<compile_context>
chip_gen: v5e
topology: v5e:2x2
jax: 0.10.0
libtpu: 0.0.40
codegen_flags: <defaults>
</compile_context>

<pallas_src>
import functools
import math

import jax
import jax.numpy as jnp
import numpy as np
from jax.experimental import pallas as pl
from jax.experimental.pallas import tpu as pltpu


# ----------------------------- fused kernel --------------------------------
def _fused_kernel(xim_ref, w1_ref, b1_ref, w2_ref, b2_ref, o_ref, v4_scr,
                  *, kh2, oh1, rowpad, lane_pad):
    """One group of images per grid step (rows are (image, padded-height) pairs).

    xim_ref: (M, K1)          height-im2col rows of the inputs, f32
    w1_ref : (K1, OW1*C1)     banded conv_t1 weights, f32
    b1_ref : (1, OW1*C1)      conv_t1 bias tiled over width, f32
    w2_ref : (OW1*C1, kh2*lane_pad)  banded conv_t2 weights, kh taps folded
                               into lane-padded N slabs, bf16
    b2_ref : (1, lane_pad)    conv_t2 bias tiled over width (lane-padded), f32
    o_ref  : (M, lane_pad)    output rows, lane-dense, f32
    v4_scr : (M, OW1*C1)      leaky(conv_t1) intermediate, bf16, VMEM resident
    """
    m = o_ref.shape[0]

    # ---- conv_t1 as one banded GEMM + bias + fused leaky "where" -----------
    z = jnp.dot(xim_ref[...], w1_ref[...], preferred_element_type=jnp.float32)
    z = z + b1_ref[...]
    v4 = jnp.where(z > 0, z, z * 0.25)

    # Zero the per-image height-padding rows (>= oh1) so the conv_t2
    # overlap-add below can use full-width shifted adds without masking.
    row_in_img = jax.lax.broadcasted_iota(jnp.int32, (m, 1), 0) % rowpad
    v4 = jnp.where(row_in_img < oh1, v4, 0.0)
    v4_scr[...] = v4.astype(v4_scr.dtype)

    # ---- conv_t2: single GEMM, kh height taps folded into lane-padded N ----
    part = jnp.dot(v4_scr[...], w2_ref[...],
                   preferred_element_type=jnp.float32)        # (M, kh2*lane_pad)

    # Overlap-add over height taps: output row r gets slab-kh row (r - kh).
    # Rows pulled across image boundaries / from padding are zero (masked
    # above), so full-width shifted adds are exact.
    o_ref[...] = jnp.broadcast_to(b2_ref[...], (m, lane_pad)) + part[:, :lane_pad]
    for kh in range(1, kh2):
        o_ref[kh:, :] = (o_ref[kh:, :] +
                         part[:m - kh, kh * lane_pad:(kh + 1) * lane_pad])


def _fused_pallas_call(xim, w1b, b1row, w2f, b2row, *, imgs_per_step, rowpad, oh1):
    rows_total, k1 = xim.shape
    n_imgs = rows_total // rowpad
    assert n_imgs % imgs_per_step == 0
    grid = n_imgs // imgs_per_step
    m = imgs_per_step * rowpad
    k2, nf = w2f.shape
    lane_pad = b2row.shape[1]
    kh2 = nf // lane_pad

    kernel = functools.partial(_fused_kernel, kh2=kh2, oh1=oh1,
                               rowpad=rowpad, lane_pad=lane_pad)
    return pl.pallas_call(
        kernel,
        out_shape=jax.ShapeDtypeStruct((rows_total, lane_pad), jnp.float32),
        grid_spec=pltpu.PrefetchScalarGridSpec(
            num_scalar_prefetch=0,
            grid=(grid,),
            in_specs=[
                pl.BlockSpec((m, k1), lambda g: (g, 0)),          # im2col rows
                pl.BlockSpec(w1b.shape, lambda g: (0, 0)),        # resident weights
                pl.BlockSpec(b1row.shape, lambda g: (0, 0)),
                pl.BlockSpec(w2f.shape, lambda g: (0, 0)),        # resident weights
                pl.BlockSpec(b2row.shape, lambda g: (0, 0)),
            ],
            out_specs=pl.BlockSpec((m, lane_pad), lambda g: (g, 0)),
            scratch_shapes=[
                pltpu.VMEM((m, k2), jnp.bfloat16),                # v4 stays in VMEM
            ],
        ),
        compiler_params=pltpu.CompilerParams(
            dimension_semantics=("parallel",)),
    )(xim, w1b, b1row, w2f, b2row)


# ------------------------- weight preprocessing -----------------------------
def _banded_weight(wt, in_w):
    """wt: (Cin, Cout, KH, KW) PyTorch ConvTranspose2d weight.

    Returns band of shape (KH, in_w*Cin, out_w*Cout), out_w = in_w + KW - 1,
    band[kh, iw*Cin+ci, ow*Cout+co] = wt[ci, co, kh, ow-iw] if 0<=ow-iw<KW else 0
    so that a stride-1/pad-0 transposed conv along width is a single GEMM.
    """
    cin, cout, kh, kw = wt.shape
    out_w = in_w + kw - 1
    iw = jnp.arange(in_w)[:, None, None]
    k = jnp.arange(kw)[None, :, None]
    ow = jnp.arange(out_w)[None, None, :]
    ind = (ow == iw + k).astype(jnp.float32)                  # (in_w, KW, out_w)
    wp = jnp.transpose(wt, (2, 3, 0, 1)).astype(jnp.float32)  # (KH, KW, Cin, Cout)
    band = jnp.einsum('ikw,hkcd->hicwd', ind, wp)             # (KH,in_w,Cin,out_w,Cout)
    return band.reshape(kh, in_w * cin, out_w * cout)


def prepare_params(wt1, b1, wt2, b2, in_w, lane_pad=128):
    """Hoisted once per set of weights (constant-folds out of the hot path)."""
    cin1, cout1, kh1, kw1 = wt1.shape
    band1 = _banded_weight(wt1, in_w)                         # (4, 24, 3840)
    w1b = band1.reshape(kh1 * in_w * cin1, band1.shape[2])    # (96, 3840) f32
    ow1 = in_w + kw1 - 1                                      # 15
    b1row = jnp.tile(b1.astype(jnp.float32), ow1).reshape(1, -1)    # (1, 3840)

    cin2, cout2, kh2, kw2 = wt2.shape
    band2 = _banded_weight(wt2, ow1)                          # (3, 3840, 66)
    ow2 = ow1 + kw2 - 1                                       # 22
    n_valid = ow2 * cout2                                     # 66
    assert n_valid <= lane_pad
    # Fold the kh taps into the GEMM N dim, each slab lane-padded to 128.
    w2pad = jnp.zeros((kh2, band2.shape[1], lane_pad), jnp.float32)
    w2pad = w2pad.at[:, :, :n_valid].set(band2)
    w2f = jnp.transpose(w2pad, (1, 0, 2)).reshape(band2.shape[1], kh2 * lane_pad)
    w2f = w2f.astype(jnp.bfloat16)                            # (3840, 384)
    b2row = jnp.zeros((1, lane_pad), jnp.float32)
    b2row = b2row.at[0, :n_valid].set(jnp.tile(b2.astype(jnp.float32), ow2))
    dims = dict(kh1=kh1, kh2=kh2, ow2=ow2, cout=cout2)
    return w1b, b1row, w2f, b2row, dims


# ------------------------------ forward pass --------------------------------
@functools.partial(jax.jit,
                   static_argnames=("kh1", "kh2", "ow2", "cout", "imgs_per_step"))
def model_forward(x_nchw, w1b, b1row, w2f, b2row, *, kh1, kh2, ow2, cout,
                  imgs_per_step):
    N, C, H, W = x_nchw.shape
    WC = W * C
    oh1 = H + kh1 - 1                                         # 11
    oh2 = oh1 + kh2 - 1                                       # 13
    rowpad = 16                                               # per-image rows, 8-aligned
    assert oh2 <= rowpad and N % imgs_per_step == 0

    # Layout plumbing (tiny): NCHW -> row-major (N, H, W*C), then height-im2col
    # with per-image padding to 16 rows: xim[n, oh, kh*WC+j] = x[n, oh-kh, j].
    x2d = jnp.transpose(x_nchw, (0, 2, 3, 1)).reshape(N, H, WC)
    xim = jnp.zeros((N, rowpad, kh1 * WC), jnp.float32)
    for kh in range(kh1):
        xim = xim.at[:, kh:kh + H, kh * WC:(kh + 1) * WC].set(x2d)
    xim_flat = xim.reshape(N * rowpad, kh1 * WC)              # (128, 96)

    out = _fused_pallas_call(xim_flat, w1b, b1row, w2f, b2row,
                             imgs_per_step=imgs_per_step, rowpad=rowpad, oh1=oh1)

    y = out.reshape(N, rowpad, -1)[:, :oh2, :ow2 * cout]      # (N, 13, 66)
    y = y.reshape(N, oh2, ow2, cout)                          # (N, 13, 22, 3)
    return jnp.transpose(y, (0, 3, 1, 2))                     # -> NCHW


# ---------------- pure-JAX reference (for correctness check) ----------------
def _ref_convt(x_nchw, wt, b):
    KH, KW = wt.shape[2], wt.shape[3]
    y = jax.lax.conv_general_dilated(
        x_nchw, wt[:, :, ::-1, ::-1],
        window_strides=(1, 1),
        padding=[(KH - 1, KH - 1), (KW - 1, KW - 1)],
        dimension_numbers=("NCHW", "IOHW", "NCHW"))
    return y + b[None, :, None, None]


def ref_forward(x, wt1, b1, wt2, b2):
    v1 = _ref_convt(x, wt1, b1)
    v4 = jnp.where(v1 > 0, v1, v1 * 0.25)
    return _ref_convt(v4, wt2, b2)


if __name__ == "__main__":
    n_channels = 3
    key = jax.random.PRNGKey(0)
    kx, kw1, kb1, kw2, kb2 = jax.random.split(key, 5)

    # Input matches the module: torch.randn(8, n_channels, 8, 8), NCHW.
    x = jax.random.normal(kx, (8, n_channels, 8, 8), jnp.float32)

    # ConvTranspose2d(3, 256, (4, 8)): weight (3, 256, 4, 8), bias (256,)
    bound1 = 1.0 / math.sqrt(256 * 4 * 8)
    wt1 = jax.random.uniform(kw1, (n_channels, 256, 4, 8), jnp.float32, -bound1, bound1)
    b1 = jax.random.uniform(kb1, (256,), jnp.float32, -bound1, bound1)

    # ConvTranspose2d(256, 3, (3, 8)): weight (256, 3, 3, 8), bias (3,)
    bound2 = 1.0 / math.sqrt(3 * 3 * 8)
    wt2 = jax.random.uniform(kw2, (256, n_channels, 3, 8), jnp.float32, -bound2, bound2)
    b2 = jax.random.uniform(kb2, (n_channels,), jnp.float32, -bound2, bound2)

    # One-time weight preprocessing (banded GEMM weights; tiled, lane-padded biases).
    w1b, b1row, w2f, b2row, dims = prepare_params(wt1, b1, wt2, b2, in_w=x.shape[3])

    imgs_per_step = 4 if x.shape[0] % 4 == 0 else 1           # grid=(2,) -> both v7x TCs
    out = jax.block_until_ready(model_forward(
        x, w1b, b1row, w2f, b2row,
        kh1=dims["kh1"], kh2=dims["kh2"], ow2=dims["ow2"], cout=dims["cout"],
        imgs_per_step=imgs_per_step))
    assert out.shape == (8, n_channels, 13, 22), out.shape

    ref = jax.block_until_ready(ref_forward(x, wt1, b1, wt2, b2))
    if not np.allclose(np.asarray(out), np.asarray(ref), rtol=5e-2, atol=5e-2):
        raise AssertionError(
            "mismatch vs reference, max abs err = %g"
            % float(jnp.max(jnp.abs(out - ref))))

    print("KERNEL_OK")
</pallas_src>

<mosaic_0001>
module attributes {stable_mosaic.version = 11 : i64} {
  func.func @_fused_kernel(%arg0: i32, %arg1: memref<64x96xf32, #tpu.memory_space<vmem>>, %arg2: memref<96x3840xf32, #tpu.memory_space<vmem>>, %arg3: memref<1x3840xf32, #tpu.memory_space<vmem>>, %arg4: memref<3840x384xbf16, #tpu.memory_space<vmem>>, %arg5: memref<1x128xf32, #tpu.memory_space<vmem>>, %arg6: memref<64x128xf32, #tpu.memory_space<vmem>>, %arg7: memref<64x3840xbf16, #tpu.memory_space<vmem>>) attributes {dimension_semantics = [#tpu.dimension_semantics<parallel>], iteration_bounds = array<i64: 2>, scalar_prefetch = 0 : i64, scratch_operands = 1 : i64, tpu.core_type = #tpu.core_type<tc>, window_params = [{transform_indices = @transform_0, window_bounds = array<i64: 64, 96>}, {pipeline_mode = #tpu.pipeline_mode<synchronous>, transform_indices = @transform_1, window_bounds = array<i64: 96, 3840>}, {pipeline_mode = #tpu.pipeline_mode<synchronous>, transform_indices = @transform_2, window_bounds = array<i64: 1, 3840>}, {pipeline_mode = #tpu.pipeline_mode<synchronous>, transform_indices = @transform_3, window_bounds = array<i64: 3840, 384>}, {pipeline_mode = #tpu.pipeline_mode<synchronous>, transform_indices = @transform_4, window_bounds = array<i64: 1, 128>}, {transform_indices = @transform_5, window_bounds = array<i64: 64, 128>}]} {
    %c0 = arith.constant 0 : index
    %c0_0 = arith.constant 0 : index
    %0 = vector.load %arg1[%c0, %c0_0] : memref<64x96xf32, #tpu.memory_space<vmem>>, vector<64x96xf32>
    %c0_1 = arith.constant 0 : index
    %c0_2 = arith.constant 0 : index
    %1 = vector.load %arg2[%c0_1, %c0_2] : memref<96x3840xf32, #tpu.memory_space<vmem>>, vector<96x3840xf32>
    %cst = arith.constant dense<0.000000e+00> : vector<64x3840xf32>
    %2 = tpu.matmul %0, %1, %cst {dimension_numbers = #tpu.dot_dimension_numbers<[1], [0], [0], [1], [0, 0, 1, 1], [], []>} : vector<64x96xf32>, vector<96x3840xf32>, vector<64x3840xf32> -> vector<64x3840xf32>
    %c0_3 = arith.constant 0 : index
    %c0_4 = arith.constant 0 : index
    %3 = vector.load %arg3[%c0_3, %c0_4] : memref<1x3840xf32, #tpu.memory_space<vmem>>, vector<1x3840xf32>
    %4 = vector.broadcast %3 : vector<1x3840xf32> to vector<64x3840xf32>
    %5 = arith.addf %2, %4 : vector<64x3840xf32>
    %cst_5 = arith.constant 0.000000e+00 : f32
    %6 = vector.broadcast %cst_5 : f32 to vector<64x3840xf32>
    %7 = arith.cmpf ogt, %5, %6 : vector<64x3840xf32>
    %cst_6 = arith.constant 2.500000e-01 : f32
    %8 = vector.broadcast %cst_6 : f32 to vector<64x3840xf32>
    %9 = arith.mulf %5, %8 : vector<64x3840xf32>
    %10 = arith.select %7, %5, %9 : vector<64x3840xi1>, vector<64x3840xf32>
    %11 = tpu.iota {dimensions = array<i32: 0>} : vector<64x1xi32>
    %c16_i32 = arith.constant 16 : i32
    %c0_i32 = arith.constant 0 : i32
    %12 = arith.cmpi eq, %c16_i32, %c0_i32 : i32
    %c1_i32 = arith.constant 1 : i32
    %13 = arith.select %12, %c1_i32, %c16_i32 : i32
    %14 = vector.broadcast %13 : i32 to vector<64x1xi32>
    %15 = arith.remsi %11, %14 : vector<64x1xi32>
    %c0_i32_7 = arith.constant 0 : i32
    %16 = vector.broadcast %c0_i32_7 : i32 to vector<64x1xi32>
    %17 = arith.cmpi ne, %15, %16 : vector<64x1xi32>
    %c0_i32_8 = arith.constant 0 : i32
    %18 = vector.broadcast %c0_i32_8 : i32 to vector<64x1xi32>
    %19 = arith.cmpi slt, %15, %18 : vector<64x1xi32>
    %c0_i32_9 = arith.constant 0 : i32
    %20 = arith.cmpi slt, %13, %c0_i32_9 : i32
    %21 = vector.broadcast %20 : i1 to vector<64x1xi1>
    %22 = vector.broadcast %21 : vector<64x1xi1> to vector<64x1xi1>
    %23 = arith.xori %19, %22 : vector<64x1xi1>
    %24 = arith.andi %23, %17 : vector<64x1xi1>
    %25 = vector.broadcast %13 : i32 to vector<64x1xi32>
    %26 = arith.addi %15, %25 : vector<64x1xi32>
    %27 = arith.select %24, %26, %15 : vector<64x1xi1>, vector<64x1xi32>
    %c11_i32 = arith.constant 11 : i32
    %28 = vector.broadcast %c11_i32 : i32 to vector<64x1xi32>
    %29 = arith.cmpi slt, %27, %28 : vector<64x1xi32>
    %cst_10 = arith.constant 0.000000e+00 : f32
    %30 = vector.shape_cast %29 : vector<64x1xi1> to vector<64x1xi1>
    %31 = vector.broadcast %30 : vector<64x1xi1> to vector<64x3840xi1>
    %32 = vector.broadcast %cst_10 : f32 to vector<64x3840xf32>
    %33 = arith.select %31, %10, %32 : vector<64x3840xi1>, vector<64x3840xf32>
    %34 = arith.truncf %33 : vector<64x3840xf32> to vector<64x3840xbf16>
    %c0_11 = arith.constant 0 : index
    %c0_12 = arith.constant 0 : index
    %35 = vector.load %arg7[%c0_11, %c0_12] : memref<64x3840xbf16, #tpu.memory_space<vmem>>, vector<64x3840xbf16>
    tpu.vector_store %arg7[%c0_11, %c0_12], %34 {strides = array<i32>} : memref<64x3840xbf16, #tpu.memory_space<vmem>>, vector<64x3840xbf16>,
    %c0_13 = arith.constant 0 : index
    %c0_14 = arith.constant 0 : index
    %36 = vector.load %arg7[%c0_13, %c0_14] : memref<64x3840xbf16, #tpu.memory_space<vmem>>, vector<64x3840xbf16>
    %c0_15 = arith.constant 0 : index
    %c0_16 = arith.constant 0 : index
    %37 = vector.load %arg4[%c0_15, %c0_16] : memref<3840x384xbf16, #tpu.memory_space<vmem>>, vector<3840x384xbf16>
    %cst_17 = arith.constant dense<0.000000e+00> : vector<64x384xf32>
    %38 = tpu.matmul %36, %37, %cst_17 {dimension_numbers = #tpu.dot_dimension_numbers<[1], [0], [0], [1], [0, 0, 1, 1], [], []>} : vector<64x3840xbf16>, vector<3840x384xbf16>, vector<64x384xf32> -> vector<64x384xf32>
    %c0_18 = arith.constant 0 : index
    %c0_19 = arith.constant 0 : index
    %39 = vector.load %arg5[%c0_18, %c0_19] : memref<1x128xf32, #tpu.memory_space<vmem>>, vector<1x128xf32>
    %40 = vector.shape_cast %39 : vector<1x128xf32> to vector<1x128xf32>
    %41 = vector.broadcast %40 : vector<1x128xf32> to vector<64x128xf32>
    %42 = vector.extract_strided_slice %38 {offsets = [0, 0], sizes = [64, 128], strides = [1, 1]} : vector<64x384xf32> to vector<64x128xf32>
    %43 = arith.addf %41, %42 : vector<64x128xf32>
    %c0_20 = arith.constant 0 : index
    %c0_21 = arith.constant 0 : index
    %44 = vector.load %arg6[%c0_20, %c0_21] : memref<64x128xf32, #tpu.memory_space<vmem>>, vector<64x128xf32>
    tpu.vector_store %arg6[%c0_20, %c0_21], %43 {strides = array<i32>} : memref<64x128xf32, #tpu.memory_space<vmem>>, vector<64x128xf32>,
    %c1 = arith.constant 1 : index
    %c0_22 = arith.constant 0 : index
    %45 = vector.load %arg6[%c1, %c0_22] : memref<64x128xf32, #tpu.memory_space<vmem>>, vector<63x128xf32>
    %46 = vector.extract_strided_slice %38 {offsets = [0, 128], sizes = [63, 128], strides = [1, 1]} : vector<64x384xf32> to vector<63x128xf32>
    %47 = arith.addf %45, %46 : vector<63x128xf32>
    %c1_23 = arith.constant 1 : index
    %c0_24 = arith.constant 0 : index
    %48 = vector.load %arg6[%c1_23, %c0_24] : memref<64x128xf32, #tpu.memory_space<vmem>>, vector<63x128xf32>
    tpu.vector_store %arg6[%c1_23, %c0_24], %47 {strides = array<i32>} : memref<64x128xf32, #tpu.memory_space<vmem>>, vector<63x128xf32>,
    %c2 = arith.constant 2 : index
    %c0_25 = arith.constant 0 : index
    %49 = vector.load %arg6[%c2, %c0_25] : memref<64x128xf32, #tpu.memory_space<vmem>>, vector<62x128xf32>
    %50 = vector.extract_strided_slice %38 {offsets = [0, 256], sizes = [62, 128], strides = [1, 1]} : vector<64x384xf32> to vector<62x128xf32>
    %51 = arith.addf %49, %50 : vector<62x128xf32>
    %c2_26 = arith.constant 2 : index
    %c0_27 = arith.constant 0 : index
    %52 = vector.load %arg6[%c2_26, %c0_27] : memref<64x128xf32, #tpu.memory_space<vmem>>, vector<62x128xf32>
    tpu.vector_store %arg6[%c2_26, %c0_27], %51 {strides = array<i32>} : memref<64x128xf32, #tpu.memory_space<vmem>>, vector<62x128xf32>,
    return
  }
  func.func @transform_0(%arg0: i32) -> (i32, i32) {
    %c0_i32 = arith.constant 0 : i32
    %c0_i32_0 = arith.constant 0 : i32
    return %arg0, %c0_i32 : i32, i32
  }
  func.func @transform_1(%arg0: i32) -> (i32, i32) {
    %c0_i32 = arith.constant 0 : i32
    %c0_i32_0 = arith.constant 0 : i32
    %c0_i32_1 = arith.constant 0 : i32
    return %c0_i32, %c0_i32_0 : i32, i32
  }
  func.func @transform_2(%arg0: i32) -> (i32, i32) {
    %c0_i32 = arith.constant 0 : i32
    %c0_i32_0 = arith.constant 0 : i32
    %c0_i32_1 = arith.constant 0 : i32
    return %c0_i32, %c0_i32_0 : i32, i32
  }
  func.func @transform_3(%arg0: i32) -> (i32, i32) {
    %c0_i32 = arith.constant 0 : i32
    %c0_i32_0 = arith.constant 0 : i32
    %c0_i32_1 = arith.constant 0 : i32
    return %c0_i32, %c0_i32_0 : i32, i32
  }
  func.func @transform_4(%arg0: i32) -> (i32, i32) {
    %c0_i32 = arith.constant 0 : i32
    %c0_i32_0 = arith.constant 0 : i32
    %c0_i32_1 = arith.constant 0 : i32
    return %c0_i32, %c0_i32_0 : i32, i32
  }
  func.func @transform_5(%arg0: i32) -> (i32, i32) {
    %c0_i32 = arith.constant 0 : i32
    %c0_i32_0 = arith.constant 0 : i32
    return %arg0, %c0_i32 : i32, i32
  }
}

</mosaic_0001>

<llo_original>
// kernel: model_forward.1
$region0: #{model_forward.1}
  #allocation0 [shape = 'u32[]', space=smem, size = 0x4, offset = 0x4, fixed_abs, tag = 'smem constant byte address 0x4 - core index']
  #allocation1 [shape = 'u32[72,128]{1,0:T(1,128)}', space=vmem, size = 0x9000, scoped, tag = 'internal scratch']
  #allocation2 [shape = 'bf16[64,3840]{1,0:T(8,128)(2,1)}', space=vmem, size = 0x78000, scoped, tag = 'scratch operand']
  %s0 = inlined_call_operand.vmem [shape: f32[128,96], index: 0, kind: input, shape index: {}]
  %s1 = inlined_call_operand.hbm [shape: f32[96,3840], index: 1, kind: input, shape index: {}]
  %s2 = inlined_call_operand.hbm [shape: f32[1,3840], index: 2, kind: input, shape index: {}]
  %s3 = inlined_call_operand.hbm [shape: bf16[3840,384], index: 3, kind: input, shape index: {}]
  %s4 = inlined_call_operand.hbm [shape: f32[1,128], index: 4, kind: input, shape index: {}]
  %s5 = inlined_call_operand.vmem [shape: f32[128,128], index: 5, kind: output, shape index: {}]
  %s6 = sld [smem:[#allocation0]]
  $region69: #{model_forward.1} parent=0
    _
  %s8 = ssub.s32 1, %s6
  %s9 = scalar_select 0, %s8, %s6
  $region1: #{model_forward.1} parent=0
    #allocation3 [shape = 'u8[1474560]{0}', space=vmem, size = 0x168000, scoped, tag = 'input window, operand 1, single buffered']
    #allocation4 [shape = 's32[2]{0}', space=sflag, size = 0x8, scoped, tag = 'scoped memory for model_forward.1']
    #allocation5 [shape = 'u8[15360]{0}', space=vmem, size = 0x3c00, scoped, tag = 'input window, operand 2, single buffered']
    #allocation6 [shape = 's32[1]{0}', space=sflag, size = 0x4, scoped, tag = 'scoped memory for model_forward.1']
    #allocation7 [shape = 'u8[2949120]{0}', space=vmem, size = 0x2d0000, scoped, tag = 'input window, operand 3, single buffered']
    #allocation8 [shape = 'u8[512]{0}', space=vmem, size = 0x400, scoped, tag = 'input window, operand 4, single buffered']
    #allocation9 [shape = 's32[1]{0}', space=sflag, size = 0x4, scoped, tag = 'scoped memory for model_forward.1']
    %10 = vsyncpa [#allocation4], 0
    %11 = vsyncpa [#allocation6], 0
    %12 = vsyncpa [#allocation9], 0
    loop: start=0, step=1, limit=4
    $region2: #{model_forward.1} parent=1 // loop_pre_header
      _
    $region3: #{model_forward.1} parent=1 // loop_header
      %s14 = sphi 0, %s18
      %p15 = scmp.ge.s32.totalorder %s14, 4
      %s24 = sphi 0, %s26
      %s27 = sphi 0, %s24
      %s28 = sphi 0, %s27
      %s44 = sphi 0, %s28
      %s48 = sphi 0, %s48
      %s50 = sphi 0, %s48
      %s51 = sphi 0, %s50
      %s65 = sphi 0, %s51
      %s69 = sphi 0, %s69
      %s71 = sphi 0, %s69
      %s72 = sphi 0, %s71
      %s86 = sphi 0, %s72
      %s90 = sphi 0, %s90
      %s92 = sphi 0, %s90
      %s93 = sphi 0, %s92
      %s107 = sphi 0, %s93
      %s111 = sphi 0, %s111
      %s113 = sphi 0, %s111
      %s114 = sphi 0, %s113
      %s128 = sphi 0, %s114
      %s134 = sphi 0, %s136
      %s137 = sphi 0, %s134
      %s138 = sphi 0, %s137
      %s154 = sphi 0, %s138
    $region4: #{model_forward.1} parent=1 // loop_header_branch
      %17 = sbr.rel (%p15) target = $region8
    $region5: #{model_forward.1} parent=1 // loop_body
      %s19 = ssub.s32 %s14, 1
      %s20 = ssub.s32 %s14, 2
      %s21 = sadd.s32 %s14, 1
      %s22 = ssub.s32 %s14, %s21
      %p23 = scmp.eq.s32.totalorder %s22, 0
      %s25 = sadd.s32 %s24, 1
      %s26 = scalar_select %p23, %s24, %s25
      %p29 = pneg %p23
      %p30 = scmp.eq.s32.totalorder %s14, 1
      %p31 = por %p29, %p30
      %p32 = scmp.ne.s32.totalorder %s24, %s27
      %p33 = scmp.eq.s32.totalorder %s14, 0
      %p34 = por %p32, %p33
      %p35 = scmp.ne.s32.totalorder %s24, %s27
      %p36 = scmp.eq.s32.totalorder %s19, 1
      %p37 = por %p35, %p36
      %p38 = scmp.ne.s32.totalorder %s27, %s28
      %p39 = scmp.eq.s32.totalorder %s19, 0
      %p40 = por %p38, %p39
      %p41 = scmp.ne.s32.totalorder %s27, %s28
      %p42 = scmp.eq.s32.totalorder %s20, 1
      %p43 = por %p41, %p42
      %p45 = scmp.ne.s32.totalorder %s28, %s44
      %p46 = scmp.eq.s32.totalorder %s20, 0
      %p47 = por %p45, %p46
      %s49 = sadd.s32 %s48, 1
      %p52 = scmp.eq.s32.totalorder %s14, 1
      %p53 = scmp.ne.s32.totalorder %s48, %s50
      %p54 = scmp.eq.s32.totalorder %s14, 0
      %p55 = por %p53, %p54
      %p56 = scmp.ne.s32.totalorder %s48, %s50
      %p57 = scmp.eq.s32.totalorder %s19, 1
      %p58 = por %p56, %p57
      %p59 = scmp.ne.s32.totalorder %s50, %s51
      %p60 = scmp.eq.s32.totalorder %s19, 0
      %p61 = por %p59, %p60
      %p62 = scmp.ne.s32.totalorder %s50, %s51
      %p63 = scmp.eq.s32.totalorder %s20, 1
      %p64 = por %p62, %p63
      %p66 = scmp.ne.s32.totalorder %s51, %s65
      %p67 = scmp.eq.s32.totalorder %s20, 0
      %p68 = por %p66, %p67
      %s70 = sadd.s32 %s69, 1
      %p73 = scmp.eq.s32.totalorder %s14, 1
      %p74 = scmp.ne.s32.totalorder %s69, %s71
      %p75 = scmp.eq.s32.totalorder %s14, 0
      %p76 = por %p74, %p75
      %p77 = scmp.ne.s32.totalorder %s69, %s71
      %p78 = scmp.eq.s32.totalorder %s19, 1
      %p79 = por %p77, %p78
      %p80 = scmp.ne.s32.totalorder %s71, %s72
      %p81 = scmp.eq.s32.totalorder %s19, 0
      %p82 = por %p80, %p81
      %p83 = scmp.ne.s32.totalorder %s71, %s72
      %p84 = scmp.eq.s32.totalorder %s20, 1
      %p85 = por %p83, %p84
      %p87 = scmp.ne.s32.totalorder %s72, %s86
      %p88 = scmp.eq.s32.totalorder %s20, 0
      %p89 = por %p87, %p88
      %s91 = sadd.s32 %s90, 1
      %p94 = scmp.eq.s32.totalorder %s14, 1
      %p95 = scmp.ne.s32.totalorder %s90, %s92
      %p96 = scmp.eq.s32.totalorder %s14, 0
      %p97 = por %p95, %p96
      %p98 = scmp.ne.s32.totalorder %s90, %s92
      %p99 = scmp.eq.s32.totalorder %s19, 1
      %p100 = por %p98, %p99
      %p101 = scmp.ne.s32.totalorder %s92, %s93
      %p102 = scmp.eq.s32.totalorder %s19, 0
      %p103 = por %p101, %p102
      %p104 = scmp.ne.s32.totalorder %s92, %s93
      %p105 = scmp.eq.s32.totalorder %s20, 1
      %p106 = por %p104, %p105
      %p108 = scmp.ne.s32.totalorder %s93, %s107
      %p109 = scmp.eq.s32.totalorder %s20, 0
      %p110 = por %p108, %p109
      %s112 = sadd.s32 %s111, 1
      %p115 = scmp.eq.s32.totalorder %s14, 1
      %p116 = scmp.ne.s32.totalorder %s111, %s113
      %p117 = scmp.eq.s32.totalorder %s14, 0
      %p118 = por %p116, %p117
      %p119 = scmp.ne.s32.totalorder %s111, %s113
      %p120 = scmp.eq.s32.totalorder %s19, 1
      %p121 = por %p119, %p120
      %p122 = scmp.ne.s32.totalorder %s113, %s114
      %p123 = scmp.eq.s32.totalorder %s19, 0
      %p124 = por %p122, %p123
      %p125 = scmp.ne.s32.totalorder %s113, %s114
      %p126 = scmp.eq.s32.totalorder %s20, 1
      %p127 = por %p125, %p126
      %p129 = scmp.ne.s32.totalorder %s114, %s128
      %p130 = scmp.eq.s32.totalorder %s20, 0
      %p131 = por %p129, %p130
      %s132 = ssub.s32 %s14, %s21
      %p133 = scmp.eq.s32.totalorder %s132, 0
      %s135 = sadd.s32 %s134, 1
      %s136 = scalar_select %p133, %s134, %s135
      %p139 = pneg %p133
      %p140 = scmp.eq.s32.totalorder %s14, 1
      %p141 = por %p139, %p140
      %p142 = scmp.ne.s32.totalorder %s134, %s137
      %p143 = scmp.eq.s32.totalorder %s14, 0
      %p144 = por %p142, %p143
      %p145 = scmp.ne.s32.totalorder %s134, %s137
      %p146 = scmp.eq.s32.totalorder %s19, 1
      %p147 = por %p145, %p146
      %p148 = scmp.ne.s32.totalorder %s137, %s138
      %p149 = scmp.eq.s32.totalorder %s19, 0
      %p150 = por %p148, %p149
      %p151 = scmp.ne.s32.totalorder %s137, %s138
      %p152 = scmp.eq.s32.totalorder %s20, 1
      %p153 = por %p151, %p152
      %p155 = scmp.ne.s32.totalorder %s138, %s154
      %p156 = scmp.eq.s32.totalorder %s20, 0
      %p157 = por %p155, %p156
      %p158 = scmp.le.s32.totalorder 1, %s14
      %p159 = scmp.lt.s32.totalorder %s14, 3
      %p160 = pnand %p158, %p159
      %p161 = pneg %p160
      // Predicated region
      $region9: #{model_forward.1} parent=5 // pred_check
        _
      $region10: #{model_forward.1} parent=5 // pred_check_branch
        %163 = sbr.rel (%p160) target = $region12
      $region11: #{model_forward.1} parent=5 // pred_region
        %s164 = ssub.s32 %s14, 1
        // Predicated region
        $region13: #{model_forward.1} parent=11 // pred_check
          %p165 = pneg %p61
        $region14: #{model_forward.1} parent=11 // pred_check_branch
          %167 = sbr.rel (%p165) target = $region16
        $region15: #{model_forward.1} parent=11 // pred_region
          %169 = vsyncadd [#allocation4], 0
          %s170 = sshll.u32 %s1, 4
          %s171 = int_to_ptr.hbm [resolvable:$true] %s170
          %s172 = sshll.u32 [#allocation3], 4
          %s173 = int_to_ptr.vmem [resolvable:$true] %s172
          %178 = dma.hbm_to_vmem [thread:$0]  %s171, 46080, %s173, [#allocation4], 3840, 3840, 240
        $region16: #{model_forward.1} parent=11 // pred_fallthru
          _
        // Predicated region
        $region17: #{model_forward.1} parent=11 // pred_check
          %p179 = pneg %p82
        $region18: #{model_forward.1} parent=11 // pred_check_branch
          %181 = sbr.rel (%p179) target = $region20
        $region19: #{model_forward.1} parent=11 // pred_region
          %183 = vsyncadd [#allocation6], 0
          %s185 = sshll.u32 %s2, 4
          %s186 = int_to_ptr.hbm [resolvable:$true] %s185
          %s187 = sshll.u32 [#allocation5], 4
          %s188 = int_to_ptr.vmem [resolvable:$true] %s187
          %190 = dma.hbm_to_vmem [thread:$0]  %s186, 480, %s188, [#allocation6]
        $region20: #{model_forward.1} parent=11 // pred_fallthru
          _
        // Predicated region
        $region21: #{model_forward.1} parent=11 // pred_check
          %p191 = pneg %p103
        $region22: #{model_forward.1} parent=11 // pred_check_branch
          %193 = sbr.rel (%p191) target = $region24
        $region23: #{model_forward.1} parent=11 // pred_region
          %195 = vsyncadd [#allocation6], 0
          %s196 = sshll.u32 %s3, 4
          %s197 = int_to_ptr.hbm [resolvable:$true] %s196
          %s198 = sshll.u32 [#allocation7], 4
          %s199 = int_to_ptr.vmem [resolvable:$true] %s198
          %204 = dma.hbm_to_vmem [thread:$0]  %s197, 92160, %s199, [#allocation6], 192, 192, 12
        $region24: #{model_forward.1} parent=11 // pred_fallthru
          _
        // Predicated region
        $region25: #{model_forward.1} parent=11 // pred_check
          %p205 = pneg %p124
        $region26: #{model_forward.1} parent=11 // pred_check_branch
          %207 = sbr.rel (%p205) target = $region28
        $region27: #{model_forward.1} parent=11 // pred_region
          %209 = vsyncadd [#allocation9], 0
          %s211 = sshll.u32 %s4, 4
          %s212 = int_to_ptr.hbm [resolvable:$true] %s211
          %s213 = sshll.u32 [#allocation8], 4
          %s214 = int_to_ptr.vmem [resolvable:$true] %s213
          %216 = dma.hbm_to_vmem [thread:$0]  %s212, 16, %s214, [#allocation9]
        $region28: #{model_forward.1} parent=11 // pred_fallthru
          _
      $region12: #{model_forward.1} parent=5 // pred_fallthru
        _
      %p217 = scmp.lt.s32.totalorder %s14, 2
      // Predicated region
      $region29: #{model_forward.1} parent=5 // pred_check
        %p218 = pneg %p217
      $region30: #{model_forward.1} parent=5 // pred_check_branch
        %220 = sbr.rel (%p218) target = $region32
      $region31: #{model_forward.1} parent=5 // pred_region
        // Predicated region
        $region33: #{model_forward.1} parent=31 // pred_check
          %p221 = pneg %p34
        $region34: #{model_forward.1} parent=31 // pred_check_branch
          %223 = sbr.rel (%p221) target = $region36
        $region35: #{model_forward.1} parent=31 // pred_region
          %s224 = smul.u32 8, %s14
          %p225 = scmp.lt.s32.totalorder %s224, 15
          %s226 = scalar_select %p225, %s224, 15
          %s227 = smul.addr %s226, 8
          %s228 = scalar_lea.vmem %s0, %s227
          %s229 = smul.u32 8, %s14
        $region36: #{model_forward.1} parent=31 // pred_fallthru
          _
      $region32: #{model_forward.1} parent=5 // pred_fallthru
        _
      %p230 = scmp.le.s32.totalorder 1, %s14
      %p231 = scmp.lt.s32.totalorder %s14, 3
      %p232 = pnand %p230, %p231
      %p233 = pneg %p232
      // Predicated region
      $region37: #{model_forward.1} parent=5 // pred_check
        _
      $region38: #{model_forward.1} parent=5 // pred_check_branch
        %235 = sbr.rel (%p232) target = $region40
      $region39: #{model_forward.1} parent=5 // pred_region
        %s236 = ssub.s32 %s14, 1
        // Predicated region
        $region41: #{model_forward.1} parent=39 // pred_check
          %p237 = pneg %p61
        $region42: #{model_forward.1} parent=39 // pred_check_branch
          %239 = sbr.rel (%p237) target = $region44
        $region43: #{model_forward.1} parent=39 // pred_region
          %241 = dma.done [#allocation4], 46080
        $region44: #{model_forward.1} parent=39 // pred_fallthru
          _
        // Predicated region
        $region45: #{model_forward.1} parent=39 // pred_check
          %p242 = pneg %p82
        $region46: #{model_forward.1} parent=39 // pred_check_branch
          %244 = sbr.rel (%p242) target = $region48
        $region47: #{model_forward.1} parent=39 // pred_region
          %246 = dma.done [#allocation6], 480
        $region48: #{model_forward.1} parent=39 // pred_fallthru
          _
        // Predicated region
        $region49: #{model_forward.1} parent=39 // pred_check
          %p247 = pneg %p103
        $region50: #{model_forward.1} parent=39 // pred_check_branch
          %249 = sbr.rel (%p247) target = $region52
        $region51: #{model_forward.1} parent=39 // pred_region
          %251 = dma.done [#allocation6], 92160
        $region52: #{model_forward.1} parent=39 // pred_fallthru
          _
        // Predicated region
        $region53: #{model_forward.1} parent=39 // pred_check
          %p252 = pneg %p124
        $region54: #{model_forward.1} parent=39 // pred_check_branch
          %254 = sbr.rel (%p252) target = $region56
        $region55: #{model_forward.1} parent=39 // pred_region
          %256 = dma.done [#allocation9], 16
        $region56: #{model_forward.1} parent=39 // pred_fallthru
          _
        %s257 = smul.u32 8, %s19
        %p258 = scmp.lt.s32.totalorder %s257, 15
        %s259 = scalar_select %p258, %s257, 15
        %s260 = smul.addr %s259, 8
        %s261 = scalar_lea.vmem %s0, %s260
        %p262 = pneg %p40
        %p263 = pneg %p37
        %p264 = pneg %p61
        %p265 = pneg %p58
        %p266 = pneg %p82
        %p267 = pneg %p79
        %p268 = pneg %p103
        %p269 = pneg %p100
        %p270 = pneg %p124
        %p271 = pneg %p121
        %p272 = pneg %p150
        %p273 = pneg %p147
        %s274 = smul.u32 8, %s19
        %p275 = scmp.lt.s32.totalorder %s274, 15
        %s276 = scalar_select %p275, %s274, 15
        %s277 = smul.addr %s276, 8
        %s278 = scalar_lea.vmem %s5, %s277
        %s279 = smul.u32 8, %s19
        %p280 = scmp.lt.s32.totalorder %s279, 15
        %s281 = scalar_select %p280, %s279, 15
        %s282 = smul.addr %s281, 8
        %s283 = scalar_lea.vmem %s0, %s282
        %s284 = smul.u32 8, %s19
        %s285 = smul.u32 8, %s19
        %p286 = scmp.lt.s32.totalorder %s285, 15
        %s287 = scalar_select %p286, %s285, 15
        %s288 = smul.addr %s287, 8
        %s289 = scalar_lea.vmem %s5, %s288
        %s290 = smul.u32 8, %s19
        %v291 = vld [vmem:[%s283] sm:$0xff]
        %v292 = vld [vmem:[%s283 + $0x8] sm:$0xff]
        %v293 = vld [vmem:[%s283 + $0x10] sm:$0xff]
        %v294 = vld [vmem:[%s283 + $0x18] sm:$0xff]
        %v295 = vld [vmem:[%s283 + $0x20] sm:$0xff]
        %v296 = vld [vmem:[%s283 + $0x28] sm:$0xff]
        %v297 = vld [vmem:[%s283 + $0x30] sm:$0xff]
        %v298 = vld [vmem:[%s283 + $0x38] sm:$0xff]
        %v299 = vld [vmem:[#allocation3] sm:$0xff]
        %v300 = vld [vmem:[#allocation3 + $0x8] sm:$0xff]
        %v301 = vld [vmem:[#allocation3 + $0x10] sm:$0xff]
        %v302 = vld [vmem:[#allocation3 + $0x18] sm:$0xff]
        %v303 = vld [vmem:[#allocation3 + $0x20] sm:$0xff]
        %v304 = vld [vmem:[#allocation3 + $0x28] sm:$0xff]
        %v305 = vld [vmem:[#allocation3 + $0x30] sm:$0xff]
        %v306 = vld [vmem:[#allocation3 + $0x38] sm:$0xff]
        %v307 = vld [vmem:[#allocation3 + $0x40] sm:$0xff]
        %v308 = vld [vmem:[#allocation3 + $0x48] sm:$0xff]
        %v309 = vld [vmem:[#allocation3 + $0x50] sm:$0xff]
        %v310 = vld [vmem:[#allocation3 + $0x58] sm:$0xff]
        %v311 = vld [vmem:[#allocation3 + $0x60] sm:$0xff]
        %v312 = vld [vmem:[#allocation3 + $0x68] sm:$0xff]
        %v313 = vld [vmem:[#allocation3 + $0x70] sm:$0xff]
        %v314 = vld [vmem:[#allocation3 + $0x78] sm:$0xff]
        %v315 = vld [vmem:[#allocation3 + $0x80] sm:$0xff]
        %v316 = vld [vmem:[#allocation3 + $0x88] sm:$0xff]
        %v317 = vld [vmem:[#allocation3 + $0x90] sm:$0xff]
        %v318 = vld [vmem:[#allocation3 + $0x98] sm:$0xff]
        %v319 = vld [vmem:[#allocation3 + $0xa0] sm:$0xff]
        %v320 = vld [vmem:[#allocation3 + $0xa8] sm:$0xff]
        %v321 = vld [vmem:[#allocation3 + $0xb0] sm:$0xff]
        %v322 = vld [vmem:[#allocation3 + $0xb8] sm:$0xff]
        %v323 = vld [vmem:[#allocation3 + $0xc0] sm:$0xff]
        %v324 = vld [vmem:[#allocation3 + $0xc8] sm:$0xff]
        %v325 = vld [vmem:[#allocation3 + $0xd0] sm:$0xff]
        %v326 = vld [vmem:[#allocation3 + $0xd8] sm:$0xff]
        %v327 = vld [vmem:[#allocation3 + $0xe0] sm:$0xff]
        %v328 = vld [vmem:[#allocation3 + $0xe8] sm:$0xff]
        %v329 = vld [vmem:[#allocation3 + $0xf0] sm:$0xff]
        %v330 = vld [vmem:[#allocation3 + $0xf8] sm:$0xff]
        %v331 = vld [vmem:[#allocation3 + $0x100] sm:$0xff]
        %v332 = vld [vmem:[#allocation3 + $0x108] sm:$0xff]
        %v333 = vld [vmem:[#allocation3 + $0x110] sm:$0xff]
        %v334 = vld [vmem:[#allocation3 + $0x118] sm:$0xff]
        %v335 = vld [vmem:[#allocation3 + $0x120] sm:$0xff]
        %v336 = vld [vmem:[#allocation3 + $0x128] sm:$0xff]
        %v337 = vld [vmem:[#allocation3 + $0x130] sm:$0xff]
        %v338 = vld [vmem:[#allocation3 + $0x138] sm:$0xff]
        %v339 = vld [vmem:[#allocation3 + $0x140] sm:$0xff]
        %v340 = vld [vmem:[#allocation3 + $0x148] sm:$0xff]
        %v341 = vld [vmem:[#allocation3 + $0x150] sm:$0xff]
        %v342 = vld [vmem:[#allocation3 + $0x158] sm:$0xff]
        %v343 = vld [vmem:[#allocation3 + $0x160] sm:$0xff]
        %v344 = vld [vmem:[#allocation3 + $0x168] sm:$0xff]
        %v345 = vld [vmem:[#allocation3 + $0x170] sm:$0xff]
        %v346 = vld [vmem:[#allocation3 + $0x178] sm:$0xff]
        %v347 = vld [vmem:[#allocation3 + $0x180] sm:$0xff]
        %v348 = vld [vmem:[#allocation3 + $0x188] sm:$0xff]
        %v349 = vld [vmem:[#allocation3 + $0x190] sm:$0xff]
        %v350 = vld [vmem:[#allocation3 + $0x198] sm:$0xff]
        %v351 = vld [vmem:[#allocation3 + $0x1a0] sm:$0xff]
        %v352 = vld [vmem:[#allocation3 + $0x1a8] sm:$0xff]
        %v353 = vld [vmem:[#allocation3 + $0x1b0] sm:$0xff]
        %v354 = vld [vmem:[#allocation3 + $0x1b8] sm:$0xff]
        %v355 = vld [vmem:[#allocation3 + $0x1c0] sm:$0xff]
        %v356 = vld [vmem:[#allocation3 + $0x1c8] sm:$0xff]
        %v357 = vld [vmem:[#allocation3 + $0x1d0] sm:$0xff]
        %v358 = vld [vmem:[#allocation3 + $0x1d8] sm:$0xff]
        %v359 = vld [vmem:[#allocation3 + $0x1e0] sm:$0xff]
        %v360 = vld [vmem:[#allocation3 + $0x1e8] sm:$0xff]
        %v361 = vld [vmem:[#allocation3 + $0x1f0] sm:$0xff]
        %v362 = vld [vmem:[#allocation3 + $0x1f8] sm:$0xff]
        %v363 = vld [vmem:[#allocation3 + $0x200] sm:$0xff]
        %v364 = vld [vmem:[#allocation3 + $0x208] sm:$0xff]
        %v365 = vld [vmem:[#allocation3 + $0x210] sm:$0xff]
        %v366 = vld [vmem:[#allocation3 + $0x218] sm:$0xff]
        %v367 = vld [vmem:[#allocation3 + $0x220] sm:$0xff]
        %v368 = vld [vmem:[#allocation3 + $0x228] sm:$0xff]
        %v369 = vld [vmem:[#allocation3 + $0x230] sm:$0xff]
        %v370 = vld [vmem:[#allocation3 + $0x238] sm:$0xff]
        %v371 = vld [vmem:[#allocation3 + $0x240] sm:$0xff]
        %v372 = vld [vmem:[#allocation3 + $0x248] sm:$0xff]
        %v373 = vld [vmem:[#allocation3 + $0x250] sm:$0xff]
        %v374 = vld [vmem:[#allocation3 + $0x258] sm:$0xff]
        %v375 = vld [vmem:[#allocation3 + $0x260] sm:$0xff]
        %v376 = vld [vmem:[#allocation3 + $0x268] sm:$0xff]
        %v377 = vld [vmem:[#allocation3 + $0x270] sm:$0xff]
        %v378 = vld [vmem:[#allocation3 + $0x278] sm:$0xff]
        %v379 = vld [vmem:[#allocation3 + $0x280] sm:$0xff]
        %v380 = vld [vmem:[#allocation3 + $0x288] sm:$0xff]
        %v381 = vld [vmem:[#allocation3 + $0x290] sm:$0xff]
        %v382 = vld [vmem:[#allocation3 + $0x298] sm:$0xff]
        %v383 = vld [vmem:[#allocation3 + $0x2a0] sm:$0xff]
        %v384 = vld [vmem:[#allocation3 + $0x2a8] sm:$0xff]
        %v385 = vld [vmem:[#allocation3 + $0x2b0] sm:$0xff]
        %v386 = vld [vmem:[#allocation3 + $0x2b8] sm:$0xff]
        %v387 = vld [vmem:[#allocation3 + $0x2c0] sm:$0xff]
        %v388 = vld [vmem:[#allocation3 + $0x2c8] sm:$0xff]
        %v389 = vld [vmem:[#allocation3 + $0x2d0] sm:$0xff]
        %v390 = vld [vmem:[#allocation3 + $0x2d8] sm:$0xff]
        %v391 = vld [vmem:[#allocation3 + $0x2e0] sm:$0xff]
        %v392 = vld [vmem:[#allocation3 + $0x2e8] sm:$0xff]
        %v393 = vld [vmem:[#allocation3 + $0x2f0] sm:$0xff]
        %v394 = vld [vmem:[#allocation3 + $0x2f8] sm:$0xff]
        %v395 = vld [vmem:[#allocation3 + $0x300] sm:$0xff]
        %v396 = vld [vmem:[#allocation3 + $0x308] sm:$0xff]
        %v397 = vld [vmem:[#allocation3 + $0x310] sm:$0xff]
        %v398 = vld [vmem:[#allocation3 + $0x318] sm:$0xff]
        %v399 = vld [vmem:[#allocation3 + $0x320] sm:$0xff]
        %v400 = vld [vmem:[#allocation3 + $0x328] sm:$0xff]
        %v401 = vld [vmem:[#allocation3 + $0x330] sm:$0xff]
        %v402 = vld [vmem:[#allocation3 + $0x338] sm:$0xff]
        %v403 = vld [vmem:[#allocation3 + $0x340] sm:$0xff]
        %v404 = vld [vmem:[#allocation3 + $0x348] sm:$0xff]
        %v405 = vld [vmem:[#allocation3 + $0x350] sm:$0xff]
        %v406 = vld [vmem:[#allocation3 + $0x358] sm:$0xff]
        %v407 = vld [vmem:[#allocation3 + $0x360] sm:$0xff]
        %v408 = vld [vmem:[#allocation3 + $0x368] sm:$0xff]
        %v409 = vld [vmem:[#allocation3 + $0x370] sm:$0xff]
        %v410 = vld [vmem:[#allocation3 + $0x378] sm:$0xff]
        %v411 = vld [vmem:[#allocation3 + $0x380] sm:$0xff]
        %v412 = vld [vmem:[#allocation3 + $0x388] sm:$0xff]
        %v413 = vld [vmem:[#allocation3 + $0x390] sm:$0xff]
        %v414 = vld [vmem:[#allocation3 + $0x398] sm:$0xff]
        %v415 = vld [vmem:[#allocation3 + $0x3a0] sm:$0xff]
        %v416 = vld [vmem:[#allocation3 + $0x3a8] sm:$0xff]
        %v417 = vld [vmem:[#allocation3 + $0x3b0] sm:$0xff]
        %v418 = vld [vmem:[#allocation3 + $0x3b8] sm:$0xff]
        %v419 = vld [vmem:[#allocation3 + $0x3c0] sm:$0xff]
        %v420 = vld [vmem:[#allocation3 + $0x3c8] sm:$0xff]
        %v421 = vld [vmem:[#allocation3 + $0x3d0] sm:$0xff]
        %v422 = vld [vmem:[#allocation3 + $0x3d8] sm:$0xff]
        %v423 = vld [vmem:[#allocation3 + $0x3e0] sm:$0xff]
        %v424 = vld [vmem:[#allocation3 + $0x3e8] sm:$0xff]
        %v425 = vld [vmem:[#allocation3 + $0x3f0] sm:$0xff]
        %v426 = vld [vmem:[#allocation3 + $0x3f8] sm:$0xff]
        %v427 = vld [vmem:[#allocation3 + $0x400] sm:$0xff]
        %v428 = vld [vmem:[#allocation3 + $0x408] sm:$0xff]
        %v429 = vld [vmem:[#allocation3 + $0x410] sm:$0xff]
        %v430 = vld [vmem:[#allocation3 + $0x418] sm:$0xff]
        %v431 = vld [vmem:[#allocation3 + $0x420] sm:$0xff]
        %v432 = vld [vmem:[#allocation3 + $0x428] sm:$0xff]
        %v433 = vld [vmem:[#allocation3 + $0x430] sm:$0xff]
        %v434 = vld [vmem:[#allocation3 + $0x438] sm:$0xff]
        %v435 = vld [vmem:[#allocation3 + $0x440] sm:$0xff]
        %v436 = vld [vmem:[#allocation3 + $0x448] sm:$0xff]
        %v437 = vld [vmem:[#allocation3 + $0x450] sm:$0xff]
        %v438 = vld [vmem:[#allocation3 + $0x458] sm:$0xff]
        %v439 = vld [vmem:[#allocation3 + $0x460] sm:$0xff]
        %v440 = vld [vmem:[#allocation3 + $0x468] sm:$0xff]
        %v441 = vld [vmem:[#allocation3 + $0x470] sm:$0xff]
        %v442 = vld [vmem:[#allocation3 + $0x478] sm:$0xff]
        %v443 = vld [vmem:[#allocation3 + $0x480] sm:$0xff]
        %v444 = vld [vmem:[#allocation3 + $0x488] sm:$0xff]
        %v445 = vld [vmem:[#allocation3 + $0x490] sm:$0xff]
        %v446 = vld [vmem:[#allocation3 + $0x498] sm:$0xff]
        %v447 = vld [vmem:[#allocation3 + $0x4a0] sm:$0xff]
        %v448 = vld [vmem:[#allocation3 + $0x4a8] sm:$0xff]
        %v449 = vld [vmem:[#allocation3 + $0x4b0] sm:$0xff]
        %v450 = vld [vmem:[#allocation3 + $0x4b8] sm:$0xff]
        %v451 = vld [vmem:[#allocation3 + $0x4c0] sm:$0xff]
        %v452 = vld [vmem:[#allocation3 + $0x4c8] sm:$0xff]
        %v453 = vld [vmem:[#allocation3 + $0x4d0] sm:$0xff]
        %v454 = vld [vmem:[#allocation3 + $0x4d8] sm:$0xff]
        %v455 = vld [vmem:[#allocation3 + $0x4e0] sm:$0xff]
        %v456 = vld [vmem:[#allocation3 + $0x4e8] sm:$0xff]
        %v457 = vld [vmem:[#allocation3 + $0x4f0] sm:$0xff]
        %v458 = vld [vmem:[#allocation3 + $0x4f8] sm:$0xff]
        %v459 = vld [vmem:[#allocation3 + $0x500] sm:$0xff]
        %v460 = vld [vmem:[#allocation3 + $0x508] sm:$0xff]
        %v461 = vld [vmem:[#allocation3 + $0x510] sm:$0xff]
        %v462 = vld [vmem:[#allocation3 + $0x518] sm:$0xff]
        %v463 = vld [vmem:[#allocation3 + $0x520] sm:$0xff]
        %v464 = vld [vmem:[#allocation3 + $0x528] sm:$0xff]
        %v465 = vld [vmem:[#allocation3 + $0x530] sm:$0xff]
        %v466 = vld [vmem:[#allocation3 + $0x538] sm:$0xff]
        %v467 = vld [vmem:[#allocation3 + $0x540] sm:$0xff]
        %v468 = vld [vmem:[#allocation3 + $0x548] sm:$0xff]
        %v469 = vld [vmem:[#allocation3 + $0x550] sm:$0xff]
        %v470 = vld [vmem:[#allocation3 + $0x558] sm:$0xff]
        %v471 = vld [vmem:[#allocation3 + $0x560] sm:$0xff]
        %v472 = vld [vmem:[#allocation3 + $0x568] sm:$0xff]
        %v473 = vld [vmem:[#allocation3 + $0x570] sm:$0xff]
        %v474 = vld [vmem:[#allocation3 + $0x578] sm:$0xff]
        %v475 = vld [vmem:[#allocation3 + $0x580] sm:$0xff]
        %v476 = vld [vmem:[#allocation3 + $0x588] sm:$0xff]
        %v477 = vld [vmem:[#allocation3 + $0x590] sm:$0xff]
        %v478 = vld [vmem:[#allocation3 + $0x598] sm:$0xff]
        %v479 = vld [vmem:[#allocation3 + $0x5a0] sm:$0xff]
        %v480 = vld [vmem:[#allocation3 + $0x5a8] sm:$0xff]
        %v481 = vld [vmem:[#allocation3 + $0x5b0] sm:$0xff]
        %v482 = vld [vmem:[#allocation3 + $0x5b8] sm:$0xff]
        %v483 = vld [vmem:[#allocation3 + $0x5c0] sm:$0xff]
        %v484 = vld [vmem:[#allocation3 + $0x5c8] sm:$0xff]
        %v485 = vld [vmem:[#allocation3 + $0x5d0] sm:$0xff]
        %v486 = vld [vmem:[#allocation3 + $0x5d8] sm:$0xff]
        %v487 = vld [vmem:[#allocation3 + $0x5e0] sm:$0xff]
        %v488 = vld [vmem:[#allocation3 + $0x5e8] sm:$0xff]
        %v489 = vld [vmem:[#allocation3 + $0x5f0] sm:$0xff]
        %v490 = vld [vmem:[#allocation3 + $0x5f8] sm:$0xff]
        %v491 = vld [vmem:[#allocation3 + $0x600] sm:$0xff]
        %v492 = vld [vmem:[#allocation3 + $0x608] sm:$0xff]
        %v493 = vld [vmem:[#allocation3 + $0x610] sm:$0xff]
        %v494 = vld [vmem:[#allocation3 + $0x618] sm:$0xff]
        %v495 = vld [vmem:[#allocation3 + $0x620] sm:$0xff]
        %v496 = vld [vmem:[#allocation3 + $0x628] sm:$0xff]
        %v497 = vld [vmem:[#allocation3 + $0x630] sm:$0xff]
        %v498 = vld [vmem:[#allocation3 + $0x638] sm:$0xff]
        %v499 = vld [vmem:[#allocation3 + $0x640] sm:$0xff]
        %v500 = vld [vmem:[#allocation3 + $0x648] sm:$0xff]
        %v501 = vld [vmem:[#allocation3 + $0x650] sm:$0xff]
        %v502 = vld [vmem:[#allocation3 + $0x658] sm:$0xff]
        %v503 = vld [vmem:[#allocation3 + $0x660] sm:$0xff]
        %v504 = vld [vmem:[#allocation3 + $0x668] sm:$0xff]
        %v505 = vld [vmem:[#allocation3 + $0x670] sm:$0xff]
        %v506 = vld [vmem:[#allocation3 + $0x678] sm:$0xff]
        %v507 = vld [vmem:[#allocation3 + $0x680] sm:$0xff]
        %v508 = vld [vmem:[#allocation3 + $0x688] sm:$0xff]
        %v509 = vld [vmem:[#allocation3 + $0x690] sm:$0xff]
        %v510 = vld [vmem:[#allocation3 + $0x698] sm:$0xff]
        %v511 = vld [vmem:[#allocation3 + $0x6a0] sm:$0xff]
        %v512 = vld [vmem:[#allocation3 + $0x6a8] sm:$0xff]
        %v513 = vld [vmem:[#allocation3 + $0x6b0] sm:$0xff]
        %v514 = vld [vmem:[#allocation3 + $0x6b8] sm:$0xff]
        %v515 = vld [vmem:[#allocation3 + $0x6c0] sm:$0xff]
        %v516 = vld [vmem:[#allocation3 + $0x6c8] sm:$0xff]
        %v517 = vld [vmem:[#allocation3 + $0x6d0] sm:$0xff]
        %v518 = vld [vmem:[#allocation3 + $0x6d8] sm:$0xff]
        %v519 = vld [vmem:[#allocation3 + $0x6e0] sm:$0xff]
        %v520 = vld [vmem:[#allocation3 + $0x6e8] sm:$0xff]
        %v521 = vld [vmem:[#allocation3 + $0x6f0] sm:$0xff]
        %v522 = vld [vmem:[#allocation3 + $0x6f8] sm:$0xff]
        %v523 = vld [vmem:[#allocation3 + $0x700] sm:$0xff]
        %v524 = vld [vmem:[#allocation3 + $0x708] sm:$0xff]
        %v525 = vld [vmem:[#allocation3 + $0x710] sm:$0xff]
        %v526 = vld [vmem:[#allocation3 + $0x718] sm:$0xff]
        %v527 = vld [vmem:[#allocation3 + $0x720] sm:$0xff]
        %v528 = vld [vmem:[#allocation3 + $0x728] sm:$0xff]
        %v529 = vld [vmem:[#allocation3 + $0x730] sm:$0xff]
        %v530 = vld [vmem:[#allocation3 + $0x738] sm:$0xff]
        %v531 = vld [vmem:[#allocation3 + $0x740] sm:$0xff]
        %v532 = vld [vmem:[#allocation3 + $0x748] sm:$0xff]
        %v533 = vld [vmem:[#allocation3 + $0x750] sm:$0xff]
        %v534 = vld [vmem:[#allocation3 + $0x758] sm:$0xff]
        %v535 = vld [vmem:[#allocation3 + $0x760] sm:$0xff]
        %v536 = vld [vmem:[#allocation3 + $0x768] sm:$0xff]
        %v537 = vld [vmem:[#allocation3 + $0x770] sm:$0xff]
        %v538 = vld [vmem:[#allocation3 + $0x778] sm:$0xff]
        %v539 = vld [vmem:[#allocation3 + $0x780] sm:$0xff]
        %v540 = vld [vmem:[#allocation3 + $0x788] sm:$0xff]
        %v541 = vld [vmem:[#allocation3 + $0x790] sm:$0xff]
        %v542 = vld [vmem:[#allocation3 + $0x798] sm:$0xff]
        %v543 = vld [vmem:[#allocation3 + $0x7a0] sm:$0xff]
        %v544 = vld [vmem:[#allocation3 + $0x7a8] sm:$0xff]
        %v545 = vld [vmem:[#allocation3 + $0x7b0] sm:$0xff]
        %v546 = vld [vmem:[#allocation3 + $0x7b8] sm:$0xff]
        %v547 = vld [vmem:[#allocation3 + $0x7c0] sm:$0xff]
        %v548 = vld [vmem:[#allocation3 + $0x7c8] sm:$0xff]
        %v549 = vld [vmem:[#allocation3 + $0x7d0] sm:$0xff]
        %v550 = vld [vmem:[#allocation3 + $0x7d8] sm:$0xff]
        %v551 = vld [vmem:[#allocation3 + $0x7e0] sm:$0xff]
        %v552 = vld [vmem:[#allocation3 + $0x7e8] sm:$0xff]
        %v553 = vld [vmem:[#allocation3 + $0x7f0] sm:$0xff]
        %v554 = vld [vmem:[#allocation3 + $0x7f8] sm:$0xff]
        %v555 = vld [vmem:[#allocation3 + $0x800] sm:$0xff]
        %v556 = vld [vmem:[#allocation3 + $0x808] sm:$0xff]
        %v557 = vld [vmem:[#allocation3 + $0x810] sm:$0xff]
        %v558 = vld [vmem:[#allocation3 + $0x818] sm:$0xff]
        %v559 = vld [vmem:[#allocation3 + $0x820] sm:$0xff]
        %v560 = vld [vmem:[#allocation3 + $0x828] sm:$0xff]
        %v561 = vld [vmem:[#allocation3 + $0x830] sm:$0xff]
        %v562 = vld [vmem:[#allocation3 + $0x838] sm:$0xff]
        %v563 = vld [vmem:[#allocation3 + $0x840] sm:$0xff]
        %v564 = vld [vmem:[#allocation3 + $0x848] sm:$0xff]
        %v565 = vld [vmem:[#allocation3 + $0x850] sm:$0xff]
        %v566 = vld [vmem:[#allocation3 + $0x858] sm:$0xff]
        %v567 = vld [vmem:[#allocation3 + $0x860] sm:$0xff]
        %v568 = vld [vmem:[#allocation3 + $0x868] sm:$0xff]
        %v569 = vld [vmem:[#allocation3 + $0x870] sm:$0xff]
        %v570 = vld [vmem:[#allocation3 + $0x878] sm:$0xff]
        %v571 = vld [vmem:[#allocation3 + $0x880] sm:$0xff]
        %v572 = vld [vmem:[#allocation3 + $0x888] sm:$0xff]
        %v573 = vld [vmem:[#allocation3 + $0x890] sm:$0xff]
        %v574 = vld [vmem:[#allocation3 + $0x898] sm:$0xff]
        %v575 = vld [vmem:[#allocation3 + $0x8a0] sm:$0xff]
        %v576 = vld [vmem:[#allocation3 + $0x8a8] sm:$0xff]
        %v577 = vld [vmem:[#allocation3 + $0x8b0] sm:$0xff]
        %v578 = vld [vmem:[#allocation3 + $0x8b8] sm:$0xff]
        %v579 = vld [vmem:[#allocation3 + $0x8c0] sm:$0xff]
        %v580 = vld [vmem:[#allocation3 + $0x8c8] sm:$0xff]
        %v581 = vld [vmem:[#allocation3 + $0x8d0] sm:$0xff]
        %v582 = vld [vmem:[#allocation3 + $0x8d8] sm:$0xff]
        %v583 = vld [vmem:[#allocation3 + $0x8e0] sm:$0xff]
        %v584 = vld [vmem:[#allocation3 + $0x8e8] sm:$0xff]
        %v585 = vld [vmem:[#allocation3 + $0x8f0] sm:$0xff]
        %v586 = vld [vmem:[#allocation3 + $0x8f8] sm:$0xff]
        %v587 = vld [vmem:[#allocation3 + $0x900] sm:$0xff]
        %v588 = vld [vmem:[#allocation3 + $0x908] sm:$0xff]
        %v589 = vld [vmem:[#allocation3 + $0x910] sm:$0xff]
        %v590 = vld [vmem:[#allocation3 + $0x918] sm:$0xff]
        %v591 = vld [vmem:[#allocation3 + $0x920] sm:$0xff]
        %v592 = vld [vmem:[#allocation3 + $0x928] sm:$0xff]
        %v593 = vld [vmem:[#allocation3 + $0x930] sm:$0xff]
        %v594 = vld [vmem:[#allocation3 + $0x938] sm:$0xff]
        %v595 = vld [vmem:[#allocation3 + $0x940] sm:$0xff]
        %v596 = vld [vmem:[#allocation3 + $0x948] sm:$0xff]
        %v597 = vld [vmem:[#allocation3 + $0x950] sm:$0xff]
        %v598 = vld [vmem:[#allocation3 + $0x958] sm:$0xff]
        %v599 = vld [vmem:[#allocation3 + $0x960] sm:$0xff]
        %v600 = vld [vmem:[#allocation3 + $0x968] sm:$0xff]
        %v601 = vld [vmem:[#allocation3 + $0x970] sm:$0xff]
        %v602 = vld [vmem:[#allocation3 + $0x978] sm:$0xff]
        %v603 = vld [vmem:[#allocation3 + $0x980] sm:$0xff]
        %v604 = vld [vmem:[#allocation3 + $0x988] sm:$0xff]
        %v605 = vld [vmem:[#allocation3 + $0x990] sm:$0xff]
        %v606 = vld [vmem:[#allocation3 + $0x998] sm:$0xff]
        %v607 = vld [vmem:[#allocation3 + $0x9a0] sm:$0xff]
        %v608 = vld [vmem:[#allocation3 + $0x9a8] sm:$0xff]
        %v609 = vld [vmem:[#allocation3 + $0x9b0] sm:$0xff]
        %v610 = vld [vmem:[#allocation3 + $0x9b8] sm:$0xff]
        %v611 = vld [vmem:[#allocation3 + $0x9c0] sm:$0xff]
        %v612 = vld [vmem:[#allocation3 + $0x9c8] sm:$0xff]
        %v613 = vld [vmem:[#allocation3 + $0x9d0] sm:$0xff]
        %v614 = vld [vmem:[#allocation3 + $0x9d8] sm:$0xff]
        %v615 = vld [vmem:[#allocation3 + $0x9e0] sm:$0xff]
        %v616 = vld [vmem:[#allocation3 + $0x9e8] sm:$0xff]
        %v617 = vld [vmem:[#allocation3 + $0x9f0] sm:$0xff]
        %v618 = vld [vmem:[#allocation3 + $0x9f8] sm:$0xff]
        %v619 = vld [vmem:[#allocation3 + $0xa00] sm:$0xff]
        %v620 = vld [vmem:[#allocation3 + $0xa08] sm:$0xff]
        %v621 = vld [vmem:[#allocation3 + $0xa10] sm:$0xff]
        %v622 = vld [vmem:[#allocation3 + $0xa18] sm:$0xff]
        %v623 = vld [vmem:[#allocation3 + $0xa20] sm:$0xff]
        %v624 = vld [vmem:[#allocation3 + $0xa28] sm:$0xff]
        %v625 = vld [vmem:[#allocation3 + $0xa30] sm:$0xff]
        %v626 = vld [vmem:[#allocation3 + $0xa38] sm:$0xff]
        %v627 = vld [vmem:[#allocation3 + $0xa40] sm:$0xff]
        %v628 = vld [vmem:[#allocation3 + $0xa48] sm:$0xff]
        %v629 = vld [vmem:[#allocation3 + $0xa50] sm:$0xff]
        %v630 = vld [vmem:[#allocation3 + $0xa58] sm:$0xff]
        %v631 = vld [vmem:[#allocation3 + $0xa60] sm:$0xff]
        %v632 = vld [vmem:[#allocation3 + $0xa68] sm:$0xff]
        %v633 = vld [vmem:[#allocation3 + $0xa70] sm:$0xff]
        %v634 = vld [vmem:[#allocation3 + $0xa78] sm:$0xff]
        %v635 = vld [vmem:[#allocation3 + $0xa80] sm:$0xff]
        %v636 = vld [vmem:[#allocation3 + $0xa88] sm:$0xff]
        %v637 = vld [vmem:[#allocation3 + $0xa90] sm:$0xff]
        %v638 = vld [vmem:[#allocation3 + $0xa98] sm:$0xff]
        %v639 = vld [vmem:[#allocation3 + $0xaa0] sm:$0xff]
        %v640 = vld [vmem:[#allocation3 + $0xaa8] sm:$0xff]
        %v641 = vld [vmem:[#allocation3 + $0xab0] sm:$0xff]
        %v642 = vld [vmem:[#allocation3 + $0xab8] sm:$0xff]
        %v643 = vld [vmem:[#allocation3 + $0xac0] sm:$0xff]
        %v644 = vld [vmem:[#allocation3 + $0xac8] sm:$0xff]
        %v645 = vld [vmem:[#allocation3 + $0xad0] sm:$0xff]
        %v646 = vld [vmem:[#allocation3 + $0xad8] sm:$0xff]
        %v647 = vld [vmem:[#allocation3 + $0xae0] sm:$0xff]
        %v648 = vld [vmem:[#allocation3 + $0xae8] sm:$0xff]
        %v649 = vld [vmem:[#allocation3 + $0xaf0] sm:$0xff]
        %v650 = vld [vmem:[#allocation3 + $0xaf8] sm:$0xff]
        %v651 = vld [vmem:[#allocation3 + $0xb00] sm:$0xff]
        %v652 = vld [vmem:[#allocation3 + $0xb08] sm:$0xff]
        %v653 = vld [vmem:[#allocation3 + $0xb10] sm:$0xff]
        %v654 = vld [vmem:[#allocation3 + $0xb18] sm:$0xff]
        %v655 = vld [vmem:[#allocation3 + $0xb20] sm:$0xff]
        %v656 = vld [vmem:[#allocation3 + $0xb28] sm:$0xff]
        %v657 = vld [vmem:[#allocation3 + $0xb30] sm:$0xff]
        %v658 = vld [vmem:[#allocation3 + $0xb38] sm:$0xff]
        %v659 = vld [vmem:[#allocation5] sm:$0xff]
        %v660 = vld [vmem:[#allocation5 + $0x8] sm:$0xff]
        %v661 = vld [vmem:[#allocation5 + $0x10] sm:$0xff]
        %v662 = vld [vmem:[#allocation5 + $0x18] sm:$0x3f]
        %v667 = vperm.slane %v659, 0
        %v668 = vperm.slane %v659, 1
        %v669 = vperm.slane %v659, 2
        %v670 = vperm.slane %v659, 3
        %v671 = vperm.slane %v659, 4
        %v672 = vperm.slane %v659, 5
        %v673 = vperm.slane %v659, 6
        %v674 = vperm.slane %v659, 7
        %v675 = vperm.slane %v660, 0
        %v676 = vperm.slane %v660, 1
        %v677 = vperm.slane %v660, 2
        %v678 = vperm.slane %v660, 3
        %v679 = vperm.slane %v660, 4
        %v680 = vperm.slane %v660, 5
        %v681 = vperm.slane %v660, 6
        %v682 = vperm.slane %v660, 7
        %v683 = vperm.slane %v661, 0
        %v684 = vperm.slane %v661, 1
        %v685 = vperm.slane %v661, 2
        %v686 = vperm.slane %v661, 3
        %v687 = vperm.slane %v661, 4
        %v688 = vperm.slane %v661, 5
        %v689 = vperm.slane %v661, 6
        %v690 = vperm.slane %v661, 7
        %v691 = vperm.slane %v662, 0
        %v692 = vperm.slane %v662, 1
        %v693 = vperm.slane %v662, 2
        %v694 = vperm.slane %v662, 3
        %v695 = vperm.slane %v662, 4
        %v696 = vperm.slane %v662, 5
        %vm727 = vcmask 785408
        %v729 = vsel %vm727, %v291, 0
        %v732 = vsel %vm727, %v292, 0
        %v735 = vsel %vm727, %v293, 0
        %v738 = vsel %vm727, %v294, 0
        %v741 = vsel %vm727, %v295, 0
        %v744 = vsel %vm727, %v296, 0
        %v747 = vsel %vm727, %v297, 0
        %v750 = vsel %vm727, %v298, 0
        %752 = vmatpush.msra.mxu0 0.0
        %753 = vmatpush.msra.mxu0 0.0
        %754 = vmatpush.msra.mxu0 0.0
        %755 = vmatpush.msra.mxu0 0.0
        %756 = vmatpush.msra.mxu0 %v629
        %757 = vmatpush.msra.mxu0 %v599
        %758 = vmatpush.msra.mxu0 %v569
        %759 = vmatpush.msra.mxu0 %v539
        %760 = vmatpush.msra.mxu0 %v509
        %761 = vmatpush.msra.mxu0 %v479
        %762 = vmatpush.msra.mxu0 %v449
        %763 = vmatpush.msra.mxu0 %v419
        %764 = vmatpush.msra.mxu0 %v389
        %765 = vmatpush.msra.mxu0 %v359
        %766 = vmatpush.msra.mxu0 %v329
        %767 = vmatpush.msra.mxu0 %v299
        %768 = vmatmul.f32.gmra.mxu0 %v729
        %v769 = vpop.f32.mrf.mxu0
        %v770 = vadd.f32 %v667, %v769
        %771 = vmatmul.f32.gmra.mxu0 %v732
        %v772 = vpop.f32.mrf.mxu0
        %v773 = vadd.f32 %v667, %v772
        %774 = vmatmul.f32.gmra.mxu0 %v735
        %v775 = vpop.f32.mrf.mxu0
        %v776 = vadd.f32 %v667, %v775
        %777 = vmatmul.f32.gmra.mxu0 %v738
        %v778 = vpop.f32.mrf.mxu0
        %v779 = vadd.f32 %v667, %v778
        %780 = vmatmul.f32.gmra.mxu0 %v741
        %v781 = vpop.f32.mrf.mxu0
        %v782 = vadd.f32 %v667, %v781
        %783 = vmatmul.f32.gmra.mxu0 %v744
        %v784 = vpop.f32.mrf.mxu0
        %v785 = vadd.f32 %v667, %v784
        %786 = vmatmul.f32.gmra.mxu0 %v747
        %v787 = vpop.f32.mrf.mxu0
        %v788 = vadd.f32 %v667, %v787
        %789 = vmatmul.f32.gmra.mxu0 %v750
        %v790 = vpop.f32.mrf.mxu0
        %v791 = vadd.f32 %v667, %v790
        %792 = vdwg.mxu0
        %793 = vmatpush.msra.mxu0 0.0
        %794 = vmatpush.msra.mxu0 0.0
        %795 = vmatpush.msra.mxu0 0.0
        %796 = vmatpush.msra.mxu0 0.0
        %797 = vmatpush.msra.mxu0 %v630
        %798 = vmatpush.msra.mxu0 %v600
        %799 = vmatpush.msra.mxu0 %v570
        %800 = vmatpush.msra.mxu0 %v540
        %801 = vmatpush.msra.mxu0 %v510
        %802 = vmatpush.msra.mxu0 %v480
        %803 = vmatpush.msra.mxu0 %v450
        %804 = vmatpush.msra.mxu0 %v420
        %805 = vmatpush.msra.mxu0 %v390
        %806 = vmatpush.msra.mxu0 %v360
        %807 = vmatpush.msra.mxu0 %v330
        %808 = vmatpush.msra.mxu0 %v300
        %809 = vmatmul.f32.gmra.mxu0 %v729
        %v810 = vpop.f32.mrf.mxu0
        %v811 = vadd.f32 %v668, %v810
        %812 = vmatmul.f32.gmra.mxu0 %v732
        %v813 = vpop.f32.mrf.mxu0
        %v814 = vadd.f32 %v668, %v813
        %815 = vmatmul.f32.gmra.mxu0 %v735
        %v816 = vpop.f32.mrf.mxu0
        %v817 = vadd.f32 %v668, %v816
        %818 = vmatmul.f32.gmra.mxu0 %v738
        %v819 = vpop.f32.mrf.mxu0
        %v820 = vadd.f32 %v668, %v819
        %821 = vmatmul.f32.gmra.mxu0 %v741
        %v822 = vpop.f32.mrf.mxu0
        %v823 = vadd.f32 %v668, %v822
        %824 = vmatmul.f32.gmra.mxu0 %v744
        %v825 = vpop.f32.mrf.mxu0
        %v826 = vadd.f32 %v668, %v825
        %827 = vmatmul.f32.gmra.mxu0 %v747
        %v828 = vpop.f32.mrf.mxu0
        %v829 = vadd.f32 %v668, %v828
        %830 = vmatmul.f32.gmra.mxu0 %v750
        %v831 = vpop.f32.mrf.mxu0
        %v832 = vadd.f32 %v668, %v831
        %833 = vdwg.mxu0
        %834 = vmatpush.msra.mxu0 0.0
        %835 = vmatpush.msra.mxu0 0.0
        %836 = vmatpush.msra.mxu0 0.0
        %837 = vmatpush.msra.mxu0 0.0
        %838 = vmatpush.msra.mxu0 %v631
        %839 = vmatpush.msra.mxu0 %v601
        %840 = vmatpush.msra.mxu0 %v571
        %841 = vmatpush.msra.mxu0 %v541
        %842 = vmatpush.msra.mxu0 %v511
        %843 = vmatpush.msra.mxu0 %v481
        %844 = vmatpush.msra.mxu0 %v451
        %845 = vmatpush.msra.mxu0 %v421
        %846 = vmatpush.msra.mxu0 %v391
        %847 = vmatpush.msra.mxu0 %v361
        %848 = vmatpush.msra.mxu0 %v331
        %849 = vmatpush.msra.mxu0 %v301
        %850 = vmatmul.f32.gmra.mxu0 %v729
        %v851 = vpop.f32.mrf.mxu0
        %v852 = vadd.f32 %v669, %v851
        %853 = vmatmul.f32.gmra.mxu0 %v732
        %v854 = vpop.f32.mrf.mxu0
        %v855 = vadd.f32 %v669, %v854
        %856 = vmatmul.f32.gmra.mxu0 %v735
        %v857 = vpop.f32.mrf.mxu0
        %v858 = vadd.f32 %v669, %v857
        %859 = vmatmul.f32.gmra.mxu0 %v738
        %v860 = vpop.f32.mrf.mxu0
        %v861 = vadd.f32 %v669, %v860
        %862 = vmatmul.f32.gmra.mxu0 %v741
        %v863 = vpop.f32.mrf.mxu0
        %v864 = vadd.f32 %v669, %v863
        %865 = vmatmul.f32.gmra.mxu0 %v744
        %v866 = vpop.f32.mrf.mxu0
        %v867 = vadd.f32 %v669, %v866
        %868 = vmatmul.f32.gmra.mxu0 %v747
        %v869 = vpop.f32.mrf.mxu0
        %v870 = vadd.f32 %v669, %v869
        %871 = vmatmul.f32.gmra.mxu0 %v750
        %v872 = vpop.f32.mrf.mxu0
        %v873 = vadd.f32 %v669, %v872
        %874 = vdwg.mxu0
        %875 = vmatpush.msra.mxu0 0.0
        %876 = vmatpush.msra.mxu0 0.0
        %877 = vmatpush.msra.mxu0 0.0
        %878 = vmatpush.msra.mxu0 0.0
        %879 = vmatpush.msra.mxu0 %v632
        %880 = vmatpush.msra.mxu0 %v602
        %881 = vmatpush.msra.mxu0 %v572
        %882 = vmatpush.msra.mxu0 %v542
        %883 = vmatpush.msra.mxu0 %v512
        %884 = vmatpush.msra.mxu0 %v482
        %885 = vmatpush.msra.mxu0 %v452
        %886 = vmatpush.msra.mxu0 %v422
        %887 = vmatpush.msra.mxu0 %v392
        %888 = vmatpush.msra.mxu0 %v362
        %889 = vmatpush.msra.mxu0 %v332
        %890 = vmatpush.msra.mxu0 %v302
        %891 = vmatmul.f32.gmra.mxu0 %v729
        %v892 = vpop.f32.mrf.mxu0
        %v893 = vadd.f32 %v670, %v892
        %894 = vmatmul.f32.gmra.mxu0 %v732
        %v895 = vpop.f32.mrf.mxu0
        %v896 = vadd.f32 %v670, %v895
        %897 = vmatmul.f32.gmra.mxu0 %v735
        %v898 = vpop.f32.mrf.mxu0
        %v899 = vadd.f32 %v670, %v898
        %900 = vmatmul.f32.gmra.mxu0 %v738
        %v901 = vpop.f32.mrf.mxu0
        %v902 = vadd.f32 %v670, %v901
        %903 = vmatmul.f32.gmra.mxu0 %v741
        %v904 = vpop.f32.mrf.mxu0
        %v905 = vadd.f32 %v670, %v904
        %906 = vmatmul.f32.gmra.mxu0 %v744
        %v907 = vpop.f32.mrf.mxu0
        %v908 = vadd.f32 %v670, %v907
        %909 = vmatmul.f32.gmra.mxu0 %v747
        %v910 = vpop.f32.mrf.mxu0
        %v911 = vadd.f32 %v670, %v910
        %912 = vmatmul.f32.gmra.mxu0 %v750
        %v913 = vpop.f32.mrf.mxu0
        %v914 = vadd.f32 %v670, %v913
        %915 = vdwg.mxu0
        %916 = vmatpush.msra.mxu0 0.0
        %917 = vmatpush.msra.mxu0 0.0
        %918 = vmatpush.msra.mxu0 0.0
        %919 = vmatpush.msra.mxu0 0.0
        %920 = vmatpush.msra.mxu0 %v633
        %921 = vmatpush.msra.mxu0 %v603
        %922 = vmatpush.msra.mxu0 %v573
        %923 = vmatpush.msra.mxu0 %v543
        %924 = vmatpush.msra.mxu0 %v513
        %925 = vmatpush.msra.mxu0 %v483
        %926 = vmatpush.msra.mxu0 %v453
        %927 = vmatpush.msra.mxu0 %v423
        %928 = vmatpush.msra.mxu0 %v393
        %929 = vmatpush.msra.mxu0 %v363
        %930 = vmatpush.msra.mxu0 %v333
        %931 = vmatpush.msra.mxu0 %v303
        %932 = vmatmul.f32.gmra.mxu0 %v729
        %v933 = vpop.f32.mrf.mxu0
        %v934 = vadd.f32 %v671, %v933
        %935 = vmatmul.f32.gmra.mxu0 %v732
        %v936 = vpop.f32.mrf.mxu0
        %v937 = vadd.f32 %v671, %v936
        %938 = vmatmul.f32.gmra.mxu0 %v735
        %v939 = vpop.f32.mrf.mxu0
        %v940 = vadd.f32 %v671, %v939
        %941 = vmatmul.f32.gmra.mxu0 %v738
        %v942 = vpop.f32.mrf.mxu0
        %v943 = vadd.f32 %v671, %v942
        %944 = vmatmul.f32.gmra.mxu0 %v741
        %v945 = vpop.f32.mrf.mxu0
        %v946 = vadd.f32 %v671, %v945
        %947 = vmatmul.f32.gmra.mxu0 %v744
        %v948 = vpop.f32.mrf.mxu0
        %v949 = vadd.f32 %v671, %v948
        %950 = vmatmul.f32.gmra.mxu0 %v747
        %v951 = vpop.f32.mrf.mxu0
        %v952 = vadd.f32 %v671, %v951
        %953 = vmatmul.f32.gmra.mxu0 %v750
        %v954 = vpop.f32.mrf.mxu0
        %v955 = vadd.f32 %v671, %v954
        %956 = vdwg.mxu0
        %957 = vmatpush.msra.mxu0 0.0
        %958 = vmatpush.msra.mxu0 0.0
        %959 = vmatpush.msra.mxu0 0.0
        %960 = vmatpush.msra.mxu0 0.0
        %961 = vmatpush.msra.mxu0 %v634
        %962 = vmatpush.msra.mxu0 %v604
        %963 = vmatpush.msra.mxu0 %v574
        %964 = vmatpush.msra.mxu0 %v544
        %965 = vmatpush.msra.mxu0 %v514
        %966 = vmatpush.msra.mxu0 %v484
        %967 = vmatpush.msra.mxu0 %v454
        %968 = vmatpush.msra.mxu0 %v424
        %969 = vmatpush.msra.mxu0 %v394
        %970 = vmatpush.msra.mxu0 %v364
        %971 = vmatpush.msra.mxu0 %v334
        %972 = vmatpush.msra.mxu0 %v304
        %973 = vmatmul.f32.gmra.mxu0 %v729
        %v974 = vpop.f32.mrf.mxu0
        %v975 = vadd.f32 %v672, %v974
        %976 = vmatmul.f32.gmra.mxu0 %v732
        %v977 = vpop.f32.mrf.mxu0
        %v978 = vadd.f32 %v672, %v977
        %979 = vmatmul.f32.gmra.mxu0 %v735
        %v980 = vpop.f32.mrf.mxu0
        %v981 = vadd.f32 %v672, %v980
        %982 = vmatmul.f32.gmra.mxu0 %v738
        %v983 = vpop.f32.mrf.mxu0
        %v984 = vadd.f32 %v672, %v983
        %985 = vmatmul.f32.gmra.mxu0 %v741
        %v986 = vpop.f32.mrf.mxu0
        %v987 = vadd.f32 %v672, %v986
        %988 = vmatmul.f32.gmra.mxu0 %v744
        %v989 = vpop.f32.mrf.mxu0
        %v990 = vadd.f32 %v672, %v989
        %991 = vmatmul.f32.gmra.mxu0 %v747
        %v992 = vpop.f32.mrf.mxu0
        %v993 = vadd.f32 %v672, %v992
        %994 = vmatmul.f32.gmra.mxu0 %v750
        %v995 = vpop.f32.mrf.mxu0
        %v996 = vadd.f32 %v672, %v995
        %997 = vdwg.mxu0
        %998 = vmatpush.msra.mxu0 0.0
        %999 = vmatpush.msra.mxu0 0.0
        %1000 = vmatpush.msra.mxu0 0.0
        %1001 = vmatpush.msra.mxu0 0.0
        %1002 = vmatpush.msra.mxu0 %v635
        %1003 = vmatpush.msra.mxu0 %v605
        %1004 = vmatpush.msra.mxu0 %v575
        %1005 = vmatpush.msra.mxu0 %v545
        %1006 = vmatpush.msra.mxu0 %v515
        %1007 = vmatpush.msra.mxu0 %v485
        %1008 = vmatpush.msra.mxu0 %v455
        %1009 = vmatpush.msra.mxu0 %v425
        %1010 = vmatpush.msra.mxu0 %v395
        %1011 = vmatpush.msra.mxu0 %v365
        %1012 = vmatpush.msra.mxu0 %v335
        %1013 = vmatpush.msra.mxu0 %v305
        %1014 = vmatmul.f32.gmra.mxu0 %v729
        %v1015 = vpop.f32.mrf.mxu0
        %v1016 = vadd.f32 %v673, %v1015
        %1017 = vmatmul.f32.gmra.mxu0 %v732
        %v1018 = vpop.f32.mrf.mxu0
        %v1019 = vadd.f32 %v673, %v1018
        %1020 = vmatmul.f32.gmra.mxu0 %v735
        %v1021 = vpop.f32.mrf.mxu0
        %v1022 = vadd.f32 %v673, %v1021
        %1023 = vmatmul.f32.gmra.mxu0 %v738
        %v1024 = vpop.f32.mrf.mxu0
        %v1025 = vadd.f32 %v673, %v1024
        %1026 = vmatmul.f32.gmra.mxu0 %v741
        %v1027 = vpop.f32.mrf.mxu0
        %v1028 = vadd.f32 %v673, %v1027
        %1029 = vmatmul.f32.gmra.mxu0 %v744
        %v1030 = vpop.f32.mrf.mxu0
        %v1031 = vadd.f32 %v673, %v1030
        %1032 = vmatmul.f32.gmra.mxu0 %v747
        %v1033 = vpop.f32.mrf.mxu0
        %v1034 = vadd.f32 %v673, %v1033
        %1035 = vmatmul.f32.gmra.mxu0 %v750
        %v1036 = vpop.f32.mrf.mxu0
        %v1037 = vadd.f32 %v673, %v1036
        %1038 = vdwg.mxu0
        %1039 = vmatpush.msra.mxu0 0.0
        %1040 = vmatpush.msra.mxu0 0.0
        %1041 = vmatpush.msra.mxu0 0.0
        %1042 = vmatpush.msra.mxu0 0.0
        %1043 = vmatpush.msra.mxu0 %v636
        %1044 = vmatpush.msra.mxu0 %v606
        %1045 = vmatpush.msra.mxu0 %v576
        %1046 = vmatpush.msra.mxu0 %v546
        %1047 = vmatpush.msra.mxu0 %v516
        %1048 = vmatpush.msra.mxu0 %v486
        %1049 = vmatpush.msra.mxu0 %v456
        %1050 = vmatpush.msra.mxu0 %v426
        %1051 = vmatpush.msra.mxu0 %v396
        %1052 = vmatpush.msra.mxu0 %v366
        %1053 = vmatpush.msra.mxu0 %v336
        %1054 = vmatpush.msra.mxu0 %v306
        %1055 = vmatmul.f32.gmra.mxu0 %v729
        %v1056 = vpop.f32.mrf.mxu0
        %v1057 = vadd.f32 %v674, %v1056
        %1058 = vmatmul.f32.gmra.mxu0 %v732
        %v1059 = vpop.f32.mrf.mxu0
        %v1060 = vadd.f32 %v674, %v1059
        %1061 = vmatmul.f32.gmra.mxu0 %v735
        %v1062 = vpop.f32.mrf.mxu0
        %v1063 = vadd.f32 %v674, %v1062
        %1064 = vmatmul.f32.gmra.mxu0 %v738
        %v1065 = vpop.f32.mrf.mxu0
        %v1066 = vadd.f32 %v674, %v1065
        %1067 = vmatmul.f32.gmra.mxu0 %v741
        %v1068 = vpop.f32.mrf.mxu0
        %v1069 = vadd.f32 %v674, %v1068
        %1070 = vmatmul.f32.gmra.mxu0 %v744
        %v1071 = vpop.f32.mrf.mxu0
        %v1072 = vadd.f32 %v674, %v1071
        %1073 = vmatmul.f32.gmra.mxu0 %v747
        %v1074 = vpop.f32.mrf.mxu0
        %v1075 = vadd.f32 %v674, %v1074
        %1076 = vmatmul.f32.gmra.mxu0 %v750
        %v1077 = vpop.f32.mrf.mxu0
        %v1078 = vadd.f32 %v674, %v1077
        %1079 = vdwg.mxu0
        %1080 = vmatpush.msra.mxu0 0.0
        %1081 = vmatpush.msra.mxu0 0.0
        %1082 = vmatpush.msra.mxu0 0.0
        %1083 = vmatpush.msra.mxu0 0.0
        %1084 = vmatpush.msra.mxu0 %v637
        %1085 = vmatpush.msra.mxu0 %v607
        %1086 = vmatpush.msra.mxu0 %v577
        %1087 = vmatpush.msra.mxu0 %v547
        %1088 = vmatpush.msra.mxu0 %v517
        %1089 = vmatpush.msra.mxu0 %v487
        %1090 = vmatpush.msra.mxu0 %v457
        %1091 = vmatpush.msra.mxu0 %v427
        %1092 = vmatpush.msra.mxu0 %v397
        %1093 = vmatpush.msra.mxu0 %v367
        %1094 = vmatpush.msra.mxu0 %v337
        %1095 = vmatpush.msra.mxu0 %v307
        %1096 = vmatmul.f32.gmra.mxu0 %v729
        %v1097 = vpop.f32.mrf.mxu0
        %v1098 = vadd.f32 %v675, %v1097
        %1099 = vmatmul.f32.gmra.mxu0 %v732
        %v1100 = vpop.f32.mrf.mxu0
        %v1101 = vadd.f32 %v675, %v1100
        %1102 = vmatmul.f32.gmra.mxu0 %v735
        %v1103 = vpop.f32.mrf.mxu0
        %v1104 = vadd.f32 %v675, %v1103
        %1105 = vmatmul.f32.gmra.mxu0 %v738
        %v1106 = vpop.f32.mrf.mxu0
        %v1107 = vadd.f32 %v675, %v1106
        %1108 = vmatmul.f32.gmra.mxu0 %v741
        %v1109 = vpop.f32.mrf.mxu0
        %v1110 = vadd.f32 %v675, %v1109
        %1111 = vmatmul.f32.gmra.mxu0 %v744
        %v1112 = vpop.f32.mrf.mxu0
        %v1113 = vadd.f32 %v675, %v1112
        %1114 = vmatmul.f32.gmra.mxu0 %v747
        %v1115 = vpop.f32.mrf.mxu0
        %v1116 = vadd.f32 %v675, %v1115
        %1117 = vmatmul.f32.gmra.mxu0 %v750
        %v1118 = vpop.f32.mrf.mxu0
        %v1119 = vadd.f32 %v675, %v1118
        %1120 = vdwg.mxu0
        %1121 = vmatpush.msra.mxu0 0.0
        %1122 = vmatpush.msra.mxu0 0.0
        %1123 = vmatpush.msra.mxu0 0.0
        %1124 = vmatpush.msra.mxu0 0.0
        %1125 = vmatpush.msra.mxu0 %v638
        %1126 = vmatpush.msra.mxu0 %v608
        %1127 = vmatpush.msra.mxu0 %v578
        %1128 = vmatpush.msra.mxu0 %v548
        %1129 = vmatpush.msra.mxu0 %v518
        %1130 = vmatpush.msra.mxu0 %v488
        %1131 = vmatpush.msra.mxu0 %v458
        %1132 = vmatpush.msra.mxu0 %v428
        %1133 = vmatpush.msra.mxu0 %v398
        %1134 = vmatpush.msra.mxu0 %v368
        %1135 = vmatpush.msra.mxu0 %v338
        %1136 = vmatpush.msra.mxu0 %v308
        %1137 = vmatmul.f32.gmra.mxu0 %v729
        %v1138 = vpop.f32.mrf.mxu0
        %v1139 = vadd.f32 %v676, %v1138
        %1140 = vmatmul.f32.gmra.mxu0 %v732
        %v1141 = vpop.f32.mrf.mxu0
        %v1142 = vadd.f32 %v676, %v1141
        %1143 = vmatmul.f32.gmra.mxu0 %v735
        %v1144 = vpop.f32.mrf.mxu0
        %v1145 = vadd.f32 %v676, %v1144
        %1146 = vmatmul.f32.gmra.mxu0 %v738
        %v1147 = vpop.f32.mrf.mxu0
        %v1148 = vadd.f32 %v676, %v1147
        %1149 = vmatmul.f32.gmra.mxu0 %v741
        %v1150 = vpop.f32.mrf.mxu0
        %v1151 = vadd.f32 %v676, %v1150
        %1152 = vmatmul.f32.gmra.mxu0 %v744
        %v1153 = vpop.f32.mrf.mxu0
        %v1154 = vadd.f32 %v676, %v1153
        %1155 = vmatmul.f32.gmra.mxu0 %v747
        %v1156 = vpop.f32.mrf.mxu0
        %v1157 = vadd.f32 %v676, %v1156
        %1158 = vmatmul.f32.gmra.mxu0 %v750
        %v1159 = vpop.f32.mrf.mxu0
        %v1160 = vadd.f32 %v676, %v1159
        %1161 = vdwg.mxu0
        %1162 = vmatpush.msra.mxu0 0.0
        %1163 = vmatpush.msra.mxu0 0.0
        %1164 = vmatpush.msra.mxu0 0.0
        %1165 = vmatpush.msra.mxu0 0.0
        %1166 = vmatpush.msra.mxu0 %v639
        %1167 = vmatpush.msra.mxu0 %v609
        %1168 = vmatpush.msra.mxu0 %v579
        %1169 = vmatpush.msra.mxu0 %v549
        %1170 = vmatpush.msra.mxu0 %v519
        %1171 = vmatpush.msra.mxu0 %v489
        %1172 = vmatpush.msra.mxu0 %v459
        %1173 = vmatpush.msra.mxu0 %v429
        %1174 = vmatpush.msra.mxu0 %v399
        %1175 = vmatpush.msra.mxu0 %v369
        %1176 = vmatpush.msra.mxu0 %v339
        %1177 = vmatpush.msra.mxu0 %v309
        %1178 = vmatmul.f32.gmra.mxu0 %v729
        %v1179 = vpop.f32.mrf.mxu0
        %v1180 = vadd.f32 %v677, %v1179
        %1181 = vmatmul.f32.gmra.mxu0 %v732
        %v1182 = vpop.f32.mrf.mxu0
        %v1183 = vadd.f32 %v677, %v1182
        %1184 = vmatmul.f32.gmra.mxu0 %v735
        %v1185 = vpop.f32.mrf.mxu0
        %v1186 = vadd.f32 %v677, %v1185
        %1187 = vmatmul.f32.gmra.mxu0 %v738
        %v1188 = vpop.f32.mrf.mxu0
        %v1189 = vadd.f32 %v677, %v1188
        %1190 = vmatmul.f32.gmra.mxu0 %v741
        %v1191 = vpop.f32.mrf.mxu0
        %v1192 = vadd.f32 %v677, %v1191
        %1193 = vmatmul.f32.gmra.mxu0 %v744
        %v1194 = vpop.f32.mrf.mxu0
        %v1195 = vadd.f32 %v677, %v1194
        %1196 = vmatmul.f32.gmra.mxu0 %v747
        %v1197 = vpop.f32.mrf.mxu0
        %v1198 = vadd.f32 %v677, %v1197
        %1199 = vmatmul.f32.gmra.mxu0 %v750
        %v1200 = vpop.f32.mrf.mxu0
        %v1201 = vadd.f32 %v677, %v1200
        %1202 = vdwg.mxu0
        %1203 = vmatpush.msra.mxu0 0.0
        %1204 = vmatpush.msra.mxu0 0.0
        %1205 = vmatpush.msra.mxu0 0.0
        %1206 = vmatpush.msra.mxu0 0.0
        %1207 = vmatpush.msra.mxu0 %v640
        %1208 = vmatpush.msra.mxu0 %v610
        %1209 = vmatpush.msra.mxu0 %v580
        %1210 = vmatpush.msra.mxu0 %v550
        %1211 = vmatpush.msra.mxu0 %v520
        %1212 = vmatpush.msra.mxu0 %v490
        %1213 = vmatpush.msra.mxu0 %v460
        %1214 = vmatpush.msra.mxu0 %v430
        %1215 = vmatpush.msra.mxu0 %v400
        %1216 = vmatpush.msra.mxu0 %v370
        %1217 = vmatpush.msra.mxu0 %v340
        %1218 = vmatpush.msra.mxu0 %v310
        %1219 = vmatmul.f32.gmra.mxu0 %v729
        %v1220 = vpop.f32.mrf.mxu0
        %v1221 = vadd.f32 %v678, %v1220
        %1222 = vmatmul.f32.gmra.mxu0 %v732
        %v1223 = vpop.f32.mrf.mxu0
        %v1224 = vadd.f32 %v678, %v1223
        %1225 = vmatmul.f32.gmra.mxu0 %v735
        %v1226 = vpop.f32.mrf.mxu0
        %v1227 = vadd.f32 %v678, %v1226
        %1228 = vmatmul.f32.gmra.mxu0 %v738
        %v1229 = vpop.f32.mrf.mxu0
        %v1230 = vadd.f32 %v678, %v1229
        %1231 = vmatmul.f32.gmra.mxu0 %v741
        %v1232 = vpop.f32.mrf.mxu0
        %v1233 = vadd.f32 %v678, %v1232
        %1234 = vmatmul.f32.gmra.mxu0 %v744
        %v1235 = vpop.f32.mrf.mxu0
        %v1236 = vadd.f32 %v678, %v1235
        %1237 = vmatmul.f32.gmra.mxu0 %v747
        %v1238 = vpop.f32.mrf.mxu0
        %v1239 = vadd.f32 %v678, %v1238
        %1240 = vmatmul.f32.gmra.mxu0 %v750
        %v1241 = vpop.f32.mrf.mxu0
        %v1242 = vadd.f32 %v678, %v1241
        %1243 = vdwg.mxu0
        %1244 = vmatpush.msra.mxu0 0.0
        %1245 = vmatpush.msra.mxu0 0.0
        %1246 = vmatpush.msra.mxu0 0.0
        %1247 = vmatpush.msra.mxu0 0.0
        %1248 = vmatpush.msra.mxu0 %v641
        %1249 = vmatpush.msra.mxu0 %v611
        %1250 = vmatpush.msra.mxu0 %v581
        %1251 = vmatpush.msra.mxu0 %v551
        %1252 = vmatpush.msra.mxu0 %v521
        %1253 = vmatpush.msra.mxu0 %v491
        %1254 = vmatpush.msra.mxu0 %v461
        %1255 = vmatpush.msra.mxu0 %v431
        %1256 = vmatpush.msra.mxu0 %v401
        %1257 = vmatpush.msra.mxu0 %v371
        %1258 = vmatpush.msra.mxu0 %v341
        %1259 = vmatpush.msra.mxu0 %v311
        %1260 = vmatmul.f32.gmra.mxu0 %v729
        %v1261 = vpop.f32.mrf.mxu0
        %v1262 = vadd.f32 %v679, %v1261
        %1263 = vmatmul.f32.gmra.mxu0 %v732
        %v1264 = vpop.f32.mrf.mxu0
        %v1265 = vadd.f32 %v679, %v1264
        %1266 = vmatmul.f32.gmra.mxu0 %v735
        %v1267 = vpop.f32.mrf.mxu0
        %v1268 = vadd.f32 %v679, %v1267
        %1269 = vmatmul.f32.gmra.mxu0 %v738
        %v1270 = vpop.f32.mrf.mxu0
        %v1271 = vadd.f32 %v679, %v1270
        %1272 = vmatmul.f32.gmra.mxu0 %v741
        %v1273 = vpop.f32.mrf.mxu0
        %v1274 = vadd.f32 %v679, %v1273
        %1275 = vmatmul.f32.gmra.mxu0 %v744
        %v1276 = vpop.f32.mrf.mxu0
        %v1277 = vadd.f32 %v679, %v1276
        %1278 = vmatmul.f32.gmra.mxu0 %v747
        %v1279 = vpop.f32.mrf.mxu0
        %v1280 = vadd.f32 %v679, %v1279
        %1281 = vmatmul.f32.gmra.mxu0 %v750
        %v1282 = vpop.f32.mrf.mxu0
        %v1283 = vadd.f32 %v679, %v1282
        %1284 = vdwg.mxu0
        %1285 = vmatpush.msra.mxu0 0.0
        %1286 = vmatpush.msra.mxu0 0.0
        %1287 = vmatpush.msra.mxu0 0.0
        %1288 = vmatpush.msra.mxu0 0.0
        %1289 = vmatpush.msra.mxu0 %v642
        %1290 = vmatpush.msra.mxu0 %v612
        %1291 = vmatpush.msra.mxu0 %v582
        %1292 = vmatpush.msra.mxu0 %v552
        %1293 = vmatpush.msra.mxu0 %v522
        %1294 = vmatpush.msra.mxu0 %v492
        %1295 = vmatpush.msra.mxu0 %v462
        %1296 = vmatpush.msra.mxu0 %v432
        %1297 = vmatpush.msra.mxu0 %v402
        %1298 = vmatpush.msra.mxu0 %v372
        %1299 = vmatpush.msra.mxu0 %v342
        %1300 = vmatpush.msra.mxu0 %v312
        %1301 = vmatmul.f32.gmra.mxu0 %v729
        %v1302 = vpop.f32.mrf.mxu0
        %v1303 = vadd.f32 %v680, %v1302
        %1304 = vmatmul.f32.gmra.mxu0 %v732
        %v1305 = vpop.f32.mrf.mxu0
        %v1306 = vadd.f32 %v680, %v1305
        %1307 = vmatmul.f32.gmra.mxu0 %v735
        %v1308 = vpop.f32.mrf.mxu0
        %v1309 = vadd.f32 %v680, %v1308
        %1310 = vmatmul.f32.gmra.mxu0 %v738
        %v1311 = vpop.f32.mrf.mxu0
        %v1312 = vadd.f32 %v680, %v1311
        %1313 = vmatmul.f32.gmra.mxu0 %v741
        %v1314 = vpop.f32.mrf.mxu0
        %v1315 = vadd.f32 %v680, %v1314
        %1316 = vmatmul.f32.gmra.mxu0 %v744
        %v1317 = vpop.f32.mrf.mxu0
        %v1318 = vadd.f32 %v680, %v1317
        %1319 = vmatmul.f32.gmra.mxu0 %v747
        %v1320 = vpop.f32.mrf.mxu0
        %v1321 = vadd.f32 %v680, %v1320
        %1322 = vmatmul.f32.gmra.mxu0 %v750
        %v1323 = vpop.f32.mrf.mxu0
        %v1324 = vadd.f32 %v680, %v1323
        %1325 = vdwg.mxu0
        %1326 = vmatpush.msra.mxu0 0.0
        %1327 = vmatpush.msra.mxu0 0.0
        %1328 = vmatpush.msra.mxu0 0.0
        %1329 = vmatpush.msra.mxu0 0.0
        %1330 = vmatpush.msra.mxu0 %v643
        %1331 = vmatpush.msra.mxu0 %v613
        %1332 = vmatpush.msra.mxu0 %v583
        %1333 = vmatpush.msra.mxu0 %v553
        %1334 = vmatpush.msra.mxu0 %v523
        %1335 = vmatpush.msra.mxu0 %v493
        %1336 = vmatpush.msra.mxu0 %v463
        %1337 = vmatpush.msra.mxu0 %v433
        %1338 = vmatpush.msra.mxu0 %v403
        %1339 = vmatpush.msra.mxu0 %v373
        %1340 = vmatpush.msra.mxu0 %v343
        %1341 = vmatpush.msra.mxu0 %v313
        %1342 = vmatmul.f32.gmra.mxu0 %v729
        %v1343 = vpop.f32.mrf.mxu0
        %v1344 = vadd.f32 %v681, %v1343
        %1345 = vmatmul.f32.gmra.mxu0 %v732
        %v1346 = vpop.f32.mrf.mxu0
        %v1347 = vadd.f32 %v681, %v1346
        %1348 = vmatmul.f32.gmra.mxu0 %v735
        %v1349 = vpop.f32.mrf.mxu0
        %v1350 = vadd.f32 %v681, %v1349
        %1351 = vmatmul.f32.gmra.mxu0 %v738
        %v1352 = vpop.f32.mrf.mxu0
        %v1353 = vadd.f32 %v681, %v1352
        %1354 = vmatmul.f32.gmra.mxu0 %v741
        %v1355 = vpop.f32.mrf.mxu0
        %v1356 = vadd.f32 %v681, %v1355
        %1357 = vmatmul.f32.gmra.mxu0 %v744
        %v1358 = vpop.f32.mrf.mxu0
        %v1359 = vadd.f32 %v681, %v1358
        %1360 = vmatmul.f32.gmra.mxu0 %v747
        %v1361 = vpop.f32.mrf.mxu0
        %v1362 = vadd.f32 %v681, %v1361
        %1363 = vmatmul.f32.gmra.mxu0 %v750
        %v1364 = vpop.f32.mrf.mxu0
        %v1365 = vadd.f32 %v681, %v1364
        %1366 = vdwg.mxu0
        %1367 = vmatpush.msra.mxu0 0.0
        %1368 = vmatpush.msra.mxu0 0.0
        %1369 = vmatpush.msra.mxu0 0.0
        %1370 = vmatpush.msra.mxu0 0.0
        %1371 = vmatpush.msra.mxu0 %v644
        %1372 = vmatpush.msra.mxu0 %v614
        %1373 = vmatpush.msra.mxu0 %v584
        %1374 = vmatpush.msra.mxu0 %v554
        %1375 = vmatpush.msra.mxu0 %v524
        %1376 = vmatpush.msra.mxu0 %v494
        %1377 = vmatpush.msra.mxu0 %v464
        %1378 = vmatpush.msra.mxu0 %v434
        %1379 = vmatpush.msra.mxu0 %v404
        %1380 = vmatpush.msra.mxu0 %v374
        %1381 = vmatpush.msra.mxu0 %v344
        %1382 = vmatpush.msra.mxu0 %v314
        %1383 = vmatmul.f32.gmra.mxu0 %v729
        %v1384 = vpop.f32.mrf.mxu0
        %v1385 = vadd.f32 %v682, %v1384
        %1386 = vmatmul.f32.gmra.mxu0 %v732
        %v1387 = vpop.f32.mrf.mxu0
        %v1388 = vadd.f32 %v682, %v1387
        %1389 = vmatmul.f32.gmra.mxu0 %v735
        %v1390 = vpop.f32.mrf.mxu0
        %v1391 = vadd.f32 %v682, %v1390
        %1392 = vmatmul.f32.gmra.mxu0 %v738
        %v1393 = vpop.f32.mrf.mxu0
        %v1394 = vadd.f32 %v682, %v1393
        %1395 = vmatmul.f32.gmra.mxu0 %v741
        %v1396 = vpop.f32.mrf.mxu0
        %v1397 = vadd.f32 %v682, %v1396
        %1398 = vmatmul.f32.gmra.mxu0 %v744
        %v1399 = vpop.f32.mrf.mxu0
        %v1400 = vadd.f32 %v682, %v1399
        %1401 = vmatmul.f32.gmra.mxu0 %v747
        %v1402 = vpop.f32.mrf.mxu0
        %v1403 = vadd.f32 %v682, %v1402
        %1404 = vmatmul.f32.gmra.mxu0 %v750
        %v1405 = vpop.f32.mrf.mxu0
        %v1406 = vadd.f32 %v682, %v1405
        %1407 = vdwg.mxu0
        %1408 = vmatpush.msra.mxu0 0.0
        %1409 = vmatpush.msra.mxu0 0.0
        %1410 = vmatpush.msra.mxu0 0.0
        %1411 = vmatpush.msra.mxu0 0.0
        %1412 = vmatpush.msra.mxu0 %v645
        %1413 = vmatpush.msra.mxu0 %v615
        %1414 = vmatpush.msra.mxu0 %v585
        %1415 = vmatpush.msra.mxu0 %v555
        %1416 = vmatpush.msra.mxu0 %v525
        %1417 = vmatpush.msra.mxu0 %v495
        %1418 = vmatpush.msra.mxu0 %v465
        %1419 = vmatpush.msra.mxu0 %v435
        %1420 = vmatpush.msra.mxu0 %v405
        %1421 = vmatpush.msra.mxu0 %v375
        %1422 = vmatpush.msra.mxu0 %v345
        %1423 = vmatpush.msra.mxu0 %v315
        %1424 = vmatmul.f32.gmra.mxu0 %v729
        %v1425 = vpop.f32.mrf.mxu0
        %v1426 = vadd.f32 %v683, %v1425
        %1427 = vmatmul.f32.gmra.mxu0 %v732
        %v1428 = vpop.f32.mrf.mxu0
        %v1429 = vadd.f32 %v683, %v1428
        %1430 = vmatmul.f32.gmra.mxu0 %v735
        %v1431 = vpop.f32.mrf.mxu0
        %v1432 = vadd.f32 %v683, %v1431
        %1433 = vmatmul.f32.gmra.mxu0 %v738
        %v1434 = vpop.f32.mrf.mxu0
        %v1435 = vadd.f32 %v683, %v1434
        %1436 = vmatmul.f32.gmra.mxu0 %v741
        %v1437 = vpop.f32.mrf.mxu0
        %v1438 = vadd.f32 %v683, %v1437
        %1439 = vmatmul.f32.gmra.mxu0 %v744
        %v1440 = vpop.f32.mrf.mxu0
        %v1441 = vadd.f32 %v683, %v1440
        %1442 = vmatmul.f32.gmra.mxu0 %v747
        %v1443 = vpop.f32.mrf.mxu0
        %v1444 = vadd.f32 %v683, %v1443
        %1445 = vmatmul.f32.gmra.mxu0 %v750
        %v1446 = vpop.f32.mrf.mxu0
        %v1447 = vadd.f32 %v683, %v1446
        %1448 = vdwg.mxu0
        %1449 = vmatpush.msra.mxu0 0.0
        %1450 = vmatpush.msra.mxu0 0.0
        %1451 = vmatpush.msra.mxu0 0.0
        %1452 = vmatpush.msra.mxu0 0.0
        %1453 = vmatpush.msra.mxu0 %v646
        %1454 = vmatpush.msra.mxu0 %v616
        %1455 = vmatpush.msra.mxu0 %v586
        %1456 = vmatpush.msra.mxu0 %v556
        %1457 = vmatpush.msra.mxu0 %v526
        %1458 = vmatpush.msra.mxu0 %v496
        %1459 = vmatpush.msra.mxu0 %v466
        %1460 = vmatpush.msra.mxu0 %v436
        %1461 = vmatpush.msra.mxu0 %v406
        %1462 = vmatpush.msra.mxu0 %v376
        %1463 = vmatpush.msra.mxu0 %v346
        %1464 = vmatpush.msra.mxu0 %v316
        %1465 = vmatmul.f32.gmra.mxu0 %v729
        %v1466 = vpop.f32.mrf.mxu0
        %v1467 = vadd.f32 %v684, %v1466
        %1468 = vmatmul.f32.gmra.mxu0 %v732
        %v1469 = vpop.f32.mrf.mxu0
        %v1470 = vadd.f32 %v684, %v1469
        %1471 = vmatmul.f32.gmra.mxu0 %v735
        %v1472 = vpop.f32.mrf.mxu0
        %v1473 = vadd.f32 %v684, %v1472
        %1474 = vmatmul.f32.gmra.mxu0 %v738
        %v1475 = vpop.f32.mrf.mxu0
        %v1476 = vadd.f32 %v684, %v1475
        %1477 = vmatmul.f32.gmra.mxu0 %v741
        %v1478 = vpop.f32.mrf.mxu0
        %v1479 = vadd.f32 %v684, %v1478
        %1480 = vmatmul.f32.gmra.mxu0 %v744
        %v1481 = vpop.f32.mrf.mxu0
        %v1482 = vadd.f32 %v684, %v1481
        %1483 = vmatmul.f32.gmra.mxu0 %v747
        %v1484 = vpop.f32.mrf.mxu0
        %v1485 = vadd.f32 %v684, %v1484
        %1486 = vmatmul.f32.gmra.mxu0 %v750
        %v1487 = vpop.f32.mrf.mxu0
        %v1488 = vadd.f32 %v684, %v1487
        %1489 = vdwg.mxu0
        %1490 = vmatpush.msra.mxu0 0.0
        %1491 = vmatpush.msra.mxu0 0.0
        %1492 = vmatpush.msra.mxu0 0.0
        %1493 = vmatpush.msra.mxu0 0.0
        %1494 = vmatpush.msra.mxu0 %v647
        %1495 = vmatpush.msra.mxu0 %v617
        %1496 = vmatpush.msra.mxu0 %v587
        %1497 = vmatpush.msra.mxu0 %v557
        %1498 = vmatpush.msra.mxu0 %v527
        %1499 = vmatpush.msra.mxu0 %v497
        %1500 = vmatpush.msra.mxu0 %v467
        %1501 = vmatpush.msra.mxu0 %v437
        %1502 = vmatpush.msra.mxu0 %v407
        %1503 = vmatpush.msra.mxu0 %v377
        %1504 = vmatpush.msra.mxu0 %v347
        %1505 = vmatpush.msra.mxu0 %v317
        %1506 = vmatmul.f32.gmra.mxu0 %v729
        %v1507 = vpop.f32.mrf.mxu0
        %v1508 = vadd.f32 %v685, %v1507
        %1509 = vmatmul.f32.gmra.mxu0 %v732
        %v1510 = vpop.f32.mrf.mxu0
        %v1511 = vadd.f32 %v685, %v1510
        %1512 = vmatmul.f32.gmra.mxu0 %v735
        %v1513 = vpop.f32.mrf.mxu0
        %v1514 = vadd.f32 %v685, %v1513
        %1515 = vmatmul.f32.gmra.mxu0 %v738
        %v1516 = vpop.f32.mrf.mxu0
        %v1517 = vadd.f32 %v685, %v1516
        %1518 = vmatmul.f32.gmra.mxu0 %v741
        %v1519 = vpop.f32.mrf.mxu0
        %v1520 = vadd.f32 %v685, %v1519
        %1521 = vmatmul.f32.gmra.mxu0 %v744
        %v1522 = vpop.f32.mrf.mxu0
        %v1523 = vadd.f32 %v685, %v1522
        %1524 = vmatmul.f32.gmra.mxu0 %v747
        %v1525 = vpop.f32.mrf.mxu0
        %v1526 = vadd.f32 %v685, %v1525
        %1527 = vmatmul.f32.gmra.mxu0 %v750
        %v1528 = vpop.f32.mrf.mxu0
        %v1529 = vadd.f32 %v685, %v1528
        %1530 = vdwg.mxu0
        %1531 = vmatpush.msra.mxu0 0.0
        %1532 = vmatpush.msra.mxu0 0.0
        %1533 = vmatpush.msra.mxu0 0.0
        %1534 = vmatpush.msra.mxu0 0.0
        %1535 = vmatpush.msra.mxu0 %v648
        %1536 = vmatpush.msra.mxu0 %v618
        %1537 = vmatpush.msra.mxu0 %v588
        %1538 = vmatpush.msra.mxu0 %v558
        %1539 = vmatpush.msra.mxu0 %v528
        %1540 = vmatpush.msra.mxu0 %v498
        %1541 = vmatpush.msra.mxu0 %v468
        %1542 = vmatpush.msra.mxu0 %v438
        %1543 = vmatpush.msra.mxu0 %v408
        %1544 = vmatpush.msra.mxu0 %v378
        %1545 = vmatpush.msra.mxu0 %v348
        %1546 = vmatpush.msra.mxu0 %v318
        %1547 = vmatmul.f32.gmra.mxu0 %v729
        %v1548 = vpop.f32.mrf.mxu0
        %v1549 = vadd.f32 %v686, %v1548
        %1550 = vmatmul.f32.gmra.mxu0 %v732
        %v1551 = vpop.f32.mrf.mxu0
        %v1552 = vadd.f32 %v686, %v1551
        %1553 = vmatmul.f32.gmra.mxu0 %v735
        %v1554 = vpop.f32.mrf.mxu0
        %v1555 = vadd.f32 %v686, %v1554
        %1556 = vmatmul.f32.gmra.mxu0 %v738
        %v1557 = vpop.f32.mrf.mxu0
        %v1558 = vadd.f32 %v686, %v1557
        %1559 = vmatmul.f32.gmra.mxu0 %v741
        %v1560 = vpop.f32.mrf.mxu0
        %v1561 = vadd.f32 %v686, %v1560
        %1562 = vmatmul.f32.gmra.mxu0 %v744
        %v1563 = vpop.f32.mrf.mxu0
        %v1564 = vadd.f32 %v686, %v1563
        %1565 = vmatmul.f32.gmra.mxu0 %v747
        %v1566 = vpop.f32.mrf.mxu0
        %v1567 = vadd.f32 %v686, %v1566
        %1568 = vmatmul.f32.gmra.mxu0 %v750
        %v1569 = vpop.f32.mrf.mxu0
        %v1570 = vadd.f32 %v686, %v1569
        %1571 = vdwg.mxu0
        %1572 = vmatpush.msra.mxu0 0.0
        %1573 = vmatpush.msra.mxu0 0.0
        %1574 = vmatpush.msra.mxu0 0.0
        %1575 = vmatpush.msra.mxu0 0.0
        %1576 = vmatpush.msra.mxu0 %v649
        %1577 = vmatpush.msra.mxu0 %v619
        %1578 = vmatpush.msra.mxu0 %v589
        %1579 = vmatpush.msra.mxu0 %v559
        %1580 = vmatpush.msra.mxu0 %v529
        %1581 = vmatpush.msra.mxu0 %v499
        %1582 = vmatpush.msra.mxu0 %v469
        %1583 = vmatpush.msra.mxu0 %v439
        %1584 = vmatpush.msra.mxu0 %v409
        %1585 = vmatpush.msra.mxu0 %v379
        %1586 = vmatpush.msra.mxu0 %v349
        %1587 = vmatpush.msra.mxu0 %v319
        %1588 = vmatmul.f32.gmra.mxu0 %v729
        %v1589 = vpop.f32.mrf.mxu0
        %v1590 = vadd.f32 %v687, %v1589
        %1591 = vmatmul.f32.gmra.mxu0 %v732
        %v1592 = vpop.f32.mrf.mxu0
        %v1593 = vadd.f32 %v687, %v1592
        %1594 = vmatmul.f32.gmra.mxu0 %v735
        %v1595 = vpop.f32.mrf.mxu0
        %v1596 = vadd.f32 %v687, %v1595
        %1597 = vmatmul.f32.gmra.mxu0 %v738
        %v1598 = vpop.f32.mrf.mxu0
        %v1599 = vadd.f32 %v687, %v1598
        %1600 = vmatmul.f32.gmra.mxu0 %v741
        %v1601 = vpop.f32.mrf.mxu0
        %v1602 = vadd.f32 %v687, %v1601
        %1603 = vmatmul.f32.gmra.mxu0 %v744
        %v1604 = vpop.f32.mrf.mxu0
        %v1605 = vadd.f32 %v687, %v1604
        %1606 = vmatmul.f32.gmra.mxu0 %v747
        %v1607 = vpop.f32.mrf.mxu0
        %v1608 = vadd.f32 %v687, %v1607
        %1609 = vmatmul.f32.gmra.mxu0 %v750
        %v1610 = vpop.f32.mrf.mxu0
        %v1611 = vadd.f32 %v687, %v1610
        %1612 = vdwg.mxu0
        %1613 = vmatpush.msra.mxu0 0.0
        %1614 = vmatpush.msra.mxu0 0.0
        %1615 = vmatpush.msra.mxu0 0.0
        %1616 = vmatpush.msra.mxu0 0.0
        %1617 = vmatpush.msra.mxu0 %v650
        %1618 = vmatpush.msra.mxu0 %v620
        %1619 = vmatpush.msra.mxu0 %v590
        %1620 = vmatpush.msra.mxu0 %v560
        %1621 = vmatpush.msra.mxu0 %v530
        %1622 = vmatpush.msra.mxu0 %v500
        %1623 = vmatpush.msra.mxu0 %v470
        %1624 = vmatpush.msra.mxu0 %v440
        %1625 = vmatpush.msra.mxu0 %v410
        %1626 = vmatpush.msra.mxu0 %v380
        %1627 = vmatpush.msra.mxu0 %v350
        %1628 = vmatpush.msra.mxu0 %v320
        %1629 = vmatmul.f32.gmra.mxu0 %v729
        %v1630 = vpop.f32.mrf.mxu0
        %v1631 = vadd.f32 %v688, %v1630
        %1632 = vmatmul.f32.gmra.mxu0 %v732
        %v1633 = vpop.f32.mrf.mxu0
        %v1634 = vadd.f32 %v688, %v1633
        %1635 = vmatmul.f32.gmra.mxu0 %v735
        %v1636 = vpop.f32.mrf.mxu0
        %v1637 = vadd.f32 %v688, %v1636
        %1638 = vmatmul.f32.gmra.mxu0 %v738
        %v1639 = vpop.f32.mrf.mxu0
        %v1640 = vadd.f32 %v688, %v1639
        %1641 = vmatmul.f32.gmra.mxu0 %v741
        %v1642 = vpop.f32.mrf.mxu0
        %v1643 = vadd.f32 %v688, %v1642
        %1644 = vmatmul.f32.gmra.mxu0 %v744
        %v1645 = vpop.f32.mrf.mxu0
        %v1646 = vadd.f32 %v688, %v1645
        %1647 = vmatmul.f32.gmra.mxu0 %v747
        %v1648 = vpop.f32.mrf.mxu0
        %v1649 = vadd.f32 %v688, %v1648
        %1650 = vmatmul.f32.gmra.mxu0 %v750
        %v1651 = vpop.f32.mrf.mxu0
        %v1652 = vadd.f32 %v688, %v1651
        %1653 = vdwg.mxu0
        %1654 = vmatpush.msra.mxu0 0.0
        %1655 = vmatpush.msra.mxu0 0.0
        %1656 = vmatpush.msra.mxu0 0.0
        %1657 = vmatpush.msra.mxu0 0.0
        %1658 = vmatpush.msra.mxu0 %v651
        %1659 = vmatpush.msra.mxu0 %v621
        %1660 = vmatpush.msra.mxu0 %v591
        %1661 = vmatpush.msra.mxu0 %v561
        %1662 = vmatpush.msra.mxu0 %v531
        %1663 = vmatpush.msra.mxu0 %v501
        %1664 = vmatpush.msra.mxu0 %v471
        %1665 = vmatpush.msra.mxu0 %v441
        %1666 = vmatpush.msra.mxu0 %v411
        %1667 = vmatpush.msra.mxu0 %v381
        %1668 = vmatpush.msra.mxu0 %v351
        %1669 = vmatpush.msra.mxu0 %v321
        %1670 = vmatmul.f32.gmra.mxu0 %v729
        %v1671 = vpop.f32.mrf.mxu0
        %v1672 = vadd.f32 %v689, %v1671
        %1673 = vmatmul.f32.gmra.mxu0 %v732
        %v1674 = vpop.f32.mrf.mxu0
        %v1675 = vadd.f32 %v689, %v1674
        %1676 = vmatmul.f32.gmra.mxu0 %v735
        %v1677 = vpop.f32.mrf.mxu0
        %v1678 = vadd.f32 %v689, %v1677
        %1679 = vmatmul.f32.gmra.mxu0 %v738
        %v1680 = vpop.f32.mrf.mxu0
        %v1681 = vadd.f32 %v689, %v1680
        %1682 = vmatmul.f32.gmra.mxu0 %v741
        %v1683 = vpop.f32.mrf.mxu0
        %v1684 = vadd.f32 %v689, %v1683
        %1685 = vmatmul.f32.gmra.mxu0 %v744
        %v1686 = vpop.f32.mrf.mxu0
        %v1687 = vadd.f32 %v689, %v1686
        %1688 = vmatmul.f32.gmra.mxu0 %v747
        %v1689 = vpop.f32.mrf.mxu0
        %v1690 = vadd.f32 %v689, %v1689
        %1691 = vmatmul.f32.gmra.mxu0 %v750
        %v1692 = vpop.f32.mrf.mxu0
        %v1693 = vadd.f32 %v689, %v1692
        %1694 = vdwg.mxu0
        %1695 = vmatpush.msra.mxu0 0.0
        %1696 = vmatpush.msra.mxu0 0.0
        %1697 = vmatpush.msra.mxu0 0.0
        %1698 = vmatpush.msra.mxu0 0.0
        %1699 = vmatpush.msra.mxu0 %v652
        %1700 = vmatpush.msra.mxu0 %v622
        %1701 = vmatpush.msra.mxu0 %v592
        %1702 = vmatpush.msra.mxu0 %v562
        %1703 = vmatpush.msra.mxu0 %v532
        %1704 = vmatpush.msra.mxu0 %v502
        %1705 = vmatpush.msra.mxu0 %v472
        %1706 = vmatpush.msra.mxu0 %v442
        %1707 = vmatpush.msra.mxu0 %v412
        %1708 = vmatpush.msra.mxu0 %v382
        %1709 = vmatpush.msra.mxu0 %v352
        %1710 = vmatpush.msra.mxu0 %v322
        %1711 = vmatmul.f32.gmra.mxu0 %v729
        %v1712 = vpop.f32.mrf.mxu0
        %v1713 = vadd.f32 %v690, %v1712
        %1714 = vmatmul.f32.gmra.mxu0 %v732
        %v1715 = vpop.f32.mrf.mxu0
        %v1716 = vadd.f32 %v690, %v1715
        %1717 = vmatmul.f32.gmra.mxu0 %v735
        %v1718 = vpop.f32.mrf.mxu0
        %v1719 = vadd.f32 %v690, %v1718
        %1720 = vmatmul.f32.gmra.mxu0 %v738
        %v1721 = vpop.f32.mrf.mxu0
        %v1722 = vadd.f32 %v690, %v1721
        %1723 = vmatmul.f32.gmra.mxu0 %v741
        %v1724 = vpop.f32.mrf.mxu0
        %v1725 = vadd.f32 %v690, %v1724
        %1726 = vmatmul.f32.gmra.mxu0 %v744
        %v1727 = vpop.f32.mrf.mxu0
        %v1728 = vadd.f32 %v690, %v1727
        %1729 = vmatmul.f32.gmra.mxu0 %v747
        %v1730 = vpop.f32.mrf.mxu0
        %v1731 = vadd.f32 %v690, %v1730
        %1732 = vmatmul.f32.gmra.mxu0 %v750
        %v1733 = vpop.f32.mrf.mxu0
        %v1734 = vadd.f32 %v690, %v1733
        %1735 = vdwg.mxu0
        %1736 = vmatpush.msra.mxu0 0.0
        %1737 = vmatpush.msra.mxu0 0.0
        %1738 = vmatpush.msra.mxu0 0.0
        %1739 = vmatpush.msra.mxu0 0.0
        %1740 = vmatpush.msra.mxu0 %v653
        %1741 = vmatpush.msra.mxu0 %v623
        %1742 = vmatpush.msra.mxu0 %v593
        %1743 = vmatpush.msra.mxu0 %v563
        %1744 = vmatpush.msra.mxu0 %v533
        %1745 = vmatpush.msra.mxu0 %v503
        %1746 = vmatpush.msra.mxu0 %v473
        %1747 = vmatpush.msra.mxu0 %v443
        %1748 = vmatpush.msra.mxu0 %v413
        %1749 = vmatpush.msra.mxu0 %v383
        %1750 = vmatpush.msra.mxu0 %v353
        %1751 = vmatpush.msra.mxu0 %v323
        %1752 = vmatmul.f32.gmra.mxu0 %v729
        %v1753 = vpop.f32.mrf.mxu0
        %v1754 = vadd.f32 %v691, %v1753
        %1755 = vmatmul.f32.gmra.mxu0 %v732
        %v1756 = vpop.f32.mrf.mxu0
        %v1757 = vadd.f32 %v691, %v1756
        %1758 = vmatmul.f32.gmra.mxu0 %v735
        %v1759 = vpop.f32.mrf.mxu0
        %v1760 = vadd.f32 %v691, %v1759
        %1761 = vmatmul.f32.gmra.mxu0 %v738
        %v1762 = vpop.f32.mrf.mxu0
        %v1763 = vadd.f32 %v691, %v1762
        %1764 = vmatmul.f32.gmra.mxu0 %v741
        %v1765 = vpop.f32.mrf.mxu0
        %v1766 = vadd.f32 %v691, %v1765
        %1767 = vmatmul.f32.gmra.mxu0 %v744
        %v1768 = vpop.f32.mrf.mxu0
        %v1769 = vadd.f32 %v691, %v1768
        %1770 = vmatmul.f32.gmra.mxu0 %v747
        %v1771 = vpop.f32.mrf.mxu0
        %v1772 = vadd.f32 %v691, %v1771
        %1773 = vmatmul.f32.gmra.mxu0 %v750
        %v1774 = vpop.f32.mrf.mxu0
        %v1775 = vadd.f32 %v691, %v1774
        %1776 = vdwg.mxu0
        %1777 = vmatpush.msra.mxu0 0.0
        %1778 = vmatpush.msra.mxu0 0.0
        %1779 = vmatpush.msra.mxu0 0.0
        %1780 = vmatpush.msra.mxu0 0.0
        %1781 = vmatpush.msra.mxu0 %v654
        %1782 = vmatpush.msra.mxu0 %v624
        %1783 = vmatpush.msra.mxu0 %v594
        %1784 = vmatpush.msra.mxu0 %v564
        %1785 = vmatpush.msra.mxu0 %v534
        %1786 = vmatpush.msra.mxu0 %v504
        %1787 = vmatpush.msra.mxu0 %v474
        %1788 = vmatpush.msra.mxu0 %v444
        %1789 = vmatpush.msra.mxu0 %v414
        %1790 = vmatpush.msra.mxu0 %v384
        %1791 = vmatpush.msra.mxu0 %v354
        %1792 = vmatpush.msra.mxu0 %v324
        %1793 = vmatmul.f32.gmra.mxu0 %v729
        %v1794 = vpop.f32.mrf.mxu0
        %v1795 = vadd.f32 %v692, %v1794
        %1796 = vmatmul.f32.gmra.mxu0 %v732
        %v1797 = vpop.f32.mrf.mxu0
        %v1798 = vadd.f32 %v692, %v1797
        %1799 = vmatmul.f32.gmra.mxu0 %v735
        %v1800 = vpop.f32.mrf.mxu0
        %v1801 = vadd.f32 %v692, %v1800
        %1802 = vmatmul.f32.gmra.mxu0 %v738
        %v1803 = vpop.f32.mrf.mxu0
        %v1804 = vadd.f32 %v692, %v1803
        %1805 = vmatmul.f32.gmra.mxu0 %v741
        %v1806 = vpop.f32.mrf.mxu0
        %v1807 = vadd.f32 %v692, %v1806
        %1808 = vmatmul.f32.gmra.mxu0 %v744
        %v1809 = vpop.f32.mrf.mxu0
        %v1810 = vadd.f32 %v692, %v1809
        %1811 = vmatmul.f32.gmra.mxu0 %v747
        %v1812 = vpop.f32.mrf.mxu0
        %v1813 = vadd.f32 %v692, %v1812
        %1814 = vmatmul.f32.gmra.mxu0 %v750
        %v1815 = vpop.f32.mrf.mxu0
        %v1816 = vadd.f32 %v692, %v1815
        %1817 = vdwg.mxu0
        %1818 = vmatpush.msra.mxu0 0.0
        %1819 = vmatpush.msra.mxu0 0.0
        %1820 = vmatpush.msra.mxu0 0.0
        %1821 = vmatpush.msra.mxu0 0.0
        %1822 = vmatpush.msra.mxu0 %v655
        %1823 = vmatpush.msra.mxu0 %v625
        %1824 = vmatpush.msra.mxu0 %v595
        %1825 = vmatpush.msra.mxu0 %v565
        %1826 = vmatpush.msra.mxu0 %v535
        %1827 = vmatpush.msra.mxu0 %v505
        %1828 = vmatpush.msra.mxu0 %v475
        %1829 = vmatpush.msra.mxu0 %v445
        %1830 = vmatpush.msra.mxu0 %v415
        %1831 = vmatpush.msra.mxu0 %v385
        %1832 = vmatpush.msra.mxu0 %v355
        %1833 = vmatpush.msra.mxu0 %v325
        %1834 = vmatmul.f32.gmra.mxu0 %v729
        %v1835 = vpop.f32.mrf.mxu0
        %v1836 = vadd.f32 %v693, %v1835
        %1837 = vmatmul.f32.gmra.mxu0 %v732
        %v1838 = vpop.f32.mrf.mxu0
        %v1839 = vadd.f32 %v693, %v1838
        %1840 = vmatmul.f32.gmra.mxu0 %v735
        %v1841 = vpop.f32.mrf.mxu0
        %v1842 = vadd.f32 %v693, %v1841
        %1843 = vmatmul.f32.gmra.mxu0 %v738
        %v1844 = vpop.f32.mrf.mxu0
        %v1845 = vadd.f32 %v693, %v1844
        %1846 = vmatmul.f32.gmra.mxu0 %v741
        %v1847 = vpop.f32.mrf.mxu0
        %v1848 = vadd.f32 %v693, %v1847
        %1849 = vmatmul.f32.gmra.mxu0 %v744
        %v1850 = vpop.f32.mrf.mxu0
        %v1851 = vadd.f32 %v693, %v1850
        %1852 = vmatmul.f32.gmra.mxu0 %v747
        %v1853 = vpop.f32.mrf.mxu0
        %v1854 = vadd.f32 %v693, %v1853
        %1855 = vmatmul.f32.gmra.mxu0 %v750
        %v1856 = vpop.f32.mrf.mxu0
        %v1857 = vadd.f32 %v693, %v1856
        %1858 = vdwg.mxu0
        %1859 = vmatpush.msra.mxu0 0.0
        %1860 = vmatpush.msra.mxu0 0.0
        %1861 = vmatpush.msra.mxu0 0.0
        %1862 = vmatpush.msra.mxu0 0.0
        %1863 = vmatpush.msra.mxu0 %v656
        %1864 = vmatpush.msra.mxu0 %v626
        %1865 = vmatpush.msra.mxu0 %v596
        %1866 = vmatpush.msra.mxu0 %v566
        %1867 = vmatpush.msra.mxu0 %v536
        %1868 = vmatpush.msra.mxu0 %v506
        %1869 = vmatpush.msra.mxu0 %v476
        %1870 = vmatpush.msra.mxu0 %v446
        %1871 = vmatpush.msra.mxu0 %v416
        %1872 = vmatpush.msra.mxu0 %v386
        %1873 = vmatpush.msra.mxu0 %v356
        %1874 = vmatpush.msra.mxu0 %v326
        %1875 = vmatmul.f32.gmra.mxu0 %v729
        %v1876 = vpop.f32.mrf.mxu0
        %v1877 = vadd.f32 %v694, %v1876
        %1878 = vmatmul.f32.gmra.mxu0 %v732
        %v1879 = vpop.f32.mrf.mxu0
        %v1880 = vadd.f32 %v694, %v1879
        %1881 = vmatmul.f32.gmra.mxu0 %v735
        %v1882 = vpop.f32.mrf.mxu0
        %v1883 = vadd.f32 %v694, %v1882
        %1884 = vmatmul.f32.gmra.mxu0 %v738
        %v1885 = vpop.f32.mrf.mxu0
        %v1886 = vadd.f32 %v694, %v1885
        %1887 = vmatmul.f32.gmra.mxu0 %v741
        %v1888 = vpop.f32.mrf.mxu0
        %v1889 = vadd.f32 %v694, %v1888
        %1890 = vmatmul.f32.gmra.mxu0 %v744
        %v1891 = vpop.f32.mrf.mxu0
        %v1892 = vadd.f32 %v694, %v1891
        %1893 = vmatmul.f32.gmra.mxu0 %v747
        %v1894 = vpop.f32.mrf.mxu0
        %v1895 = vadd.f32 %v694, %v1894
        %1896 = vmatmul.f32.gmra.mxu0 %v750
        %v1897 = vpop.f32.mrf.mxu0
        %v1898 = vadd.f32 %v694, %v1897
        %1899 = vdwg.mxu0
        %1900 = vmatpush.msra.mxu0 0.0
        %1901 = vmatpush.msra.mxu0 0.0
        %1902 = vmatpush.msra.mxu0 0.0
        %1903 = vmatpush.msra.mxu0 0.0
        %1904 = vmatpush.msra.mxu0 %v657
        %1905 = vmatpush.msra.mxu0 %v627
        %1906 = vmatpush.msra.mxu0 %v597
        %1907 = vmatpush.msra.mxu0 %v567
        %1908 = vmatpush.msra.mxu0 %v537
        %1909 = vmatpush.msra.mxu0 %v507
        %1910 = vmatpush.msra.mxu0 %v477
        %1911 = vmatpush.msra.mxu0 %v447
        %1912 = vmatpush.msra.mxu0 %v417
        %1913 = vmatpush.msra.mxu0 %v387
        %1914 = vmatpush.msra.mxu0 %v357
        %1915 = vmatpush.msra.mxu0 %v327
        %1916 = vmatmul.f32.gmra.mxu0 %v729
        %v1917 = vpop.f32.mrf.mxu0
        %v1918 = vadd.f32 %v695, %v1917
        %1919 = vmatmul.f32.gmra.mxu0 %v732
        %v1920 = vpop.f32.mrf.mxu0
        %v1921 = vadd.f32 %v695, %v1920
        %1922 = vmatmul.f32.gmra.mxu0 %v735
        %v1923 = vpop.f32.mrf.mxu0
        %v1924 = vadd.f32 %v695, %v1923
        %1925 = vmatmul.f32.gmra.mxu0 %v738
        %v1926 = vpop.f32.mrf.mxu0
        %v1927 = vadd.f32 %v695, %v1926
        %1928 = vmatmul.f32.gmra.mxu0 %v741
        %v1929 = vpop.f32.mrf.mxu0
        %v1930 = vadd.f32 %v695, %v1929
        %1931 = vmatmul.f32.gmra.mxu0 %v744
        %v1932 = vpop.f32.mrf.mxu0
        %v1933 = vadd.f32 %v695, %v1932
        %1934 = vmatmul.f32.gmra.mxu0 %v747
        %v1935 = vpop.f32.mrf.mxu0
        %v1936 = vadd.f32 %v695, %v1935
        %1937 = vmatmul.f32.gmra.mxu0 %v750
        %v1938 = vpop.f32.mrf.mxu0
        %v1939 = vadd.f32 %v695, %v1938
        %1940 = vdwg.mxu0
        %1941 = vmatpush.msra.mxu0 0.0
        %1942 = vmatpush.msra.mxu0 0.0
        %1943 = vmatpush.msra.mxu0 0.0
        %1944 = vmatpush.msra.mxu0 0.0
        %1945 = vmatpush.msra.mxu0 %v658
        %1946 = vmatpush.msra.mxu0 %v628
        %1947 = vmatpush.msra.mxu0 %v598
        %1948 = vmatpush.msra.mxu0 %v568
        %1949 = vmatpush.msra.mxu0 %v538
        %1950 = vmatpush.msra.mxu0 %v508
        %1951 = vmatpush.msra.mxu0 %v478
        %1952 = vmatpush.msra.mxu0 %v448
        %1953 = vmatpush.msra.mxu0 %v418
        %1954 = vmatpush.msra.mxu0 %v388
        %1955 = vmatpush.msra.mxu0 %v358
        %1956 = vmatpush.msra.mxu0 %v328
        %1957 = vmatmul.f32.gmra.mxu0 %v729
        %v1958 = vpop.f32.mrf.mxu0
        %v1959 = vadd.f32 %v696, %v1958
        %1960 = vmatmul.f32.gmra.mxu0 %v732
        %v1961 = vpop.f32.mrf.mxu0
        %v1962 = vadd.f32 %v696, %v1961
        %1963 = vmatmul.f32.gmra.mxu0 %v735
        %v1964 = vpop.f32.mrf.mxu0
        %v1965 = vadd.f32 %v696, %v1964
        %1966 = vmatmul.f32.gmra.mxu0 %v738
        %v1967 = vpop.f32.mrf.mxu0
        %v1968 = vadd.f32 %v696, %v1967
        %1969 = vmatmul.f32.gmra.mxu0 %v741
        %v1970 = vpop.f32.mrf.mxu0
        %v1971 = vadd.f32 %v696, %v1970
        %1972 = vmatmul.f32.gmra.mxu0 %v744
        %v1973 = vpop.f32.mrf.mxu0
        %v1974 = vadd.f32 %v696, %v1973
        %1975 = vmatmul.f32.gmra.mxu0 %v747
        %v1976 = vpop.f32.mrf.mxu0
        %v1977 = vadd.f32 %v696, %v1976
        %1978 = vmatmul.f32.gmra.mxu0 %v750
        %v1979 = vpop.f32.mrf.mxu0
        %v1980 = vadd.f32 %v696, %v1979
        %1981 = vdwg.mxu0
        %vm1982 = vcmp.gt.f32.partialorder %v770, 0.0
        %vm1983 = vcmp.gt.f32.partialorder %v811, 0.0
        %vm1984 = vcmp.gt.f32.partialorder %v852, 0.0
        %vm1985 = vcmp.gt.f32.partialorder %v893, 0.0
        %vm1986 = vcmp.gt.f32.partialorder %v934, 0.0
        %vm1987 = vcmp.gt.f32.partialorder %v975, 0.0
        %vm1988 = vcmp.gt.f32.partialorder %v1016, 0.0
        %vm1989 = vcmp.gt.f32.partialorder %v1057, 0.0
        %vm1990 = vcmp.gt.f32.partialorder %v1098, 0.0
        %vm1991 = vcmp.gt.f32.partialorder %v1139, 0.0
        %vm1992 = vcmp.gt.f32.partialorder %v1180, 0.0
        %vm1993 = vcmp.gt.f32.partialorder %v1221, 0.0
        %vm1994 = vcmp.gt.f32.partialorder %v1262, 0.0
        %vm1995 = vcmp.gt.f32.partialorder %v1303, 0.0
        %vm1996 = vcmp.gt.f32.partialorder %v1344, 0.0
        %vm1997 = vcmp.gt.f32.partialorder %v1385, 0.0
        %vm1998 = vcmp.gt.f32.partialorder %v1426, 0.0
        %vm1999 = vcmp.gt.f32.partialorder %v1467, 0.0
        %vm2000 = vcmp.gt.f32.partialorder %v1508, 0.0
        %vm2001 = vcmp.gt.f32.partialorder %v1549, 0.0
        %vm2002 = vcmp.gt.f32.partialorder %v1590, 0.0
        %vm2003 = vcmp.gt.f32.partialorder %v1631, 0.0
        %vm2004 = vcmp.gt.f32.partialorder %v1672, 0.0
        %vm2005 = vcmp.gt.f32.partialorder %v1713, 0.0
        %vm2006 = vcmp.gt.f32.partialorder %v1754, 0.0
        %vm2007 = vcmp.gt.f32.partialorder %v1795, 0.0
        %vm2008 = vcmp.gt.f32.partialorder %v1836, 0.0
        %vm2009 = vcmp.gt.f32.partialorder %v1877, 0.0
        %vm2010 = vcmp.gt.f32.partialorder %v1918, 0.0
        %vm2011 = vcmp.gt.f32.partialorder %v1959, 0.0
        %vm2012 = vcmp.gt.f32.partialorder %v773, 0.0
        %vm2013 = vcmp.gt.f32.partialorder %v814, 0.0
        %vm2014 = vcmp.gt.f32.partialorder %v855, 0.0
        %vm2015 = vcmp.gt.f32.partialorder %v896, 0.0
        %vm2016 = vcmp.gt.f32.partialorder %v937, 0.0
        %vm2017 = vcmp.gt.f32.partialorder %v978, 0.0
        %vm2018 = vcmp.gt.f32.partialorder %v1019, 0.0
        %vm2019 = vcmp.gt.f32.partialorder %v1060, 0.0
        %vm2020 = vcmp.gt.f32.partialorder %v1101, 0.0
        %vm2021 = vcmp.gt.f32.partialorder %v1142, 0.0
        %vm2022 = vcmp.gt.f32.partialorder %v1183, 0.0
        %vm2023 = vcmp.gt.f32.partialorder %v1224, 0.0
        %vm2024 = vcmp.gt.f32.partialorder %v1265, 0.0
        %vm2025 = vcmp.gt.f32.partialorder %v1306, 0.0
        %vm2026 = vcmp.gt.f32.partialorder %v1347, 0.0
        %vm2027 = vcmp.gt.f32.partialorder %v1388, 0.0
        %vm2028 = vcmp.gt.f32.partialorder %v1429, 0.0
        %vm2029 = vcmp.gt.f32.partialorder %v1470, 0.0
        %vm2030 = vcmp.gt.f32.partialorder %v1511, 0.0
        %vm2031 = vcmp.gt.f32.partialorder %v1552, 0.0
        %vm2032 = vcmp.gt.f32.partialorder %v1593, 0.0
        %vm2033 = vcmp.gt.f32.partialorder %v1634, 0.0
        %vm2034 = vcmp.gt.f32.partialorder %v1675, 0.0
        %vm2035 = vcmp.gt.f32.partialorder %v1716, 0.0
        %vm2036 = vcmp.gt.f32.partialorder %v1757, 0.0
        %vm2037 = vcmp.gt.f32.partialorder %v1798, 0.0
        %vm2038 = vcmp.gt.f32.partialorder %v1839, 0.0
        %vm2039 = vcmp.gt.f32.partialorder %v1880, 0.0
        %vm2040 = vcmp.gt.f32.partialorder %v1921, 0.0
        %vm2041 = vcmp.gt.f32.partialorder %v1962, 0.0
        %vm2042 = vcmp.gt.f32.partialorder %v776, 0.0
        %vm2043 = vcmp.gt.f32.partialorder %v817, 0.0
        %vm2044 = vcmp.gt.f32.partialorder %v858, 0.0
        %vm2045 = vcmp.gt.f32.partialorder %v899, 0.0
        %vm2046 = vcmp.gt.f32.partialorder %v940, 0.0
        %vm2047 = vcmp.gt.f32.partialorder %v981, 0.0
        %vm2048 = vcmp.gt.f32.partialorder %v1022, 0.0
        %vm2049 = vcmp.gt.f32.partialorder %v1063, 0.0
        %vm2050 = vcmp.gt.f32.partialorder %v1104, 0.0
        %vm2051 = vcmp.gt.f32.partialorder %v1145, 0.0
        %vm2052 = vcmp.gt.f32.partialorder %v1186, 0.0
        %vm2053 = vcmp.gt.f32.partialorder %v1227, 0.0
        %vm2054 = vcmp.gt.f32.partialorder %v1268, 0.0
        %vm2055 = vcmp.gt.f32.partialorder %v1309, 0.0
        %vm2056 = vcmp.gt.f32.partialorder %v1350, 0.0
        %vm2057 = vcmp.gt.f32.partialorder %v1391, 0.0
        %vm2058 = vcmp.gt.f32.partialorder %v1432, 0.0
        %vm2059 = vcmp.gt.f32.partialorder %v1473, 0.0
        %vm2060 = vcmp.gt.f32.partialorder %v1514, 0.0
        %vm2061 = vcmp.gt.f32.partialorder %v1555, 0.0
        %vm2062 = vcmp.gt.f32.partialorder %v1596, 0.0
        %vm2063 = vcmp.gt.f32.partialorder %v1637, 0.0
        %vm2064 = vcmp.gt.f32.partialorder %v1678, 0.0
        %vm2065 = vcmp.gt.f32.partialorder %v1719, 0.0
        %vm2066 = vcmp.gt.f32.partialorder %v1760, 0.0
        %vm2067 = vcmp.gt.f32.partialorder %v1801, 0.0
        %vm2068 = vcmp.gt.f32.partialorder %v1842, 0.0
        %vm2069 = vcmp.gt.f32.partialorder %v1883, 0.0
        %vm2070 = vcmp.gt.f32.partialorder %v1924, 0.0
        %vm2071 = vcmp.gt.f32.partialorder %v1965, 0.0
        %vm2072 = vcmp.gt.f32.partialorder %v779, 0.0
        %vm2073 = vcmp.gt.f32.partialorder %v820, 0.0
        %vm2074 = vcmp.gt.f32.partialorder %v861, 0.0
        %vm2075 = vcmp.gt.f32.partialorder %v902, 0.0
        %vm2076 = vcmp.gt.f32.partialorder %v943, 0.0
        %vm2077 = vcmp.gt.f32.partialorder %v984, 0.0
        %vm2078 = vcmp.gt.f32.partialorder %v1025, 0.0
        %vm2079 = vcmp.gt.f32.partialorder %v1066, 0.0
        %vm2080 = vcmp.gt.f32.partialorder %v1107, 0.0
        %vm2081 = vcmp.gt.f32.partialorder %v1148, 0.0
        %vm2082 = vcmp.gt.f32.partialorder %v1189, 0.0
        %vm2083 = vcmp.gt.f32.partialorder %v1230, 0.0
        %vm2084 = vcmp.gt.f32.partialorder %v1271, 0.0
        %vm2085 = vcmp.gt.f32.partialorder %v1312, 0.0
        %vm2086 = vcmp.gt.f32.partialorder %v1353, 0.0
        %vm2087 = vcmp.gt.f32.partialorder %v1394, 0.0
        %vm2088 = vcmp.gt.f32.partialorder %v1435, 0.0
        %vm2089 = vcmp.gt.f32.partialorder %v1476, 0.0
        %vm2090 = vcmp.gt.f32.partialorder %v1517, 0.0
        %vm2091 = vcmp.gt.f32.partialorder %v1558, 0.0
        %vm2092 = vcmp.gt.f32.partialorder %v1599, 0.0
        %vm2093 = vcmp.gt.f32.partialorder %v1640, 0.0
        %vm2094 = vcmp.gt.f32.partialorder %v1681, 0.0
        %vm2095 = vcmp.gt.f32.partialorder %v1722, 0.0
        %vm2096 = vcmp.gt.f32.partialorder %v1763, 0.0
        %vm2097 = vcmp.gt.f32.partialorder %v1804, 0.0
        %vm2098 = vcmp.gt.f32.partialorder %v1845, 0.0
        %vm2099 = vcmp.gt.f32.partialorder %v1886, 0.0
        %vm2100 = vcmp.gt.f32.partialorder %v1927, 0.0
        %vm2101 = vcmp.gt.f32.partialorder %v1968, 0.0
        %vm2102 = vcmp.gt.f32.partialorder %v782, 0.0
        %vm2103 = vcmp.gt.f32.partialorder %v823, 0.0
        %vm2104 = vcmp.gt.f32.partialorder %v864, 0.0
        %vm2105 = vcmp.gt.f32.partialorder %v905, 0.0
        %vm2106 = vcmp.gt.f32.partialorder %v946, 0.0
        %vm2107 = vcmp.gt.f32.partialorder %v987, 0.0
        %vm2108 = vcmp.gt.f32.partialorder %v1028, 0.0
        %vm2109 = vcmp.gt.f32.partialorder %v1069, 0.0
        %vm2110 = vcmp.gt.f32.partialorder %v1110, 0.0
        %vm2111 = vcmp.gt.f32.partialorder %v1151, 0.0
        %vm2112 = vcmp.gt.f32.partialorder %v1192, 0.0
        %vm2113 = vcmp.gt.f32.partialorder %v1233, 0.0
        %vm2114 = vcmp.gt.f32.partialorder %v1274, 0.0
        %vm2115 = vcmp.gt.f32.partialorder %v1315, 0.0
        %vm2116 = vcmp.gt.f32.partialorder %v1356, 0.0
        %vm2117 = vcmp.gt.f32.partialorder %v1397, 0.0
        %vm2118 = vcmp.gt.f32.partialorder %v1438, 0.0
        %vm2119 = vcmp.gt.f32.partialorder %v1479, 0.0
        %vm2120 = vcmp.gt.f32.partialorder %v1520, 0.0
        %vm2121 = vcmp.gt.f32.partialorder %v1561, 0.0
        %vm2122 = vcmp.gt.f32.partialorder %v1602, 0.0
        %vm2123 = vcmp.gt.f32.partialorder %v1643, 0.0
        %vm2124 = vcmp.gt.f32.partialorder %v1684, 0.0
        %vm2125 = vcmp.gt.f32.partialorder %v1725, 0.0
        %vm2126 = vcmp.gt.f32.partialorder %v1766, 0.0
        %vm2127 = vcmp.gt.f32.partialorder %v1807, 0.0
        %vm2128 = vcmp.gt.f32.partialorder %v1848, 0.0
        %vm2129 = vcmp.gt.f32.partialorder %v1889, 0.0
        %vm2130 = vcmp.gt.f32.partialorder %v1930, 0.0
        %vm2131 = vcmp.gt.f32.partialorder %v1971, 0.0
        %vm2132 = vcmp.gt.f32.partialorder %v785, 0.0
        %vm2133 = vcmp.gt.f32.partialorder %v826, 0.0
        %vm2134 = vcmp.gt.f32.partialorder %v867, 0.0
        %vm2135 = vcmp.gt.f32.partialorder %v908, 0.0
        %vm2136 = vcmp.gt.f32.partialorder %v949, 0.0
        %vm2137 = vcmp.gt.f32.partialorder %v990, 0.0
        %vm2138 = vcmp.gt.f32.partialorder %v1031, 0.0
        %vm2139 = vcmp.gt.f32.partialorder %v1072, 0.0
        %vm2140 = vcmp.gt.f32.partialorder %v1113, 0.0
        %vm2141 = vcmp.gt.f32.partialorder %v1154, 0.0
        %vm2142 = vcmp.gt.f32.partialorder %v1195, 0.0
        %vm2143 = vcmp.gt.f32.partialorder %v1236, 0.0
        %vm2144 = vcmp.gt.f32.partialorder %v1277, 0.0
        %vm2145 = vcmp.gt.f32.partialorder %v1318, 0.0
        %vm2146 = vcmp.gt.f32.partialorder %v1359, 0.0
        %vm2147 = vcmp.gt.f32.partialorder %v1400, 0.0
        %vm2148 = vcmp.gt.f32.partialorder %v1441, 0.0
        %vm2149 = vcmp.gt.f32.partialorder %v1482, 0.0
        %vm2150 = vcmp.gt.f32.partialorder %v1523, 0.0
        %vm2151 = vcmp.gt.f32.partialorder %v1564, 0.0
        %vm2152 = vcmp.gt.f32.partialorder %v1605, 0.0
        %vm2153 = vcmp.gt.f32.partialorder %v1646, 0.0
        %vm2154 = vcmp.gt.f32.partialorder %v1687, 0.0
        %vm2155 = vcmp.gt.f32.partialorder %v1728, 0.0
        %vm2156 = vcmp.gt.f32.partialorder %v1769, 0.0
        %vm2157 = vcmp.gt.f32.partialorder %v1810, 0.0
        %vm2158 = vcmp.gt.f32.partialorder %v1851, 0.0
        %vm2159 = vcmp.gt.f32.partialorder %v1892, 0.0
        %vm2160 = vcmp.gt.f32.partialorder %v1933, 0.0
        %vm2161 = vcmp.gt.f32.partialorder %v1974, 0.0
        %vm2162 = vcmp.gt.f32.partialorder %v788, 0.0
        %vm2163 = vcmp.gt.f32.partialorder %v829, 0.0
        %vm2164 = vcmp.gt.f32.partialorder %v870, 0.0
        %vm2165 = vcmp.gt.f32.partialorder %v911, 0.0
        %vm2166 = vcmp.gt.f32.partialorder %v952, 0.0
        %vm2167 = vcmp.gt.f32.partialorder %v993, 0.0
        %vm2168 = vcmp.gt.f32.partialorder %v1034, 0.0
        %vm2169 = vcmp.gt.f32.partialorder %v1075, 0.0
        %vm2170 = vcmp.gt.f32.partialorder %v1116, 0.0
        %vm2171 = vcmp.gt.f32.partialorder %v1157, 0.0
        %vm2172 = vcmp.gt.f32.partialorder %v1198, 0.0
        %vm2173 = vcmp.gt.f32.partialorder %v1239, 0.0
        %vm2174 = vcmp.gt.f32.partialorder %v1280, 0.0
        %vm2175 = vcmp.gt.f32.partialorder %v1321, 0.0
        %vm2176 = vcmp.gt.f32.partialorder %v1362, 0.0
        %vm2177 = vcmp.gt.f32.partialorder %v1403, 0.0
        %vm2178 = vcmp.gt.f32.partialorder %v1444, 0.0
        %vm2179 = vcmp.gt.f32.partialorder %v1485, 0.0
        %vm2180 = vcmp.gt.f32.partialorder %v1526, 0.0
        %vm2181 = vcmp.gt.f32.partialorder %v1567, 0.0
        %vm2182 = vcmp.gt.f32.partialorder %v1608, 0.0
        %vm2183 = vcmp.gt.f32.partialorder %v1649, 0.0
        %vm2184 = vcmp.gt.f32.partialorder %v1690, 0.0
        %vm2185 = vcmp.gt.f32.partialorder %v1731, 0.0
        %vm2186 = vcmp.gt.f32.partialorder %v1772, 0.0
        %vm2187 = vcmp.gt.f32.partialorder %v1813, 0.0
        %vm2188 = vcmp.gt.f32.partialorder %v1854, 0.0
        %vm2189 = vcmp.gt.f32.partialorder %v1895, 0.0
        %vm2190 = vcmp.gt.f32.partialorder %v1936, 0.0
        %vm2191 = vcmp.gt.f32.partialorder %v1977, 0.0
        %vm2192 = vcmp.gt.f32.partialorder %v791, 0.0
        %vm2193 = vcmp.gt.f32.partialorder %v832, 0.0
        %vm2194 = vcmp.gt.f32.partialorder %v873, 0.0
        %vm2195 = vcmp.gt.f32.partialorder %v914, 0.0
        %vm2196 = vcmp.gt.f32.partialorder %v955, 0.0
        %vm2197 = vcmp.gt.f32.partialorder %v996, 0.0
        %vm2198 = vcmp.gt.f32.partialorder %v1037, 0.0
        %vm2199 = vcmp.gt.f32.partialorder %v1078, 0.0
        %vm2200 = vcmp.gt.f32.partialorder %v1119, 0.0
        %vm2201 = vcmp.gt.f32.partialorder %v1160, 0.0
        %vm2202 = vcmp.gt.f32.partialorder %v1201, 0.0
        %vm2203 = vcmp.gt.f32.partialorder %v1242, 0.0
        %vm2204 = vcmp.gt.f32.partialorder %v1283, 0.0
        %vm2205 = vcmp.gt.f32.partialorder %v1324, 0.0
        %vm2206 = vcmp.gt.f32.partialorder %v1365, 0.0
        %vm2207 = vcmp.gt.f32.partialorder %v1406, 0.0
        %vm2208 = vcmp.gt.f32.partialorder %v1447, 0.0
        %vm2209 = vcmp.gt.f32.partialorder %v1488, 0.0
        %vm2210 = vcmp.gt.f32.partialorder %v1529, 0.0
        %vm2211 = vcmp.gt.f32.partialorder %v1570, 0.0
        %vm2212 = vcmp.gt.f32.partialorder %v1611, 0.0
        %vm2213 = vcmp.gt.f32.partialorder %v1652, 0.0
        %vm2214 = vcmp.gt.f32.partialorder %v1693, 0.0
        %vm2215 = vcmp.gt.f32.partialorder %v1734, 0.0
        %vm2216 = vcmp.gt.f32.partialorder %v1775, 0.0
        %vm2217 = vcmp.gt.f32.partialorder %v1816, 0.0
        %vm2218 = vcmp.gt.f32.partialorder %v1857, 0.0
        %vm2219 = vcmp.gt.f32.partialorder %v1898, 0.0
        %vm2220 = vcmp.gt.f32.partialorder %v1939, 0.0
        %vm2221 = vcmp.gt.f32.partialorder %v1980, 0.0
        %v2222 = vmul.f32 %v770, 0.25
        %v2223 = vmul.f32 %v811, 0.25
        %v2224 = vmul.f32 %v852, 0.25
        %v2225 = vmul.f32 %v893, 0.25
        %v2226 = vmul.f32 %v934, 0.25
        %v2227 = vmul.f32 %v975, 0.25
        %v2228 = vmul.f32 %v1016, 0.25
        %v2229 = vmul.f32 %v1057, 0.25
        %v2230 = vmul.f32 %v1098, 0.25
        %v2231 = vmul.f32 %v1139, 0.25
        %v2232 = vmul.f32 %v1180, 0.25
        %v2233 = vmul.f32 %v1221, 0.25
        %v2234 = vmul.f32 %v1262, 0.25
        %v2235 = vmul.f32 %v1303, 0.25
        %v2236 = vmul.f32 %v1344, 0.25
        %v2237 = vmul.f32 %v1385, 0.25
        %v2238 = vmul.f32 %v1426, 0.25
        %v2239 = vmul.f32 %v1467, 0.25
        %v2240 = vmul.f32 %v1508, 0.25
        %v2241 = vmul.f32 %v1549, 0.25
        %v2242 = vmul.f32 %v1590, 0.25
        %v2243 = vmul.f32 %v1631, 0.25
        %v2244 = vmul.f32 %v1672, 0.25
        %v2245 = vmul.f32 %v1713, 0.25
        %v2246 = vmul.f32 %v1754, 0.25
        %v2247 = vmul.f32 %v1795, 0.25
        %v2248 = vmul.f32 %v1836, 0.25
        %v2249 = vmul.f32 %v1877, 0.25
        %v2250 = vmul.f32 %v1918, 0.25
        %v2251 = vmul.f32 %v1959, 0.25
        %v2252 = vmul.f32 %v773, 0.25
        %v2253 = vmul.f32 %v814, 0.25
        %v2254 = vmul.f32 %v855, 0.25
        %v2255 = vmul.f32 %v896, 0.25
        %v2256 = vmul.f32 %v937, 0.25
        %v2257 = vmul.f32 %v978, 0.25
        %v2258 = vmul.f32 %v1019, 0.25
        %v2259 = vmul.f32 %v1060, 0.25
        %v2260 = vmul.f32 %v1101, 0.25
        %v2261 = vmul.f32 %v1142, 0.25
        %v2262 = vmul.f32 %v1183, 0.25
        %v2263 = vmul.f32 %v1224, 0.25
        %v2264 = vmul.f32 %v1265, 0.25
        %v2265 = vmul.f32 %v1306, 0.25
        %v2266 = vmul.f32 %v1347, 0.25
        %v2267 = vmul.f32 %v1388, 0.25
        %v2268 = vmul.f32 %v1429, 0.25
        %v2269 = vmul.f32 %v1470, 0.25
        %v2270 = vmul.f32 %v1511, 0.25
        %v2271 = vmul.f32 %v1552, 0.25
        %v2272 = vmul.f32 %v1593, 0.25
        %v2273 = vmul.f32 %v1634, 0.25
        %v2274 = vmul.f32 %v1675, 0.25
        %v2275 = vmul.f32 %v1716, 0.25
        %v2276 = vmul.f32 %v1757, 0.25
        %v2277 = vmul.f32 %v1798, 0.25
        %v2278 = vmul.f32 %v1839, 0.25
        %v2279 = vmul.f32 %v1880, 0.25
        %v2280 = vmul.f32 %v1921, 0.25
        %v2281 = vmul.f32 %v1962, 0.25
        %v2282 = vmul.f32 %v776, 0.25
        %v2283 = vmul.f32 %v817, 0.25
        %v2284 = vmul.f32 %v858, 0.25
        %v2285 = vmul.f32 %v899, 0.25
        %v2286 = vmul.f32 %v940, 0.25
        %v2287 = vmul.f32 %v981, 0.25
        %v2288 = vmul.f32 %v1022, 0.25
        %v2289 = vmul.f32 %v1063, 0.25
        %v2290 = vmul.f32 %v1104, 0.25
        %v2291 = vmul.f32 %v1145, 0.25
        %v2292 = vmul.f32 %v1186, 0.25
        %v2293 = vmul.f32 %v1227, 0.25
        %v2294 = vmul.f32 %v1268, 0.25
        %v2295 = vmul.f32 %v1309, 0.25
        %v2296 = vmul.f32 %v1350, 0.25
        %v2297 = vmul.f32 %v1391, 0.25
        %v2298 = vmul.f32 %v1432, 0.25
        %v2299 = vmul.f32 %v1473, 0.25
        %v2300 = vmul.f32 %v1514, 0.25
        %v2301 = vmul.f32 %v1555, 0.25
        %v2302 = vmul.f32 %v1596, 0.25
        %v2303 = vmul.f32 %v1637, 0.25
        %v2304 = vmul.f32 %v1678, 0.25
        %v2305 = vmul.f32 %v1719, 0.25
        %v2306 = vmul.f32 %v1760, 0.25
        %v2307 = vmul.f32 %v1801, 0.25
        %v2308 = vmul.f32 %v1842, 0.25
        %v2309 = vmul.f32 %v1883, 0.25
        %v2310 = vmul.f32 %v1924, 0.25
        %v2311 = vmul.f32 %v1965, 0.25
        %v2312 = vmul.f32 %v779, 0.25
        %v2313 = vmul.f32 %v820, 0.25
        %v2314 = vmul.f32 %v861, 0.25
        %v2315 = vmul.f32 %v902, 0.25
        %v2316 = vmul.f32 %v943, 0.25
        %v2317 = vmul.f32 %v984, 0.25
        %v2318 = vmul.f32 %v1025, 0.25
        %v2319 = vmul.f32 %v1066, 0.25
        %v2320 = vmul.f32 %v1107, 0.25
        %v2321 = vmul.f32 %v1148, 0.25
        %v2322 = vmul.f32 %v1189, 0.25
        %v2323 = vmul.f32 %v1230, 0.25
        %v2324 = vmul.f32 %v1271, 0.25
        %v2325 = vmul.f32 %v1312, 0.25
        %v2326 = vmul.f32 %v1353, 0.25
        %v2327 = vmul.f32 %v1394, 0.25
        %v2328 = vmul.f32 %v1435, 0.25
        %v2329 = vmul.f32 %v1476, 0.25
        %v2330 = vmul.f32 %v1517, 0.25
        %v2331 = vmul.f32 %v1558, 0.25
        %v2332 = vmul.f32 %v1599, 0.25
        %v2333 = vmul.f32 %v1640, 0.25
        %v2334 = vmul.f32 %v1681, 0.25
        %v2335 = vmul.f32 %v1722, 0.25
        %v2336 = vmul.f32 %v1763, 0.25
        %v2337 = vmul.f32 %v1804, 0.25
        %v2338 = vmul.f32 %v1845, 0.25
        %v2339 = vmul.f32 %v1886, 0.25
        %v2340 = vmul.f32 %v1927, 0.25
        %v2341 = vmul.f32 %v1968, 0.25
        %v2342 = vmul.f32 %v782, 0.25
        %v2343 = vmul.f32 %v823, 0.25
        %v2344 = vmul.f32 %v864, 0.25
        %v2345 = vmul.f32 %v905, 0.25
        %v2346 = vmul.f32 %v946, 0.25
        %v2347 = vmul.f32 %v987, 0.25
        %v2348 = vmul.f32 %v1028, 0.25
        %v2349 = vmul.f32 %v1069, 0.25
        %v2350 = vmul.f32 %v1110, 0.25
        %v2351 = vmul.f32 %v1151, 0.25
        %v2352 = vmul.f32 %v1192, 0.25
        %v2353 = vmul.f32 %v1233, 0.25
        %v2354 = vmul.f32 %v1274, 0.25
        %v2355 = vmul.f32 %v1315, 0.25
        %v2356 = vmul.f32 %v1356, 0.25
        %v2357 = vmul.f32 %v1397, 0.25
        %v2358 = vmul.f32 %v1438, 0.25
        %v2359 = vmul.f32 %v1479, 0.25
        %v2360 = vmul.f32 %v1520, 0.25
        %v2361 = vmul.f32 %v1561, 0.25
        %v2362 = vmul.f32 %v1602, 0.25
        %v2363 = vmul.f32 %v1643, 0.25
        %v2364 = vmul.f32 %v1684, 0.25
        %v2365 = vmul.f32 %v1725, 0.25
        %v2366 = vmul.f32 %v1766, 0.25
        %v2367 = vmul.f32 %v1807, 0.25
        %v2368 = vmul.f32 %v1848, 0.25
        %v2369 = vmul.f32 %v1889, 0.25
        %v2370 = vmul.f32 %v1930, 0.25
        %v2371 = vmul.f32 %v1971, 0.25
        %v2372 = vmul.f32 %v785, 0.25
        %v2373 = vmul.f32 %v826, 0.25
        %v2374 = vmul.f32 %v867, 0.25
        %v2375 = vmul.f32 %v908, 0.25
        %v2376 = vmul.f32 %v949, 0.25
        %v2377 = vmul.f32 %v990, 0.25
        %v2378 = vmul.f32 %v1031, 0.25
        %v2379 = vmul.f32 %v1072, 0.25
        %v2380 = vmul.f32 %v1113, 0.25
        %v2381 = vmul.f32 %v1154, 0.25
        %v2382 = vmul.f32 %v1195, 0.25
        %v2383 = vmul.f32 %v1236, 0.25
        %v2384 = vmul.f32 %v1277, 0.25
        %v2385 = vmul.f32 %v1318, 0.25
        %v2386 = vmul.f32 %v1359, 0.25
        %v2387 = vmul.f32 %v1400, 0.25
        %v2388 = vmul.f32 %v1441, 0.25
        %v2389 = vmul.f32 %v1482, 0.25
        %v2390 = vmul.f32 %v1523, 0.25
        %v2391 = vmul.f32 %v1564, 0.25
        %v2392 = vmul.f32 %v1605, 0.25
        %v2393 = vmul.f32 %v1646, 0.25
        %v2394 = vmul.f32 %v1687, 0.25
        %v2395 = vmul.f32 %v1728, 0.25
        %v2396 = vmul.f32 %v1769, 0.25
        %v2397 = vmul.f32 %v1810, 0.25
        %v2398 = vmul.f32 %v1851, 0.25
        %v2399 = vmul.f32 %v1892, 0.25
        %v2400 = vmul.f32 %v1933, 0.25
        %v2401 = vmul.f32 %v1974, 0.25
        %v2402 = vmul.f32 %v788, 0.25
        %v2403 = vmul.f32 %v829, 0.25
        %v2404 = vmul.f32 %v870, 0.25
        %v2405 = vmul.f32 %v911, 0.25
        %v2406 = vmul.f32 %v952, 0.25
        %v2407 = vmul.f32 %v993, 0.25
        %v2408 = vmul.f32 %v1034, 0.25
        %v2409 = vmul.f32 %v1075, 0.25
        %v2410 = vmul.f32 %v1116, 0.25
        %v2411 = vmul.f32 %v1157, 0.25
        %v2412 = vmul.f32 %v1198, 0.25
        %v2413 = vmul.f32 %v1239, 0.25
        %v2414 = vmul.f32 %v1280, 0.25
        %v2415 = vmul.f32 %v1321, 0.25
        %v2416 = vmul.f32 %v1362, 0.25
        %v2417 = vmul.f32 %v1403, 0.25
        %v2418 = vmul.f32 %v1444, 0.25
        %v2419 = vmul.f32 %v1485, 0.25
        %v2420 = vmul.f32 %v1526, 0.25
        %v2421 = vmul.f32 %v1567, 0.25
        %v2422 = vmul.f32 %v1608, 0.25
        %v2423 = vmul.f32 %v1649, 0.25
        %v2424 = vmul.f32 %v1690, 0.25
        %v2425 = vmul.f32 %v1731, 0.25
        %v2426 = vmul.f32 %v1772, 0.25
        %v2427 = vmul.f32 %v1813, 0.25
        %v2428 = vmul.f32 %v1854, 0.25
        %v2429 = vmul.f32 %v1895, 0.25
        %v2430 = vmul.f32 %v1936, 0.25
        %v2431 = vmul.f32 %v1977, 0.25
        %v2432 = vmul.f32 %v791, 0.25
        %v2433 = vmul.f32 %v832, 0.25
        %v2434 = vmul.f32 %v873, 0.25
        %v2435 = vmul.f32 %v914, 0.25
        %v2436 = vmul.f32 %v955, 0.25
        %v2437 = vmul.f32 %v996, 0.25
        %v2438 = vmul.f32 %v1037, 0.25
        %v2439 = vmul.f32 %v1078, 0.25
        %v2440 = vmul.f32 %v1119, 0.25
        %v2441 = vmul.f32 %v1160, 0.25
        %v2442 = vmul.f32 %v1201, 0.25
        %v2443 = vmul.f32 %v1242, 0.25
        %v2444 = vmul.f32 %v1283, 0.25
        %v2445 = vmul.f32 %v1324, 0.25
        %v2446 = vmul.f32 %v1365, 0.25
        %v2447 = vmul.f32 %v1406, 0.25
        %v2448 = vmul.f32 %v1447, 0.25
        %v2449 = vmul.f32 %v1488, 0.25
        %v2450 = vmul.f32 %v1529, 0.25
        %v2451 = vmul.f32 %v1570, 0.25
        %v2452 = vmul.f32 %v1611, 0.25
        %v2453 = vmul.f32 %v1652, 0.25
        %v2454 = vmul.f32 %v1693, 0.25
        %v2455 = vmul.f32 %v1734, 0.25
        %v2456 = vmul.f32 %v1775, 0.25
        %v2457 = vmul.f32 %v1816, 0.25
        %v2458 = vmul.f32 %v1857, 0.25
        %v2459 = vmul.f32 %v1898, 0.25
        %v2460 = vmul.f32 %v1939, 0.25
        %v2461 = vmul.f32 %v1980, 0.25
        %v2462 = vsel %vm1982, %v770, %v2222
        %v2463 = vsel %vm1983, %v811, %v2223
        %v2464 = vsel %vm1984, %v852, %v2224
        %v2465 = vsel %vm1985, %v893, %v2225
        %v2466 = vsel %vm1986, %v934, %v2226
        %v2467 = vsel %vm1987, %v975, %v2227
        %v2468 = vsel %vm1988, %v1016, %v2228
        %v2469 = vsel %vm1989, %v1057, %v2229
        %v2470 = vsel %vm1990, %v1098, %v2230
        %v2471 = vsel %vm1991, %v1139, %v2231
        %v2472 = vsel %vm1992, %v1180, %v2232
        %v2473 = vsel %vm1993, %v1221, %v2233
        %v2474 = vsel %vm1994, %v1262, %v2234
        %v2475 = vsel %vm1995, %v1303, %v2235
        %v2476 = vsel %vm1996, %v1344, %v2236
        %v2477 = vsel %vm1997, %v1385, %v2237
        %v2478 = vsel %vm1998, %v1426, %v2238
        %v2479 = vsel %vm1999, %v1467, %v2239
        %v2480 = vsel %vm2000, %v1508, %v2240
        %v2481 = vsel %vm2001, %v1549, %v2241
        %v2482 = vsel %vm2002, %v1590, %v2242
        %v2483 = vsel %vm2003, %v1631, %v2243
        %v2484 = vsel %vm2004, %v1672, %v2244
        %v2485 = vsel %vm2005, %v1713, %v2245
        %v2486 = vsel %vm2006, %v1754, %v2246
        %v2487 = vsel %vm2007, %v1795, %v2247
        %v2488 = vsel %vm2008, %v1836, %v2248
        %v2489 = vsel %vm2009, %v1877, %v2249
        %v2490 = vsel %vm2010, %v1918, %v2250
        %v2491 = vsel %vm2011, %v1959, %v2251
        %v2492 = vsel %vm2012, %v773, %v2252
        %v2493 = vsel %vm2013, %v814, %v2253
        %v2494 = vsel %vm2014, %v855, %v2254
        %v2495 = vsel %vm2015, %v896, %v2255
        %v2496 = vsel %vm2016, %v937, %v2256
        %v2497 = vsel %vm2017, %v978, %v2257
        %v2498 = vsel %vm2018, %v1019, %v2258
        %v2499 = vsel %vm2019, %v1060, %v2259
        %v2500 = vsel %vm2020, %v1101, %v2260
        %v2501 = vsel %vm2021, %v1142, %v2261
        %v2502 = vsel %vm2022, %v1183, %v2262
        %v2503 = vsel %vm2023, %v1224, %v2263
        %v2504 = vsel %vm2024, %v1265, %v2264
        %v2505 = vsel %vm2025, %v1306, %v2265
        %v2506 = vsel %vm2026, %v1347, %v2266
        %v2507 = vsel %vm2027, %v1388, %v2267
        %v2508 = vsel %vm2028, %v1429, %v2268
        %v2509 = vsel %vm2029, %v1470, %v2269
        %v2510 = vsel %vm2030, %v1511, %v2270
        %v2511 = vsel %vm2031, %v1552, %v2271
        %v2512 = vsel %vm2032, %v1593, %v2272
        %v2513 = vsel %vm2033, %v1634, %v2273
        %v2514 = vsel %vm2034, %v1675, %v2274
        %v2515 = vsel %vm2035, %v1716, %v2275
        %v2516 = vsel %vm2036, %v1757, %v2276
        %v2517 = vsel %vm2037, %v1798, %v2277
        %v2518 = vsel %vm2038, %v1839, %v2278
        %v2519 = vsel %vm2039, %v1880, %v2279
        %v2520 = vsel %vm2040, %v1921, %v2280
        %v2521 = vsel %vm2041, %v1962, %v2281
        %v2522 = vsel %vm2042, %v776, %v2282
        %v2523 = vsel %vm2043, %v817, %v2283
        %v2524 = vsel %vm2044, %v858, %v2284
        %v2525 = vsel %vm2045, %v899, %v2285
        %v2526 = vsel %vm2046, %v940, %v2286
        %v2527 = vsel %vm2047, %v981, %v2287
        %v2528 = vsel %vm2048, %v1022, %v2288
        %v2529 = vsel %vm2049, %v1063, %v2289
        %v2530 = vsel %vm2050, %v1104, %v2290
        %v2531 = vsel %vm2051, %v1145, %v2291
        %v2532 = vsel %vm2052, %v1186, %v2292
        %v2533 = vsel %vm2053, %v1227, %v2293
        %v2534 = vsel %vm2054, %v1268, %v2294
        %v2535 = vsel %vm2055, %v1309, %v2295
        %v2536 = vsel %vm2056, %v1350, %v2296
        %v2537 = vsel %vm2057, %v1391, %v2297
        %v2538 = vsel %vm2058, %v1432, %v2298
        %v2539 = vsel %vm2059, %v1473, %v2299
        %v2540 = vsel %vm2060, %v1514, %v2300
        %v2541 = vsel %vm2061, %v1555, %v2301
        %v2542 = vsel %vm2062, %v1596, %v2302
        %v2543 = vsel %vm2063, %v1637, %v2303
        %v2544 = vsel %vm2064, %v1678, %v2304
        %v2545 = vsel %vm2065, %v1719, %v2305
        %v2546 = vsel %vm2066, %v1760, %v2306
        %v2547 = vsel %vm2067, %v1801, %v2307
        %v2548 = vsel %vm2068, %v1842, %v2308
        %v2549 = vsel %vm2069, %v1883, %v2309
        %v2550 = vsel %vm2070, %v1924, %v2310
        %v2551 = vsel %vm2071, %v1965, %v2311
        %v2552 = vsel %vm2072, %v779, %v2312
        %v2553 = vsel %vm2073, %v820, %v2313
        %v2554 = vsel %vm2074, %v861, %v2314
        %v2555 = vsel %vm2075, %v902, %v2315
        %v2556 = vsel %vm2076, %v943, %v2316
        %v2557 = vsel %vm2077, %v984, %v2317
        %v2558 = vsel %vm2078, %v1025, %v2318
        %v2559 = vsel %vm2079, %v1066, %v2319
        %v2560 = vsel %vm2080, %v1107, %v2320
        %v2561 = vsel %vm2081, %v1148, %v2321
        %v2562 = vsel %vm2082, %v1189, %v2322
        %v2563 = vsel %vm2083, %v1230, %v2323
        %v2564 = vsel %vm2084, %v1271, %v2324
        %v2565 = vsel %vm2085, %v1312, %v2325
        %v2566 = vsel %vm2086, %v1353, %v2326
        %v2567 = vsel %vm2087, %v1394, %v2327
        %v2568 = vsel %vm2088, %v1435, %v2328
        %v2569 = vsel %vm2089, %v1476, %v2329
        %v2570 = vsel %vm2090, %v1517, %v2330
        %v2571 = vsel %vm2091, %v1558, %v2331
        %v2572 = vsel %vm2092, %v1599, %v2332
        %v2573 = vsel %vm2093, %v1640, %v2333
        %v2574 = vsel %vm2094, %v1681, %v2334
        %v2575 = vsel %vm2095, %v1722, %v2335
        %v2576 = vsel %vm2096, %v1763, %v2336
        %v2577 = vsel %vm2097, %v1804, %v2337
        %v2578 = vsel %vm2098, %v1845, %v2338
        %v2579 = vsel %vm2099, %v1886, %v2339
        %v2580 = vsel %vm2100, %v1927, %v2340
        %v2581 = vsel %vm2101, %v1968, %v2341
        %v2582 = vsel %vm2102, %v782, %v2342
        %v2583 = vsel %vm2103, %v823, %v2343
        %v2584 = vsel %vm2104, %v864, %v2344
        %v2585 = vsel %vm2105, %v905, %v2345
        %v2586 = vsel %vm2106, %v946, %v2346
        %v2587 = vsel %vm2107, %v987, %v2347
        %v2588 = vsel %vm2108, %v1028, %v2348
        %v2589 = vsel %vm2109, %v1069, %v2349
        %v2590 = vsel %vm2110, %v1110, %v2350
        %v2591 = vsel %vm2111, %v1151, %v2351
        %v2592 = vsel %vm2112, %v1192, %v2352
        %v2593 = vsel %vm2113, %v1233, %v2353
        %v2594 = vsel %vm2114, %v1274, %v2354
        %v2595 = vsel %vm2115, %v1315, %v2355
        %v2596 = vsel %vm2116, %v1356, %v2356
        %v2597 = vsel %vm2117, %v1397, %v2357
        %v2598 = vsel %vm2118, %v1438, %v2358
        %v2599 = vsel %vm2119, %v1479, %v2359
        %v2600 = vsel %vm2120, %v1520, %v2360
        %v2601 = vsel %vm2121, %v1561, %v2361
        %v2602 = vsel %vm2122, %v1602, %v2362
        %v2603 = vsel %vm2123, %v1643, %v2363
        %v2604 = vsel %vm2124, %v1684, %v2364
        %v2605 = vsel %vm2125, %v1725, %v2365
        %v2606 = vsel %vm2126, %v1766, %v2366
        %v2607 = vsel %vm2127, %v1807, %v2367
        %v2608 = vsel %vm2128, %v1848, %v2368
        %v2609 = vsel %vm2129, %v1889, %v2369
        %v2610 = vsel %vm2130, %v1930, %v2370
        %v2611 = vsel %vm2131, %v1971, %v2371
        %v2612 = vsel %vm2132, %v785, %v2372
        %v2613 = vsel %vm2133, %v826, %v2373
        %v2614 = vsel %vm2134, %v867, %v2374
        %v2615 = vsel %vm2135, %v908, %v2375
        %v2616 = vsel %vm2136, %v949, %v2376
        %v2617 = vsel %vm2137, %v990, %v2377
        %v2618 = vsel %vm2138, %v1031, %v2378
        %v2619 = vsel %vm2139, %v1072, %v2379
        %v2620 = vsel %vm2140, %v1113, %v2380
        %v2621 = vsel %vm2141, %v1154, %v2381
        %v2622 = vsel %vm2142, %v1195, %v2382
        %v2623 = vsel %vm2143, %v1236, %v2383
        %v2624 = vsel %vm2144, %v1277, %v2384
        %v2625 = vsel %vm2145, %v1318, %v2385
        %v2626 = vsel %vm2146, %v1359, %v2386
        %v2627 = vsel %vm2147, %v1400, %v2387
        %v2628 = vsel %vm2148, %v1441, %v2388
        %v2629 = vsel %vm2149, %v1482, %v2389
        %v2630 = vsel %vm2150, %v1523, %v2390
        %v2631 = vsel %vm2151, %v1564, %v2391
        %v2632 = vsel %vm2152, %v1605, %v2392
        %v2633 = vsel %vm2153, %v1646, %v2393
        %v2634 = vsel %vm2154, %v1687, %v2394
        %v2635 = vsel %vm2155, %v1728, %v2395
        %v2636 = vsel %vm2156, %v1769, %v2396
        %v2637 = vsel %vm2157, %v1810, %v2397
        %v2638 = vsel %vm2158, %v1851, %v2398
        %v2639 = vsel %vm2159, %v1892, %v2399
        %v2640 = vsel %vm2160, %v1933, %v2400
        %v2641 = vsel %vm2161, %v1974, %v2401
        %v2642 = vsel %vm2162, %v788, %v2402
        %v2643 = vsel %vm2163, %v829, %v2403
        %v2644 = vsel %vm2164, %v870, %v2404
        %v2645 = vsel %vm2165, %v911, %v2405
        %v2646 = vsel %vm2166, %v952, %v2406
        %v2647 = vsel %vm2167, %v993, %v2407
        %v2648 = vsel %vm2168, %v1034, %v2408
        %v2649 = vsel %vm2169, %v1075, %v2409
        %v2650 = vsel %vm2170, %v1116, %v2410
        %v2651 = vsel %vm2171, %v1157, %v2411
        %v2652 = vsel %vm2172, %v1198, %v2412
        %v2653 = vsel %vm2173, %v1239, %v2413
        %v2654 = vsel %vm2174, %v1280, %v2414
        %v2655 = vsel %vm2175, %v1321, %v2415
        %v2656 = vsel %vm2176, %v1362, %v2416
        %v2657 = vsel %vm2177, %v1403, %v2417
        %v2658 = vsel %vm2178, %v1444, %v2418
        %v2659 = vsel %vm2179, %v1485, %v2419
        %v2660 = vsel %vm2180, %v1526, %v2420
        %v2661 = vsel %vm2181, %v1567, %v2421
        %v2662 = vsel %vm2182, %v1608, %v2422
        %v2663 = vsel %vm2183, %v1649, %v2423
        %v2664 = vsel %vm2184, %v1690, %v2424
        %v2665 = vsel %vm2185, %v1731, %v2425
        %v2666 = vsel %vm2186, %v1772, %v2426
        %v2667 = vsel %vm2187, %v1813, %v2427
        %v2668 = vsel %vm2188, %v1854, %v2428
        %v2669 = vsel %vm2189, %v1895, %v2429
        %v2670 = vsel %vm2190, %v1936, %v2430
        %v2671 = vsel %vm2191, %v1977, %v2431
        %v2672 = vsel %vm2192, %v791, %v2432
        %v2673 = vsel %vm2193, %v832, %v2433
        %v2674 = vsel %vm2194, %v873, %v2434
        %v2675 = vsel %vm2195, %v914, %v2435
        %v2676 = vsel %vm2196, %v955, %v2436
        %v2677 = vsel %vm2197, %v996, %v2437
        %v2678 = vsel %vm2198, %v1037, %v2438
        %v2679 = vsel %vm2199, %v1078, %v2439
        %v2680 = vsel %vm2200, %v1119, %v2440
        %v2681 = vsel %vm2201, %v1160, %v2441
        %v2682 = vsel %vm2202, %v1201, %v2442
        %v2683 = vsel %vm2203, %v1242, %v2443
        %v2684 = vsel %vm2204, %v1283, %v2444
        %v2685 = vsel %vm2205, %v1324, %v2445
        %v2686 = vsel %vm2206, %v1365, %v2446
        %v2687 = vsel %vm2207, %v1406, %v2447
        %v2688 = vsel %vm2208, %v1447, %v2448
        %v2689 = vsel %vm2209, %v1488, %v2449
        %v2690 = vsel %vm2210, %v1529, %v2450
        %v2691 = vsel %vm2211, %v1570, %v2451
        %v2692 = vsel %vm2212, %v1611, %v2452
        %v2693 = vsel %vm2213, %v1652, %v2453
        %v2694 = vsel %vm2214, %v1693, %v2454
        %v2695 = vsel %vm2215, %v1734, %v2455
        %v2696 = vsel %vm2216, %v1775, %v2456
        %v2697 = vsel %vm2217, %v1816, %v2457
        %v2698 = vsel %vm2218, %v1857, %v2458
        %v2699 = vsel %vm2219, %v1898, %v2459
        %v2700 = vsel %vm2220, %v1939, %v2460
        %v2701 = vsel %vm2221, %v1980, %v2461
        %v2702 = vlaneseq
        %v2703 = vshrl.u32 %v2702, 7
        %v2704 = vadd.s32 %v2703, 8
        %v2705 = vadd.s32 %v2703, 16
        %v2706 = vadd.s32 %v2703, 24
        %v2707 = vadd.s32 %v2703, 32
        %v2708 = vadd.s32 %v2703, 40
        %v2709 = vadd.s32 %v2703, 48
        %v2710 = vadd.s32 %v2703, 56
        %vm2711 = vcmp.lt.s32.totalorder %v2703, 0
        %v2712 = vsub.s32 0, %v2703
        %v2713 = vsel %vm2711, %v2712, %v2703
        %v2714 = vshrl.u32 %v2713, 4
        %v2715 = vand.u32 %v2713, 15
        %v2716 = vsub.s32 0, %v2715
        %v2717 = vsel %vm2711, %v2716, %v2715
        %vm2718 = vcmp.lt.s32.totalorder %v2704, 0
        %v2719 = vsub.s32 0, %v2704
        %v2720 = vsel %vm2718, %v2719, %v2704
        %v2721 = vshrl.u32 %v2720, 4
        %v2722 = vand.u32 %v2720, 15
        %v2723 = vsub.s32 0, %v2722
        %v2724 = vsel %vm2718, %v2723, %v2722
        %vm2725 = vcmp.lt.s32.totalorder %v2705, 0
        %v2726 = vsub.s32 0, %v2705
        %v2727 = vsel %vm2725, %v2726, %v2705
        %v2728 = vshrl.u32 %v2727, 4
        %v2729 = vand.u32 %v2727, 15
        %v2730 = vsub.s32 0, %v2729
        %v2731 = vsel %vm2725, %v2730, %v2729
        %vm2732 = vcmp.lt.s32.totalorder %v2706, 0
        %v2733 = vsub.s32 0, %v2706
        %v2734 = vsel %vm2732, %v2733, %v2706
        %v2735 = vshrl.u32 %v2734, 4
        %v2736 = vand.u32 %v2734, 15
        %v2737 = vsub.s32 0, %v2736
        %v2738 = vsel %vm2732, %v2737, %v2736
        %vm2739 = vcmp.lt.s32.totalorder %v2707, 0
        %v2740 = vsub.s32 0, %v2707
        %v2741 = vsel %vm2739, %v2740, %v2707
        %v2742 = vshrl.u32 %v2741, 4
        %v2743 = vand.u32 %v2741, 15
        %v2744 = vsub.s32 0, %v2743
        %v2745 = vsel %vm2739, %v2744, %v2743
        %vm2746 = vcmp.lt.s32.totalorder %v2708, 0
        %v2747 = vsub.s32 0, %v2708
        %v2748 = vsel %vm2746, %v2747, %v2708
        %v2749 = vshrl.u32 %v2748, 4
        %v2750 = vand.u32 %v2748, 15
        %v2751 = vsub.s32 0, %v2750
        %v2752 = vsel %vm2746, %v2751, %v2750
        %vm2753 = vcmp.lt.s32.totalorder %v2709, 0
        %v2754 = vsub.s32 0, %v2709
        %v2755 = vsel %vm2753, %v2754, %v2709
        %v2756 = vshrl.u32 %v2755, 4
        %v2757 = vand.u32 %v2755, 15
        %v2758 = vsub.s32 0, %v2757
        %v2759 = vsel %vm2753, %v2758, %v2757
        %vm2760 = vcmp.lt.s32.totalorder %v2710, 0
        %v2761 = vsub.s32 0, %v2710
        %v2762 = vsel %vm2760, %v2761, %v2710
        %v2763 = vshrl.u32 %v2762, 4
        %v2764 = vand.u32 %v2762, 15
        %v2765 = vsub.s32 0, %v2764
        %v2766 = vsel %vm2760, %v2765, %v2764
        %vm2767 = vcmp.ne.s32.totalorder %v2717, 0
        %vm2768 = vcmp.ne.s32.totalorder %v2724, 0
        %vm2769 = vcmp.ne.s32.totalorder %v2731, 0
        %vm2770 = vcmp.ne.s32.totalorder %v2738, 0
        %vm2771 = vcmp.ne.s32.totalorder %v2745, 0
        %vm2772 = vcmp.ne.s32.totalorder %v2752, 0
        %vm2773 = vcmp.ne.s32.totalorder %v2759, 0
        %vm2774 = vcmp.ne.s32.totalorder %v2766, 0
        %vm2775 = vcmp.lt.s32.totalorder %v2717, 0
        %vm2776 = vcmp.lt.s32.totalorder %v2724, 0
        %vm2777 = vcmp.lt.s32.totalorder %v2731, 0
        %vm2778 = vcmp.lt.s32.totalorder %v2738, 0
        %vm2779 = vcmp.lt.s32.totalorder %v2745, 0
        %vm2780 = vcmp.lt.s32.totalorder %v2752, 0
        %vm2781 = vcmp.lt.s32.totalorder %v2759, 0
        %vm2782 = vcmp.lt.s32.totalorder %v2766, 0
        %vm2783 = vmand %vm2775, %vm2767
        %vm2784 = vmand %vm2776, %vm2768
        %vm2785 = vmand %vm2777, %vm2769
        %vm2786 = vmand %vm2778, %vm2770
        %vm2787 = vmand %vm2779, %vm2771
        %vm2788 = vmand %vm2780, %vm2772
        %vm2789 = vmand %vm2781, %vm2773
        %vm2790 = vmand %vm2782, %vm2774
        %v2791 = vadd.s32 %v2717, 16
        %v2792 = vadd.s32 %v2724, 16
        %v2793 = vadd.s32 %v2731, 16
        %v2794 = vadd.s32 %v2738, 16
        %v2795 = vadd.s32 %v2745, 16
        %v2796 = vadd.s32 %v2752, 16
        %v2797 = vadd.s32 %v2759, 16
        %v2798 = vadd.s32 %v2766, 16
        %v2799 = vsel %vm2783, %v2791, %v2717
        %v2800 = vsel %vm2784, %v2792, %v2724
        %v2801 = vsel %vm2785, %v2793, %v2731
        %v2802 = vsel %vm2786, %v2794, %v2738
        %v2803 = vsel %vm2787, %v2795, %v2745
        %v2804 = vsel %vm2788, %v2796, %v2752
        %v2805 = vsel %vm2789, %v2797, %v2759
        %v2806 = vsel %vm2790, %v2798, %v2766
        %vm2807 = vcmp.lt.s32.totalorder %v2799, 11
        %vm2808 = vcmp.lt.s32.totalorder %v2800, 11
        %vm2809 = vcmp.lt.s32.totalorder %v2801, 11
        %vm2810 = vcmp.lt.s32.totalorder %v2802, 11
        %vm2811 = vcmp.lt.s32.totalorder %v2803, 11
        %vm2812 = vcmp.lt.s32.totalorder %v2804, 11
        %vm2813 = vcmp.lt.s32.totalorder %v2805, 11
        %vm2814 = vcmp.lt.s32.totalorder %v2806, 11
        %v2815 = vsel %vm2807, 1, 0
        %v2816 = vsel %vm2808, 1, 0
        %v2817 = vsel %vm2809, 1, 0
        %v2818 = vsel %vm2810, 1, 0
        %v2819 = vsel %vm2811, 1, 0
        %v2820 = vsel %vm2812, 1, 0
        %v2821 = vsel %vm2813, 1, 0
        %v2822 = vsel %vm2814, 1, 0
        %vm2823 = vcmp.eq.s32.totalorder %v2815, 1
        %vm2824 = vcmp.eq.s32.totalorder %v2816, 1
        %vm2825 = vcmp.eq.s32.totalorder %v2817, 1
        %vm2826 = vcmp.eq.s32.totalorder %v2818, 1
        %vm2827 = vcmp.eq.s32.totalorder %v2819, 1
        %vm2828 = vcmp.eq.s32.totalorder %v2820, 1
        %vm2829 = vcmp.eq.s32.totalorder %v2821, 1
        %vm2830 = vcmp.eq.s32.totalorder %v2822, 1
        %v2831 = vsel %vm2823, %v2462, 0.0
        %v2832 = vsel %vm2823, %v2463, 0.0
        %v2833 = vsel %vm2823, %v2464, 0.0
        %v2834 = vsel %vm2823, %v2465, 0.0
        %v2835 = vsel %vm2823, %v2466, 0.0
        %v2836 = vsel %vm2823, %v2467, 0.0
        %v2837 = vsel %vm2823, %v2468, 0.0
        %v2838 = vsel %vm2823, %v2469, 0.0
        %v2839 = vsel %vm2823, %v2470, 0.0
        %v2840 = vsel %vm2823, %v2471, 0.0
        %v2841 = vsel %vm2823, %v2472, 0.0
        %v2842 = vsel %vm2823, %v2473, 0.0
        %v2843 = vsel %vm2823, %v2474, 0.0
        %v2844 = vsel %vm2823, %v2475, 0.0
        %v2845 = vsel %vm2823, %v2476, 0.0
        %v2846 = vsel %vm2823, %v2477, 0.0
        %v2847 = vsel %vm2823, %v2478, 0.0
        %v2848 = vsel %vm2823, %v2479, 0.0
        %v2849 = vsel %vm2823, %v2480, 0.0
        %v2850 = vsel %vm2823, %v2481, 0.0
        %v2851 = vsel %vm2823, %v2482, 0.0
        %v2852 = vsel %vm2823, %v2483, 0.0
        %v2853 = vsel %vm2823, %v2484, 0.0
        %v2854 = vsel %vm2823, %v2485, 0.0
        %v2855 = vsel %vm2823, %v2486, 0.0
        %v2856 = vsel %vm2823, %v2487, 0.0
        %v2857 = vsel %vm2823, %v2488, 0.0
        %v2858 = vsel %vm2823, %v2489, 0.0
        %v2859 = vsel %vm2823, %v2490, 0.0
        %v2860 = vsel %vm2823, %v2491, 0.0
        %v2861 = vsel %vm2824, %v2492, 0.0
        %v2862 = vsel %vm2824, %v2493, 0.0
        %v2863 = vsel %vm2824, %v2494, 0.0
        %v2864 = vsel %vm2824, %v2495, 0.0
        %v2865 = vsel %vm2824, %v2496, 0.0
        %v2866 = vsel %vm2824, %v2497, 0.0
        %v2867 = vsel %vm2824, %v2498, 0.0
        %v2868 = vsel %vm2824, %v2499, 0.0
        %v2869 = vsel %vm2824, %v2500, 0.0
        %v2870 = vsel %vm2824, %v2501, 0.0
        %v2871 = vsel %vm2824, %v2502, 0.0
        %v2872 = vsel %vm2824, %v2503, 0.0
        %v2873 = vsel %vm2824, %v2504, 0.0
        %v2874 = vsel %vm2824, %v2505, 0.0
        %v2875 = vsel %vm2824, %v2506, 0.0
        %v2876 = vsel %vm2824, %v2507, 0.0
        %v2877 = vsel %vm2824, %v2508, 0.0
        %v2878 = vsel %vm2824, %v2509, 0.0
        %v2879 = vsel %vm2824, %v2510, 0.0
        %v2880 = vsel %vm2824, %v2511, 0.0
        %v2881 = vsel %vm2824, %v2512, 0.0
        %v2882 = vsel %vm2824, %v2513, 0.0
        %v2883 = vsel %vm2824, %v2514, 0.0
        %v2884 = vsel %vm2824, %v2515, 0.0
        %v2885 = vsel %vm2824, %v2516, 0.0
        %v2886 = vsel %vm2824, %v2517, 0.0
        %v2887 = vsel %vm2824, %v2518, 0.0
        %v2888 = vsel %vm2824, %v2519, 0.0
        %v2889 = vsel %vm2824, %v2520, 0.0
        %v2890 = vsel %vm2824, %v2521, 0.0
        %v2891 = vsel %vm2825, %v2522, 0.0
        %v2892 = vsel %vm2825, %v2523, 0.0
        %v2893 = vsel %vm2825, %v2524, 0.0
        %v2894 = vsel %vm2825, %v2525, 0.0
        %v2895 = vsel %vm2825, %v2526, 0.0
        %v2896 = vsel %vm2825, %v2527, 0.0
        %v2897 = vsel %vm2825, %v2528, 0.0
        %v2898 = vsel %vm2825, %v2529, 0.0
        %v2899 = vsel %vm2825, %v2530, 0.0
        %v2900 = vsel %vm2825, %v2531, 0.0
        %v2901 = vsel %vm2825, %v2532, 0.0
        %v2902 = vsel %vm2825, %v2533, 0.0
        %v2903 = vsel %vm2825, %v2534, 0.0
        %v2904 = vsel %vm2825, %v2535, 0.0
        %v2905 = vsel %vm2825, %v2536, 0.0
        %v2906 = vsel %vm2825, %v2537, 0.0
        %v2907 = vsel %vm2825, %v2538, 0.0
        %v2908 = vsel %vm2825, %v2539, 0.0
        %v2909 = vsel %vm2825, %v2540, 0.0
        %v2910 = vsel %vm2825, %v2541, 0.0
        %v2911 = vsel %vm2825, %v2542, 0.0
        %v2912 = vsel %vm2825, %v2543, 0.0
        %v2913 = vsel %vm2825, %v2544, 0.0
        %v2914 = vsel %vm2825, %v2545, 0.0
        %v2915 = vsel %vm2825, %v2546, 0.0
        %v2916 = vsel %vm2825, %v2547, 0.0
        %v2917 = vsel %vm2825, %v2548, 0.0
        %v2918 = vsel %vm2825, %v2549, 0.0
        %v2919 = vsel %vm2825, %v2550, 0.0
        %v2920 = vsel %vm2825, %v2551, 0.0
        %v2921 = vsel %vm2826, %v2552, 0.0
        %v2922 = vsel %vm2826, %v2553, 0.0
        %v2923 = vsel %vm2826, %v2554, 0.0
        %v2924 = vsel %vm2826, %v2555, 0.0
        %v2925 = vsel %vm2826, %v2556, 0.0
        %v2926 = vsel %vm2826, %v2557, 0.0
        %v2927 = vsel %vm2826, %v2558, 0.0
        %v2928 = vsel %vm2826, %v2559, 0.0
        %v2929 = vsel %vm2826, %v2560, 0.0
        %v2930 = vsel %vm2826, %v2561, 0.0
        %v2931 = vsel %vm2826, %v2562, 0.0
        %v2932 = vsel %vm2826, %v2563, 0.0
        %v2933 = vsel %vm2826, %v2564, 0.0
        %v2934 = vsel %vm2826, %v2565, 0.0
        %v2935 = vsel %vm2826, %v2566, 0.0
        %v2936 = vsel %vm2826, %v2567, 0.0
        %v2937 = vsel %vm2826, %v2568, 0.0
        %v2938 = vsel %vm2826, %v2569, 0.0
        %v2939 = vsel %vm2826, %v2570, 0.0
        %v2940 = vsel %vm2826, %v2571, 0.0
        %v2941 = vsel %vm2826, %v2572, 0.0
        %v2942 = vsel %vm2826, %v2573, 0.0
        %v2943 = vsel %vm2826, %v2574, 0.0
        %v2944 = vsel %vm2826, %v2575, 0.0
        %v2945 = vsel %vm2826, %v2576, 0.0
        %v2946 = vsel %vm2826, %v2577, 0.0
        %v2947 = vsel %vm2826, %v2578, 0.0
        %v2948 = vsel %vm2826, %v2579, 0.0
        %v2949 = vsel %vm2826, %v2580, 0.0
        %v2950 = vsel %vm2826, %v2581, 0.0
        %v2951 = vsel %vm2827, %v2582, 0.0
        %v2952 = vsel %vm2827, %v2583, 0.0
        %v2953 = vsel %vm2827, %v2584, 0.0
        %v2954 = vsel %vm2827, %v2585, 0.0
        %v2955 = vsel %vm2827, %v2586, 0.0
        %v2956 = vsel %vm2827, %v2587, 0.0
        %v2957 = vsel %vm2827, %v2588, 0.0
        %v2958 = vsel %vm2827, %v2589, 0.0
        %v2959 = vsel %vm2827, %v2590, 0.0
        %v2960 = vsel %vm2827, %v2591, 0.0
        %v2961 = vsel %vm2827, %v2592, 0.0
        %v2962 = vsel %vm2827, %v2593, 0.0
        %v2963 = vsel %vm2827, %v2594, 0.0
        %v2964 = vsel %vm2827, %v2595, 0.0
        %v2965 = vsel %vm2827, %v2596, 0.0
        %v2966 = vsel %vm2827, %v2597, 0.0
        %v2967 = vsel %vm2827, %v2598, 0.0
        %v2968 = vsel %vm2827, %v2599, 0.0
        %v2969 = vsel %vm2827, %v2600, 0.0
        %v2970 = vsel %vm2827, %v2601, 0.0
        %v2971 = vsel %vm2827, %v2602, 0.0
        %v2972 = vsel %vm2827, %v2603, 0.0
        %v2973 = vsel %vm2827, %v2604, 0.0
        %v2974 = vsel %vm2827, %v2605, 0.0
        %v2975 = vsel %vm2827, %v2606, 0.0
        %v2976 = vsel %vm2827, %v2607, 0.0
        %v2977 = vsel %vm2827, %v2608, 0.0
        %v2978 = vsel %vm2827, %v2609, 0.0
        %v2979 = vsel %vm2827, %v2610, 0.0
        %v2980 = vsel %vm2827, %v2611, 0.0
        %v2981 = vsel %vm2828, %v2612, 0.0
        %v2982 = vsel %vm2828, %v2613, 0.0
        %v2983 = vsel %vm2828, %v2614, 0.0
        %v2984 = vsel %vm2828, %v2615, 0.0
        %v2985 = vsel %vm2828, %v2616, 0.0
        %v2986 = vsel %vm2828, %v2617, 0.0
        %v2987 = vsel %vm2828, %v2618, 0.0
        %v2988 = vsel %vm2828, %v2619, 0.0
        %v2989 = vsel %vm2828, %v2620, 0.0
        %v2990 = vsel %vm2828, %v2621, 0.0
        %v2991 = vsel %vm2828, %v2622, 0.0
        %v2992 = vsel %vm2828, %v2623, 0.0
        %v2993 = vsel %vm2828, %v2624, 0.0
        %v2994 = vsel %vm2828, %v2625, 0.0
        %v2995 = vsel %vm2828, %v2626, 0.0
        %v2996 = vsel %vm2828, %v2627, 0.0
        %v2997 = vsel %vm2828, %v2628, 0.0
        %v2998 = vsel %vm2828, %v2629, 0.0
        %v2999 = vsel %vm2828, %v2630, 0.0
        %v3000 = vsel %vm2828, %v2631, 0.0
        %v3001 = vsel %vm2828, %v2632, 0.0
        %v3002 = vsel %vm2828, %v2633, 0.0
        %v3003 = vsel %vm2828, %v2634, 0.0
        %v3004 = vsel %vm2828, %v2635, 0.0
        %v3005 = vsel %vm2828, %v2636, 0.0
        %v3006 = vsel %vm2828, %v2637, 0.0
        %v3007 = vsel %vm2828, %v2638, 0.0
        %v3008 = vsel %vm2828, %v2639, 0.0
        %v3009 = vsel %vm2828, %v2640, 0.0
        %v3010 = vsel %vm2828, %v2641, 0.0
        %v3011 = vsel %vm2829, %v2642, 0.0
        %v3012 = vsel %vm2829, %v2643, 0.0
        %v3013 = vsel %vm2829, %v2644, 0.0
        %v3014 = vsel %vm2829, %v2645, 0.0
        %v3015 = vsel %vm2829, %v2646, 0.0
        %v3016 = vsel %vm2829, %v2647, 0.0
        %v3017 = vsel %vm2829, %v2648, 0.0
        %v3018 = vsel %vm2829, %v2649, 0.0
        %v3019 = vsel %vm2829, %v2650, 0.0
        %v3020 = vsel %vm2829, %v2651, 0.0
        %v3021 = vsel %vm2829, %v2652, 0.0
        %v3022 = vsel %vm2829, %v2653, 0.0
        %v3023 = vsel %vm2829, %v2654, 0.0
        %v3024 = vsel %vm2829, %v2655, 0.0
        %v3025 = vsel %vm2829, %v2656, 0.0
        %v3026 = vsel %vm2829, %v2657, 0.0
        %v3027 = vsel %vm2829, %v2658, 0.0
        %v3028 = vsel %vm2829, %v2659, 0.0
        %v3029 = vsel %vm2829, %v2660, 0.0
        %v3030 = vsel %vm2829, %v2661, 0.0
        %v3031 = vsel %vm2829, %v2662, 0.0
        %v3032 = vsel %vm2829, %v2663, 0.0
        %v3033 = vsel %vm2829, %v2664, 0.0
        %v3034 = vsel %vm2829, %v2665, 0.0
        %v3035 = vsel %vm2829, %v2666, 0.0
        %v3036 = vsel %vm2829, %v2667, 0.0
        %v3037 = vsel %vm2829, %v2668, 0.0
        %v3038 = vsel %vm2829, %v2669, 0.0
        %v3039 = vsel %vm2829, %v2670, 0.0
        %v3040 = vsel %vm2829, %v2671, 0.0
        %v3041 = vsel %vm2830, %v2672, 0.0
        %v3042 = vsel %vm2830, %v2673, 0.0
        %v3043 = vsel %vm2830, %v2674, 0.0
        %v3044 = vsel %vm2830, %v2675, 0.0
        %v3045 = vsel %vm2830, %v2676, 0.0
        %v3046 = vsel %vm2830, %v2677, 0.0
        %v3047 = vsel %vm2830, %v2678, 0.0
        %v3048 = vsel %vm2830, %v2679, 0.0
        %v3049 = vsel %vm2830, %v2680, 0.0
        %v3050 = vsel %vm2830, %v2681, 0.0
        %v3051 = vsel %vm2830, %v2682, 0.0
        %v3052 = vsel %vm2830, %v2683, 0.0
        %v3053 = vsel %vm2830, %v2684, 0.0
        %v3054 = vsel %vm2830, %v2685, 0.0
        %v3055 = vsel %vm2830, %v2686, 0.0
        %v3056 = vsel %vm2830, %v2687, 0.0
        %v3057 = vsel %vm2830, %v2688, 0.0
        %v3058 = vsel %vm2830, %v2689, 0.0
        %v3059 = vsel %vm2830, %v2690, 0.0
        %v3060 = vsel %vm2830, %v2691, 0.0
        %v3061 = vsel %vm2830, %v2692, 0.0
        %v3062 = vsel %vm2830, %v2693, 0.0
        %v3063 = vsel %vm2830, %v2694, 0.0
        %v3064 = vsel %vm2830, %v2695, 0.0
        %v3065 = vsel %vm2830, %v2696, 0.0
        %v3066 = vsel %vm2830, %v2697, 0.0
        %v3067 = vsel %vm2830, %v2698, 0.0
        %v3068 = vsel %vm2830, %v2699, 0.0
        %v3069 = vsel %vm2830, %v2700, 0.0
        %v3070 = vsel %vm2830, %v2701, 0.0
        %v3071 = vpack.c.bf16 %v2832, %v2831
        %v3072 = vpack.c.bf16 %v2834, %v2833
        %v3073 = vpack.c.bf16 %v2836, %v2835
        %v3074 = vpack.c.bf16 %v2838, %v2837
        %v3075 = vpack.c.bf16 %v2840, %v2839
        %v3076 = vpack.c.bf16 %v2842, %v2841
        %v3077 = vpack.c.bf16 %v2844, %v2843
        %v3078 = vpack.c.bf16 %v2846, %v2845
        %v3079 = vpack.c.bf16 %v2848, %v2847
        %v3080 = vpack.c.bf16 %v2850, %v2849
        %v3081 = vpack.c.bf16 %v2852, %v2851
        %v3082 = vpack.c.bf16 %v2854, %v2853
        %v3083 = vpack.c.bf16 %v2856, %v2855
        %v3084 = vpack.c.bf16 %v2858, %v2857
        %v3085 = vpack.c.bf16 %v2860, %v2859
        %v3086 = vpack.c.bf16 %v2862, %v2861
        %v3087 = vpack.c.bf16 %v2864, %v2863
        %v3088 = vpack.c.bf16 %v2866, %v2865
        %v3089 = vpack.c.bf16 %v2868, %v2867
        %v3090 = vpack.c.bf16 %v2870, %v2869
        %v3091 = vpack.c.bf16 %v2872, %v2871
        %v3092 = vpack.c.bf16 %v2874, %v2873
        %v3093 = vpack.c.bf16 %v2876, %v2875
        %v3094 = vpack.c.bf16 %v2878, %v2877
        %v3095 = vpack.c.bf16 %v2880, %v2879
        %v3096 = vpack.c.bf16 %v2882, %v2881
        %v3097 = vpack.c.bf16 %v2884, %v2883
        %v3098 = vpack.c.bf16 %v2886, %v2885
        %v3099 = vpack.c.bf16 %v2888, %v2887
        %v3100 = vpack.c.bf16 %v2890, %v2889
        %v3101 = vpack.c.bf16 %v2892, %v2891
        %v3102 = vpack.c.bf16 %v2894, %v2893
        %v3103 = vpack.c.bf16 %v2896, %v2895
        %v3104 = vpack.c.bf16 %v2898, %v2897
        %v3105 = vpack.c.bf16 %v2900, %v2899
        %v3106 = vpack.c.bf16 %v2902, %v2901
        %v3107 = vpack.c.bf16 %v2904, %v2903
        %v3108 = vpack.c.bf16 %v2906, %v2905
        %v3109 = vpack.c.bf16 %v2908, %v2907
        %v3110 = vpack.c.bf16 %v2910, %v2909
        %v3111 = vpack.c.bf16 %v2912, %v2911
        %v3112 = vpack.c.bf16 %v2914, %v2913
        %v3113 = vpack.c.bf16 %v2916, %v2915
        %v3114 = vpack.c.bf16 %v2918, %v2917
        %v3115 = vpack.c.bf16 %v2920, %v2919
        %v3116 = vpack.c.bf16 %v2922, %v2921
        %v3117 = vpack.c.bf16 %v2924, %v2923
        %v3118 = vpack.c.bf16 %v2926, %v2925
        %v3119 = vpack.c.bf16 %v2928, %v2927
        %v3120 = vpack.c.bf16 %v2930, %v2929
        %v3121 = vpack.c.bf16 %v2932, %v2931
        %v3122 = vpack.c.bf16 %v2934, %v2933
        %v3123 = vpack.c.bf16 %v2936, %v2935
        %v3124 = vpack.c.bf16 %v2938, %v2937
        %v3125 = vpack.c.bf16 %v2940, %v2939
        %v3126 = vpack.c.bf16 %v2942, %v2941
        %v3127 = vpack.c.bf16 %v2944, %v2943
        %v3128 = vpack.c.bf16 %v2946, %v2945
        %v3129 = vpack.c.bf16 %v2948, %v2947
        %v3130 = vpack.c.bf16 %v2950, %v2949
        %v3131 = vpack.c.bf16 %v2952, %v2951
        %v3132 = vpack.c.bf16 %v2954, %v2953
        %v3133 = vpack.c.bf16 %v2956, %v2955
        %v3134 = vpack.c.bf16 %v2958, %v2957
        %v3135 = vpack.c.bf16 %v2960, %v2959
        %v3136 = vpack.c.bf16 %v2962, %v2961
        %v3137 = vpack.c.bf16 %v2964, %v2963
        %v3138 = vpack.c.bf16 %v2966, %v2965
        %v3139 = vpack.c.bf16 %v2968, %v2967
        %v3140 = vpack.c.bf16 %v2970, %v2969
        %v3141 = vpack.c.bf16 %v2972, %v2971
        %v3142 = vpack.c.bf16 %v2974, %v2973
        %v3143 = vpack.c.bf16 %v2976, %v2975
        %v3144 = vpack.c.bf16 %v2978, %v2977
        %v3145 = vpack.c.bf16 %v2980, %v2979
        %v3146 = vpack.c.bf16 %v2982, %v2981
        %v3147 = vpack.c.bf16 %v2984, %v2983
        %v3148 = vpack.c.bf16 %v2986, %v2985
        %v3149 = vpack.c.bf16 %v2988, %v2987
        %v3150 = vpack.c.bf16 %v2990, %v2989
        %v3151 = vpack.c.bf16 %v2992, %v2991
        %v3152 = vpack.c.bf16 %v2994, %v2993
        %v3153 = vpack.c.bf16 %v2996, %v2995
        %v3154 = vpack.c.bf16 %v2998, %v2997
        %v3155 = vpack.c.bf16 %v3000, %v2999
        %v3156 = vpack.c.bf16 %v3002, %v3001
        %v3157 = vpack.c.bf16 %v3004, %v3003
        %v3158 = vpack.c.bf16 %v3006, %v3005
        %v3159 = vpack.c.bf16 %v3008, %v3007
        %v3160 = vpack.c.bf16 %v3010, %v3009
        %v3161 = vpack.c.bf16 %v3012, %v3011
        %v3162 = vpack.c.bf16 %v3014, %v3013
        %v3163 = vpack.c.bf16 %v3016, %v3015
        %v3164 = vpack.c.bf16 %v3018, %v3017
        %v3165 = vpack.c.bf16 %v3020, %v3019
        %v3166 = vpack.c.bf16 %v3022, %v3021
        %v3167 = vpack.c.bf16 %v3024, %v3023
        %v3168 = vpack.c.bf16 %v3026, %v3025
        %v3169 = vpack.c.bf16 %v3028, %v3027
        %v3170 = vpack.c.bf16 %v3030, %v3029
        %v3171 = vpack.c.bf16 %v3032, %v3031
        %v3172 = vpack.c.bf16 %v3034, %v3033
        %v3173 = vpack.c.bf16 %v3036, %v3035
        %v3174 = vpack.c.bf16 %v3038, %v3037
        %v3175 = vpack.c.bf16 %v3040, %v3039
        %v3176 = vpack.c.bf16 %v3042, %v3041
        %v3177 = vpack.c.bf16 %v3044, %v3043
        %v3178 = vpack.c.bf16 %v3046, %v3045
        %v3179 = vpack.c.bf16 %v3048, %v3047
        %v3180 = vpack.c.bf16 %v3050, %v3049
        %v3181 = vpack.c.bf16 %v3052, %v3051
        %v3182 = vpack.c.bf16 %v3054, %v3053
        %v3183 = vpack.c.bf16 %v3056, %v3055
        %v3184 = vpack.c.bf16 %v3058, %v3057
        %v3185 = vpack.c.bf16 %v3060, %v3059
        %v3186 = vpack.c.bf16 %v3062, %v3061
        %v3187 = vpack.c.bf16 %v3064, %v3063
        %v3188 = vpack.c.bf16 %v3066, %v3065
        %v3189 = vpack.c.bf16 %v3068, %v3067
        %v3190 = vpack.c.bf16 %v3070, %v3069
        %3191 = vst [vmem:[#allocation2] sm:$0xff] %v3071
        %3192 = vst [vmem:[#allocation2 + $0x8] sm:$0xff] %v3072
        %3193 = vst [vmem:[#allocation2 + $0x10] sm:$0xff] %v3073
        %3194 = vst [vmem:[#allocation2 + $0x18] sm:$0xff] %v3074
        %3195 = vst [vmem:[#allocation2 + $0x20] sm:$0xff] %v3075
        %3196 = vst [vmem:[#allocation2 + $0x28] sm:$0xff] %v3076
        %3197 = vst [vmem:[#allocation2 + $0x30] sm:$0xff] %v3077
        %3198 = vst [vmem:[#allocation2 + $0x38] sm:$0xff] %v3078
        %3199 = vst [vmem:[#allocation2 + $0x40] sm:$0xff] %v3079
        %3200 = vst [vmem:[#allocation2 + $0x48] sm:$0xff] %v3080
        %3201 = vst [vmem:[#allocation2 + $0x50] sm:$0xff] %v3081
        %3202 = vst [vmem:[#allocation2 + $0x58] sm:$0xff] %v3082
        %3203 = vst [vmem:[#allocation2 + $0x60] sm:$0xff] %v3083
        %3204 = vst [vmem:[#allocation2 + $0x68] sm:$0xff] %v3084
        %3205 = vst [vmem:[#allocation2 + $0x70] sm:$0xff] %v3085
        %3206 = vst [vmem:[#allocation2 + $0x78] sm:$0xff] %v3086
        %3207 = vst [vmem:[#allocation2 + $0x80] sm:$0xff] %v3087
        %3208 = vst [vmem:[#allocation2 + $0x88] sm:$0xff] %v3088
        %3209 = vst [vmem:[#allocation2 + $0x90] sm:$0xff] %v3089
        %3210 = vst [vmem:[#allocation2 + $0x98] sm:$0xff] %v3090
        %3211 = vst [vmem:[#allocation2 + $0xa0] sm:$0xff] %v3091
        %3212 = vst [vmem:[#allocation2 + $0xa8] sm:$0xff] %v3092
        %3213 = vst [vmem:[#allocation2 + $0xb0] sm:$0xff] %v3093
        %3214 = vst [vmem:[#allocation2 + $0xb8] sm:$0xff] %v3094
        %3215 = vst [vmem:[#allocation2 + $0xc0] sm:$0xff] %v3095
        %3216 = vst [vmem:[#allocation2 + $0xc8] sm:$0xff] %v3096
        %3217 = vst [vmem:[#allocation2 + $0xd0] sm:$0xff] %v3097
        %3218 = vst [vmem:[#allocation2 + $0xd8] sm:$0xff] %v3098
        %3219 = vst [vmem:[#allocation2 + $0xe0] sm:$0xff] %v3099
        %3220 = vst [vmem:[#allocation2 + $0xe8] sm:$0xff] %v3100
        %3221 = vst [vmem:[#allocation2 + $0xf0] sm:$0xff] %v3101
        %3222 = vst [vmem:[#allocation2 + $0xf8] sm:$0xff] %v3102
        %3223 = vst [vmem:[#allocation2 + $0x100] sm:$0xff] %v3103
        %3224 = vst [vmem:[#allocation2 + $0x108] sm:$0xff] %v3104
        %3225 = vst [vmem:[#allocation2 + $0x110] sm:$0xff] %v3105
        %3226 = vst [vmem:[#allocation2 + $0x118] sm:$0xff] %v3106
        %3227 = vst [vmem:[#allocation2 + $0x120] sm:$0xff] %v3107
        %3228 = vst [vmem:[#allocation2 + $0x128] sm:$0xff] %v3108
        %3229 = vst [vmem:[#allocation2 + $0x130] sm:$0xff] %v3109
        %3230 = vst [vmem:[#allocation2 + $0x138] sm:$0xff] %v3110
        %3231 = vst [vmem:[#allocation2 + $0x140] sm:$0xff] %v3111
        %3232 = vst [vmem:[#allocation2 + $0x148] sm:$0xff] %v3112
        %3233 = vst [vmem:[#allocation2 + $0x150] sm:$0xff] %v3113
        %3234 = vst [vmem:[#allocation2 + $0x158] sm:$0xff] %v3114
        %3235 = vst [vmem:[#allocation2 + $0x160] sm:$0xff] %v3115
        %3236 = vst [vmem:[#allocation2 + $0x168] sm:$0xff] %v3116
        %3237 = vst [vmem:[#allocation2 + $0x170] sm:$0xff] %v3117
        %3238 = vst [vmem:[#allocation2 + $0x178] sm:$0xff] %v3118
        %3239 = vst [vmem:[#allocation2 + $0x180] sm:$0xff] %v3119
        %3240 = vst [vmem:[#allocation2 + $0x188] sm:$0xff] %v3120
        %3241 = vst [vmem:[#allocation2 + $0x190] sm:$0xff] %v3121
        %3242 = vst [vmem:[#allocation2 + $0x198] sm:$0xff] %v3122
        %3243 = vst [vmem:[#allocation2 + $0x1a0] sm:$0xff] %v3123
        %3244 = vst [vmem:[#allocation2 + $0x1a8] sm:$0xff] %v3124
        %3245 = vst [vmem:[#allocation2 + $0x1b0] sm:$0xff] %v3125
        %3246 = vst [vmem:[#allocation2 + $0x1b8] sm:$0xff] %v3126
        %3247 = vst [vmem:[#allocation2 + $0x1c0] sm:$0xff] %v3127
        %3248 = vst [vmem:[#allocation2 + $0x1c8] sm:$0xff] %v3128
        %3249 = vst [vmem:[#allocation2 + $0x1d0] sm:$0xff] %v3129
        %3250 = vst [vmem:[#allocation2 + $0x1d8] sm:$0xff] %v3130
        %3251 = vst [vmem:[#allocation2 + $0x1e0] sm:$0xff] %v3131
        %3252 = vst [vmem:[#allocation2 + $0x1e8] sm:$0xff] %v3132
        %3253 = vst [vmem:[#allocation2 + $0x1f0] sm:$0xff] %v3133
        %3254 = vst [vmem:[#allocation2 + $0x1f8] sm:$0xff] %v3134
        %3255 = vst [vmem:[#allocation2 + $0x200] sm:$0xff] %v3135
        %3256 = vst [vmem:[#allocation2 + $0x208] sm:$0xff] %v3136
        %3257 = vst [vmem:[#allocation2 + $0x210] sm:$0xff] %v3137
        %3258 = vst [vmem:[#allocation2 + $0x218] sm:$0xff] %v3138
        %3259 = vst [vmem:[#allocation2 + $0x220] sm:$0xff] %v3139
        %3260 = vst [vmem:[#allocation2 + $0x228] sm:$0xff] %v3140
        %3261 = vst [vmem:[#allocation2 + $0x230] sm:$0xff] %v3141
        %3262 = vst [vmem:[#allocation2 + $0x238] sm:$0xff] %v3142
        %3263 = vst [vmem:[#allocation2 + $0x240] sm:$0xff] %v3143
        %3264 = vst [vmem:[#allocation2 + $0x248] sm:$0xff] %v3144
        %3265 = vst [vmem:[#allocation2 + $0x250] sm:$0xff] %v3145
        %3266 = vst [vmem:[#allocation2 + $0x258] sm:$0xff] %v3146
        %3267 = vst [vmem:[#allocation2 + $0x260] sm:$0xff] %v3147
        %3268 = vst [vmem:[#allocation2 + $0x268] sm:$0xff] %v3148
        %3269 = vst [vmem:[#allocation2 + $0x270] sm:$0xff] %v3149
        %3270 = vst [vmem:[#allocation2 + $0x278] sm:$0xff] %v3150
        %3271 = vst [vmem:[#allocation2 + $0x280] sm:$0xff] %v3151
        %3272 = vst [vmem:[#allocation2 + $0x288] sm:$0xff] %v3152
        %3273 = vst [vmem:[#allocation2 + $0x290] sm:$0xff] %v3153
        %3274 = vst [vmem:[#allocation2 + $0x298] sm:$0xff] %v3154
        %3275 = vst [vmem:[#allocation2 + $0x2a0] sm:$0xff] %v3155
        %3276 = vst [vmem:[#allocation2 + $0x2a8] sm:$0xff] %v3156
        %3277 = vst [vmem:[#allocation2 + $0x2b0] sm:$0xff] %v3157
        %3278 = vst [vmem:[#allocation2 + $0x2b8] sm:$0xff] %v3158
        %3279 = vst [vmem:[#allocation2 + $0x2c0] sm:$0xff] %v3159
        %3280 = vst [vmem:[#allocation2 + $0x2c8] sm:$0xff] %v3160
        %3281 = vst [vmem:[#allocation2 + $0x2d0] sm:$0xff] %v3161
        %3282 = vst [vmem:[#allocation2 + $0x2d8] sm:$0xff] %v3162
        %3283 = vst [vmem:[#allocation2 + $0x2e0] sm:$0xff] %v3163
        %3284 = vst [vmem:[#allocation2 + $0x2e8] sm:$0xff] %v3164
        %3285 = vst [vmem:[#allocation2 + $0x2f0] sm:$0xff] %v3165
        %3286 = vst [vmem:[#allocation2 + $0x2f8] sm:$0xff] %v3166
        %3287 = vst [vmem:[#allocation2 + $0x300] sm:$0xff] %v3167
        %3288 = vst [vmem:[#allocation2 + $0x308] sm:$0xff] %v3168
        %3289 = vst [vmem:[#allocation2 + $0x310] sm:$0xff] %v3169
        %3290 = vst [vmem:[#allocation2 + $0x318] sm:$0xff] %v3170
        %3291 = vst [vmem:[#allocation2 + $0x320] sm:$0xff] %v3171
        %3292 = vst [vmem:[#allocation2 + $0x328] sm:$0xff] %v3172
        %3293 = vst [vmem:[#allocation2 + $0x330] sm:$0xff] %v3173
        %3294 = vst [vmem:[#allocation2 + $0x338] sm:$0xff] %v3174
        %3295 = vst [vmem:[#allocation2 + $0x340] sm:$0xff] %v3175
        %3296 = vst [vmem:[#allocation2 + $0x348] sm:$0xff] %v3176
        %3297 = vst [vmem:[#allocation2 + $0x350] sm:$0xff] %v3177
        %3298 = vst [vmem:[#allocation2 + $0x358] sm:$0xff] %v3178
        %3299 = vst [vmem:[#allocation2 + $0x360] sm:$0xff] %v3179
        %3300 = vst [vmem:[#allocation2 + $0x368] sm:$0xff] %v3180
        %3301 = vst [vmem:[#allocation2 + $0x370] sm:$0xff] %v3181
        %3302 = vst [vmem:[#allocation2 + $0x378] sm:$0xff] %v3182
        %3303 = vst [vmem:[#allocation2 + $0x380] sm:$0xff] %v3183
        %3304 = vst [vmem:[#allocation2 + $0x388] sm:$0xff] %v3184
        %3305 = vst [vmem:[#allocation2 + $0x390] sm:$0xff] %v3185
        %3306 = vst [vmem:[#allocation2 + $0x398] sm:$0xff] %v3186
        %3307 = vst [vmem:[#allocation2 + $0x3a0] sm:$0xff] %v3187
        %3308 = vst [vmem:[#allocation2 + $0x3a8] sm:$0xff] %v3188
        %3309 = vst [vmem:[#allocation2 + $0x3b0] sm:$0xff] %v3189
        %3310 = vst [vmem:[#allocation2 + $0x3b8] sm:$0xff] %v3190
        %v3311 = vld [vmem:[#allocation2] sm:$0xff]
        %v3312 = vld [vmem:[#allocation2 + $0x8] sm:$0xff]
        %v3313 = vld [vmem:[#allocation2 + $0x10] sm:$0xff]
        %v3314 = vld [vmem:[#allocation2 + $0x18] sm:$0xff]
        %v3315 = vld [vmem:[#allocation2 + $0x20] sm:$0xff]
        %v3316 = vld [vmem:[#allocation2 + $0x28] sm:$0xff]
        %v3317 = vld [vmem:[#allocation2 + $0x30] sm:$0xff]
        %v3318 = vld [vmem:[#allocation2 + $0x38] sm:$0xff]
        %v3319 = vld [vmem:[#allocation2 + $0x40] sm:$0xff]
        %v3320 = vld [vmem:[#allocation2 + $0x48] sm:$0xff]
        %v3321 = vld [vmem:[#allocation2 + $0x50] sm:$0xff]
        %v3322 = vld [vmem:[#allocation2 + $0x58] sm:$0xff]
        %v3323 = vld [vmem:[#allocation2 + $0x60] sm:$0xff]
        %v3324 = vld [vmem:[#allocation2 + $0x68] sm:$0xff]
        %v3325 = vld [vmem:[#allocation2 + $0x70] sm:$0xff]
        %v3326 = vld [vmem:[#allocation2 + $0x78] sm:$0xff]
        %v3327 = vld [vmem:[#allocation2 + $0x80] sm:$0xff]
        %v3328 = vld [vmem:[#allocation2 + $0x88] sm:$0xff]
        %v3329 = vld [vmem:[#allocation2 + $0x90] sm:$0xff]
        %v3330 = vld [vmem:[#allocation2 + $0x98] sm:$0xff]
        %v3331 = vld [vmem:[#allocation2 + $0xa0] sm:$0xff]
        %v3332 = vld [vmem:[#allocation2 + $0xa8] sm:$0xff]
        %v3333 = vld [vmem:[#allocation2 + $0xb0] sm:$0xff]
        %v3334 = vld [vmem:[#allocation2 + $0xb8] sm:$0xff]
        %v3335 = vld [vmem:[#allocation2 + $0xc0] sm:$0xff]
        %v3336 = vld [vmem:[#allocation2 + $0xc8] sm:$0xff]
        %v3337 = vld [vmem:[#allocation2 + $0xd0] sm:$0xff]
        %v3338 = vld [vmem:[#allocation2 + $0xd8] sm:$0xff]
        %v3339 = vld [vmem:[#allocation2 + $0xe0] sm:$0xff]
        %v3340 = vld [vmem:[#allocation2 + $0xe8] sm:$0xff]
        %v3341 = vld [vmem:[#allocation2 + $0xf0] sm:$0xff]
        %v3342 = vld [vmem:[#allocation2 + $0xf8] sm:$0xff]
        %v3343 = vld [vmem:[#allocation2 + $0x100] sm:$0xff]
        %v3344 = vld [vmem:[#allocation2 + $0x108] sm:$0xff]
        %v3345 = vld [vmem:[#allocation2 + $0x110] sm:$0xff]
        %v3346 = vld [vmem:[#allocation2 + $0x118] sm:$0xff]
        %v3347 = vld [vmem:[#allocation2 + $0x120] sm:$0xff]
        %v3348 = vld [vmem:[#allocation2 + $0x128] sm:$0xff]
        %v3349 = vld [vmem:[#allocation2 + $0x130] sm:$0xff]
        %v3350 = vld [vmem:[#allocation2 + $0x138] sm:$0xff]
        %v3351 = vld [vmem:[#allocation2 + $0x140] sm:$0xff]
        %v3352 = vld [vmem:[#allocation2 + $0x148] sm:$0xff]
        %v3353 = vld [vmem:[#allocation2 + $0x150] sm:$0xff]
        %v3354 = vld [vmem:[#allocation2 + $0x158] sm:$0xff]
        %v3355 = vld [vmem:[#allocation2 + $0x160] sm:$0xff]
        %v3356 = vld [vmem:[#allocation2 + $0x168] sm:$0xff]
        %v3357 = vld [vmem:[#allocation2 + $0x170] sm:$0xff]
        %v3358 = vld [vmem:[#allocation2 + $0x178] sm:$0xff]
        %v3359 = vld [vmem:[#allocation2 + $0x180] sm:$0xff]
        %v3360 = vld [vmem:[#allocation2 + $0x188] sm:$0xff]
        %v3361 = vld [vmem:[#allocation2 + $0x190] sm:$0xff]
        %v3362 = vld [vmem:[#allocation2 + $0x198] sm:$0xff]
        %v3363 = vld [vmem:[#allocation2 + $0x1a0] sm:$0xff]
        %v3364 = vld [vmem:[#allocation2 + $0x1a8] sm:$0xff]
        %v3365 = vld [vmem:[#allocation2 + $0x1b0] sm:$0xff]
        %v3366 = vld [vmem:[#allocation2 + $0x1b8] sm:$0xff]
        %v3367 = vld [vmem:[#allocation2 + $0x1c0] sm:$0xff]
        %v3368 = vld [vmem:[#allocation2 + $0x1c8] sm:$0xff]
        %v3369 = vld [vmem:[#allocation2 + $0x1d0] sm:$0xff]
        %v3370 = vld [vmem:[#allocation2 + $0x1d8] sm:$0xff]
        %v3371 = vld [vmem:[#allocation2 + $0x1e0] sm:$0xff]
        %v3372 = vld [vmem:[#allocation2 + $0x1e8] sm:$0xff]
        %v3373 = vld [vmem:[#allocation2 + $0x1f0] sm:$0xff]
        %v3374 = vld [vmem:[#allocation2 + $0x1f8] sm:$0xff]
        %v3375 = vld [vmem:[#allocation2 + $0x200] sm:$0xff]
        %v3376 = vld [vmem:[#allocation2 + $0x208] sm:$0xff]
        %v3377 = vld [vmem:[#allocation2 + $0x210] sm:$0xff]
        %v3378 = vld [vmem:[#allocation2 + $0x218] sm:$0xff]
        %v3379 = vld [vmem:[#allocation2 + $0x220] sm:$0xff]
        %v3380 = vld [vmem:[#allocation2 + $0x228] sm:$0xff]
        %v3381 = vld [vmem:[#allocation2 + $0x230] sm:$0xff]
        %v3382 = vld [vmem:[#allocation2 + $0x238] sm:$0xff]
        %v3383 = vld [vmem:[#allocation2 + $0x240] sm:$0xff]
        %v3384 = vld [vmem:[#allocation2 + $0x248] sm:$0xff]
        %v3385 = vld [vmem:[#allocation2 + $0x250] sm:$0xff]
        %v3386 = vld [vmem:[#allocation2 + $0x258] sm:$0xff]
        %v3387 = vld [vmem:[#allocation2 + $0x260] sm:$0xff]
        %v3388 = vld [vmem:[#allocation2 + $0x268] sm:$0xff]
        %v3389 = vld [vmem:[#allocation2 + $0x270] sm:$0xff]
        %v3390 = vld [vmem:[#allocation2 + $0x278] sm:$0xff]
        %v3391 = vld [vmem:[#allocation2 + $0x280] sm:$0xff]
        %v3392 = vld [vmem:[#allocation2 + $0x288] sm:$0xff]
        %v3393 = vld [vmem:[#allocation2 + $0x290] sm:$0xff]
        %v3394 = vld [vmem:[#allocation2 + $0x298] sm:$0xff]
        %v3395 = vld [vmem:[#allocation2 + $0x2a0] sm:$0xff]
        %v3396 = vld [vmem:[#allocation2 + $0x2a8] sm:$0xff]
        %v3397 = vld [vmem:[#allocation2 + $0x2b0] sm:$0xff]
        %v3398 = vld [vmem:[#allocation2 + $0x2b8] sm:$0xff]
        %v3399 = vld [vmem:[#allocation2 + $0x2c0] sm:$0xff]
        %v3400 = vld [vmem:[#allocation2 + $0x2c8] sm:$0xff]
        %v3401 = vld [vmem:[#allocation2 + $0x2d0] sm:$0xff]
        %v3402 = vld [vmem:[#allocation2 + $0x2d8] sm:$0xff]
        %v3403 = vld [vmem:[#allocation2 + $0x2e0] sm:$0xff]
        %v3404 = vld [vmem:[#allocation2 + $0x2e8] sm:$0xff]
        %v3405 = vld [vmem:[#allocation2 + $0x2f0] sm:$0xff]
        %v3406 = vld [vmem:[#allocation2 + $0x2f8] sm:$0xff]
        %v3407 = vld [vmem:[#allocation2 + $0x300] sm:$0xff]
        %v3408 = vld [vmem:[#allocation2 + $0x308] sm:$0xff]
        %v3409 = vld [vmem:[#allocation2 + $0x310] sm:$0xff]
        %v3410 = vld [vmem:[#allocation2 + $0x318] sm:$0xff]
        %v3411 = vld [vmem:[#allocation2 + $0x320] sm:$0xff]
        %v3412 = vld [vmem:[#allocation2 + $0x328] sm:$0xff]
        %v3413 = vld [vmem:[#allocation2 + $0x330] sm:$0xff]
        %v3414 = vld [vmem:[#allocation2 + $0x338] sm:$0xff]
        %v3415 = vld [vmem:[#allocation2 + $0x340] sm:$0xff]
        %v3416 = vld [vmem:[#allocation2 + $0x348] sm:$0xff]
        %v3417 = vld [vmem:[#allocation2 + $0x350] sm:$0xff]
        %v3418 = vld [vmem:[#allocation2 + $0x358] sm:$0xff]
        %v3419 = vld [vmem:[#allocation2 + $0x360] sm:$0xff]
        %v3420 = vld [vmem:[#allocation2 + $0x368] sm:$0xff]
        %v3421 = vld [vmem:[#allocation2 + $0x370] sm:$0xff]
        %v3422 = vld [vmem:[#allocation2 + $0x378] sm:$0xff]
        %v3423 = vld [vmem:[#allocation2 + $0x380] sm:$0xff]
        %v3424 = vld [vmem:[#allocation2 + $0x388] sm:$0xff]
        %v3425 = vld [vmem:[#allocation2 + $0x390] sm:$0xff]
        %v3426 = vld [vmem:[#allocation2 + $0x398] sm:$0xff]
        %v3427 = vld [vmem:[#allocation2 + $0x3a0] sm:$0xff]
        %v3428 = vld [vmem:[#allocation2 + $0x3a8] sm:$0xff]
        %v3429 = vld [vmem:[#allocation2 + $0x3b0] sm:$0xff]
        %v3430 = vld [vmem:[#allocation2 + $0x3b8] sm:$0xff]
        %v3431 = vld [vmem:[#allocation7] sm:$0xff]
        %v3432 = vld [vmem:[#allocation7 + $0x8] sm:$0xf]
        %v3433 = vld [vmem:[#allocation7 + $0xc] sm:$0xff]
        %v3434 = vld [vmem:[#allocation7 + $0x14] sm:$0xf]
        %v3435 = vld [vmem:[#allocation7 + $0x18] sm:$0xff]
        %v3436 = vld [vmem:[#allocation7 + $0x20] sm:$0xf]
        %v3437 = vld [vmem:[#allocation7 + $0x24] sm:$0xff]
        %v3438 = vld [vmem:[#allocation7 + $0x2c] sm:$0xf]
        %v3439 = vld [vmem:[#allocation7 + $0x30] sm:$0xff]
        %v3440 = vld [vmem:[#allocation7 + $0x38] sm:$0xf]
        %v3441 = vld [vmem:[#allocation7 + $0x3c] sm:$0xff]
        %v3442 = vld [vmem:[#allocation7 + $0x44] sm:$0xf]
        %v3443 = vld [vmem:[#allocation7 + $0x48] sm:$0xff]
        %v3444 = vld [vmem:[#allocation7 + $0x50] sm:$0xf]
        %v3445 = vld [vmem:[#allocation7 + $0x54] sm:$0xff]
        %v3446 = vld [vmem:[#allocation7 + $0x5c] sm:$0xf]
        %v3447 = vld [vmem:[#allocation7 + $0x60] sm:$0xff]
        %v3448 = vld [vmem:[#allocation7 + $0x68] sm:$0xf]
        %v3449 = vld [vmem:[#allocation7 + $0x6c] sm:$0xff]
        %v3450 = vld [vmem:[#allocation7 + $0x74] sm:$0xf]
        %v3451 = vld [vmem:[#allocation7 + $0x78] sm:$0xff]
        %v3452 = vld [vmem:[#allocation7 + $0x80] sm:$0xf]
        %v3453 = vld [vmem:[#allocation7 + $0x84] sm:$0xff]
        %v3454 = vld [vmem:[#allocation7 + $0x8c] sm:$0xf]
        %v3455 = vld [vmem:[#allocation7 + $0x90] sm:$0xff]
        %v3456 = vld [vmem:[#allocation7 + $0x98] sm:$0xf]
        %v3457 = vld [vmem:[#allocation7 + $0x9c] sm:$0xff]
        %v3458 = vld [vmem:[#allocation7 + $0xa4] sm:$0xf]
        %v3459 = vld [vmem:[#allocation7 + $0xa8] sm:$0xff]
        %v3460 = vld [vmem:[#allocation7 + $0xb0] sm:$0xf]
        %v3461 = vld [vmem:[#allocation7 + $0xb4] sm:$0xff]
        %v3462 = vld [vmem:[#allocation7 + $0xbc] sm:$0xf]
        %v3463 = vld [vmem:[#allocation7 + $0xc0] sm:$0xff]
        %v3464 = vld [vmem:[#allocation7 + $0xc8] sm:$0xf]
        %v3465 = vld [vmem:[#allocation7 + $0xcc] sm:$0xff]
        %v3466 = vld [vmem:[#allocation7 + $0xd4] sm:$0xf]
        %v3467 = vld [vmem:[#allocation7 + $0xd8] sm:$0xff]
        %v3468 = vld [vmem:[#allocation7 + $0xe0] sm:$0xf]
        %v3469 = vld [vmem:[#allocation7 + $0xe4] sm:$0xff]
        %v3470 = vld [vmem:[#allocation7 + $0xec] sm:$0xf]
        %v3471 = vld [vmem:[#allocation7 + $0xf0] sm:$0xff]
        %v3472 = vld [vmem:[#allocation7 + $0xf8] sm:$0xf]
        %v3473 = vld [vmem:[#allocation7 + $0xfc] sm:$0xff]
        %v3474 = vld [vmem:[#allocation7 + $0x104] sm:$0xf]
        %v3475 = vld [vmem:[#allocation7 + $0x108] sm:$0xff]
        %v3476 = vld [vmem:[#allocation7 + $0x110] sm:$0xf]
        %v3477 = vld [vmem:[#allocation7 + $0x114] sm:$0xff]
        %v3478 = vld [vmem:[#allocation7 + $0x11c] sm:$0xf]
        %v3479 = vld [vmem:[#allocation7 + $0x120] sm:$0xff]
        %v3480 = vld [vmem:[#allocation7 + $0x128] sm:$0xf]
        %v3481 = vld [vmem:[#allocation7 + $0x12c] sm:$0xff]
        %v3482 = vld [vmem:[#allocation7 + $0x134] sm:$0xf]
        %v3483 = vld [vmem:[#allocation7 + $0x138] sm:$0xff]
        %v3484 = vld [vmem:[#allocation7 + $0x140] sm:$0xf]
        %v3485 = vld [vmem:[#allocation7 + $0x144] sm:$0xff]
        %v3486 = vld [vmem:[#allocation7 + $0x14c] sm:$0xf]
        %v3487 = vld [vmem:[#allocation7 + $0x150] sm:$0xff]
        %v3488 = vld [vmem:[#allocation7 + $0x158] sm:$0xf]
        %v3489 = vld [vmem:[#allocation7 + $0x15c] sm:$0xff]
        %v3490 = vld [vmem:[#allocation7 + $0x164] sm:$0xf]
        %v3491 = vld [vmem:[#allocation7 + $0x168] sm:$0xff]
        %v3492 = vld [vmem:[#allocation7 + $0x170] sm:$0xf]
        %v3493 = vld [vmem:[#allocation7 + $0x174] sm:$0xff]
        %v3494 = vld [vmem:[#allocation7 + $0x17c] sm:$0xf]
        %v3495 = vld [vmem:[#allocation7 + $0x180] sm:$0xff]
        %v3496 = vld [vmem:[#allocation7 + $0x188] sm:$0xf]
        %v3497 = vld [vmem:[#allocation7 + $0x18c] sm:$0xff]
        %v3498 = vld [vmem:[#allocation7 + $0x194] sm:$0xf]
        %v3499 = vld [vmem:[#allocation7 + $0x198] sm:$0xff]
        %v3500 = vld [vmem:[#allocation7 + $0x1a0] sm:$0xf]
        %v3501 = vld [vmem:[#allocation7 + $0x1a4] sm:$0xff]
        %v3502 = vld [vmem:[#allocation7 + $0x1ac] sm:$0xf]
        %v3503 = vld [vmem:[#allocation7 + $0x1b0] sm:$0xff]
        %v3504 = vld [vmem:[#allocation7 + $0x1b8] sm:$0xf]
        %v3505 = vld [vmem:[#allocation7 + $0x1bc] sm:$0xff]
        %v3506 = vld [vmem:[#allocation7 + $0x1c4] sm:$0xf]
        %v3507 = vld [vmem:[#allocation7 + $0x1c8] sm:$0xff]
        %v3508 = vld [vmem:[#allocation7 + $0x1d0] sm:$0xf]
        %v3509 = vld [vmem:[#allocation7 + $0x1d4] sm:$0xff]
        %v3510 = vld [vmem:[#allocation7 + $0x1dc] sm:$0xf]
        %v3511 = vld [vmem:[#allocation7 + $0x1e0] sm:$0xff]
        %v3512 = vld [vmem:[#allocation7 + $0x1e8] sm:$0xf]
        %v3513 = vld [vmem:[#allocation7 + $0x1ec] sm:$0xff]
        %v3514 = vld [vmem:[#allocation7 + $0x1f4] sm:$0xf]
        %v3515 = vld [vmem:[#allocation7 + $0x1f8] sm:$0xff]
        %v3516 = vld [vmem:[#allocation7 + $0x200] sm:$0xf]
        %v3517 = vld [vmem:[#allocation7 + $0x204] sm:$0xff]
        %v3518 = vld [vmem:[#allocation7 + $0x20c] sm:$0xf]
        %v3519 = vld [vmem:[#allocation7 + $0x210] sm:$0xff]
        %v3520 = vld [vmem:[#allocation7 + $0x218] sm:$0xf]
        %v3521 = vld [vmem:[#allocation7 + $0x21c] sm:$0xff]
        %v3522 = vld [vmem:[#allocation7 + $0x224] sm:$0xf]
        %v3523 = vld [vmem:[#allocation7 + $0x228] sm:$0xff]
        %v3524 = vld [vmem:[#allocation7 + $0x230] sm:$0xf]
        %v3525 = vld [vmem:[#allocation7 + $0x234] sm:$0xff]
        %v3526 = vld [vmem:[#allocation7 + $0x23c] sm:$0xf]
        %v3527 = vld [vmem:[#allocation7 + $0x240] sm:$0xff]
        %v3528 = vld [vmem:[#allocation7 + $0x248] sm:$0xf]
        %v3529 = vld [vmem:[#allocation7 + $0x24c] sm:$0xff]
        %v3530 = vld [vmem:[#allocation7 + $0x254] sm:$0xf]
        %v3531 = vld [vmem:[#allocation7 + $0x258] sm:$0xff]
        %v3532 = vld [vmem:[#allocation7 + $0x260] sm:$0xf]
        %v3533 = vld [vmem:[#allocation7 + $0x264] sm:$0xff]
        %v3534 = vld [vmem:[#allocation7 + $0x26c] sm:$0xf]
        %v3535 = vld [vmem:[#allocation7 + $0x270] sm:$0xff]
        %v3536 = vld [vmem:[#allocation7 + $0x278] sm:$0xf]
        %v3537 = vld [vmem:[#allocation7 + $0x27c] sm:$0xff]
        %v3538 = vld [vmem:[#allocation7 + $0x284] sm:$0xf]
        %v3539 = vld [vmem:[#allocation7 + $0x288] sm:$0xff]
        %v3540 = vld [vmem:[#allocation7 + $0x290] sm:$0xf]
        %v3541 = vld [vmem:[#allocation7 + $0x294] sm:$0xff]
        %v3542 = vld [vmem:[#allocation7 + $0x29c] sm:$0xf]
        %v3543 = vld [vmem:[#allocation7 + $0x2a0] sm:$0xff]
        %v3544 = vld [vmem:[#allocation7 + $0x2a8] sm:$0xf]
        %v3545 = vld [vmem:[#allocation7 + $0x2ac] sm:$0xff]
        %v3546 = vld [vmem:[#allocation7 + $0x2b4] sm:$0xf]
        %v3547 = vld [vmem:[#allocation7 + $0x2b8] sm:$0xff]
        %v3548 = vld [vmem:[#allocation7 + $0x2c0] sm:$0xf]
        %v3549 = vld [vmem:[#allocation7 + $0x2c4] sm:$0xff]
        %v3550 = vld [vmem:[#allocation7 + $0x2cc] sm:$0xf]
        %v3551 = vld [vmem:[#allocation7 + $0x2d0] sm:$0xff]
        %v3552 = vld [vmem:[#allocation7 + $0x2d8] sm:$0xf]
        %v3553 = vld [vmem:[#allocation7 + $0x2dc] sm:$0xff]
        %v3554 = vld [vmem:[#allocation7 + $0x2e4] sm:$0xf]
        %v3555 = vld [vmem:[#allocation7 + $0x2e8] sm:$0xff]
        %v3556 = vld [vmem:[#allocation7 + $0x2f0] sm:$0xf]
        %v3557 = vld [vmem:[#allocation7 + $0x2f4] sm:$0xff]
        %v3558 = vld [vmem:[#allocation7 + $0x2fc] sm:$0xf]
        %v3559 = vld [vmem:[#allocation7 + $0x300] sm:$0xff]
        %v3560 = vld [vmem:[#allocation7 + $0x308] sm:$0xf]
        %v3561 = vld [vmem:[#allocation7 + $0x30c] sm:$0xff]
        %v3562 = vld [vmem:[#allocation7 + $0x314] sm:$0xf]
        %v3563 = vld [vmem:[#allocation7 + $0x318] sm:$0xff]
        %v3564 = vld [vmem:[#allocation7 + $0x320] sm:$0xf]
        %v3565 = vld [vmem:[#allocation7 + $0x324] sm:$0xff]
        %v3566 = vld [vmem:[#allocation7 + $0x32c] sm:$0xf]
        %v3567 = vld [vmem:[#allocation7 + $0x330] sm:$0xff]
        %v3568 = vld [vmem:[#allocation7 + $0x338] sm:$0xf]
        %v3569 = vld [vmem:[#allocation7 + $0x33c] sm:$0xff]
        %v3570 = vld [vmem:[#allocation7 + $0x344] sm:$0xf]
        %v3571 = vld [vmem:[#allocation7 + $0x348] sm:$0xff]
        %v3572 = vld [vmem:[#allocation7 + $0x350] sm:$0xf]
        %v3573 = vld [vmem:[#allocation7 + $0x354] sm:$0xff]
        %v3574 = vld [vmem:[#allocation7 + $0x35c] sm:$0xf]
        %v3575 = vld [vmem:[#allocation7 + $0x360] sm:$0xff]
        %v3576 = vld [vmem:[#allocation7 + $0x368] sm:$0xf]
        %v3577 = vld [vmem:[#allocation7 + $0x36c] sm:$0xff]
        %v3578 = vld [vmem:[#allocation7 + $0x374] sm:$0xf]
        %v3579 = vld [vmem:[#allocation7 + $0x378] sm:$0xff]
        %v3580 = vld [vmem:[#allocation7 + $0x380] sm:$0xf]
        %v3581 = vld [vmem:[#allocation7 + $0x384] sm:$0xff]
        %v3582 = vld [vmem:[#allocation7 + $0x38c] sm:$0xf]
        %v3583 = vld [vmem:[#allocation7 + $0x390] sm:$0xff]
        %v3584 = vld [vmem:[#allocation7 + $0x398] sm:$0xf]
        %v3585 = vld [vmem:[#allocation7 + $0x39c] sm:$0xff]
        %v3586 = vld [vmem:[#allocation7 + $0x3a4] sm:$0xf]
        %v3587 = vld [vmem:[#allocation7 + $0x3a8] sm:$0xff]
        %v3588 = vld [vmem:[#allocation7 + $0x3b0] sm:$0xf]
        %v3589 = vld [vmem:[#allocation7 + $0x3b4] sm:$0xff]
        %v3590 = vld [vmem:[#allocation7 + $0x3bc] sm:$0xf]
        %v3591 = vld [vmem:[#allocation7 + $0x3c0] sm:$0xff]
        %v3592 = vld [vmem:[#allocation7 + $0x3c8] sm:$0xf]
        %v3593 = vld [vmem:[#allocation7 + $0x3cc] sm:$0xff]
        %v3594 = vld [vmem:[#allocation7 + $0x3d4] sm:$0xf]
        %v3595 = vld [vmem:[#allocation7 + $0x3d8] sm:$0xff]
        %v3596 = vld [vmem:[#allocation7 + $0x3e0] sm:$0xf]
        %v3597 = vld [vmem:[#allocation7 + $0x3e4] sm:$0xff]
        %v3598 = vld [vmem:[#allocation7 + $0x3ec] sm:$0xf]
        %v3599 = vld [vmem:[#allocation7 + $0x3f0] sm:$0xff]
        %v3600 = vld [vmem:[#allocation7 + $0x3f8] sm:$0xf]
        %v3601 = vld [vmem:[#allocation7 + $0x3fc] sm:$0xff]
        %v3602 = vld [vmem:[#allocation7 + $0x404] sm:$0xf]
        %v3603 = vld [vmem:[#allocation7 + $0x408] sm:$0xff]
        %v3604 = vld [vmem:[#allocation7 + $0x410] sm:$0xf]
        %v3605 = vld [vmem:[#allocation7 + $0x414] sm:$0xff]
        %v3606 = vld [vmem:[#allocation7 + $0x41c] sm:$0xf]
        %v3607 = vld [vmem:[#allocation7 + $0x420] sm:$0xff]
        %v3608 = vld [vmem:[#allocation7 + $0x428] sm:$0xf]
        %v3609 = vld [vmem:[#allocation7 + $0x42c] sm:$0xff]
        %v3610 = vld [vmem:[#allocation7 + $0x434] sm:$0xf]
        %v3611 = vld [vmem:[#allocation7 + $0x438] sm:$0xff]
        %v3612 = vld [vmem:[#allocation7 + $0x440] sm:$0xf]
        %v3613 = vld [vmem:[#allocation7 + $0x444] sm:$0xff]
        %v3614 = vld [vmem:[#allocation7 + $0x44c] sm:$0xf]
        %v3615 = vld [vmem:[#allocation7 + $0x450] sm:$0xff]
        %v3616 = vld [vmem:[#allocation7 + $0x458] sm:$0xf]
        %v3617 = vld [vmem:[#allocation7 + $0x45c] sm:$0xff]
        %v3618 = vld [vmem:[#allocation7 + $0x464] sm:$0xf]
        %v3619 = vld [vmem:[#allocation7 + $0x468] sm:$0xff]
        %v3620 = vld [vmem:[#allocation7 + $0x470] sm:$0xf]
        %v3621 = vld [vmem:[#allocation7 + $0x474] sm:$0xff]
        %v3622 = vld [vmem:[#allocation7 + $0x47c] sm:$0xf]
        %v3623 = vld [vmem:[#allocation7 + $0x480] sm:$0xff]
        %v3624 = vld [vmem:[#allocation7 + $0x488] sm:$0xf]
        %v3625 = vld [vmem:[#allocation7 + $0x48c] sm:$0xff]
        %v3626 = vld [vmem:[#allocation7 + $0x494] sm:$0xf]
        %v3627 = vld [vmem:[#allocation7 + $0x498] sm:$0xff]
        %v3628 = vld [vmem:[#allocation7 + $0x4a0] sm:$0xf]
        %v3629 = vld [vmem:[#allocation7 + $0x4a4] sm:$0xff]
        %v3630 = vld [vmem:[#allocation7 + $0x4ac] sm:$0xf]
        %v3631 = vld [vmem:[#allocation7 + $0x4b0] sm:$0xff]
        %v3632 = vld [vmem:[#allocation7 + $0x4b8] sm:$0xf]
        %v3633 = vld [vmem:[#allocation7 + $0x4bc] sm:$0xff]
        %v3634 = vld [vmem:[#allocation7 + $0x4c4] sm:$0xf]
        %v3635 = vld [vmem:[#allocation7 + $0x4c8] sm:$0xff]
        %v3636 = vld [vmem:[#allocation7 + $0x4d0] sm:$0xf]
        %v3637 = vld [vmem:[#allocation7 + $0x4d4] sm:$0xff]
        %v3638 = vld [vmem:[#allocation7 + $0x4dc] sm:$0xf]
        %v3639 = vld [vmem:[#allocation7 + $0x4e0] sm:$0xff]
        %v3640 = vld [vmem:[#allocation7 + $0x4e8] sm:$0xf]
        %v3641 = vld [vmem:[#allocation7 + $0x4ec] sm:$0xff]
        %v3642 = vld [vmem:[#allocation7 + $0x4f4] sm:$0xf]
        %v3643 = vld [vmem:[#allocation7 + $0x4f8] sm:$0xff]
        %v3644 = vld [vmem:[#allocation7 + $0x500] sm:$0xf]
        %v3645 = vld [vmem:[#allocation7 + $0x504] sm:$0xff]
        %v3646 = vld [vmem:[#allocation7 + $0x50c] sm:$0xf]
        %v3647 = vld [vmem:[#allocation7 + $0x510] sm:$0xff]
        %v3648 = vld [vmem:[#allocation7 + $0x518] sm:$0xf]
        %v3649 = vld [vmem:[#allocation7 + $0x51c] sm:$0xff]
        %v3650 = vld [vmem:[#allocation7 + $0x524] sm:$0xf]
        %v3651 = vld [vmem:[#allocation7 + $0x528] sm:$0xff]
        %v3652 = vld [vmem:[#allocation7 + $0x530] sm:$0xf]
        %v3653 = vld [vmem:[#allocation7 + $0x534] sm:$0xff]
        %v3654 = vld [vmem:[#allocation7 + $0x53c] sm:$0xf]
        %v3655 = vld [vmem:[#allocation7 + $0x540] sm:$0xff]
        %v3656 = vld [vmem:[#allocation7 + $0x548] sm:$0xf]
        %v3657 = vld [vmem:[#allocation7 + $0x54c] sm:$0xff]
        %v3658 = vld [vmem:[#allocation7 + $0x554] sm:$0xf]
        %v3659 = vld [vmem:[#allocation7 + $0x558] sm:$0xff]
        %v3660 = vld [vmem:[#allocation7 + $0x560] sm:$0xf]
        %v3661 = vld [vmem:[#allocation7 + $0x564] sm:$0xff]
        %v3662 = vld [vmem:[#allocation7 + $0x56c] sm:$0xf]
        %v3663 = vld [vmem:[#allocation7 + $0x570] sm:$0xff]
        %v3664 = vld [vmem:[#allocation7 + $0x578] sm:$0xf]
        %v3665 = vld [vmem:[#allocation7 + $0x57c] sm:$0xff]
        %v3666 = vld [vmem:[#allocation7 + $0x584] sm:$0xf]
        %v3667 = vld [vmem:[#allocation7 + $0x588] sm:$0xff]
        %v3668 = vld [vmem:[#allocation7 + $0x590] sm:$0xf]
        %v3669 = vld [vmem:[#allocation7 + $0x594] sm:$0xff]
        %v3670 = vld [vmem:[#allocation7 + $0x59c] sm:$0xf]
        %v3671 = vld [vmem:[#allocation7 + $0x5a0] sm:$0xff]
        %v3672 = vld [vmem:[#allocation7 + $0x5a8] sm:$0xf]
        %v3673 = vld [vmem:[#allocation7 + $0x5ac] sm:$0xff]
        %v3674 = vld [vmem:[#allocation7 + $0x5b4] sm:$0xf]
        %v3675 = vld [vmem:[#allocation7 + $0x5b8] sm:$0xff]
        %v3676 = vld [vmem:[#allocation7 + $0x5c0] sm:$0xf]
        %v3677 = vld [vmem:[#allocation7 + $0x5c4] sm:$0xff]
        %v3678 = vld [vmem:[#allocation7 + $0x5cc] sm:$0xf]
        %v3679 = vld [vmem:[#allocation7 + $0x5d0] sm:$0xff]
        %v3680 = vld [vmem:[#allocation7 + $0x5d8] sm:$0xf]
        %v3681 = vld [vmem:[#allocation7 + $0x5dc] sm:$0xff]
        %v3682 = vld [vmem:[#allocation7 + $0x5e4] sm:$0xf]
        %v3683 = vld [vmem:[#allocation7 + $0x5e8] sm:$0xff]
        %v3684 = vld [vmem:[#allocation7 + $0x5f0] sm:$0xf]
        %v3685 = vld [vmem:[#allocation7 + $0x5f4] sm:$0xff]
        %v3686 = vld [vmem:[#allocation7 + $0x5fc] sm:$0xf]
        %v3687 = vld [vmem:[#allocation7 + $0x600] sm:$0xff]
        %v3688 = vld [vmem:[#allocation7 + $0x608] sm:$0xf]
        %v3689 = vld [vmem:[#allocation7 + $0x60c] sm:$0xff]
        %v3690 = vld [vmem:[#allocation7 + $0x614] sm:$0xf]
        %v3691 = vld [vmem:[#allocation7 + $0x618] sm:$0xff]
        %v3692 = vld [vmem:[#allocation7 + $0x620] sm:$0xf]
        %v3693 = vld [vmem:[#allocation7 + $0x624] sm:$0xff]
        %v3694 = vld [vmem:[#allocation7 + $0x62c] sm:$0xf]
        %v3695 = vld [vmem:[#allocation7 + $0x630] sm:$0xff]
        %v3696 = vld [vmem:[#allocation7 + $0x638] sm:$0xf]
        %v3697 = vld [vmem:[#allocation7 + $0x63c] sm:$0xff]
        %v3698 = vld [vmem:[#allocation7 + $0x644] sm:$0xf]
        %v3699 = vld [vmem:[#allocation7 + $0x648] sm:$0xff]
        %v3700 = vld [vmem:[#allocation7 + $0x650] sm:$0xf]
        %v3701 = vld [vmem:[#allocation7 + $0x654] sm:$0xff]
        %v3702 = vld [vmem:[#allocation7 + $0x65c] sm:$0xf]
        %v3703 = vld [vmem:[#allocation7 + $0x660] sm:$0xff]
        %v3704 = vld [vmem:[#allocation7 + $0x668] sm:$0xf]
        %v3705 = vld [vmem:[#allocation7 + $0x66c] sm:$0xff]
        %v3706 = vld [vmem:[#allocation7 + $0x674] sm:$0xf]
        %v3707 = vld [vmem:[#allocation7 + $0x678] sm:$0xff]
        %v3708 = vld [vmem:[#allocation7 + $0x680] sm:$0xf]
        %v3709 = vld [vmem:[#allocation7 + $0x684] sm:$0xff]
        %v3710 = vld [vmem:[#allocation7 + $0x68c] sm:$0xf]
        %v3711 = vld [vmem:[#allocation7 + $0x690] sm:$0xff]
        %v3712 = vld [vmem:[#allocation7 + $0x698] sm:$0xf]
        %v3713 = vld [vmem:[#allocation7 + $0x69c] sm:$0xff]
        %v3714 = vld [vmem:[#allocation7 + $0x6a4] sm:$0xf]
        %v3715 = vld [vmem:[#allocation7 + $0x6a8] sm:$0xff]
        %v3716 = vld [vmem:[#allocation7 + $0x6b0] sm:$0xf]
        %v3717 = vld [vmem:[#allocation7 + $0x6b4] sm:$0xff]
        %v3718 = vld [vmem:[#allocation7 + $0x6bc] sm:$0xf]
        %v3719 = vld [vmem:[#allocation7 + $0x6c0] sm:$0xff]
        %v3720 = vld [vmem:[#allocation7 + $0x6c8] sm:$0xf]
        %v3721 = vld [vmem:[#allocation7 + $0x6cc] sm:$0xff]
        %v3722 = vld [vmem:[#allocation7 + $0x6d4] sm:$0xf]
        %v3723 = vld [vmem:[#allocation7 + $0x6d8] sm:$0xff]
        %v3724 = vld [vmem:[#allocation7 + $0x6e0] sm:$0xf]
        %v3725 = vld [vmem:[#allocation7 + $0x6e4] sm:$0xff]
        %v3726 = vld [vmem:[#allocation7 + $0x6ec] sm:$0xf]
        %v3727 = vld [vmem:[#allocation7 + $0x6f0] sm:$0xff]
        %v3728 = vld [vmem:[#allocation7 + $0x6f8] sm:$0xf]
        %v3729 = vld [vmem:[#allocation7 + $0x6fc] sm:$0xff]
        %v3730 = vld [vmem:[#allocation7 + $0x704] sm:$0xf]
        %v3731 = vld [vmem:[#allocation7 + $0x708] sm:$0xff]
        %v3732 = vld [vmem:[#allocation7 + $0x710] sm:$0xf]
        %v3733 = vld [vmem:[#allocation7 + $0x714] sm:$0xff]
        %v3734 = vld [vmem:[#allocation7 + $0x71c] sm:$0xf]
        %v3735 = vld [vmem:[#allocation7 + $0x720] sm:$0xff]
        %v3736 = vld [vmem:[#allocation7 + $0x728] sm:$0xf]
        %v3737 = vld [vmem:[#allocation7 + $0x72c] sm:$0xff]
        %v3738 = vld [vmem:[#allocation7 + $0x734] sm:$0xf]
        %v3739 = vld [vmem:[#allocation7 + $0x738] sm:$0xff]
        %v3740 = vld [vmem:[#allocation7 + $0x740] sm:$0xf]
        %v3741 = vld [vmem:[#allocation7 + $0x744] sm:$0xff]
        %v3742 = vld [vmem:[#allocation7 + $0x74c] sm:$0xf]
        %v3743 = vld [vmem:[#allocation7 + $0x750] sm:$0xff]
        %v3744 = vld [vmem:[#allocation7 + $0x758] sm:$0xf]
        %v3745 = vld [vmem:[#allocation7 + $0x75c] sm:$0xff]
        %v3746 = vld [vmem:[#allocation7 + $0x764] sm:$0xf]
        %v3747 = vld [vmem:[#allocation7 + $0x768] sm:$0xff]
        %v3748 = vld [vmem:[#allocation7 + $0x770] sm:$0xf]
        %v3749 = vld [vmem:[#allocation7 + $0x774] sm:$0xff]
        %v3750 = vld [vmem:[#allocation7 + $0x77c] sm:$0xf]
        %v3751 = vld [vmem:[#allocation7 + $0x780] sm:$0xff]
        %v3752 = vld [vmem:[#allocation7 + $0x788] sm:$0xf]
        %v3753 = vld [vmem:[#allocation7 + $0x78c] sm:$0xff]
        %v3754 = vld [vmem:[#allocation7 + $0x794] sm:$0xf]
        %v3755 = vld [vmem:[#allocation7 + $0x798] sm:$0xff]
        %v3756 = vld [vmem:[#allocation7 + $0x7a0] sm:$0xf]
        %v3757 = vld [vmem:[#allocation7 + $0x7a4] sm:$0xff]
        %v3758 = vld [vmem:[#allocation7 + $0x7ac] sm:$0xf]
        %v3759 = vld [vmem:[#allocation7 + $0x7b0] sm:$0xff]
        %v3760 = vld [vmem:[#allocation7 + $0x7b8] sm:$0xf]
        %v3761 = vld [vmem:[#allocation7 + $0x7bc] sm:$0xff]
        %v3762 = vld [vmem:[#allocation7 + $0x7c4] sm:$0xf]
        %v3763 = vld [vmem:[#allocation7 + $0x7c8] sm:$0xff]
        %v3764 = vld [vmem:[#allocation7 + $0x7d0] sm:$0xf]
        %v3765 = vld [vmem:[#allocation7 + $0x7d4] sm:$0xff]
        %v3766 = vld [vmem:[#allocation7 + $0x7dc] sm:$0xf]
        %v3767 = vld [vmem:[#allocation7 + $0x7e0] sm:$0xff]
        %v3768 = vld [vmem:[#allocation7 + $0x7e8] sm:$0xf]
        %v3769 = vld [vmem:[#allocation7 + $0x7ec] sm:$0xff]
        %v3770 = vld [vmem:[#allocation7 + $0x7f4] sm:$0xf]
        %v3771 = vld [vmem:[#allocation7 + $0x7f8] sm:$0xff]
        %v3772 = vld [vmem:[#allocation7 + $0x800] sm:$0xf]
        %v3773 = vld [vmem:[#allocation7 + $0x804] sm:$0xff]
        %v3774 = vld [vmem:[#allocation7 + $0x80c] sm:$0xf]
        %v3775 = vld [vmem:[#allocation7 + $0x810] sm:$0xff]
        %v3776 = vld [vmem:[#allocation7 + $0x818] sm:$0xf]
        %v3777 = vld [vmem:[#allocation7 + $0x81c] sm:$0xff]
        %v3778 = vld [vmem:[#allocation7 + $0x824] sm:$0xf]
        %v3779 = vld [vmem:[#allocation7 + $0x828] sm:$0xff]
        %v3780 = vld [vmem:[#allocation7 + $0x830] sm:$0xf]
        %v3781 = vld [vmem:[#allocation7 + $0x834] sm:$0xff]
        %v3782 = vld [vmem:[#allocation7 + $0x83c] sm:$0xf]
        %v3783 = vld [vmem:[#allocation7 + $0x840] sm:$0xff]
        %v3784 = vld [vmem:[#allocation7 + $0x848] sm:$0xf]
        %v3785 = vld [vmem:[#allocation7 + $0x84c] sm:$0xff]
        %v3786 = vld [vmem:[#allocation7 + $0x854] sm:$0xf]
        %v3787 = vld [vmem:[#allocation7 + $0x858] sm:$0xff]
        %v3788 = vld [vmem:[#allocation7 + $0x860] sm:$0xf]
        %v3789 = vld [vmem:[#allocation7 + $0x864] sm:$0xff]
        %v3790 = vld [vmem:[#allocation7 + $0x86c] sm:$0xf]
        %v3791 = vld [vmem:[#allocation7 + $0x870] sm:$0xff]
        %v3792 = vld [vmem:[#allocation7 + $0x878] sm:$0xf]
        %v3793 = vld [vmem:[#allocation7 + $0x87c] sm:$0xff]
        %v3794 = vld [vmem:[#allocation7 + $0x884] sm:$0xf]
        %v3795 = vld [vmem:[#allocation7 + $0x888] sm:$0xff]
        %v3796 = vld [vmem:[#allocation7 + $0x890] sm:$0xf]
        %v3797 = vld [vmem:[#allocation7 + $0x894] sm:$0xff]
        %v3798 = vld [vmem:[#allocation7 + $0x89c] sm:$0xf]
        %v3799 = vld [vmem:[#allocation7 + $0x8a0] sm:$0xff]
        %v3800 = vld [vmem:[#allocation7 + $0x8a8] sm:$0xf]
        %v3801 = vld [vmem:[#allocation7 + $0x8ac] sm:$0xff]
        %v3802 = vld [vmem:[#allocation7 + $0x8b4] sm:$0xf]
        %v3803 = vld [vmem:[#allocation7 + $0x8b8] sm:$0xff]
        %v3804 = vld [vmem:[#allocation7 + $0x8c0] sm:$0xf]
        %v3805 = vld [vmem:[#allocation7 + $0x8c4] sm:$0xff]
        %v3806 = vld [vmem:[#allocation7 + $0x8cc] sm:$0xf]
        %v3807 = vld [vmem:[#allocation7 + $0x8d0] sm:$0xff]
        %v3808 = vld [vmem:[#allocation7 + $0x8d8] sm:$0xf]
        %v3809 = vld [vmem:[#allocation7 + $0x8dc] sm:$0xff]
        %v3810 = vld [vmem:[#allocation7 + $0x8e4] sm:$0xf]
        %v3811 = vld [vmem:[#allocation7 + $0x8e8] sm:$0xff]
        %v3812 = vld [vmem:[#allocation7 + $0x8f0] sm:$0xf]
        %v3813 = vld [vmem:[#allocation7 + $0x8f4] sm:$0xff]
        %v3814 = vld [vmem:[#allocation7 + $0x8fc] sm:$0xf]
        %v3815 = vld [vmem:[#allocation7 + $0x900] sm:$0xff]
        %v3816 = vld [vmem:[#allocation7 + $0x908] sm:$0xf]
        %v3817 = vld [vmem:[#allocation7 + $0x90c] sm:$0xff]
        %v3818 = vld [vmem:[#allocation7 + $0x914] sm:$0xf]
        %v3819 = vld [vmem:[#allocation7 + $0x918] sm:$0xff]
        %v3820 = vld [vmem:[#allocation7 + $0x920] sm:$0xf]
        %v3821 = vld [vmem:[#allocation7 + $0x924] sm:$0xff]
        %v3822 = vld [vmem:[#allocation7 + $0x92c] sm:$0xf]
        %v3823 = vld [vmem:[#allocation7 + $0x930] sm:$0xff]
        %v3824 = vld [vmem:[#allocation7 + $0x938] sm:$0xf]
        %v3825 = vld [vmem:[#allocation7 + $0x93c] sm:$0xff]
        %v3826 = vld [vmem:[#allocation7 + $0x944] sm:$0xf]
        %v3827 = vld [vmem:[#allocation7 + $0x948] sm:$0xff]
        %v3828 = vld [vmem:[#allocation7 + $0x950] sm:$0xf]
        %v3829 = vld [vmem:[#allocation7 + $0x954] sm:$0xff]
        %v3830 = vld [vmem:[#allocation7 + $0x95c] sm:$0xf]
        %v3831 = vld [vmem:[#allocation7 + $0x960] sm:$0xff]
        %v3832 = vld [vmem:[#allocation7 + $0x968] sm:$0xf]
        %v3833 = vld [vmem:[#allocation7 + $0x96c] sm:$0xff]
        %v3834 = vld [vmem:[#allocation7 + $0x974] sm:$0xf]
        %v3835 = vld [vmem:[#allocation7 + $0x978] sm:$0xff]
        %v3836 = vld [vmem:[#allocation7 + $0x980] sm:$0xf]
        %v3837 = vld [vmem:[#allocation7 + $0x984] sm:$0xff]
        %v3838 = vld [vmem:[#allocation7 + $0x98c] sm:$0xf]
        %v3839 = vld [vmem:[#allocation7 + $0x990] sm:$0xff]
        %v3840 = vld [vmem:[#allocation7 + $0x998] sm:$0xf]
        %v3841 = vld [vmem:[#allocation7 + $0x99c] sm:$0xff]
        %v3842 = vld [vmem:[#allocation7 + $0x9a4] sm:$0xf]
        %v3843 = vld [vmem:[#allocation7 + $0x9a8] sm:$0xff]
        %v3844 = vld [vmem:[#allocation7 + $0x9b0] sm:$0xf]
        %v3845 = vld [vmem:[#allocation7 + $0x9b4] sm:$0xff]
        %v3846 = vld [vmem:[#allocation7 + $0x9bc] sm:$0xf]
        %v3847 = vld [vmem:[#allocation7 + $0x9c0] sm:$0xff]
        %v3848 = vld [vmem:[#allocation7 + $0x9c8] sm:$0xf]
        %v3849 = vld [vmem:[#allocation7 + $0x9cc] sm:$0xff]
        %v3850 = vld [vmem:[#allocation7 + $0x9d4] sm:$0xf]
        %v3851 = vld [vmem:[#allocation7 + $0x9d8] sm:$0xff]
        %v3852 = vld [vmem:[#allocation7 + $0x9e0] sm:$0xf]
        %v3853 = vld [vmem:[#allocation7 + $0x9e4] sm:$0xff]
        %v3854 = vld [vmem:[#allocation7 + $0x9ec] sm:$0xf]
        %v3855 = vld [vmem:[#allocation7 + $0x9f0] sm:$0xff]
        %v3856 = vld [vmem:[#allocation7 + $0x9f8] sm:$0xf]
        %v3857 = vld [vmem:[#allocation7 + $0x9fc] sm:$0xff]
        %v3858 = vld [vmem:[#allocation7 + $0xa04] sm:$0xf]
        %v3859 = vld [vmem:[#allocation7 + $0xa08] sm:$0xff]
        %v3860 = vld [vmem:[#allocation7 + $0xa10] sm:$0xf]
        %v3861 = vld [vmem:[#allocation7 + $0xa14] sm:$0xff]
        %v3862 = vld [vmem:[#allocation7 + $0xa1c] sm:$0xf]
        %v3863 = vld [vmem:[#allocation7 + $0xa20] sm:$0xff]
        %v3864 = vld [vmem:[#allocation7 + $0xa28] sm:$0xf]
        %v3865 = vld [vmem:[#allocation7 + $0xa2c] sm:$0xff]
        %v3866 = vld [vmem:[#allocation7 + $0xa34] sm:$0xf]
        %v3867 = vld [vmem:[#allocation7 + $0xa38] sm:$0xff]
        %v3868 = vld [vmem:[#allocation7 + $0xa40] sm:$0xf]
        %v3869 = vld [vmem:[#allocation7 + $0xa44] sm:$0xff]
        %v3870 = vld [vmem:[#allocation7 + $0xa4c] sm:$0xf]
        %v3871 = vld [vmem:[#allocation7 + $0xa50] sm:$0xff]
        %v3872 = vld [vmem:[#allocation7 + $0xa58] sm:$0xf]
        %v3873 = vld [vmem:[#allocation7 + $0xa5c] sm:$0xff]
        %v3874 = vld [vmem:[#allocation7 + $0xa64] sm:$0xf]
        %v3875 = vld [vmem:[#allocation7 + $0xa68] sm:$0xff]
        %v3876 = vld [vmem:[#allocation7 + $0xa70] sm:$0xf]
        %v3877 = vld [vmem:[#allocation7 + $0xa74] sm:$0xff]
        %v3878 = vld [vmem:[#allocation7 + $0xa7c] sm:$0xf]
        %v3879 = vld [vmem:[#allocation7 + $0xa80] sm:$0xff]
        %v3880 = vld [vmem:[#allocation7 + $0xa88] sm:$0xf]
        %v3881 = vld [vmem:[#allocation7 + $0xa8c] sm:$0xff]
        %v3882 = vld [vmem:[#allocation7 + $0xa94] sm:$0xf]
        %v3883 = vld [vmem:[#allocation7 + $0xa98] sm:$0xff]
        %v3884 = vld [vmem:[#allocation7 + $0xaa0] sm:$0xf]
        %v3885 = vld [vmem:[#allocation7 + $0xaa4] sm:$0xff]
        %v3886 = vld [vmem:[#allocation7 + $0xaac] sm:$0xf]
        %v3887 = vld [vmem:[#allocation7 + $0xab0] sm:$0xff]
        %v3888 = vld [vmem:[#allocation7 + $0xab8] sm:$0xf]
        %v3889 = vld [vmem:[#allocation7 + $0xabc] sm:$0xff]
        %v3890 = vld [vmem:[#allocation7 + $0xac4] sm:$0xf]
        %v3891 = vld [vmem:[#allocation7 + $0xac8] sm:$0xff]
        %v3892 = vld [vmem:[#allocation7 + $0xad0] sm:$0xf]
        %v3893 = vld [vmem:[#allocation7 + $0xad4] sm:$0xff]
        %v3894 = vld [vmem:[#allocation7 + $0xadc] sm:$0xf]
        %v3895 = vld [vmem:[#allocation7 + $0xae0] sm:$0xff]
        %v3896 = vld [vmem:[#allocation7 + $0xae8] sm:$0xf]
        %v3897 = vld [vmem:[#allocation7 + $0xaec] sm:$0xff]
        %v3898 = vld [vmem:[#allocation7 + $0xaf4] sm:$0xf]
        %v3899 = vld [vmem:[#allocation7 + $0xaf8] sm:$0xff]
        %v3900 = vld [vmem:[#allocation7 + $0xb00] sm:$0xf]
        %v3901 = vld [vmem:[#allocation7 + $0xb04] sm:$0xff]
        %v3902 = vld [vmem:[#allocation7 + $0xb0c] sm:$0xf]
        %v3903 = vld [vmem:[#allocation7 + $0xb10] sm:$0xff]
        %v3904 = vld [vmem:[#allocation7 + $0xb18] sm:$0xf]
        %v3905 = vld [vmem:[#allocation7 + $0xb1c] sm:$0xff]
        %v3906 = vld [vmem:[#allocation7 + $0xb24] sm:$0xf]
        %v3907 = vld [vmem:[#allocation7 + $0xb28] sm:$0xff]
        %v3908 = vld [vmem:[#allocation7 + $0xb30] sm:$0xf]
        %v3909 = vld [vmem:[#allocation7 + $0xb34] sm:$0xff]
        %v3910 = vld [vmem:[#allocation7 + $0xb3c] sm:$0xf]
        %v3911 = vld [vmem:[#allocation7 + $0xb40] sm:$0xff]
        %v3912 = vld [vmem:[#allocation7 + $0xb48] sm:$0xf]
        %v3913 = vld [vmem:[#allocation7 + $0xb4c] sm:$0xff]
        %v3914 = vld [vmem:[#allocation7 + $0xb54] sm:$0xf]
        %v3915 = vld [vmem:[#allocation7 + $0xb58] sm:$0xff]
        %v3916 = vld [vmem:[#allocation7 + $0xb60] sm:$0xf]
        %v3917 = vld [vmem:[#allocation7 + $0xb64] sm:$0xff]
        %v3918 = vld [vmem:[#allocation7 + $0xb6c] sm:$0xf]
        %v3919 = vld [vmem:[#allocation7 + $0xb70] sm:$0xff]
        %v3920 = vld [vmem:[#allocation7 + $0xb78] sm:$0xf]
        %v3921 = vld [vmem:[#allocation7 + $0xb7c] sm:$0xff]
        %v3922 = vld [vmem:[#allocation7 + $0xb84] sm:$0xf]
        %v3923 = vld [vmem:[#allocation7 + $0xb88] sm:$0xff]
        %v3924 = vld [vmem:[#allocation7 + $0xb90] sm:$0xf]
        %v3925 = vld [vmem:[#allocation7 + $0xb94] sm:$0xff]
        %v3926 = vld [vmem:[#allocation7 + $0xb9c] sm:$0xf]
        %v3927 = vld [vmem:[#allocation7 + $0xba0] sm:$0xff]
        %v3928 = vld [vmem:[#allocation7 + $0xba8] sm:$0xf]
        %v3929 = vld [vmem:[#allocation7 + $0xbac] sm:$0xff]
        %v3930 = vld [vmem:[#allocation7 + $0xbb4] sm:$0xf]
        %v3931 = vld [vmem:[#allocation7 + $0xbb8] sm:$0xff]
        %v3932 = vld [vmem:[#allocation7 + $0xbc0] sm:$0xf]
        %v3933 = vld [vmem:[#allocation7 + $0xbc4] sm:$0xff]
        %v3934 = vld [vmem:[#allocation7 + $0xbcc] sm:$0xf]
        %v3935 = vld [vmem:[#allocation7 + $0xbd0] sm:$0xff]
        %v3936 = vld [vmem:[#allocation7 + $0xbd8] sm:$0xf]
        %v3937 = vld [vmem:[#allocation7 + $0xbdc] sm:$0xff]
        %v3938 = vld [vmem:[#allocation7 + $0xbe4] sm:$0xf]
        %v3939 = vld [vmem:[#allocation7 + $0xbe8] sm:$0xff]
        %v3940 = vld [vmem:[#allocation7 + $0xbf0] sm:$0xf]
        %v3941 = vld [vmem:[#allocation7 + $0xbf4] sm:$0xff]
        %v3942 = vld [vmem:[#allocation7 + $0xbfc] sm:$0xf]
        %v3943 = vld [vmem:[#allocation7 + $0xc00] sm:$0xff]
        %v3944 = vld [vmem:[#allocation7 + $0xc08] sm:$0xf]
        %v3945 = vld [vmem:[#allocation7 + $0xc0c] sm:$0xff]
        %v3946 = vld [vmem:[#allocation7 + $0xc14] sm:$0xf]
        %v3947 = vld [vmem:[#allocation7 + $0xc18] sm:$0xff]
        %v3948 = vld [vmem:[#allocation7 + $0xc20] sm:$0xf]
        %v3949 = vld [vmem:[#allocation7 + $0xc24] sm:$0xff]
        %v3950 = vld [vmem:[#allocation7 + $0xc2c] sm:$0xf]
        %v3951 = vld [vmem:[#allocation7 + $0xc30] sm:$0xff]
        %v3952 = vld [vmem:[#allocation7 + $0xc38] sm:$0xf]
        %v3953 = vld [vmem:[#allocation7 + $0xc3c] sm:$0xff]
        %v3954 = vld [vmem:[#allocation7 + $0xc44] sm:$0xf]
        %v3955 = vld [vmem:[#allocation7 + $0xc48] sm:$0xff]
        %v3956 = vld [vmem:[#allocation7 + $0xc50] sm:$0xf]
        %v3957 = vld [vmem:[#allocation7 + $0xc54] sm:$0xff]
        %v3958 = vld [vmem:[#allocation7 + $0xc5c] sm:$0xf]
        %v3959 = vld [vmem:[#allocation7 + $0xc60] sm:$0xff]
        %v3960 = vld [vmem:[#allocation7 + $0xc68] sm:$0xf]
        %v3961 = vld [vmem:[#allocation7 + $0xc6c] sm:$0xff]
        %v3962 = vld [vmem:[#allocation7 + $0xc74] sm:$0xf]
        %v3963 = vld [vmem:[#allocation7 + $0xc78] sm:$0xff]
        %v3964 = vld [vmem:[#allocation7 + $0xc80] sm:$0xf]
        %v3965 = vld [vmem:[#allocation7 + $0xc84] sm:$0xff]
        %v3966 = vld [vmem:[#allocation7 + $0xc8c] sm:$0xf]
        %v3967 = vld [vmem:[#allocation7 + $0xc90] sm:$0xff]
        %v3968 = vld [vmem:[#allocation7 + $0xc98] sm:$0xf]
        %v3969 = vld [vmem:[#allocation7 + $0xc9c] sm:$0xff]
        %v3970 = vld [vmem:[#allocation7 + $0xca4] sm:$0xf]
        %v3971 = vld [vmem:[#allocation7 + $0xca8] sm:$0xff]
        %v3972 = vld [vmem:[#allocation7 + $0xcb0] sm:$0xf]
        %v3973 = vld [vmem:[#allocation7 + $0xcb4] sm:$0xff]
        %v3974 = vld [vmem:[#allocation7 + $0xcbc] sm:$0xf]
        %v3975 = vld [vmem:[#allocation7 + $0xcc0] sm:$0xff]
        %v3976 = vld [vmem:[#allocation7 + $0xcc8] sm:$0xf]
        %v3977 = vld [vmem:[#allocation7 + $0xccc] sm:$0xff]
        %v3978 = vld [vmem:[#allocation7 + $0xcd4] sm:$0xf]
        %v3979 = vld [vmem:[#allocation7 + $0xcd8] sm:$0xff]
        %v3980 = vld [vmem:[#allocation7 + $0xce0] sm:$0xf]
        %v3981 = vld [vmem:[#allocation7 + $0xce4] sm:$0xff]
        %v3982 = vld [vmem:[#allocation7 + $0xcec] sm:$0xf]
        %v3983 = vld [vmem:[#allocation7 + $0xcf0] sm:$0xff]
        %v3984 = vld [vmem:[#allocation7 + $0xcf8] sm:$0xf]
        %v3985 = vld [vmem:[#allocation7 + $0xcfc] sm:$0xff]
        %v3986 = vld [vmem:[#allocation7 + $0xd04] sm:$0xf]
        %v3987 = vld [vmem:[#allocation7 + $0xd08] sm:$0xff]
        %v3988 = vld [vmem:[#allocation7 + $0xd10] sm:$0xf]
        %v3989 = vld [vmem:[#allocation7 + $0xd14] sm:$0xff]
        %v3990 = vld [vmem:[#allocation7 + $0xd1c] sm:$0xf]
        %v3991 = vld [vmem:[#allocation7 + $0xd20] sm:$0xff]
        %v3992 = vld [vmem:[#allocation7 + $0xd28] sm:$0xf]
        %v3993 = vld [vmem:[#allocation7 + $0xd2c] sm:$0xff]
        %v3994 = vld [vmem:[#allocation7 + $0xd34] sm:$0xf]
        %v3995 = vld [vmem:[#allocation7 + $0xd38] sm:$0xff]
        %v3996 = vld [vmem:[#allocation7 + $0xd40] sm:$0xf]
        %v3997 = vld [vmem:[#allocation7 + $0xd44] sm:$0xff]
        %v3998 = vld [vmem:[#allocation7 + $0xd4c] sm:$0xf]
        %v3999 = vld [vmem:[#allocation7 + $0xd50] sm:$0xff]
        %v4000 = vld [vmem:[#allocation7 + $0xd58] sm:$0xf]
        %v4001 = vld [vmem:[#allocation7 + $0xd5c] sm:$0xff]
        %v4002 = vld [vmem:[#allocation7 + $0xd64] sm:$0xf]
        %v4003 = vld [vmem:[#allocation7 + $0xd68] sm:$0xff]
        %v4004 = vld [vmem:[#allocation7 + $0xd70] sm:$0xf]
        %v4005 = vld [vmem:[#allocation7 + $0xd74] sm:$0xff]
        %v4006 = vld [vmem:[#allocation7 + $0xd7c] sm:$0xf]
        %v4007 = vld [vmem:[#allocation7 + $0xd80] sm:$0xff]
        %v4008 = vld [vmem:[#allocation7 + $0xd88] sm:$0xf]
        %v4009 = vld [vmem:[#allocation7 + $0xd8c] sm:$0xff]
        %v4010 = vld [vmem:[#allocation7 + $0xd94] sm:$0xf]
        %v4011 = vld [vmem:[#allocation7 + $0xd98] sm:$0xff]
        %v4012 = vld [vmem:[#allocation7 + $0xda0] sm:$0xf]
        %v4013 = vld [vmem:[#allocation7 + $0xda4] sm:$0xff]
        %v4014 = vld [vmem:[#allocation7 + $0xdac] sm:$0xf]
        %v4015 = vld [vmem:[#allocation7 + $0xdb0] sm:$0xff]
        %v4016 = vld [vmem:[#allocation7 + $0xdb8] sm:$0xf]
        %v4017 = vld [vmem:[#allocation7 + $0xdbc] sm:$0xff]
        %v4018 = vld [vmem:[#allocation7 + $0xdc4] sm:$0xf]
        %v4019 = vld [vmem:[#allocation7 + $0xdc8] sm:$0xff]
        %v4020 = vld [vmem:[#allocation7 + $0xdd0] sm:$0xf]
        %v4021 = vld [vmem:[#allocation7 + $0xdd4] sm:$0xff]
        %v4022 = vld [vmem:[#allocation7 + $0xddc] sm:$0xf]
        %v4023 = vld [vmem:[#allocation7 + $0xde0] sm:$0xff]
        %v4024 = vld [vmem:[#allocation7 + $0xde8] sm:$0xf]
        %v4025 = vld [vmem:[#allocation7 + $0xdec] sm:$0xff]
        %v4026 = vld [vmem:[#allocation7 + $0xdf4] sm:$0xf]
        %v4027 = vld [vmem:[#allocation7 + $0xdf8] sm:$0xff]
        %v4028 = vld [vmem:[#allocation7 + $0xe00] sm:$0xf]
        %v4029 = vld [vmem:[#allocation7 + $0xe04] sm:$0xff]
        %v4030 = vld [vmem:[#allocation7 + $0xe0c] sm:$0xf]
        %v4031 = vld [vmem:[#allocation7 + $0xe10] sm:$0xff]
        %v4032 = vld [vmem:[#allocation7 + $0xe18] sm:$0xf]
        %v4033 = vld [vmem:[#allocation7 + $0xe1c] sm:$0xff]
        %v4034 = vld [vmem:[#allocation7 + $0xe24] sm:$0xf]
        %v4035 = vld [vmem:[#allocation7 + $0xe28] sm:$0xff]
        %v4036 = vld [vmem:[#allocation7 + $0xe30] sm:$0xf]
        %v4037 = vld [vmem:[#allocation7 + $0xe34] sm:$0xff]
        %v4038 = vld [vmem:[#allocation7 + $0xe3c] sm:$0xf]
        %v4039 = vld [vmem:[#allocation7 + $0xe40] sm:$0xff]
        %v4040 = vld [vmem:[#allocation7 + $0xe48] sm:$0xf]
        %v4041 = vld [vmem:[#allocation7 + $0xe4c] sm:$0xff]
        %v4042 = vld [vmem:[#allocation7 + $0xe54] sm:$0xf]
        %v4043 = vld [vmem:[#allocation7 + $0xe58] sm:$0xff]
        %v4044 = vld [vmem:[#allocation7 + $0xe60] sm:$0xf]
        %v4045 = vld [vmem:[#allocation7 + $0xe64] sm:$0xff]
        %v4046 = vld [vmem:[#allocation7 + $0xe6c] sm:$0xf]
        %v4047 = vld [vmem:[#allocation7 + $0xe70] sm:$0xff]
        %v4048 = vld [vmem:[#allocation7 + $0xe78] sm:$0xf]
        %v4049 = vld [vmem:[#allocation7 + $0xe7c] sm:$0xff]
        %v4050 = vld [vmem:[#allocation7 + $0xe84] sm:$0xf]
        %v4051 = vld [vmem:[#allocation7 + $0xe88] sm:$0xff]
        %v4052 = vld [vmem:[#allocation7 + $0xe90] sm:$0xf]
        %v4053 = vld [vmem:[#allocation7 + $0xe94] sm:$0xff]
        %v4054 = vld [vmem:[#allocation7 + $0xe9c] sm:$0xf]
        %v4055 = vld [vmem:[#allocation7 + $0xea0] sm:$0xff]
        %v4056 = vld [vmem:[#allocation7 + $0xea8] sm:$0xf]
        %v4057 = vld [vmem:[#allocation7 + $0xeac] sm:$0xff]
        %v4058 = vld [vmem:[#allocation7 + $0xeb4] sm:$0xf]
        %v4059 = vld [vmem:[#allocation7 + $0xeb8] sm:$0xff]
        %v4060 = vld [vmem:[#allocation7 + $0xec0] sm:$0xf]
        %v4061 = vld [vmem:[#allocation7 + $0xec4] sm:$0xff]
        %v4062 = vld [vmem:[#allocation7 + $0xecc] sm:$0xf]
        %v4063 = vld [vmem:[#allocation7 + $0xed0] sm:$0xff]
        %v4064 = vld [vmem:[#allocation7 + $0xed8] sm:$0xf]
        %v4065 = vld [vmem:[#allocation7 + $0xedc] sm:$0xff]
        %v4066 = vld [vmem:[#allocation7 + $0xee4] sm:$0xf]
        %v4067 = vld [vmem:[#allocation7 + $0xee8] sm:$0xff]
        %v4068 = vld [vmem:[#allocation7 + $0xef0] sm:$0xf]
        %v4069 = vld [vmem:[#allocation7 + $0xef4] sm:$0xff]
        %v4070 = vld [vmem:[#allocation7 + $0xefc] sm:$0xf]
        %v4071 = vld [vmem:[#allocation7 + $0xf00] sm:$0xff]
        %v4072 = vld [vmem:[#allocation7 + $0xf08] sm:$0xf]
        %v4073 = vld [vmem:[#allocation7 + $0xf0c] sm:$0xff]
        %v4074 = vld [vmem:[#allocation7 + $0xf14] sm:$0xf]
        %v4075 = vld [vmem:[#allocation7 + $0xf18] sm:$0xff]
        %v4076 = vld [vmem:[#allocation7 + $0xf20] sm:$0xf]
        %v4077 = vld [vmem:[#allocation7 + $0xf24] sm:$0xff]
        %v4078 = vld [vmem:[#allocation7 + $0xf2c] sm:$0xf]
        %v4079 = vld [vmem:[#allocation7 + $0xf30] sm:$0xff]
        %v4080 = vld [vmem:[#allocation7 + $0xf38] sm:$0xf]
        %v4081 = vld [vmem:[#allocation7 + $0xf3c] sm:$0xff]
        %v4082 = vld [vmem:[#allocation7 + $0xf44] sm:$0xf]
        %v4083 = vld [vmem:[#allocation7 + $0xf48] sm:$0xff]
        %v4084 = vld [vmem:[#allocation7 + $0xf50] sm:$0xf]
        %v4085 = vld [vmem:[#allocation7 + $0xf54] sm:$0xff]
        %v4086 = vld [vmem:[#allocation7 + $0xf5c] sm:$0xf]
        %v4087 = vld [vmem:[#allocation7 + $0xf60] sm:$0xff]
        %v4088 = vld [vmem:[#allocation7 + $0xf68] sm:$0xf]
        %v4089 = vld [vmem:[#allocation7 + $0xf6c] sm:$0xff]
        %v4090 = vld [vmem:[#allocation7 + $0xf74] sm:$0xf]
        %v4091 = vld [vmem:[#allocation7 + $0xf78] sm:$0xff]
        %v4092 = vld [vmem:[#allocation7 + $0xf80] sm:$0xf]
        %v4093 = vld [vmem:[#allocation7 + $0xf84] sm:$0xff]
        %v4094 = vld [vmem:[#allocation7 + $0xf8c] sm:$0xf]
        %v4095 = vld [vmem:[#allocation7 + $0xf90] sm:$0xff]
        %v4096 = vld [vmem:[#allocation7 + $0xf98] sm:$0xf]
        %v4097 = vld [vmem:[#allocation7 + $0xf9c] sm:$0xff]
        %v4098 = vld [vmem:[#allocation7 + $0xfa4] sm:$0xf]
        %v4099 = vld [vmem:[#allocation7 + $0xfa8] sm:$0xff]
        %v4100 = vld [vmem:[#allocation7 + $0xfb0] sm:$0xf]
        %v4101 = vld [vmem:[#allocation7 + $0xfb4] sm:$0xff]
        %v4102 = vld [vmem:[#allocation7 + $0xfbc] sm:$0xf]
        %v4103 = vld [vmem:[#allocation7 + $0xfc0] sm:$0xff]
        %v4104 = vld [vmem:[#allocation7 + $0xfc8] sm:$0xf]
        %v4105 = vld [vmem:[#allocation7 + $0xfcc] sm:$0xff]
        %v4106 = vld [vmem:[#allocation7 + $0xfd4] sm:$0xf]
        %v4107 = vld [vmem:[#allocation7 + $0xfd8] sm:$0xff]
        %v4108 = vld [vmem:[#allocation7 + $0xfe0] sm:$0xf]
        %v4109 = vld [vmem:[#allocation7 + $0xfe4] sm:$0xff]
        %v4110 = vld [vmem:[#allocation7 + $0xfec] sm:$0xf]
        %v4111 = vld [vmem:[#allocation7 + $0xff0] sm:$0xff]
        %v4112 = vld [vmem:[#allocation7 + $0xff8] sm:$0xf]
        %v4113 = vld [vmem:[#allocation7 + $0xffc] sm:$0xff]
        %v4114 = vld [vmem:[#allocation7 + $0x1004] sm:$0xf]
        %v4115 = vld [vmem:[#allocation7 + $0x1008] sm:$0xff]
        %v4116 = vld [vmem:[#allocation7 + $0x1010] sm:$0xf]
        %v4117 = vld [vmem:[#allocation7 + $0x1014] sm:$0xff]
        %v4118 = vld [vmem:[#allocation7 + $0x101c] sm:$0xf]
        %v4119 = vld [vmem:[#allocation7 + $0x1020] sm:$0xff]
        %v4120 = vld [vmem:[#allocation7 + $0x1028] sm:$0xf]
        %v4121 = vld [vmem:[#allocation7 + $0x102c] sm:$0xff]
        %v4122 = vld [vmem:[#allocation7 + $0x1034] sm:$0xf]
        %v4123 = vld [vmem:[#allocation7 + $0x1038] sm:$0xff]
        %v4124 = vld [vmem:[#allocation7 + $0x1040] sm:$0xf]
        %v4125 = vld [vmem:[#allocation7 + $0x1044] sm:$0xff]
        %v4126 = vld [vmem:[#allocation7 + $0x104c] sm:$0xf]
        %v4127 = vld [vmem:[#allocation7 + $0x1050] sm:$0xff]
        %v4128 = vld [vmem:[#allocation7 + $0x1058] sm:$0xf]
        %v4129 = vld [vmem:[#allocation7 + $0x105c] sm:$0xff]
        %v4130 = vld [vmem:[#allocation7 + $0x1064] sm:$0xf]
        %v4131 = vld [vmem:[#allocation7 + $0x1068] sm:$0xff]
        %v4132 = vld [vmem:[#allocation7 + $0x1070] sm:$0xf]
        %v4133 = vld [vmem:[#allocation7 + $0x1074] sm:$0xff]
        %v4134 = vld [vmem:[#allocation7 + $0x107c] sm:$0xf]
        %v4135 = vld [vmem:[#allocation7 + $0x1080] sm:$0xff]
        %v4136 = vld [vmem:[#allocation7 + $0x1088] sm:$0xf]
        %v4137 = vld [vmem:[#allocation7 + $0x108c] sm:$0xff]
        %v4138 = vld [vmem:[#allocation7 + $0x1094] sm:$0xf]
        %v4139 = vld [vmem:[#allocation7 + $0x1098] sm:$0xff]
        %v4140 = vld [vmem:[#allocation7 + $0x10a0] sm:$0xf]
        %v4141 = vld [vmem:[#allocation7 + $0x10a4] sm:$0xff]
        %v4142 = vld [vmem:[#allocation7 + $0x10ac] sm:$0xf]
        %v4143 = vld [vmem:[#allocation7 + $0x10b0] sm:$0xff]
        %v4144 = vld [vmem:[#allocation7 + $0x10b8] sm:$0xf]
        %v4145 = vld [vmem:[#allocation7 + $0x10bc] sm:$0xff]
        %v4146 = vld [vmem:[#allocation7 + $0x10c4] sm:$0xf]
        %v4147 = vld [vmem:[#allocation7 + $0x10c8] sm:$0xff]
        %v4148 = vld [vmem:[#allocation7 + $0x10d0] sm:$0xf]
        %v4149 = vld [vmem:[#allocation7 + $0x10d4] sm:$0xff]
        %v4150 = vld [vmem:[#allocation7 + $0x10dc] sm:$0xf]
        %v4151 = vld [vmem:[#allocation7 + $0x10e0] sm:$0xff]
        %v4152 = vld [vmem:[#allocation7 + $0x10e8] sm:$0xf]
        %v4153 = vld [vmem:[#allocation7 + $0x10ec] sm:$0xff]
        %v4154 = vld [vmem:[#allocation7 + $0x10f4] sm:$0xf]
        %v4155 = vld [vmem:[#allocation7 + $0x10f8] sm:$0xff]
        %v4156 = vld [vmem:[#allocation7 + $0x1100] sm:$0xf]
        %v4157 = vld [vmem:[#allocation7 + $0x1104] sm:$0xff]
        %v4158 = vld [vmem:[#allocation7 + $0x110c] sm:$0xf]
        %v4159 = vld [vmem:[#allocation7 + $0x1110] sm:$0xff]
        %v4160 = vld [vmem:[#allocation7 + $0x1118] sm:$0xf]
        %v4161 = vld [vmem:[#allocation7 + $0x111c] sm:$0xff]
        %v4162 = vld [vmem:[#allocation7 + $0x1124] sm:$0xf]
        %v4163 = vld [vmem:[#allocation7 + $0x1128] sm:$0xff]
        %v4164 = vld [vmem:[#allocation7 + $0x1130] sm:$0xf]
        %v4165 = vld [vmem:[#allocation7 + $0x1134] sm:$0xff]
        %v4166 = vld [vmem:[#allocation7 + $0x113c] sm:$0xf]
        %v4167 = vld [vmem:[#allocation7 + $0x1140] sm:$0xff]
        %v4168 = vld [vmem:[#allocation7 + $0x1148] sm:$0xf]
        %v4169 = vld [vmem:[#allocation7 + $0x114c] sm:$0xff]
        %v4170 = vld [vmem:[#allocation7 + $0x1154] sm:$0xf]
        %v4171 = vld [vmem:[#allocation7 + $0x1158] sm:$0xff]
        %v4172 = vld [vmem:[#allocation7 + $0x1160] sm:$0xf]
        %v4173 = vld [vmem:[#allocation7 + $0x1164] sm:$0xff]
        %v4174 = vld [vmem:[#allocation7 + $0x116c] sm:$0xf]
        %v4175 = vld [vmem:[#allocation7 + $0x1170] sm:$0xff]
        %v4176 = vld [vmem:[#allocation7 + $0x1178] sm:$0xf]
        %v4177 = vld [vmem:[#allocation7 + $0x117c] sm:$0xff]
        %v4178 = vld [vmem:[#allocation7 + $0x1184] sm:$0xf]
        %v4179 = vld [vmem:[#allocation7 + $0x1188] sm:$0xff]
        %v4180 = vld [vmem:[#allocation7 + $0x1190] sm:$0xf]
        %v4181 = vld [vmem:[#allocation7 + $0x1194] sm:$0xff]
        %v4182 = vld [vmem:[#allocation7 + $0x119c] sm:$0xf]
        %v4183 = vld [vmem:[#allocation7 + $0x11a0] sm:$0xff]
        %v4184 = vld [vmem:[#allocation7 + $0x11a8] sm:$0xf]
        %v4185 = vld [vmem:[#allocation7 + $0x11ac] sm:$0xff]
        %v4186 = vld [vmem:[#allocation7 + $0x11b4] sm:$0xf]
        %v4187 = vld [vmem:[#allocation7 + $0x11b8] sm:$0xff]
        %v4188 = vld [vmem:[#allocation7 + $0x11c0] sm:$0xf]
        %v4189 = vld [vmem:[#allocation7 + $0x11c4] sm:$0xff]
        %v4190 = vld [vmem:[#allocation7 + $0x11cc] sm:$0xf]
        %v4191 = vld [vmem:[#allocation7 + $0x11d0] sm:$0xff]
        %v4192 = vld [vmem:[#allocation7 + $0x11d8] sm:$0xf]
        %v4193 = vld [vmem:[#allocation7 + $0x11dc] sm:$0xff]
        %v4194 = vld [vmem:[#allocation7 + $0x11e4] sm:$0xf]
        %v4195 = vld [vmem:[#allocation7 + $0x11e8] sm:$0xff]
        %v4196 = vld [vmem:[#allocation7 + $0x11f0] sm:$0xf]
        %v4197 = vld [vmem:[#allocation7 + $0x11f4] sm:$0xff]
        %v4198 = vld [vmem:[#allocation7 + $0x11fc] sm:$0xf]
        %v4199 = vld [vmem:[#allocation7 + $0x1200] sm:$0xff]
        %v4200 = vld [vmem:[#allocation7 + $0x1208] sm:$0xf]
        %v4201 = vld [vmem:[#allocation7 + $0x120c] sm:$0xff]
        %v4202 = vld [vmem:[#allocation7 + $0x1214] sm:$0xf]
        %v4203 = vld [vmem:[#allocation7 + $0x1218] sm:$0xff]
        %v4204 = vld [vmem:[#allocation7 + $0x1220] sm:$0xf]
        %v4205 = vld [vmem:[#allocation7 + $0x1224] sm:$0xff]
        %v4206 = vld [vmem:[#allocation7 + $0x122c] sm:$0xf]
        %v4207 = vld [vmem:[#allocation7 + $0x1230] sm:$0xff]
        %v4208 = vld [vmem:[#allocation7 + $0x1238] sm:$0xf]
        %v4209 = vld [vmem:[#allocation7 + $0x123c] sm:$0xff]
        %v4210 = vld [vmem:[#allocation7 + $0x1244] sm:$0xf]
        %v4211 = vld [vmem:[#allocation7 + $0x1248] sm:$0xff]
        %v4212 = vld [vmem:[#allocation7 + $0x1250] sm:$0xf]
        %v4213 = vld [vmem:[#allocation7 + $0x1254] sm:$0xff]
        %v4214 = vld [vmem:[#allocation7 + $0x125c] sm:$0xf]
        %v4215 = vld [vmem:[#allocation7 + $0x1260] sm:$0xff]
        %v4216 = vld [vmem:[#allocation7 + $0x1268] sm:$0xf]
        %v4217 = vld [vmem:[#allocation7 + $0x126c] sm:$0xff]
        %v4218 = vld [vmem:[#allocation7 + $0x1274] sm:$0xf]
        %v4219 = vld [vmem:[#allocation7 + $0x1278] sm:$0xff]
        %v4220 = vld [vmem:[#allocation7 + $0x1280] sm:$0xf]
        %v4221 = vld [vmem:[#allocation7 + $0x1284] sm:$0xff]
        %v4222 = vld [vmem:[#allocation7 + $0x128c] sm:$0xf]
        %v4223 = vld [vmem:[#allocation7 + $0x1290] sm:$0xff]
        %v4224 = vld [vmem:[#allocation7 + $0x1298] sm:$0xf]
        %v4225 = vld [vmem:[#allocation7 + $0x129c] sm:$0xff]
        %v4226 = vld [vmem:[#allocation7 + $0x12a4] sm:$0xf]
        %v4227 = vld [vmem:[#allocation7 + $0x12a8] sm:$0xff]
        %v4228 = vld [vmem:[#allocation7 + $0x12b0] sm:$0xf]
        %v4229 = vld [vmem:[#allocation7 + $0x12b4] sm:$0xff]
        %v4230 = vld [vmem:[#allocation7 + $0x12bc] sm:$0xf]
        %v4231 = vld [vmem:[#allocation7 + $0x12c0] sm:$0xff]
        %v4232 = vld [vmem:[#allocation7 + $0x12c8] sm:$0xf]
        %v4233 = vld [vmem:[#allocation7 + $0x12cc] sm:$0xff]
        %v4234 = vld [vmem:[#allocation7 + $0x12d4] sm:$0xf]
        %v4235 = vld [vmem:[#allocation7 + $0x12d8] sm:$0xff]
        %v4236 = vld [vmem:[#allocation7 + $0x12e0] sm:$0xf]
        %v4237 = vld [vmem:[#allocation7 + $0x12e4] sm:$0xff]
        %v4238 = vld [vmem:[#allocation7 + $0x12ec] sm:$0xf]
        %v4239 = vld [vmem:[#allocation7 + $0x12f0] sm:$0xff]
        %v4240 = vld [vmem:[#allocation7 + $0x12f8] sm:$0xf]
        %v4241 = vld [vmem:[#allocation7 + $0x12fc] sm:$0xff]
        %v4242 = vld [vmem:[#allocation7 + $0x1304] sm:$0xf]
        %v4243 = vld [vmem:[#allocation7 + $0x1308] sm:$0xff]
        %v4244 = vld [vmem:[#allocation7 + $0x1310] sm:$0xf]
        %v4245 = vld [vmem:[#allocation7 + $0x1314] sm:$0xff]
        %v4246 = vld [vmem:[#allocation7 + $0x131c] sm:$0xf]
        %v4247 = vld [vmem:[#allocation7 + $0x1320] sm:$0xff]
        %v4248 = vld [vmem:[#allocation7 + $0x1328] sm:$0xf]
        %v4249 = vld [vmem:[#allocation7 + $0x132c] sm:$0xff]
        %v4250 = vld [vmem:[#allocation7 + $0x1334] sm:$0xf]
        %v4251 = vld [vmem:[#allocation7 + $0x1338] sm:$0xff]
        %v4252 = vld [vmem:[#allocation7 + $0x1340] sm:$0xf]
        %v4253 = vld [vmem:[#allocation7 + $0x1344] sm:$0xff]
        %v4254 = vld [vmem:[#allocation7 + $0x134c] sm:$0xf]
        %v4255 = vld [vmem:[#allocation7 + $0x1350] sm:$0xff]
        %v4256 = vld [vmem:[#allocation7 + $0x1358] sm:$0xf]
        %v4257 = vld [vmem:[#allocation7 + $0x135c] sm:$0xff]
        %v4258 = vld [vmem:[#allocation7 + $0x1364] sm:$0xf]
        %v4259 = vld [vmem:[#allocation7 + $0x1368] sm:$0xff]
        %v4260 = vld [vmem:[#allocation7 + $0x1370] sm:$0xf]
        %v4261 = vld [vmem:[#allocation7 + $0x1374] sm:$0xff]
        %v4262 = vld [vmem:[#allocation7 + $0x137c] sm:$0xf]
        %v4263 = vld [vmem:[#allocation7 + $0x1380] sm:$0xff]
        %v4264 = vld [vmem:[#allocation7 + $0x1388] sm:$0xf]
        %v4265 = vld [vmem:[#allocation7 + $0x138c] sm:$0xff]
        %v4266 = vld [vmem:[#allocation7 + $0x1394] sm:$0xf]
        %v4267 = vld [vmem:[#allocation7 + $0x1398] sm:$0xff]
        %v4268 = vld [vmem:[#allocation7 + $0x13a0] sm:$0xf]
        %v4269 = vld [vmem:[#allocation7 + $0x13a4] sm:$0xff]
        %v4270 = vld [vmem:[#allocation7 + $0x13ac] sm:$0xf]
        %v4271 = vld [vmem:[#allocation7 + $0x13b0] sm:$0xff]
        %v4272 = vld [vmem:[#allocation7 + $0x13b8] sm:$0xf]
        %v4273 = vld [vmem:[#allocation7 + $0x13bc] sm:$0xff]
        %v4274 = vld [vmem:[#allocation7 + $0x13c4] sm:$0xf]
        %v4275 = vld [vmem:[#allocation7 + $0x13c8] sm:$0xff]
        %v4276 = vld [vmem:[#allocation7 + $0x13d0] sm:$0xf]
        %v4277 = vld [vmem:[#allocation7 + $0x13d4] sm:$0xff]
        %v4278 = vld [vmem:[#allocation7 + $0x13dc] sm:$0xf]
        %v4279 = vld [vmem:[#allocation7 + $0x13e0] sm:$0xff]
        %v4280 = vld [vmem:[#allocation7 + $0x13e8] sm:$0xf]
        %v4281 = vld [vmem:[#allocation7 + $0x13ec] sm:$0xff]
        %v4282 = vld [vmem:[#allocation7 + $0x13f4] sm:$0xf]
        %v4283 = vld [vmem:[#allocation7 + $0x13f8] sm:$0xff]
        %v4284 = vld [vmem:[#allocation7 + $0x1400] sm:$0xf]
        %v4285 = vld [vmem:[#allocation7 + $0x1404] sm:$0xff]
        %v4286 = vld [vmem:[#allocation7 + $0x140c] sm:$0xf]
        %v4287 = vld [vmem:[#allocation7 + $0x1410] sm:$0xff]
        %v4288 = vld [vmem:[#allocation7 + $0x1418] sm:$0xf]
        %v4289 = vld [vmem:[#allocation7 + $0x141c] sm:$0xff]
        %v4290 = vld [vmem:[#allocation7 + $0x1424] sm:$0xf]
        %v4291 = vld [vmem:[#allocation7 + $0x1428] sm:$0xff]
        %v4292 = vld [vmem:[#allocation7 + $0x1430] sm:$0xf]
        %v4293 = vld [vmem:[#allocation7 + $0x1434] sm:$0xff]
        %v4294 = vld [vmem:[#allocation7 + $0x143c] sm:$0xf]
        %v4295 = vld [vmem:[#allocation7 + $0x1440] sm:$0xff]
        %v4296 = vld [vmem:[#allocation7 + $0x1448] sm:$0xf]
        %v4297 = vld [vmem:[#allocation7 + $0x144c] sm:$0xff]
        %v4298 = vld [vmem:[#allocation7 + $0x1454] sm:$0xf]
        %v4299 = vld [vmem:[#allocation7 + $0x1458] sm:$0xff]
        %v4300 = vld [vmem:[#allocation7 + $0x1460] sm:$0xf]
        %v4301 = vld [vmem:[#allocation7 + $0x1464] sm:$0xff]
        %v4302 = vld [vmem:[#allocation7 + $0x146c] sm:$0xf]
        %v4303 = vld [vmem:[#allocation7 + $0x1470] sm:$0xff]
        %v4304 = vld [vmem:[#allocation7 + $0x1478] sm:$0xf]
        %v4305 = vld [vmem:[#allocation7 + $0x147c] sm:$0xff]
        %v4306 = vld [vmem:[#allocation7 + $0x1484] sm:$0xf]
        %v4307 = vld [vmem:[#allocation7 + $0x1488] sm:$0xff]
        %v4308 = vld [vmem:[#allocation7 + $0x1490] sm:$0xf]
        %v4309 = vld [vmem:[#allocation7 + $0x1494] sm:$0xff]
        %v4310 = vld [vmem:[#allocation7 + $0x149c] sm:$0xf]
        %v4311 = vld [vmem:[#allocation7 + $0x14a0] sm:$0xff]
        %v4312 = vld [vmem:[#allocation7 + $0x14a8] sm:$0xf]
        %v4313 = vld [vmem:[#allocation7 + $0x14ac] sm:$0xff]
        %v4314 = vld [vmem:[#allocation7 + $0x14b4] sm:$0xf]
        %v4315 = vld [vmem:[#allocation7 + $0x14b8] sm:$0xff]
        %v4316 = vld [vmem:[#allocation7 + $0x14c0] sm:$0xf]
        %v4317 = vld [vmem:[#allocation7 + $0x14c4] sm:$0xff]
        %v4318 = vld [vmem:[#allocation7 + $0x14cc] sm:$0xf]
        %v4319 = vld [vmem:[#allocation7 + $0x14d0] sm:$0xff]
        %v4320 = vld [vmem:[#allocation7 + $0x14d8] sm:$0xf]
        %v4321 = vld [vmem:[#allocation7 + $0x14dc] sm:$0xff]
        %v4322 = vld [vmem:[#allocation7 + $0x14e4] sm:$0xf]
        %v4323 = vld [vmem:[#allocation7 + $0x14e8] sm:$0xff]
        %v4324 = vld [vmem:[#allocation7 + $0x14f0] sm:$0xf]
        %v4325 = vld [vmem:[#allocation7 + $0x14f4] sm:$0xff]
        %v4326 = vld [vmem:[#allocation7 + $0x14fc] sm:$0xf]
        %v4327 = vld [vmem:[#allocation7 + $0x1500] sm:$0xff]
        %v4328 = vld [vmem:[#allocation7 + $0x1508] sm:$0xf]
        %v4329 = vld [vmem:[#allocation7 + $0x150c] sm:$0xff]
        %v4330 = vld [vmem:[#allocation7 + $0x1514] sm:$0xf]
        %v4331 = vld [vmem:[#allocation7 + $0x1518] sm:$0xff]
        %v4332 = vld [vmem:[#allocation7 + $0x1520] sm:$0xf]
        %v4333 = vld [vmem:[#allocation7 + $0x1524] sm:$0xff]
        %v4334 = vld [vmem:[#allocation7 + $0x152c] sm:$0xf]
        %v4335 = vld [vmem:[#allocation7 + $0x1530] sm:$0xff]
        %v4336 = vld [vmem:[#allocation7 + $0x1538] sm:$0xf]
        %v4337 = vld [vmem:[#allocation7 + $0x153c] sm:$0xff]
        %v4338 = vld [vmem:[#allocation7 + $0x1544] sm:$0xf]
        %v4339 = vld [vmem:[#allocation7 + $0x1548] sm:$0xff]
        %v4340 = vld [vmem:[#allocation7 + $0x1550] sm:$0xf]
        %v4341 = vld [vmem:[#allocation7 + $0x1554] sm:$0xff]
        %v4342 = vld [vmem:[#allocation7 + $0x155c] sm:$0xf]
        %v4343 = vld [vmem:[#allocation7 + $0x1560] sm:$0xff]
        %v4344 = vld [vmem:[#allocation7 + $0x1568] sm:$0xf]
        %v4345 = vld [vmem:[#allocation7 + $0x156c] sm:$0xff]
        %v4346 = vld [vmem:[#allocation7 + $0x1574] sm:$0xf]
        %v4347 = vld [vmem:[#allocation7 + $0x1578] sm:$0xff]
        %v4348 = vld [vmem:[#allocation7 + $0x1580] sm:$0xf]
        %v4349 = vld [vmem:[#allocation7 + $0x1584] sm:$0xff]
        %v4350 = vld [vmem:[#allocation7 + $0x158c] sm:$0xf]
        %v4351 = vld [vmem:[#allocation7 + $0x1590] sm:$0xff]
        %v4352 = vld [vmem:[#allocation7 + $0x1598] sm:$0xf]
        %v4353 = vld [vmem:[#allocation7 + $0x159c] sm:$0xff]
        %v4354 = vld [vmem:[#allocation7 + $0x15a4] sm:$0xf]
        %v4355 = vld [vmem:[#allocation7 + $0x15a8] sm:$0xff]
        %v4356 = vld [vmem:[#allocation7 + $0x15b0] sm:$0xf]
        %v4357 = vld [vmem:[#allocation7 + $0x15b4] sm:$0xff]
        %v4358 = vld [vmem:[#allocation7 + $0x15bc] sm:$0xf]
        %v4359 = vld [vmem:[#allocation7 + $0x15c0] sm:$0xff]
        %v4360 = vld [vmem:[#allocation7 + $0x15c8] sm:$0xf]
        %v4361 = vld [vmem:[#allocation7 + $0x15cc] sm:$0xff]
        %v4362 = vld [vmem:[#allocation7 + $0x15d4] sm:$0xf]
        %v4363 = vld [vmem:[#allocation7 + $0x15d8] sm:$0xff]
        %v4364 = vld [vmem:[#allocation7 + $0x15e0] sm:$0xf]
        %v4365 = vld [vmem:[#allocation7 + $0x15e4] sm:$0xff]
        %v4366 = vld [vmem:[#allocation7 + $0x15ec] sm:$0xf]
        %v4367 = vld [vmem:[#allocation7 + $0x15f0] sm:$0xff]
        %v4368 = vld [vmem:[#allocation7 + $0x15f8] sm:$0xf]
        %v4369 = vld [vmem:[#allocation7 + $0x15fc] sm:$0xff]
        %v4370 = vld [vmem:[#allocation7 + $0x1604] sm:$0xf]
        %v4371 = vld [vmem:[#allocation7 + $0x1608] sm:$0xff]
        %v4372 = vld [vmem:[#allocation7 + $0x1610] sm:$0xf]
        %v4373 = vld [vmem:[#allocation7 + $0x1614] sm:$0xff]
        %v4374 = vld [vmem:[#allocation7 + $0x161c] sm:$0xf]
        %v4375 = vld [vmem:[#allocation7 + $0x1620] sm:$0xff]
        %v4376 = vld [vmem:[#allocation7 + $0x1628] sm:$0xf]
        %v4377 = vld [vmem:[#allocation7 + $0x162c] sm:$0xff]
        %v4378 = vld [vmem:[#allocation7 + $0x1634] sm:$0xf]
        %v4379 = vld [vmem:[#allocation7 + $0x1638] sm:$0xff]
        %v4380 = vld [vmem:[#allocation7 + $0x1640] sm:$0xf]
        %v4381 = vld [vmem:[#allocation7 + $0x1644] sm:$0xff]
        %v4382 = vld [vmem:[#allocation7 + $0x164c] sm:$0xf]
        %v4383 = vld [vmem:[#allocation7 + $0x1650] sm:$0xff]
        %v4384 = vld [vmem:[#allocation7 + $0x1658] sm:$0xf]
        %v4385 = vld [vmem:[#allocation7 + $0x165c] sm:$0xff]
        %v4386 = vld [vmem:[#allocation7 + $0x1664] sm:$0xf]
        %v4387 = vld [vmem:[#allocation7 + $0x1668] sm:$0xff]
        %v4388 = vld [vmem:[#allocation7 + $0x1670] sm:$0xf]
        %v4389 = vld [vmem:[#allocation7 + $0x1674] sm:$0xff]
        %v4390 = vld [vmem:[#allocation7 + $0x167c] sm:$0xf]
        %v4511 = vunpack.c.l.b16 %v3311
        %v4512 = vunpack.c.h.b16 %v3311
        %v4513 = vunpack.c.l.b16 %v3312
        %v4514 = vunpack.c.h.b16 %v3312
        %v4515 = vunpack.c.l.b16 %v3313
        %v4516 = vunpack.c.h.b16 %v3313
        %v4517 = vunpack.c.l.b16 %v3314
        %v4518 = vunpack.c.h.b16 %v3314
        %v4519 = vunpack.c.l.b16 %v3315
        %v4520 = vunpack.c.h.b16 %v3315
        %v4521 = vunpack.c.l.b16 %v3316
        %v4522 = vunpack.c.h.b16 %v3316
        %v4523 = vunpack.c.l.b16 %v3317
        %v4524 = vunpack.c.h.b16 %v3317
        %v4525 = vunpack.c.l.b16 %v3318
        %v4526 = vunpack.c.h.b16 %v3318
        %v4527 = vunpack.c.l.b16 %v3319
        %v4528 = vunpack.c.h.b16 %v3319
        %v4529 = vunpack.c.l.b16 %v3320
        %v4530 = vunpack.c.h.b16 %v3320
        %v4531 = vunpack.c.l.b16 %v3321
        %v4532 = vunpack.c.h.b16 %v3321
        %v4533 = vunpack.c.l.b16 %v3322
        %v4534 = vunpack.c.h.b16 %v3322
        %v4535 = vunpack.c.l.b16 %v3323
        %v4536 = vunpack.c.h.b16 %v3323
        %v4537 = vunpack.c.l.b16 %v3324
        %v4538 = vunpack.c.h.b16 %v3324
        %v4539 = vunpack.c.l.b16 %v3325
        %v4540 = vunpack.c.h.b16 %v3325
        %v4541 = vunpack.c.l.b16 %v3326
        %v4542 = vunpack.c.h.b16 %v3326
        %v4543 = vunpack.c.l.b16 %v3327
        %v4544 = vunpack.c.h.b16 %v3327
        %v4545 = vunpack.c.l.b16 %v3328
        %v4546 = vunpack.c.h.b16 %v3328
        %v4547 = vunpack.c.l.b16 %v3329
        %v4548 = vunpack.c.h.b16 %v3329
        %v4549 = vunpack.c.l.b16 %v3330
        %v4550 = vunpack.c.h.b16 %v3330
        %v4551 = vunpack.c.l.b16 %v3331
        %v4552 = vunpack.c.h.b16 %v3331
        %v4553 = vunpack.c.l.b16 %v3332
        %v4554 = vunpack.c.h.b16 %v3332
        %v4555 = vunpack.c.l.b16 %v3333
        %v4556 = vunpack.c.h.b16 %v3333
        %v4557 = vunpack.c.l.b16 %v3334
        %v4558 = vunpack.c.h.b16 %v3334
        %v4559 = vunpack.c.l.b16 %v3335
        %v4560 = vunpack.c.h.b16 %v3335
        %v4561 = vunpack.c.l.b16 %v3336
        %v4562 = vunpack.c.h.b16 %v3336
        %v4563 = vunpack.c.l.b16 %v3337
        %v4564 = vunpack.c.h.b16 %v3337
        %v4565 = vunpack.c.l.b16 %v3338
        %v4566 = vunpack.c.h.b16 %v3338
        %v4567 = vunpack.c.l.b16 %v3339
        %v4568 = vunpack.c.h.b16 %v3339
        %v4569 = vunpack.c.l.b16 %v3340
        %v4570 = vunpack.c.h.b16 %v3340
        %v4571 = vunpack.c.l.b16 %v3341
        %v4572 = vunpack.c.h.b16 %v3341
        %v4573 = vunpack.c.l.b16 %v3342
        %v4574 = vunpack.c.h.b16 %v3342
        %v4575 = vunpack.c.l.b16 %v3343
        %v4576 = vunpack.c.h.b16 %v3343
        %v4577 = vunpack.c.l.b16 %v3344
        %v4578 = vunpack.c.h.b16 %v3344
        %v4579 = vunpack.c.l.b16 %v3345
        %v4580 = vunpack.c.h.b16 %v3345
        %v4581 = vunpack.c.l.b16 %v3346
        %v4582 = vunpack.c.h.b16 %v3346
        %v4583 = vunpack.c.l.b16 %v3347
        %v4584 = vunpack.c.h.b16 %v3347
        %v4585 = vunpack.c.l.b16 %v3348
        %v4586 = vunpack.c.h.b16 %v3348
        %v4587 = vunpack.c.l.b16 %v3349
        %v4588 = vunpack.c.h.b16 %v3349
        %v4589 = vunpack.c.l.b16 %v3350
        %v4590 = vunpack.c.h.b16 %v3350
        %v4591 = vunpack.c.l.b16 %v3351
        %v4592 = vunpack.c.h.b16 %v3351
        %v4593 = vunpack.c.l.b16 %v3352
        %v4594 = vunpack.c.h.b16 %v3352
        %v4595 = vunpack.c.l.b16 %v3353
        %v4596 = vunpack.c.h.b16 %v3353
        %v4597 = vunpack.c.l.b16 %v3354
        %v4598 = vunpack.c.h.b16 %v3354
        %v4599 = vunpack.c.l.b16 %v3355
        %v4600 = vunpack.c.h.b16 %v3355
        %v4601 = vunpack.c.l.b16 %v3356
        %v4602 = vunpack.c.h.b16 %v3356
        %v4603 = vunpack.c.l.b16 %v3357
        %v4604 = vunpack.c.h.b16 %v3357
        %v4605 = vunpack.c.l.b16 %v3358
        %v4606 = vunpack.c.h.b16 %v3358
        %v4607 = vunpack.c.l.b16 %v3359
        %v4608 = vunpack.c.h.b16 %v3359
        %v4609 = vunpack.c.l.b16 %v3360
        %v4610 = vunpack.c.h.b16 %v3360
        %v4611 = vunpack.c.l.b16 %v3361
        %v4612 = vunpack.c.h.b16 %v3361
        %v4613 = vunpack.c.l.b16 %v3362
        %v4614 = vunpack.c.h.b16 %v3362
        %v4615 = vunpack.c.l.b16 %v3363
        %v4616 = vunpack.c.h.b16 %v3363
        %v4617 = vunpack.c.l.b16 %v3364
        %v4618 = vunpack.c.h.b16 %v3364
        %v4619 = vunpack.c.l.b16 %v3365
        %v4620 = vunpack.c.h.b16 %v3365
        %v4621 = vunpack.c.l.b16 %v3366
        %v4622 = vunpack.c.h.b16 %v3366
        %v4623 = vunpack.c.l.b16 %v3367
        %v4624 = vunpack.c.h.b16 %v3367
        %v4625 = vunpack.c.l.b16 %v3368
        %v4626 = vunpack.c.h.b16 %v3368
        %v4627 = vunpack.c.l.b16 %v3369
        %v4628 = vunpack.c.h.b16 %v3369
        %v4629 = vunpack.c.l.b16 %v3370
        %v4630 = vunpack.c.h.b16 %v3370
        %v4631 = vunpack.c.l.b16 %v3371
        %v4632 = vunpack.c.h.b16 %v3371
        %v4633 = vunpack.c.l.b16 %v3372
        %v4634 = vunpack.c.h.b16 %v3372
        %v4635 = vunpack.c.l.b16 %v3373
        %v4636 = vunpack.c.h.b16 %v3373
        %v4637 = vunpack.c.l.b16 %v3374
        %v4638 = vunpack.c.h.b16 %v3374
        %v4639 = vunpack.c.l.b16 %v3375
        %v4640 = vunpack.c.h.b16 %v3375
        %v4641 = vunpack.c.l.b16 %v3376
        %v4642 = vunpack.c.h.b16 %v3376
        %v4643 = vunpack.c.l.b16 %v3377
        %v4644 = vunpack.c.h.b16 %v3377
        %v4645 = vunpack.c.l.b16 %v3378
        %v4646 = vunpack.c.h.b16 %v3378
        %v4647 = vunpack.c.l.b16 %v3379
        %v4648 = vunpack.c.h.b16 %v3379
        %v4649 = vunpack.c.l.b16 %v3380
        %v4650 = vunpack.c.h.b16 %v3380
        %v4651 = vunpack.c.l.b16 %v3381
        %v4652 = vunpack.c.h.b16 %v3381
        %v4653 = vunpack.c.l.b16 %v3382
        %v4654 = vunpack.c.h.b16 %v3382
        %v4655 = vunpack.c.l.b16 %v3383
        %v4656 = vunpack.c.h.b16 %v3383
        %v4657 = vunpack.c.l.b16 %v3384
        %v4658 = vunpack.c.h.b16 %v3384
        %v4659 = vunpack.c.l.b16 %v3385
        %v4660 = vunpack.c.h.b16 %v3385
        %v4661 = vunpack.c.l.b16 %v3386
        %v4662 = vunpack.c.h.b16 %v3386
        %v4663 = vunpack.c.l.b16 %v3387
        %v4664 = vunpack.c.h.b16 %v3387
        %v4665 = vunpack.c.l.b16 %v3388
        %v4666 = vunpack.c.h.b16 %v3388
        %v4667 = vunpack.c.l.b16 %v3389
        %v4668 = vunpack.c.h.b16 %v3389
        %v4669 = vunpack.c.l.b16 %v3390
        %v4670 = vunpack.c.h.b16 %v3390
        %v4671 = vunpack.c.l.b16 %v3391
        %v4672 = vunpack.c.h.b16 %v3391
        %v4673 = vunpack.c.l.b16 %v3392
        %v4674 = vunpack.c.h.b16 %v3392
        %v4675 = vunpack.c.l.b16 %v3393
        %v4676 = vunpack.c.h.b16 %v3393
        %v4677 = vunpack.c.l.b16 %v3394
        %v4678 = vunpack.c.h.b16 %v3394
        %v4679 = vunpack.c.l.b16 %v3395
        %v4680 = vunpack.c.h.b16 %v3395
        %v4681 = vunpack.c.l.b16 %v3396
        %v4682 = vunpack.c.h.b16 %v3396
        %v4683 = vunpack.c.l.b16 %v3397
        %v4684 = vunpack.c.h.b16 %v3397
        %v4685 = vunpack.c.l.b16 %v3398
        %v4686 = vunpack.c.h.b16 %v3398
        %v4687 = vunpack.c.l.b16 %v3399
        %v4688 = vunpack.c.h.b16 %v3399
        %v4689 = vunpack.c.l.b16 %v3400
        %v4690 = vunpack.c.h.b16 %v3400
        %v4691 = vunpack.c.l.b16 %v3401
        %v4692 = vunpack.c.h.b16 %v3401
        %v4693 = vunpack.c.l.b16 %v3402
        %v4694 = vunpack.c.h.b16 %v3402
        %v4695 = vunpack.c.l.b16 %v3403
        %v4696 = vunpack.c.h.b16 %v3403
        %v4697 = vunpack.c.l.b16 %v3404
        %v4698 = vunpack.c.h.b16 %v3404
        %v4699 = vunpack.c.l.b16 %v3405
        %v4700 = vunpack.c.h.b16 %v3405
        %v4701 = vunpack.c.l.b16 %v3406
        %v4702 = vunpack.c.h.b16 %v3406
        %v4703 = vunpack.c.l.b16 %v3407
        %v4704 = vunpack.c.h.b16 %v3407
        %v4705 = vunpack.c.l.b16 %v3408
        %v4706 = vunpack.c.h.b16 %v3408
        %v4707 = vunpack.c.l.b16 %v3409
        %v4708 = vunpack.c.h.b16 %v3409
        %v4709 = vunpack.c.l.b16 %v3410
        %v4710 = vunpack.c.h.b16 %v3410
        %v4711 = vunpack.c.l.b16 %v3411
        %v4712 = vunpack.c.h.b16 %v3411
        %v4713 = vunpack.c.l.b16 %v3412
        %v4714 = vunpack.c.h.b16 %v3412
        %v4715 = vunpack.c.l.b16 %v3413
        %v4716 = vunpack.c.h.b16 %v3413
        %v4717 = vunpack.c.l.b16 %v3414
        %v4718 = vunpack.c.h.b16 %v3414
        %v4719 = vunpack.c.l.b16 %v3415
        %v4720 = vunpack.c.h.b16 %v3415
        %v4721 = vunpack.c.l.b16 %v3416
        %v4722 = vunpack.c.h.b16 %v3416
        %v4723 = vunpack.c.l.b16 %v3417
        %v4724 = vunpack.c.h.b16 %v3417
        %v4725 = vunpack.c.l.b16 %v3418
        %v4726 = vunpack.c.h.b16 %v3418
        %v4727 = vunpack.c.l.b16 %v3419
        %v4728 = vunpack.c.h.b16 %v3419
        %v4729 = vunpack.c.l.b16 %v3420
        %v4730 = vunpack.c.h.b16 %v3420
        %v4731 = vunpack.c.l.b16 %v3421
        %v4732 = vunpack.c.h.b16 %v3421
        %v4733 = vunpack.c.l.b16 %v3422
        %v4734 = vunpack.c.h.b16 %v3422
        %v4735 = vunpack.c.l.b16 %v3423
        %v4736 = vunpack.c.h.b16 %v3423
        %v4737 = vunpack.c.l.b16 %v3424
        %v4738 = vunpack.c.h.b16 %v3424
        %v4739 = vunpack.c.l.b16 %v3425
        %v4740 = vunpack.c.h.b16 %v3425
        %v4741 = vunpack.c.l.b16 %v3426
        %v4742 = vunpack.c.h.b16 %v3426
        %v4743 = vunpack.c.l.b16 %v3427
        %v4744 = vunpack.c.h.b16 %v3427
        %v4745 = vunpack.c.l.b16 %v3428
        %v4746 = vunpack.c.h.b16 %v3428
        %v4747 = vunpack.c.l.b16 %v3429
        %v4748 = vunpack.c.h.b16 %v3429
        %v4749 = vunpack.c.l.b16 %v3430
        %v4750 = vunpack.c.h.b16 %v3430
        %v4751 = vpack.c.b16 %v4541, %v4511
        %v4752 = vpack.c.b16 %v4542, %v4512
        %v4753 = vpack.c.b16 %v4543, %v4513
        %v4754 = vpack.c.b16 %v4544, %v4514
        %v4755 = vpack.c.b16 %v4545, %v4515
        %v4756 = vpack.c.b16 %v4546, %v4516
        %v4757 = vpack.c.b16 %v4547, %v4517
        %v4758 = vpack.c.b16 %v4548, %v4518
        %v4759 = vpack.c.b16 %v4549, %v4519
        %v4760 = vpack.c.b16 %v4550, %v4520
        %v4761 = vpack.c.b16 %v4551, %v4521
        %v4762 = vpack.c.b16 %v4552, %v4522
        %v4763 = vpack.c.b16 %v4553, %v4523
        %v4764 = vpack.c.b16 %v4554, %v4524
        %v4765 = vpack.c.b16 %v4555, %v4525
        %v4766 = vpack.c.b16 %v4556, %v4526
        %v4767 = vpack.c.b16 %v4557, %v4527
        %v4768 = vpack.c.b16 %v4558, %v4528
        %v4769 = vpack.c.b16 %v4559, %v4529
        %v4770 = vpack.c.b16 %v4560, %v4530
        %v4771 = vpack.c.b16 %v4561, %v4531
        %v4772 = vpack.c.b16 %v4562, %v4532
        %v4773 = vpack.c.b16 %v4563, %v4533
        %v4774 = vpack.c.b16 %v4564, %v4534
        %v4775 = vpack.c.b16 %v4565, %v4535
        %v4776 = vpack.c.b16 %v4566, %v4536
        %v4777 = vpack.c.b16 %v4567, %v4537
        %v4778 = vpack.c.b16 %v4568, %v4538
        %v4779 = vpack.c.b16 %v4569, %v4539
        %v4780 = vpack.c.b16 %v4570, %v4540
        %v4781 = vpack.c.b16 %v4601, %v4571
        %v4782 = vpack.c.b16 %v4602, %v4572
        %v4783 = vpack.c.b16 %v4603, %v4573
        %v4784 = vpack.c.b16 %v4604, %v4574
        %v4785 = vpack.c.b16 %v4605, %v4575
        %v4786 = vpack.c.b16 %v4606, %v4576
        %v4787 = vpack.c.b16 %v4607, %v4577
        %v4788 = vpack.c.b16 %v4608, %v4578
        %v4789 = vpack.c.b16 %v4609, %v4579
        %v4790 = vpack.c.b16 %v4610, %v4580
        %v4791 = vpack.c.b16 %v4611, %v4581
        %v4792 = vpack.c.b16 %v4612, %v4582
        %v4793 = vpack.c.b16 %v4613, %v4583
        %v4794 = vpack.c.b16 %v4614, %v4584
        %v4795 = vpack.c.b16 %v4615, %v4585
        %v4796 = vpack.c.b16 %v4616, %v4586
        %v4797 = vpack.c.b16 %v4617, %v4587
        %v4798 = vpack.c.b16 %v4618, %v4588
        %v4799 = vpack.c.b16 %v4619, %v4589
        %v4800 = vpack.c.b16 %v4620, %v4590
        %v4801 = vpack.c.b16 %v4621, %v4591
        %v4802 = vpack.c.b16 %v4622, %v4592
        %v4803 = vpack.c.b16 %v4623, %v4593
        %v4804 = vpack.c.b16 %v4624, %v4594
        %v4805 = vpack.c.b16 %v4625, %v4595
        %v4806 = vpack.c.b16 %v4626, %v4596
        %v4807 = vpack.c.b16 %v4627, %v4597
        %v4808 = vpack.c.b16 %v4628, %v4598
        %v4809 = vpack.c.b16 %v4629, %v4599
        %v4810 = vpack.c.b16 %v4630, %v4600
        %v4811 = vpack.c.b16 %v4661, %v4631
        %v4812 = vpack.c.b16 %v4662, %v4632
        %v4813 = vpack.c.b16 %v4663, %v4633
        %v4814 = vpack.c.b16 %v4664, %v4634
        %v4815 = vpack.c.b16 %v4665, %v4635
        %v4816 = vpack.c.b16 %v4666, %v4636
        %v4817 = vpack.c.b16 %v4667, %v4637
        %v4818 = vpack.c.b16 %v4668, %v4638
        %v4819 = vpack.c.b16 %v4669, %v4639
        %v4820 = vpack.c.b16 %v4670, %v4640
        %v4821 = vpack.c.b16 %v4671, %v4641
        %v4822 = vpack.c.b16 %v4672, %v4642
        %v4823 = vpack.c.b16 %v4673, %v4643
        %v4824 = vpack.c.b16 %v4674, %v4644
        %v4825 = vpack.c.b16 %v4675, %v4645
        %v4826 = vpack.c.b16 %v4676, %v4646
        %v4827 = vpack.c.b16 %v4677, %v4647
        %v4828 = vpack.c.b16 %v4678, %v4648
        %v4829 = vpack.c.b16 %v4679, %v4649
        %v4830 = vpack.c.b16 %v4680, %v4650
        %v4831 = vpack.c.b16 %v4681, %v4651
        %v4832 = vpack.c.b16 %v4682, %v4652
        %v4833 = vpack.c.b16 %v4683, %v4653
        %v4834 = vpack.c.b16 %v4684, %v4654
        %v4835 = vpack.c.b16 %v4685, %v4655
        %v4836 = vpack.c.b16 %v4686, %v4656
        %v4837 = vpack.c.b16 %v4687, %v4657
        %v4838 = vpack.c.b16 %v4688, %v4658
        %v4839 = vpack.c.b16 %v4689, %v4659
        %v4840 = vpack.c.b16 %v4690, %v4660
        %v4841 = vpack.c.b16 %v4721, %v4691
        %v4842 = vpack.c.b16 %v4722, %v4692
        %v4843 = vpack.c.b16 %v4723, %v4693
        %v4844 = vpack.c.b16 %v4724, %v4694
        %v4845 = vpack.c.b16 %v4725, %v4695
        %v4846 = vpack.c.b16 %v4726, %v4696
        %v4847 = vpack.c.b16 %v4727, %v4697
        %v4848 = vpack.c.b16 %v4728, %v4698
        %v4849 = vpack.c.b16 %v4729, %v4699
        %v4850 = vpack.c.b16 %v4730, %v4700
        %v4851 = vpack.c.b16 %v4731, %v4701
        %v4852 = vpack.c.b16 %v4732, %v4702
        %v4853 = vpack.c.b16 %v4733, %v4703
        %v4854 = vpack.c.b16 %v4734, %v4704
        %v4855 = vpack.c.b16 %v4735, %v4705
        %v4856 = vpack.c.b16 %v4736, %v4706
        %v4857 = vpack.c.b16 %v4737, %v4707
        %v4858 = vpack.c.b16 %v4738, %v4708
        %v4859 = vpack.c.b16 %v4739, %v4709
        %v4860 = vpack.c.b16 %v4740, %v4710
        %v4861 = vpack.c.b16 %v4741, %v4711
        %v4862 = vpack.c.b16 %v4742, %v4712
        %v4863 = vpack.c.b16 %v4743, %v4713
        %v4864 = vpack.c.b16 %v4744, %v4714
        %v4865 = vpack.c.b16 %v4745, %v4715
        %v4866 = vpack.c.b16 %v4746, %v4716
        %v4867 = vpack.c.b16 %v4747, %v4717
        %v4868 = vpack.c.b16 %v4748, %v4718
        %v4869 = vpack.c.b16 %v4749, %v4719
        %v4870 = vpack.c.b16 %v4750, %v4720
        %v5951 = vunpack.c.l.b16 %v3431
        %v5952 = vunpack.c.h.b16 %v3431
        %v5953 = vunpack.c.l.b16 %v3432
        %v5954 = vunpack.c.l.b16 %v3433
        %v5955 = vunpack.c.h.b16 %v3433
        %v5956 = vunpack.c.l.b16 %v3434
        %v5957 = vunpack.c.l.b16 %v3435
        %v5958 = vunpack.c.h.b16 %v3435
        %v5959 = vunpack.c.l.b16 %v3436
        %v5960 = vunpack.c.l.b16 %v3437
        %v5961 = vunpack.c.h.b16 %v3437
        %v5962 = vunpack.c.l.b16 %v3438
        %v5963 = vunpack.c.l.b16 %v3439
        %v5964 = vunpack.c.h.b16 %v3439
        %v5965 = vunpack.c.l.b16 %v3440
        %v5966 = vunpack.c.l.b16 %v3441
        %v5967 = vunpack.c.h.b16 %v3441
        %v5968 = vunpack.c.l.b16 %v3442
        %v5969 = vunpack.c.l.b16 %v3443
        %v5970 = vunpack.c.h.b16 %v3443
        %v5971 = vunpack.c.l.b16 %v3444
        %v5972 = vunpack.c.l.b16 %v3445
        %v5973 = vunpack.c.h.b16 %v3445
        %v5974 = vunpack.c.l.b16 %v3446
        %v5975 = vunpack.c.l.b16 %v3447
        %v5976 = vunpack.c.h.b16 %v3447
        %v5977 = vunpack.c.l.b16 %v3448
        %v5978 = vunpack.c.l.b16 %v3449
        %v5979 = vunpack.c.h.b16 %v3449
        %v5980 = vunpack.c.l.b16 %v3450
        %v5981 = vunpack.c.l.b16 %v3451
        %v5982 = vunpack.c.h.b16 %v3451
        %v5983 = vunpack.c.l.b16 %v3452
        %v5984 = vunpack.c.l.b16 %v3453
        %v5985 = vunpack.c.h.b16 %v3453
        %v5986 = vunpack.c.l.b16 %v3454
        %v5987 = vunpack.c.l.b16 %v3455
        %v5988 = vunpack.c.h.b16 %v3455
        %v5989 = vunpack.c.l.b16 %v3456
        %v5990 = vunpack.c.l.b16 %v3457
        %v5991 = vunpack.c.h.b16 %v3457
        %v5992 = vunpack.c.l.b16 %v3458
        %v5993 = vunpack.c.l.b16 %v3459
        %v5994 = vunpack.c.h.b16 %v3459
        %v5995 = vunpack.c.l.b16 %v3460
        %v5996 = vunpack.c.l.b16 %v3461
        %v5997 = vunpack.c.h.b16 %v3461
        %v5998 = vunpack.c.l.b16 %v3462
        %v5999 = vunpack.c.l.b16 %v3463
        %v6000 = vunpack.c.h.b16 %v3463
        %v6001 = vunpack.c.l.b16 %v3464
        %v6002 = vunpack.c.l.b16 %v3465
        %v6003 = vunpack.c.h.b16 %v3465
        %v6004 = vunpack.c.l.b16 %v3466
        %v6005 = vunpack.c.l.b16 %v3467
        %v6006 = vunpack.c.h.b16 %v3467
        %v6007 = vunpack.c.l.b16 %v3468
        %v6008 = vunpack.c.l.b16 %v3469
        %v6009 = vunpack.c.h.b16 %v3469
        %v6010 = vunpack.c.l.b16 %v3470
        %v6011 = vunpack.c.l.b16 %v3471
        %v6012 = vunpack.c.h.b16 %v3471
        %v6013 = vunpack.c.l.b16 %v3472
        %v6014 = vunpack.c.l.b16 %v3473
        %v6015 = vunpack.c.h.b16 %v3473
        %v6016 = vunpack.c.l.b16 %v3474
        %v6017 = vunpack.c.l.b16 %v3475
        %v6018 = vunpack.c.h.b16 %v3475
        %v6019 = vunpack.c.l.b16 %v3476
        %v6020 = vunpack.c.l.b16 %v3477
        %v6021 = vunpack.c.h.b16 %v3477
        %v6022 = vunpack.c.l.b16 %v3478
        %v6023 = vunpack.c.l.b16 %v3479
        %v6024 = vunpack.c.h.b16 %v3479
        %v6025 = vunpack.c.l.b16 %v3480
        %v6026 = vunpack.c.l.b16 %v3481
        %v6027 = vunpack.c.h.b16 %v3481
        %v6028 = vunpack.c.l.b16 %v3482
        %v6029 = vunpack.c.l.b16 %v3483
        %v6030 = vunpack.c.h.b16 %v3483
        %v6031 = vunpack.c.l.b16 %v3484
        %v6032 = vunpack.c.l.b16 %v3485
        %v6033 = vunpack.c.h.b16 %v3485
        %v6034 = vunpack.c.l.b16 %v3486
        %v6035 = vunpack.c.l.b16 %v3487
        %v6036 = vunpack.c.h.b16 %v3487
        %v6037 = vunpack.c.l.b16 %v3488
        %v6038 = vunpack.c.l.b16 %v3489
        %v6039 = vunpack.c.h.b16 %v3489
        %v6040 = vunpack.c.l.b16 %v3490
        %v6041 = vunpack.c.l.b16 %v3491
        %v6042 = vunpack.c.h.b16 %v3491
        %v6043 = vunpack.c.l.b16 %v3492
        %v6044 = vunpack.c.l.b16 %v3493
        %v6045 = vunpack.c.h.b16 %v3493
        %v6046 = vunpack.c.l.b16 %v3494
        %v6047 = vunpack.c.l.b16 %v3495
        %v6048 = vunpack.c.h.b16 %v3495
        %v6049 = vunpack.c.l.b16 %v3496
        %v6050 = vunpack.c.l.b16 %v3497
        %v6051 = vunpack.c.h.b16 %v3497
        %v6052 = vunpack.c.l.b16 %v3498
        %v6053 = vunpack.c.l.b16 %v3499
        %v6054 = vunpack.c.h.b16 %v3499
        %v6055 = vunpack.c.l.b16 %v3500
        %v6056 = vunpack.c.l.b16 %v3501
        %v6057 = vunpack.c.h.b16 %v3501
        %v6058 = vunpack.c.l.b16 %v3502
        %v6059 = vunpack.c.l.b16 %v3503
        %v6060 = vunpack.c.h.b16 %v3503
        %v6061 = vunpack.c.l.b16 %v3504
        %v6062 = vunpack.c.l.b16 %v3505
        %v6063 = vunpack.c.h.b16 %v3505
        %v6064 = vunpack.c.l.b16 %v3506
        %v6065 = vunpack.c.l.b16 %v3507
        %v6066 = vunpack.c.h.b16 %v3507
        %v6067 = vunpack.c.l.b16 %v3508
        %v6068 = vunpack.c.l.b16 %v3509
        %v6069 = vunpack.c.h.b16 %v3509
        %v6070 = vunpack.c.l.b16 %v3510
        %v6071 = vunpack.c.l.b16 %v3511
        %v6072 = vunpack.c.h.b16 %v3511
        %v6073 = vunpack.c.l.b16 %v3512
        %v6074 = vunpack.c.l.b16 %v3513
        %v6075 = vunpack.c.h.b16 %v3513
        %v6076 = vunpack.c.l.b16 %v3514
        %v6077 = vunpack.c.l.b16 %v3515
        %v6078 = vunpack.c.h.b16 %v3515
        %v6079 = vunpack.c.l.b16 %v3516
        %v6080 = vunpack.c.l.b16 %v3517
        %v6081 = vunpack.c.h.b16 %v3517
        %v6082 = vunpack.c.l.b16 %v3518
        %v6083 = vunpack.c.l.b16 %v3519
        %v6084 = vunpack.c.h.b16 %v3519
        %v6085 = vunpack.c.l.b16 %v3520
        %v6086 = vunpack.c.l.b16 %v3521
        %v6087 = vunpack.c.h.b16 %v3521
        %v6088 = vunpack.c.l.b16 %v3522
        %v6089 = vunpack.c.l.b16 %v3523
        %v6090 = vunpack.c.h.b16 %v3523
        %v6091 = vunpack.c.l.b16 %v3524
        %v6092 = vunpack.c.l.b16 %v3525
        %v6093 = vunpack.c.h.b16 %v3525
        %v6094 = vunpack.c.l.b16 %v3526
        %v6095 = vunpack.c.l.b16 %v3527
        %v6096 = vunpack.c.h.b16 %v3527
        %v6097 = vunpack.c.l.b16 %v3528
        %v6098 = vunpack.c.l.b16 %v3529
        %v6099 = vunpack.c.h.b16 %v3529
        %v6100 = vunpack.c.l.b16 %v3530
        %v6101 = vunpack.c.l.b16 %v3531
        %v6102 = vunpack.c.h.b16 %v3531
        %v6103 = vunpack.c.l.b16 %v3532
        %v6104 = vunpack.c.l.b16 %v3533
        %v6105 = vunpack.c.h.b16 %v3533
        %v6106 = vunpack.c.l.b16 %v3534
        %v6107 = vunpack.c.l.b16 %v3535
        %v6108 = vunpack.c.h.b16 %v3535
        %v6109 = vunpack.c.l.b16 %v3536
        %v6110 = vunpack.c.l.b16 %v3537
        %v6111 = vunpack.c.h.b16 %v3537
        %v6112 = vunpack.c.l.b16 %v3538
        %v6113 = vunpack.c.l.b16 %v3539
        %v6114 = vunpack.c.h.b16 %v3539
        %v6115 = vunpack.c.l.b16 %v3540
        %v6116 = vunpack.c.l.b16 %v3541
        %v6117 = vunpack.c.h.b16 %v3541
        %v6118 = vunpack.c.l.b16 %v3542
        %v6119 = vunpack.c.l.b16 %v3543
        %v6120 = vunpack.c.h.b16 %v3543
        %v6121 = vunpack.c.l.b16 %v3544
        %v6122 = vunpack.c.l.b16 %v3545
        %v6123 = vunpack.c.h.b16 %v3545
        %v6124 = vunpack.c.l.b16 %v3546
        %v6125 = vunpack.c.l.b16 %v3547
        %v6126 = vunpack.c.h.b16 %v3547
        %v6127 = vunpack.c.l.b16 %v3548
        %v6128 = vunpack.c.l.b16 %v3549
        %v6129 = vunpack.c.h.b16 %v3549
        %v6130 = vunpack.c.l.b16 %v3550
        %v6131 = vunpack.c.l.b16 %v3551
        %v6132 = vunpack.c.h.b16 %v3551
        %v6133 = vunpack.c.l.b16 %v3552
        %v6134 = vunpack.c.l.b16 %v3553
        %v6135 = vunpack.c.h.b16 %v3553
        %v6136 = vunpack.c.l.b16 %v3554
        %v6137 = vunpack.c.l.b16 %v3555
        %v6138 = vunpack.c.h.b16 %v3555
        %v6139 = vunpack.c.l.b16 %v3556
        %v6140 = vunpack.c.l.b16 %v3557
        %v6141 = vunpack.c.h.b16 %v3557
        %v6142 = vunpack.c.l.b16 %v3558
        %v6143 = vunpack.c.l.b16 %v3559
        %v6144 = vunpack.c.h.b16 %v3559
        %v6145 = vunpack.c.l.b16 %v3560
        %v6146 = vunpack.c.l.b16 %v3561
        %v6147 = vunpack.c.h.b16 %v3561
        %v6148 = vunpack.c.l.b16 %v3562
        %v6149 = vunpack.c.l.b16 %v3563
        %v6150 = vunpack.c.h.b16 %v3563
        %v6151 = vunpack.c.l.b16 %v3564
        %v6152 = vunpack.c.l.b16 %v3565
        %v6153 = vunpack.c.h.b16 %v3565
        %v6154 = vunpack.c.l.b16 %v3566
        %v6155 = vunpack.c.l.b16 %v3567
        %v6156 = vunpack.c.h.b16 %v3567
        %v6157 = vunpack.c.l.b16 %v3568
        %v6158 = vunpack.c.l.b16 %v3569
        %v6159 = vunpack.c.h.b16 %v3569
        %v6160 = vunpack.c.l.b16 %v3570
        %v6161 = vunpack.c.l.b16 %v3571
        %v6162 = vunpack.c.h.b16 %v3571
        %v6163 = vunpack.c.l.b16 %v3572
        %v6164 = vunpack.c.l.b16 %v3573
        %v6165 = vunpack.c.h.b16 %v3573
        %v6166 = vunpack.c.l.b16 %v3574
        %v6167 = vunpack.c.l.b16 %v3575
        %v6168 = vunpack.c.h.b16 %v3575
        %v6169 = vunpack.c.l.b16 %v3576
        %v6170 = vunpack.c.l.b16 %v3577
        %v6171 = vunpack.c.h.b16 %v3577
        %v6172 = vunpack.c.l.b16 %v3578
        %v6173 = vunpack.c.l.b16 %v3579
        %v6174 = vunpack.c.h.b16 %v3579
        %v6175 = vunpack.c.l.b16 %v3580
        %v6176 = vunpack.c.l.b16 %v3581
        %v6177 = vunpack.c.h.b16 %v3581
        %v6178 = vunpack.c.l.b16 %v3582
        %v6179 = vunpack.c.l.b16 %v3583
        %v6180 = vunpack.c.h.b16 %v3583
        %v6181 = vunpack.c.l.b16 %v3584
        %v6182 = vunpack.c.l.b16 %v3585
        %v6183 = vunpack.c.h.b16 %v3585
        %v6184 = vunpack.c.l.b16 %v3586
        %v6185 = vunpack.c.l.b16 %v3587
        %v6186 = vunpack.c.h.b16 %v3587
        %v6187 = vunpack.c.l.b16 %v3588
        %v6188 = vunpack.c.l.b16 %v3589
        %v6189 = vunpack.c.h.b16 %v3589
        %v6190 = vunpack.c.l.b16 %v3590
        %v6191 = vunpack.c.l.b16 %v3591
        %v6192 = vunpack.c.h.b16 %v3591
        %v6193 = vunpack.c.l.b16 %v3592
        %v6194 = vunpack.c.l.b16 %v3593
        %v6195 = vunpack.c.h.b16 %v3593
        %v6196 = vunpack.c.l.b16 %v3594
        %v6197 = vunpack.c.l.b16 %v3595
        %v6198 = vunpack.c.h.b16 %v3595
        %v6199 = vunpack.c.l.b16 %v3596
        %v6200 = vunpack.c.l.b16 %v3597
        %v6201 = vunpack.c.h.b16 %v3597
        %v6202 = vunpack.c.l.b16 %v3598
        %v6203 = vunpack.c.l.b16 %v3599
        %v6204 = vunpack.c.h.b16 %v3599
        %v6205 = vunpack.c.l.b16 %v3600
        %v6206 = vunpack.c.l.b16 %v3601
        %v6207 = vunpack.c.h.b16 %v3601
        %v6208 = vunpack.c.l.b16 %v3602
        %v6209 = vunpack.c.l.b16 %v3603
        %v6210 = vunpack.c.h.b16 %v3603
        %v6211 = vunpack.c.l.b16 %v3604
        %v6212 = vunpack.c.l.b16 %v3605
        %v6213 = vunpack.c.h.b16 %v3605
        %v6214 = vunpack.c.l.b16 %v3606
        %v6215 = vunpack.c.l.b16 %v3607
        %v6216 = vunpack.c.h.b16 %v3607
        %v6217 = vunpack.c.l.b16 %v3608
        %v6218 = vunpack.c.l.b16 %v3609
        %v6219 = vunpack.c.h.b16 %v3609
        %v6220 = vunpack.c.l.b16 %v3610
        %v6221 = vunpack.c.l.b16 %v3611
        %v6222 = vunpack.c.h.b16 %v3611
        %v6223 = vunpack.c.l.b16 %v3612
        %v6224 = vunpack.c.l.b16 %v3613
        %v6225 = vunpack.c.h.b16 %v3613
        %v6226 = vunpack.c.l.b16 %v3614
        %v6227 = vunpack.c.l.b16 %v3615
        %v6228 = vunpack.c.h.b16 %v3615
        %v6229 = vunpack.c.l.b16 %v3616
        %v6230 = vunpack.c.l.b16 %v3617
        %v6231 = vunpack.c.h.b16 %v3617
        %v6232 = vunpack.c.l.b16 %v3618
        %v6233 = vunpack.c.l.b16 %v3619
        %v6234 = vunpack.c.h.b16 %v3619
        %v6235 = vunpack.c.l.b16 %v3620
        %v6236 = vunpack.c.l.b16 %v3621
        %v6237 = vunpack.c.h.b16 %v3621
        %v6238 = vunpack.c.l.b16 %v3622
        %v6239 = vunpack.c.l.b16 %v3623
        %v6240 = vunpack.c.h.b16 %v3623
        %v6241 = vunpack.c.l.b16 %v3624
        %v6242 = vunpack.c.l.b16 %v3625
        %v6243 = vunpack.c.h.b16 %v3625
        %v6244 = vunpack.c.l.b16 %v3626
        %v6245 = vunpack.c.l.b16 %v3627
        %v6246 = vunpack.c.h.b16 %v3627
        %v6247 = vunpack.c.l.b16 %v3628
        %v6248 = vunpack.c.l.b16 %v3629
        %v6249 = vunpack.c.h.b16 %v3629
        %v6250 = vunpack.c.l.b16 %v3630
        %v6251 = vunpack.c.l.b16 %v3631
        %v6252 = vunpack.c.h.b16 %v3631
        %v6253 = vunpack.c.l.b16 %v3632
        %v6254 = vunpack.c.l.b16 %v3633
        %v6255 = vunpack.c.h.b16 %v3633
        %v6256 = vunpack.c.l.b16 %v3634
        %v6257 = vunpack.c.l.b16 %v3635
        %v6258 = vunpack.c.h.b16 %v3635
        %v6259 = vunpack.c.l.b16 %v3636
        %v6260 = vunpack.c.l.b16 %v3637
        %v6261 = vunpack.c.h.b16 %v3637
        %v6262 = vunpack.c.l.b16 %v3638
        %v6263 = vunpack.c.l.b16 %v3639
        %v6264 = vunpack.c.h.b16 %v3639
        %v6265 = vunpack.c.l.b16 %v3640
        %v6266 = vunpack.c.l.b16 %v3641
        %v6267 = vunpack.c.h.b16 %v3641
        %v6268 = vunpack.c.l.b16 %v3642
        %v6269 = vunpack.c.l.b16 %v3643
        %v6270 = vunpack.c.h.b16 %v3643
        %v6271 = vunpack.c.l.b16 %v3644
        %v6272 = vunpack.c.l.b16 %v3645
        %v6273 = vunpack.c.h.b16 %v3645
        %v6274 = vunpack.c.l.b16 %v3646
        %v6275 = vunpack.c.l.b16 %v3647
        %v6276 = vunpack.c.h.b16 %v3647
        %v6277 = vunpack.c.l.b16 %v3648
        %v6278 = vunpack.c.l.b16 %v3649
        %v6279 = vunpack.c.h.b16 %v3649
        %v6280 = vunpack.c.l.b16 %v3650
        %v6281 = vunpack.c.l.b16 %v3651
        %v6282 = vunpack.c.h.b16 %v3651
        %v6283 = vunpack.c.l.b16 %v3652
        %v6284 = vunpack.c.l.b16 %v3653
        %v6285 = vunpack.c.h.b16 %v3653
        %v6286 = vunpack.c.l.b16 %v3654
        %v6287 = vunpack.c.l.b16 %v3655
        %v6288 = vunpack.c.h.b16 %v3655
        %v6289 = vunpack.c.l.b16 %v3656
        %v6290 = vunpack.c.l.b16 %v3657
        %v6291 = vunpack.c.h.b16 %v3657
        %v6292 = vunpack.c.l.b16 %v3658
        %v6293 = vunpack.c.l.b16 %v3659
        %v6294 = vunpack.c.h.b16 %v3659
        %v6295 = vunpack.c.l.b16 %v3660
        %v6296 = vunpack.c.l.b16 %v3661
        %v6297 = vunpack.c.h.b16 %v3661
        %v6298 = vunpack.c.l.b16 %v3662
        %v6299 = vunpack.c.l.b16 %v3663
        %v6300 = vunpack.c.h.b16 %v3663
        %v6301 = vunpack.c.l.b16 %v3664
        %v6302 = vunpack.c.l.b16 %v3665
        %v6303 = vunpack.c.h.b16 %v3665
        %v6304 = vunpack.c.l.b16 %v3666
        %v6305 = vunpack.c.l.b16 %v3667
        %v6306 = vunpack.c.h.b16 %v3667
        %v6307 = vunpack.c.l.b16 %v3668
        %v6308 = vunpack.c.l.b16 %v3669
        %v6309 = vunpack.c.h.b16 %v3669
        %v6310 = vunpack.c.l.b16 %v3670
        %v6311 = vunpack.c.l.b16 %v3671
        %v6312 = vunpack.c.h.b16 %v3671
        %v6313 = vunpack.c.l.b16 %v3672
        %v6314 = vunpack.c.l.b16 %v3673
        %v6315 = vunpack.c.h.b16 %v3673
        %v6316 = vunpack.c.l.b16 %v3674
        %v6317 = vunpack.c.l.b16 %v3675
        %v6318 = vunpack.c.h.b16 %v3675
        %v6319 = vunpack.c.l.b16 %v3676
        %v6320 = vunpack.c.l.b16 %v3677
        %v6321 = vunpack.c.h.b16 %v3677
        %v6322 = vunpack.c.l.b16 %v3678
        %v6323 = vunpack.c.l.b16 %v3679
        %v6324 = vunpack.c.h.b16 %v3679
        %v6325 = vunpack.c.l.b16 %v3680
        %v6326 = vunpack.c.l.b16 %v3681
        %v6327 = vunpack.c.h.b16 %v3681
        %v6328 = vunpack.c.l.b16 %v3682
        %v6329 = vunpack.c.l.b16 %v3683
        %v6330 = vunpack.c.h.b16 %v3683
        %v6331 = vunpack.c.l.b16 %v3684
        %v6332 = vunpack.c.l.b16 %v3685
        %v6333 = vunpack.c.h.b16 %v3685
        %v6334 = vunpack.c.l.b16 %v3686
        %v6335 = vunpack.c.l.b16 %v3687
        %v6336 = vunpack.c.h.b16 %v3687
        %v6337 = vunpack.c.l.b16 %v3688
        %v6338 = vunpack.c.l.b16 %v3689
        %v6339 = vunpack.c.h.b16 %v3689
        %v6340 = vunpack.c.l.b16 %v3690
        %v6341 = vunpack.c.l.b16 %v3691
        %v6342 = vunpack.c.h.b16 %v3691
        %v6343 = vunpack.c.l.b16 %v3692
        %v6344 = vunpack.c.l.b16 %v3693
        %v6345 = vunpack.c.h.b16 %v3693
        %v6346 = vunpack.c.l.b16 %v3694
        %v6347 = vunpack.c.l.b16 %v3695
        %v6348 = vunpack.c.h.b16 %v3695
        %v6349 = vunpack.c.l.b16 %v3696
        %v6350 = vunpack.c.l.b16 %v3697
        %v6351 = vunpack.c.h.b16 %v3697
        %v6352 = vunpack.c.l.b16 %v3698
        %v6353 = vunpack.c.l.b16 %v3699
        %v6354 = vunpack.c.h.b16 %v3699
        %v6355 = vunpack.c.l.b16 %v3700
        %v6356 = vunpack.c.l.b16 %v3701
        %v6357 = vunpack.c.h.b16 %v3701
        %v6358 = vunpack.c.l.b16 %v3702
        %v6359 = vunpack.c.l.b16 %v3703
        %v6360 = vunpack.c.h.b16 %v3703
        %v6361 = vunpack.c.l.b16 %v3704
        %v6362 = vunpack.c.l.b16 %v3705
        %v6363 = vunpack.c.h.b16 %v3705
        %v6364 = vunpack.c.l.b16 %v3706
        %v6365 = vunpack.c.l.b16 %v3707
        %v6366 = vunpack.c.h.b16 %v3707
        %v6367 = vunpack.c.l.b16 %v3708
        %v6368 = vunpack.c.l.b16 %v3709
        %v6369 = vunpack.c.h.b16 %v3709
        %v6370 = vunpack.c.l.b16 %v3710
        %v6371 = vunpack.c.l.b16 %v3711
        %v6372 = vunpack.c.h.b16 %v3711
        %v6373 = vunpack.c.l.b16 %v3712
        %v6374 = vunpack.c.l.b16 %v3713
        %v6375 = vunpack.c.h.b16 %v3713
        %v6376 = vunpack.c.l.b16 %v3714
        %v6377 = vunpack.c.l.b16 %v3715
        %v6378 = vunpack.c.h.b16 %v3715
        %v6379 = vunpack.c.l.b16 %v3716
        %v6380 = vunpack.c.l.b16 %v3717
        %v6381 = vunpack.c.h.b16 %v3717
        %v6382 = vunpack.c.l.b16 %v3718
        %v6383 = vunpack.c.l.b16 %v3719
        %v6384 = vunpack.c.h.b16 %v3719
        %v6385 = vunpack.c.l.b16 %v3720
        %v6386 = vunpack.c.l.b16 %v3721
        %v6387 = vunpack.c.h.b16 %v3721
        %v6388 = vunpack.c.l.b16 %v3722
        %v6389 = vunpack.c.l.b16 %v3723
        %v6390 = vunpack.c.h.b16 %v3723
        %v6391 = vunpack.c.l.b16 %v3724
        %v6392 = vunpack.c.l.b16 %v3725
        %v6393 = vunpack.c.h.b16 %v3725
        %v6394 = vunpack.c.l.b16 %v3726
        %v6395 = vunpack.c.l.b16 %v3727
        %v6396 = vunpack.c.h.b16 %v3727
        %v6397 = vunpack.c.l.b16 %v3728
        %v6398 = vunpack.c.l.b16 %v3729
        %v6399 = vunpack.c.h.b16 %v3729
        %v6400 = vunpack.c.l.b16 %v3730
        %v6401 = vunpack.c.l.b16 %v3731
        %v6402 = vunpack.c.h.b16 %v3731
        %v6403 = vunpack.c.l.b16 %v3732
        %v6404 = vunpack.c.l.b16 %v3733
        %v6405 = vunpack.c.h.b16 %v3733
        %v6406 = vunpack.c.l.b16 %v3734
        %v6407 = vunpack.c.l.b16 %v3735
        %v6408 = vunpack.c.h.b16 %v3735
        %v6409 = vunpack.c.l.b16 %v3736
        %v6410 = vunpack.c.l.b16 %v3737
        %v6411 = vunpack.c.h.b16 %v3737
        %v6412 = vunpack.c.l.b16 %v3738
        %v6413 = vunpack.c.l.b16 %v3739
        %v6414 = vunpack.c.h.b16 %v3739
        %v6415 = vunpack.c.l.b16 %v3740
        %v6416 = vunpack.c.l.b16 %v3741
        %v6417 = vunpack.c.h.b16 %v3741
        %v6418 = vunpack.c.l.b16 %v3742
        %v6419 = vunpack.c.l.b16 %v3743
        %v6420 = vunpack.c.h.b16 %v3743
        %v6421 = vunpack.c.l.b16 %v3744
        %v6422 = vunpack.c.l.b16 %v3745
        %v6423 = vunpack.c.h.b16 %v3745
        %v6424 = vunpack.c.l.b16 %v3746
        %v6425 = vunpack.c.l.b16 %v3747
        %v6426 = vunpack.c.h.b16 %v3747
        %v6427 = vunpack.c.l.b16 %v3748
        %v6428 = vunpack.c.l.b16 %v3749
        %v6429 = vunpack.c.h.b16 %v3749
        %v6430 = vunpack.c.l.b16 %v3750
        %v6431 = vunpack.c.l.b16 %v3751
        %v6432 = vunpack.c.h.b16 %v3751
        %v6433 = vunpack.c.l.b16 %v3752
        %v6434 = vunpack.c.l.b16 %v3753
        %v6435 = vunpack.c.h.b16 %v3753
        %v6436 = vunpack.c.l.b16 %v3754
        %v6437 = vunpack.c.l.b16 %v3755
        %v6438 = vunpack.c.h.b16 %v3755
        %v6439 = vunpack.c.l.b16 %v3756
        %v6440 = vunpack.c.l.b16 %v3757
        %v6441 = vunpack.c.h.b16 %v3757
        %v6442 = vunpack.c.l.b16 %v3758
        %v6443 = vunpack.c.l.b16 %v3759
        %v6444 = vunpack.c.h.b16 %v3759
        %v6445 = vunpack.c.l.b16 %v3760
        %v6446 = vunpack.c.l.b16 %v3761
        %v6447 = vunpack.c.h.b16 %v3761
        %v6448 = vunpack.c.l.b16 %v3762
        %v6449 = vunpack.c.l.b16 %v3763
        %v6450 = vunpack.c.h.b16 %v3763
        %v6451 = vunpack.c.l.b16 %v3764
        %v6452 = vunpack.c.l.b16 %v3765
        %v6453 = vunpack.c.h.b16 %v3765
        %v6454 = vunpack.c.l.b16 %v3766
        %v6455 = vunpack.c.l.b16 %v3767
        %v6456 = vunpack.c.h.b16 %v3767
        %v6457 = vunpack.c.l.b16 %v3768
        %v6458 = vunpack.c.l.b16 %v3769
        %v6459 = vunpack.c.h.b16 %v3769
        %v6460 = vunpack.c.l.b16 %v3770
        %v6461 = vunpack.c.l.b16 %v3771
        %v6462 = vunpack.c.h.b16 %v3771
        %v6463 = vunpack.c.l.b16 %v3772
        %v6464 = vunpack.c.l.b16 %v3773
        %v6465 = vunpack.c.h.b16 %v3773
        %v6466 = vunpack.c.l.b16 %v3774
        %v6467 = vunpack.c.l.b16 %v3775
        %v6468 = vunpack.c.h.b16 %v3775
        %v6469 = vunpack.c.l.b16 %v3776
        %v6470 = vunpack.c.l.b16 %v3777
        %v6471 = vunpack.c.h.b16 %v3777
        %v6472 = vunpack.c.l.b16 %v3778
        %v6473 = vunpack.c.l.b16 %v3779
        %v6474 = vunpack.c.h.b16 %v3779
        %v6475 = vunpack.c.l.b16 %v3780
        %v6476 = vunpack.c.l.b16 %v3781
        %v6477 = vunpack.c.h.b16 %v3781
        %v6478 = vunpack.c.l.b16 %v3782
        %v6479 = vunpack.c.l.b16 %v3783
        %v6480 = vunpack.c.h.b16 %v3783
        %v6481 = vunpack.c.l.b16 %v3784
        %v6482 = vunpack.c.l.b16 %v3785
        %v6483 = vunpack.c.h.b16 %v3785
        %v6484 = vunpack.c.l.b16 %v3786
        %v6485 = vunpack.c.l.b16 %v3787
        %v6486 = vunpack.c.h.b16 %v3787
        %v6487 = vunpack.c.l.b16 %v3788
        %v6488 = vunpack.c.l.b16 %v3789
        %v6489 = vunpack.c.h.b16 %v3789
        %v6490 = vunpack.c.l.b16 %v3790
        %v6491 = vunpack.c.l.b16 %v3791
        %v6492 = vunpack.c.h.b16 %v3791
        %v6493 = vunpack.c.l.b16 %v3792
        %v6494 = vunpack.c.l.b16 %v3793
        %v6495 = vunpack.c.h.b16 %v3793
        %v6496 = vunpack.c.l.b16 %v3794
        %v6497 = vunpack.c.l.b16 %v3795
        %v6498 = vunpack.c.h.b16 %v3795
        %v6499 = vunpack.c.l.b16 %v3796
        %v6500 = vunpack.c.l.b16 %v3797
        %v6501 = vunpack.c.h.b16 %v3797
        %v6502 = vunpack.c.l.b16 %v3798
        %v6503 = vunpack.c.l.b16 %v3799
        %v6504 = vunpack.c.h.b16 %v3799
        %v6505 = vunpack.c.l.b16 %v3800
        %v6506 = vunpack.c.l.b16 %v3801
        %v6507 = vunpack.c.h.b16 %v3801
        %v6508 = vunpack.c.l.b16 %v3802
        %v6509 = vunpack.c.l.b16 %v3803
        %v6510 = vunpack.c.h.b16 %v3803
        %v6511 = vunpack.c.l.b16 %v3804
        %v6512 = vunpack.c.l.b16 %v3805
        %v6513 = vunpack.c.h.b16 %v3805
        %v6514 = vunpack.c.l.b16 %v3806
        %v6515 = vunpack.c.l.b16 %v3807
        %v6516 = vunpack.c.h.b16 %v3807
        %v6517 = vunpack.c.l.b16 %v3808
        %v6518 = vunpack.c.l.b16 %v3809
        %v6519 = vunpack.c.h.b16 %v3809
        %v6520 = vunpack.c.l.b16 %v3810
        %v6521 = vunpack.c.l.b16 %v3811
        %v6522 = vunpack.c.h.b16 %v3811
        %v6523 = vunpack.c.l.b16 %v3812
        %v6524 = vunpack.c.l.b16 %v3813
        %v6525 = vunpack.c.h.b16 %v3813
        %v6526 = vunpack.c.l.b16 %v3814
        %v6527 = vunpack.c.l.b16 %v3815
        %v6528 = vunpack.c.h.b16 %v3815
        %v6529 = vunpack.c.l.b16 %v3816
        %v6530 = vunpack.c.l.b16 %v3817
        %v6531 = vunpack.c.h.b16 %v3817
        %v6532 = vunpack.c.l.b16 %v3818
        %v6533 = vunpack.c.l.b16 %v3819
        %v6534 = vunpack.c.h.b16 %v3819
        %v6535 = vunpack.c.l.b16 %v3820
        %v6536 = vunpack.c.l.b16 %v3821
        %v6537 = vunpack.c.h.b16 %v3821
        %v6538 = vunpack.c.l.b16 %v3822
        %v6539 = vunpack.c.l.b16 %v3823
        %v6540 = vunpack.c.h.b16 %v3823
        %v6541 = vunpack.c.l.b16 %v3824
        %v6542 = vunpack.c.l.b16 %v3825
        %v6543 = vunpack.c.h.b16 %v3825
        %v6544 = vunpack.c.l.b16 %v3826
        %v6545 = vunpack.c.l.b16 %v3827
        %v6546 = vunpack.c.h.b16 %v3827
        %v6547 = vunpack.c.l.b16 %v3828
        %v6548 = vunpack.c.l.b16 %v3829
        %v6549 = vunpack.c.h.b16 %v3829
        %v6550 = vunpack.c.l.b16 %v3830
        %v6551 = vunpack.c.l.b16 %v3831
        %v6552 = vunpack.c.h.b16 %v3831
        %v6553 = vunpack.c.l.b16 %v3832
        %v6554 = vunpack.c.l.b16 %v3833
        %v6555 = vunpack.c.h.b16 %v3833
        %v6556 = vunpack.c.l.b16 %v3834
        %v6557 = vunpack.c.l.b16 %v3835
        %v6558 = vunpack.c.h.b16 %v3835
        %v6559 = vunpack.c.l.b16 %v3836
        %v6560 = vunpack.c.l.b16 %v3837
        %v6561 = vunpack.c.h.b16 %v3837
        %v6562 = vunpack.c.l.b16 %v3838
        %v6563 = vunpack.c.l.b16 %v3839
        %v6564 = vunpack.c.h.b16 %v3839
        %v6565 = vunpack.c.l.b16 %v3840
        %v6566 = vunpack.c.l.b16 %v3841
        %v6567 = vunpack.c.h.b16 %v3841
        %v6568 = vunpack.c.l.b16 %v3842
        %v6569 = vunpack.c.l.b16 %v3843
        %v6570 = vunpack.c.h.b16 %v3843
        %v6571 = vunpack.c.l.b16 %v3844
        %v6572 = vunpack.c.l.b16 %v3845
        %v6573 = vunpack.c.h.b16 %v3845
        %v6574 = vunpack.c.l.b16 %v3846
        %v6575 = vunpack.c.l.b16 %v3847
        %v6576 = vunpack.c.h.b16 %v3847
        %v6577 = vunpack.c.l.b16 %v3848
        %v6578 = vunpack.c.l.b16 %v3849
        %v6579 = vunpack.c.h.b16 %v3849
        %v6580 = vunpack.c.l.b16 %v3850
        %v6581 = vunpack.c.l.b16 %v3851
        %v6582 = vunpack.c.h.b16 %v3851
        %v6583 = vunpack.c.l.b16 %v3852
        %v6584 = vunpack.c.l.b16 %v3853
        %v6585 = vunpack.c.h.b16 %v3853
        %v6586 = vunpack.c.l.b16 %v3854
        %v6587 = vunpack.c.l.b16 %v3855
        %v6588 = vunpack.c.h.b16 %v3855
        %v6589 = vunpack.c.l.b16 %v3856
        %v6590 = vunpack.c.l.b16 %v3857
        %v6591 = vunpack.c.h.b16 %v3857
        %v6592 = vunpack.c.l.b16 %v3858
        %v6593 = vunpack.c.l.b16 %v3859
        %v6594 = vunpack.c.h.b16 %v3859
        %v6595 = vunpack.c.l.b16 %v3860
        %v6596 = vunpack.c.l.b16 %v3861
        %v6597 = vunpack.c.h.b16 %v3861
        %v6598 = vunpack.c.l.b16 %v3862
        %v6599 = vunpack.c.l.b16 %v3863
        %v6600 = vunpack.c.h.b16 %v3863
        %v6601 = vunpack.c.l.b16 %v3864
        %v6602 = vunpack.c.l.b16 %v3865
        %v6603 = vunpack.c.h.b16 %v3865
        %v6604 = vunpack.c.l.b16 %v3866
        %v6605 = vunpack.c.l.b16 %v3867
        %v6606 = vunpack.c.h.b16 %v3867
        %v6607 = vunpack.c.l.b16 %v3868
        %v6608 = vunpack.c.l.b16 %v3869
        %v6609 = vunpack.c.h.b16 %v3869
        %v6610 = vunpack.c.l.b16 %v3870
        %v6611 = vunpack.c.l.b16 %v3871
        %v6612 = vunpack.c.h.b16 %v3871
        %v6613 = vunpack.c.l.b16 %v3872
        %v6614 = vunpack.c.l.b16 %v3873
        %v6615 = vunpack.c.h.b16 %v3873
        %v6616 = vunpack.c.l.b16 %v3874
        %v6617 = vunpack.c.l.b16 %v3875
        %v6618 = vunpack.c.h.b16 %v3875
        %v6619 = vunpack.c.l.b16 %v3876
        %v6620 = vunpack.c.l.b16 %v3877
        %v6621 = vunpack.c.h.b16 %v3877
        %v6622 = vunpack.c.l.b16 %v3878
        %v6623 = vunpack.c.l.b16 %v3879
        %v6624 = vunpack.c.h.b16 %v3879
        %v6625 = vunpack.c.l.b16 %v3880
        %v6626 = vunpack.c.l.b16 %v3881
        %v6627 = vunpack.c.h.b16 %v3881
        %v6628 = vunpack.c.l.b16 %v3882
        %v6629 = vunpack.c.l.b16 %v3883
        %v6630 = vunpack.c.h.b16 %v3883
        %v6631 = vunpack.c.l.b16 %v3884
        %v6632 = vunpack.c.l.b16 %v3885
        %v6633 = vunpack.c.h.b16 %v3885
        %v6634 = vunpack.c.l.b16 %v3886
        %v6635 = vunpack.c.l.b16 %v3887
        %v6636 = vunpack.c.h.b16 %v3887
        %v6637 = vunpack.c.l.b16 %v3888
        %v6638 = vunpack.c.l.b16 %v3889
        %v6639 = vunpack.c.h.b16 %v3889
        %v6640 = vunpack.c.l.b16 %v3890
        %v6641 = vunpack.c.l.b16 %v3891
        %v6642 = vunpack.c.h.b16 %v3891
        %v6643 = vunpack.c.l.b16 %v3892
        %v6644 = vunpack.c.l.b16 %v3893
        %v6645 = vunpack.c.h.b16 %v3893
        %v6646 = vunpack.c.l.b16 %v3894
        %v6647 = vunpack.c.l.b16 %v3895
        %v6648 = vunpack.c.h.b16 %v3895
        %v6649 = vunpack.c.l.b16 %v3896
        %v6650 = vunpack.c.l.b16 %v3897
        %v6651 = vunpack.c.h.b16 %v3897
        %v6652 = vunpack.c.l.b16 %v3898
        %v6653 = vunpack.c.l.b16 %v3899
        %v6654 = vunpack.c.h.b16 %v3899
        %v6655 = vunpack.c.l.b16 %v3900
        %v6656 = vunpack.c.l.b16 %v3901
        %v6657 = vunpack.c.h.b16 %v3901
        %v6658 = vunpack.c.l.b16 %v3902
        %v6659 = vunpack.c.l.b16 %v3903
        %v6660 = vunpack.c.h.b16 %v3903
        %v6661 = vunpack.c.l.b16 %v3904
        %v6662 = vunpack.c.l.b16 %v3905
        %v6663 = vunpack.c.h.b16 %v3905
        %v6664 = vunpack.c.l.b16 %v3906
        %v6665 = vunpack.c.l.b16 %v3907
        %v6666 = vunpack.c.h.b16 %v3907
        %v6667 = vunpack.c.l.b16 %v3908
        %v6668 = vunpack.c.l.b16 %v3909
        %v6669 = vunpack.c.h.b16 %v3909
        %v6670 = vunpack.c.l.b16 %v3910
        %v6671 = vunpack.c.l.b16 %v3911
        %v6672 = vunpack.c.h.b16 %v3911
        %v6673 = vunpack.c.l.b16 %v3912
        %v6674 = vunpack.c.l.b16 %v3913
        %v6675 = vunpack.c.h.b16 %v3913
        %v6676 = vunpack.c.l.b16 %v3914
        %v6677 = vunpack.c.l.b16 %v3915
        %v6678 = vunpack.c.h.b16 %v3915
        %v6679 = vunpack.c.l.b16 %v3916
        %v6680 = vunpack.c.l.b16 %v3917
        %v6681 = vunpack.c.h.b16 %v3917
        %v6682 = vunpack.c.l.b16 %v3918
        %v6683 = vunpack.c.l.b16 %v3919
        %v6684 = vunpack.c.h.b16 %v3919
        %v6685 = vunpack.c.l.b16 %v3920
        %v6686 = vunpack.c.l.b16 %v3921
        %v6687 = vunpack.c.h.b16 %v3921
        %v6688 = vunpack.c.l.b16 %v3922
        %v6689 = vunpack.c.l.b16 %v3923
        %v6690 = vunpack.c.h.b16 %v3923
        %v6691 = vunpack.c.l.b16 %v3924
        %v6692 = vunpack.c.l.b16 %v3925
        %v6693 = vunpack.c.h.b16 %v3925
        %v6694 = vunpack.c.l.b16 %v3926
        %v6695 = vunpack.c.l.b16 %v3927
        %v6696 = vunpack.c.h.b16 %v3927
        %v6697 = vunpack.c.l.b16 %v3928
        %v6698 = vunpack.c.l.b16 %v3929
        %v6699 = vunpack.c.h.b16 %v3929
        %v6700 = vunpack.c.l.b16 %v3930
        %v6701 = vunpack.c.l.b16 %v3931
        %v6702 = vunpack.c.h.b16 %v3931
        %v6703 = vunpack.c.l.b16 %v3932
        %v6704 = vunpack.c.l.b16 %v3933
        %v6705 = vunpack.c.h.b16 %v3933
        %v6706 = vunpack.c.l.b16 %v3934
        %v6707 = vunpack.c.l.b16 %v3935
        %v6708 = vunpack.c.h.b16 %v3935
        %v6709 = vunpack.c.l.b16 %v3936
        %v6710 = vunpack.c.l.b16 %v3937
        %v6711 = vunpack.c.h.b16 %v3937
        %v6712 = vunpack.c.l.b16 %v3938
        %v6713 = vunpack.c.l.b16 %v3939
        %v6714 = vunpack.c.h.b16 %v3939
        %v6715 = vunpack.c.l.b16 %v3940
        %v6716 = vunpack.c.l.b16 %v3941
        %v6717 = vunpack.c.h.b16 %v3941
        %v6718 = vunpack.c.l.b16 %v3942
        %v6719 = vunpack.c.l.b16 %v3943
        %v6720 = vunpack.c.h.b16 %v3943
        %v6721 = vunpack.c.l.b16 %v3944
        %v6722 = vunpack.c.l.b16 %v3945
        %v6723 = vunpack.c.h.b16 %v3945
        %v6724 = vunpack.c.l.b16 %v3946
        %v6725 = vunpack.c.l.b16 %v3947
        %v6726 = vunpack.c.h.b16 %v3947
        %v6727 = vunpack.c.l.b16 %v3948
        %v6728 = vunpack.c.l.b16 %v3949
        %v6729 = vunpack.c.h.b16 %v3949
        %v6730 = vunpack.c.l.b16 %v3950
        %v6731 = vunpack.c.l.b16 %v3951
        %v6732 = vunpack.c.h.b16 %v3951
        %v6733 = vunpack.c.l.b16 %v3952
        %v6734 = vunpack.c.l.b16 %v3953
        %v6735 = vunpack.c.h.b16 %v3953
        %v6736 = vunpack.c.l.b16 %v3954
        %v6737 = vunpack.c.l.b16 %v3955
        %v6738 = vunpack.c.h.b16 %v3955
        %v6739 = vunpack.c.l.b16 %v3956
        %v6740 = vunpack.c.l.b16 %v3957
        %v6741 = vunpack.c.h.b16 %v3957
        %v6742 = vunpack.c.l.b16 %v3958
        %v6743 = vunpack.c.l.b16 %v3959
        %v6744 = vunpack.c.h.b16 %v3959
        %v6745 = vunpack.c.l.b16 %v3960
        %v6746 = vunpack.c.l.b16 %v3961
        %v6747 = vunpack.c.h.b16 %v3961
        %v6748 = vunpack.c.l.b16 %v3962
        %v6749 = vunpack.c.l.b16 %v3963
        %v6750 = vunpack.c.h.b16 %v3963
        %v6751 = vunpack.c.l.b16 %v3964
        %v6752 = vunpack.c.l.b16 %v3965
        %v6753 = vunpack.c.h.b16 %v3965
        %v6754 = vunpack.c.l.b16 %v3966
        %v6755 = vunpack.c.l.b16 %v3967
        %v6756 = vunpack.c.h.b16 %v3967
        %v6757 = vunpack.c.l.b16 %v3968
        %v6758 = vunpack.c.l.b16 %v3969
        %v6759 = vunpack.c.h.b16 %v3969
        %v6760 = vunpack.c.l.b16 %v3970
        %v6761 = vunpack.c.l.b16 %v3971
        %v6762 = vunpack.c.h.b16 %v3971
        %v6763 = vunpack.c.l.b16 %v3972
        %v6764 = vunpack.c.l.b16 %v3973
        %v6765 = vunpack.c.h.b16 %v3973
        %v6766 = vunpack.c.l.b16 %v3974
        %v6767 = vunpack.c.l.b16 %v3975
        %v6768 = vunpack.c.h.b16 %v3975
        %v6769 = vunpack.c.l.b16 %v3976
        %v6770 = vunpack.c.l.b16 %v3977
        %v6771 = vunpack.c.h.b16 %v3977
        %v6772 = vunpack.c.l.b16 %v3978
        %v6773 = vunpack.c.l.b16 %v3979
        %v6774 = vunpack.c.h.b16 %v3979
        %v6775 = vunpack.c.l.b16 %v3980
        %v6776 = vunpack.c.l.b16 %v3981
        %v6777 = vunpack.c.h.b16 %v3981
        %v6778 = vunpack.c.l.b16 %v3982
        %v6779 = vunpack.c.l.b16 %v3983
        %v6780 = vunpack.c.h.b16 %v3983
        %v6781 = vunpack.c.l.b16 %v3984
        %v6782 = vunpack.c.l.b16 %v3985
        %v6783 = vunpack.c.h.b16 %v3985
        %v6784 = vunpack.c.l.b16 %v3986
        %v6785 = vunpack.c.l.b16 %v3987
        %v6786 = vunpack.c.h.b16 %v3987
        %v6787 = vunpack.c.l.b16 %v3988
        %v6788 = vunpack.c.l.b16 %v3989
        %v6789 = vunpack.c.h.b16 %v3989
        %v6790 = vunpack.c.l.b16 %v3990
        %v6791 = vunpack.c.l.b16 %v3991
        %v6792 = vunpack.c.h.b16 %v3991
        %v6793 = vunpack.c.l.b16 %v3992
        %v6794 = vunpack.c.l.b16 %v3993
        %v6795 = vunpack.c.h.b16 %v3993
        %v6796 = vunpack.c.l.b16 %v3994
        %v6797 = vunpack.c.l.b16 %v3995
        %v6798 = vunpack.c.h.b16 %v3995
        %v6799 = vunpack.c.l.b16 %v3996
        %v6800 = vunpack.c.l.b16 %v3997
        %v6801 = vunpack.c.h.b16 %v3997
        %v6802 = vunpack.c.l.b16 %v3998
        %v6803 = vunpack.c.l.b16 %v3999
        %v6804 = vunpack.c.h.b16 %v3999
        %v6805 = vunpack.c.l.b16 %v4000
        %v6806 = vunpack.c.l.b16 %v4001
        %v6807 = vunpack.c.h.b16 %v4001
        %v6808 = vunpack.c.l.b16 %v4002
        %v6809 = vunpack.c.l.b16 %v4003
        %v6810 = vunpack.c.h.b16 %v4003
        %v6811 = vunpack.c.l.b16 %v4004
        %v6812 = vunpack.c.l.b16 %v4005
        %v6813 = vunpack.c.h.b16 %v4005
        %v6814 = vunpack.c.l.b16 %v4006
        %v6815 = vunpack.c.l.b16 %v4007
        %v6816 = vunpack.c.h.b16 %v4007
        %v6817 = vunpack.c.l.b16 %v4008
        %v6818 = vunpack.c.l.b16 %v4009
        %v6819 = vunpack.c.h.b16 %v4009
        %v6820 = vunpack.c.l.b16 %v4010
        %v6821 = vunpack.c.l.b16 %v4011
        %v6822 = vunpack.c.h.b16 %v4011
        %v6823 = vunpack.c.l.b16 %v4012
        %v6824 = vunpack.c.l.b16 %v4013
        %v6825 = vunpack.c.h.b16 %v4013
        %v6826 = vunpack.c.l.b16 %v4014
        %v6827 = vunpack.c.l.b16 %v4015
        %v6828 = vunpack.c.h.b16 %v4015
        %v6829 = vunpack.c.l.b16 %v4016
        %v6830 = vunpack.c.l.b16 %v4017
        %v6831 = vunpack.c.h.b16 %v4017
        %v6832 = vunpack.c.l.b16 %v4018
        %v6833 = vunpack.c.l.b16 %v4019
        %v6834 = vunpack.c.h.b16 %v4019
        %v6835 = vunpack.c.l.b16 %v4020
        %v6836 = vunpack.c.l.b16 %v4021
        %v6837 = vunpack.c.h.b16 %v4021
        %v6838 = vunpack.c.l.b16 %v4022
        %v6839 = vunpack.c.l.b16 %v4023
        %v6840 = vunpack.c.h.b16 %v4023
        %v6841 = vunpack.c.l.b16 %v4024
        %v6842 = vunpack.c.l.b16 %v4025
        %v6843 = vunpack.c.h.b16 %v4025
        %v6844 = vunpack.c.l.b16 %v4026
        %v6845 = vunpack.c.l.b16 %v4027
        %v6846 = vunpack.c.h.b16 %v4027
        %v6847 = vunpack.c.l.b16 %v4028
        %v6848 = vunpack.c.l.b16 %v4029
        %v6849 = vunpack.c.h.b16 %v4029
        %v6850 = vunpack.c.l.b16 %v4030
        %v6851 = vunpack.c.l.b16 %v4031
        %v6852 = vunpack.c.h.b16 %v4031
        %v6853 = vunpack.c.l.b16 %v4032
        %v6854 = vunpack.c.l.b16 %v4033
        %v6855 = vunpack.c.h.b16 %v4033
        %v6856 = vunpack.c.l.b16 %v4034
        %v6857 = vunpack.c.l.b16 %v4035
        %v6858 = vunpack.c.h.b16 %v4035
        %v6859 = vunpack.c.l.b16 %v4036
        %v6860 = vunpack.c.l.b16 %v4037
        %v6861 = vunpack.c.h.b16 %v4037
        %v6862 = vunpack.c.l.b16 %v4038
        %v6863 = vunpack.c.l.b16 %v4039
        %v6864 = vunpack.c.h.b16 %v4039
        %v6865 = vunpack.c.l.b16 %v4040
        %v6866 = vunpack.c.l.b16 %v4041
        %v6867 = vunpack.c.h.b16 %v4041
        %v6868 = vunpack.c.l.b16 %v4042
        %v6869 = vunpack.c.l.b16 %v4043
        %v6870 = vunpack.c.h.b16 %v4043
        %v6871 = vunpack.c.l.b16 %v4044
        %v6872 = vunpack.c.l.b16 %v4045
        %v6873 = vunpack.c.h.b16 %v4045
        %v6874 = vunpack.c.l.b16 %v4046
        %v6875 = vunpack.c.l.b16 %v4047
        %v6876 = vunpack.c.h.b16 %v4047
        %v6877 = vunpack.c.l.b16 %v4048
        %v6878 = vunpack.c.l.b16 %v4049
        %v6879 = vunpack.c.h.b16 %v4049
        %v6880 = vunpack.c.l.b16 %v4050
        %v6881 = vunpack.c.l.b16 %v4051
        %v6882 = vunpack.c.h.b16 %v4051
        %v6883 = vunpack.c.l.b16 %v4052
        %v6884 = vunpack.c.l.b16 %v4053
        %v6885 = vunpack.c.h.b16 %v4053
        %v6886 = vunpack.c.l.b16 %v4054
        %v6887 = vunpack.c.l.b16 %v4055
        %v6888 = vunpack.c.h.b16 %v4055
        %v6889 = vunpack.c.l.b16 %v4056
        %v6890 = vunpack.c.l.b16 %v4057
        %v6891 = vunpack.c.h.b16 %v4057
        %v6892 = vunpack.c.l.b16 %v4058
        %v6893 = vunpack.c.l.b16 %v4059
        %v6894 = vunpack.c.h.b16 %v4059
        %v6895 = vunpack.c.l.b16 %v4060
        %v6896 = vunpack.c.l.b16 %v4061
        %v6897 = vunpack.c.h.b16 %v4061
        %v6898 = vunpack.c.l.b16 %v4062
        %v6899 = vunpack.c.l.b16 %v4063
        %v6900 = vunpack.c.h.b16 %v4063
        %v6901 = vunpack.c.l.b16 %v4064
        %v6902 = vunpack.c.l.b16 %v4065
        %v6903 = vunpack.c.h.b16 %v4065
        %v6904 = vunpack.c.l.b16 %v4066
        %v6905 = vunpack.c.l.b16 %v4067
        %v6906 = vunpack.c.h.b16 %v4067
        %v6907 = vunpack.c.l.b16 %v4068
        %v6908 = vunpack.c.l.b16 %v4069
        %v6909 = vunpack.c.h.b16 %v4069
        %v6910 = vunpack.c.l.b16 %v4070
        %v6911 = vunpack.c.l.b16 %v4071
        %v6912 = vunpack.c.h.b16 %v4071
        %v6913 = vunpack.c.l.b16 %v4072
        %v6914 = vunpack.c.l.b16 %v4073
        %v6915 = vunpack.c.h.b16 %v4073
        %v6916 = vunpack.c.l.b16 %v4074
        %v6917 = vunpack.c.l.b16 %v4075
        %v6918 = vunpack.c.h.b16 %v4075
        %v6919 = vunpack.c.l.b16 %v4076
        %v6920 = vunpack.c.l.b16 %v4077
        %v6921 = vunpack.c.h.b16 %v4077
        %v6922 = vunpack.c.l.b16 %v4078
        %v6923 = vunpack.c.l.b16 %v4079
        %v6924 = vunpack.c.h.b16 %v4079
        %v6925 = vunpack.c.l.b16 %v4080
        %v6926 = vunpack.c.l.b16 %v4081
        %v6927 = vunpack.c.h.b16 %v4081
        %v6928 = vunpack.c.l.b16 %v4082
        %v6929 = vunpack.c.l.b16 %v4083
        %v6930 = vunpack.c.h.b16 %v4083
        %v6931 = vunpack.c.l.b16 %v4084
        %v6932 = vunpack.c.l.b16 %v4085
        %v6933 = vunpack.c.h.b16 %v4085
        %v6934 = vunpack.c.l.b16 %v4086
        %v6935 = vunpack.c.l.b16 %v4087
        %v6936 = vunpack.c.h.b16 %v4087
        %v6937 = vunpack.c.l.b16 %v4088
        %v6938 = vunpack.c.l.b16 %v4089
        %v6939 = vunpack.c.h.b16 %v4089
        %v6940 = vunpack.c.l.b16 %v4090
        %v6941 = vunpack.c.l.b16 %v4091
        %v6942 = vunpack.c.h.b16 %v4091
        %v6943 = vunpack.c.l.b16 %v4092
        %v6944 = vunpack.c.l.b16 %v4093
        %v6945 = vunpack.c.h.b16 %v4093
        %v6946 = vunpack.c.l.b16 %v4094
        %v6947 = vunpack.c.l.b16 %v4095
        %v6948 = vunpack.c.h.b16 %v4095
        %v6949 = vunpack.c.l.b16 %v4096
        %v6950 = vunpack.c.l.b16 %v4097
        %v6951 = vunpack.c.h.b16 %v4097
        %v6952 = vunpack.c.l.b16 %v4098
        %v6953 = vunpack.c.l.b16 %v4099
        %v6954 = vunpack.c.h.b16 %v4099
        %v6955 = vunpack.c.l.b16 %v4100
        %v6956 = vunpack.c.l.b16 %v4101
        %v6957 = vunpack.c.h.b16 %v4101
        %v6958 = vunpack.c.l.b16 %v4102
        %v6959 = vunpack.c.l.b16 %v4103
        %v6960 = vunpack.c.h.b16 %v4103
        %v6961 = vunpack.c.l.b16 %v4104
        %v6962 = vunpack.c.l.b16 %v4105
        %v6963 = vunpack.c.h.b16 %v4105
        %v6964 = vunpack.c.l.b16 %v4106
        %v6965 = vunpack.c.l.b16 %v4107
        %v6966 = vunpack.c.h.b16 %v4107
        %v6967 = vunpack.c.l.b16 %v4108
        %v6968 = vunpack.c.l.b16 %v4109
        %v6969 = vunpack.c.h.b16 %v4109
        %v6970 = vunpack.c.l.b16 %v4110
        %v6971 = vunpack.c.l.b16 %v4111
        %v6972 = vunpack.c.h.b16 %v4111
        %v6973 = vunpack.c.l.b16 %v4112
        %v6974 = vunpack.c.l.b16 %v4113
        %v6975 = vunpack.c.h.b16 %v4113
        %v6976 = vunpack.c.l.b16 %v4114
        %v6977 = vunpack.c.l.b16 %v4115
        %v6978 = vunpack.c.h.b16 %v4115
        %v6979 = vunpack.c.l.b16 %v4116
        %v6980 = vunpack.c.l.b16 %v4117
        %v6981 = vunpack.c.h.b16 %v4117
        %v6982 = vunpack.c.l.b16 %v4118
        %v6983 = vunpack.c.l.b16 %v4119
        %v6984 = vunpack.c.h.b16 %v4119
        %v6985 = vunpack.c.l.b16 %v4120
        %v6986 = vunpack.c.l.b16 %v4121
        %v6987 = vunpack.c.h.b16 %v4121
        %v6988 = vunpack.c.l.b16 %v4122
        %v6989 = vunpack.c.l.b16 %v4123
        %v6990 = vunpack.c.h.b16 %v4123
        %v6991 = vunpack.c.l.b16 %v4124
        %v6992 = vunpack.c.l.b16 %v4125
        %v6993 = vunpack.c.h.b16 %v4125
        %v6994 = vunpack.c.l.b16 %v4126
        %v6995 = vunpack.c.l.b16 %v4127
        %v6996 = vunpack.c.h.b16 %v4127
        %v6997 = vunpack.c.l.b16 %v4128
        %v6998 = vunpack.c.l.b16 %v4129
        %v6999 = vunpack.c.h.b16 %v4129
        %v7000 = vunpack.c.l.b16 %v4130
        %v7001 = vunpack.c.l.b16 %v4131
        %v7002 = vunpack.c.h.b16 %v4131
        %v7003 = vunpack.c.l.b16 %v4132
        %v7004 = vunpack.c.l.b16 %v4133
        %v7005 = vunpack.c.h.b16 %v4133
        %v7006 = vunpack.c.l.b16 %v4134
        %v7007 = vunpack.c.l.b16 %v4135
        %v7008 = vunpack.c.h.b16 %v4135
        %v7009 = vunpack.c.l.b16 %v4136
        %v7010 = vunpack.c.l.b16 %v4137
        %v7011 = vunpack.c.h.b16 %v4137
        %v7012 = vunpack.c.l.b16 %v4138
        %v7013 = vunpack.c.l.b16 %v4139
        %v7014 = vunpack.c.h.b16 %v4139
        %v7015 = vunpack.c.l.b16 %v4140
        %v7016 = vunpack.c.l.b16 %v4141
        %v7017 = vunpack.c.h.b16 %v4141
        %v7018 = vunpack.c.l.b16 %v4142
        %v7019 = vunpack.c.l.b16 %v4143
        %v7020 = vunpack.c.h.b16 %v4143
        %v7021 = vunpack.c.l.b16 %v4144
        %v7022 = vunpack.c.l.b16 %v4145
        %v7023 = vunpack.c.h.b16 %v4145
        %v7024 = vunpack.c.l.b16 %v4146
        %v7025 = vunpack.c.l.b16 %v4147
        %v7026 = vunpack.c.h.b16 %v4147
        %v7027 = vunpack.c.l.b16 %v4148
        %v7028 = vunpack.c.l.b16 %v4149
        %v7029 = vunpack.c.h.b16 %v4149
        %v7030 = vunpack.c.l.b16 %v4150
        %v7031 = vunpack.c.l.b16 %v4151
        %v7032 = vunpack.c.h.b16 %v4151
        %v7033 = vunpack.c.l.b16 %v4152
        %v7034 = vunpack.c.l.b16 %v4153
        %v7035 = vunpack.c.h.b16 %v4153
        %v7036 = vunpack.c.l.b16 %v4154
        %v7037 = vunpack.c.l.b16 %v4155
        %v7038 = vunpack.c.h.b16 %v4155
        %v7039 = vunpack.c.l.b16 %v4156
        %v7040 = vunpack.c.l.b16 %v4157
        %v7041 = vunpack.c.h.b16 %v4157
        %v7042 = vunpack.c.l.b16 %v4158
        %v7043 = vunpack.c.l.b16 %v4159
        %v7044 = vunpack.c.h.b16 %v4159
        %v7045 = vunpack.c.l.b16 %v4160
        %v7046 = vunpack.c.l.b16 %v4161
        %v7047 = vunpack.c.h.b16 %v4161
        %v7048 = vunpack.c.l.b16 %v4162
        %v7049 = vunpack.c.l.b16 %v4163
        %v7050 = vunpack.c.h.b16 %v4163
        %v7051 = vunpack.c.l.b16 %v4164
        %v7052 = vunpack.c.l.b16 %v4165
        %v7053 = vunpack.c.h.b16 %v4165
        %v7054 = vunpack.c.l.b16 %v4166
        %v7055 = vunpack.c.l.b16 %v4167
        %v7056 = vunpack.c.h.b16 %v4167
        %v7057 = vunpack.c.l.b16 %v4168
        %v7058 = vunpack.c.l.b16 %v4169
        %v7059 = vunpack.c.h.b16 %v4169
        %v7060 = vunpack.c.l.b16 %v4170
        %v7061 = vunpack.c.l.b16 %v4171
        %v7062 = vunpack.c.h.b16 %v4171
        %v7063 = vunpack.c.l.b16 %v4172
        %v7064 = vunpack.c.l.b16 %v4173
        %v7065 = vunpack.c.h.b16 %v4173
        %v7066 = vunpack.c.l.b16 %v4174
        %v7067 = vunpack.c.l.b16 %v4175
        %v7068 = vunpack.c.h.b16 %v4175
        %v7069 = vunpack.c.l.b16 %v4176
        %v7070 = vunpack.c.l.b16 %v4177
        %v7071 = vunpack.c.h.b16 %v4177
        %v7072 = vunpack.c.l.b16 %v4178
        %v7073 = vunpack.c.l.b16 %v4179
        %v7074 = vunpack.c.h.b16 %v4179
        %v7075 = vunpack.c.l.b16 %v4180
        %v7076 = vunpack.c.l.b16 %v4181
        %v7077 = vunpack.c.h.b16 %v4181
        %v7078 = vunpack.c.l.b16 %v4182
        %v7079 = vunpack.c.l.b16 %v4183
        %v7080 = vunpack.c.h.b16 %v4183
        %v7081 = vunpack.c.l.b16 %v4184
        %v7082 = vunpack.c.l.b16 %v4185
        %v7083 = vunpack.c.h.b16 %v4185
        %v7084 = vunpack.c.l.b16 %v4186
        %v7085 = vunpack.c.l.b16 %v4187
        %v7086 = vunpack.c.h.b16 %v4187
        %v7087 = vunpack.c.l.b16 %v4188
        %v7088 = vunpack.c.l.b16 %v4189
        %v7089 = vunpack.c.h.b16 %v4189
        %v7090 = vunpack.c.l.b16 %v4190
        %v7091 = vunpack.c.l.b16 %v4191
        %v7092 = vunpack.c.h.b16 %v4191
        %v7093 = vunpack.c.l.b16 %v4192
        %v7094 = vunpack.c.l.b16 %v4193
        %v7095 = vunpack.c.h.b16 %v4193
        %v7096 = vunpack.c.l.b16 %v4194
        %v7097 = vunpack.c.l.b16 %v4195
        %v7098 = vunpack.c.h.b16 %v4195
        %v7099 = vunpack.c.l.b16 %v4196
        %v7100 = vunpack.c.l.b16 %v4197
        %v7101 = vunpack.c.h.b16 %v4197
        %v7102 = vunpack.c.l.b16 %v4198
        %v7103 = vunpack.c.l.b16 %v4199
        %v7104 = vunpack.c.h.b16 %v4199
        %v7105 = vunpack.c.l.b16 %v4200
        %v7106 = vunpack.c.l.b16 %v4201
        %v7107 = vunpack.c.h.b16 %v4201
        %v7108 = vunpack.c.l.b16 %v4202
        %v7109 = vunpack.c.l.b16 %v4203
        %v7110 = vunpack.c.h.b16 %v4203
        %v7111 = vunpack.c.l.b16 %v4204
        %v7112 = vunpack.c.l.b16 %v4205
        %v7113 = vunpack.c.h.b16 %v4205
        %v7114 = vunpack.c.l.b16 %v4206
        %v7115 = vunpack.c.l.b16 %v4207
        %v7116 = vunpack.c.h.b16 %v4207
        %v7117 = vunpack.c.l.b16 %v4208
        %v7118 = vunpack.c.l.b16 %v4209
        %v7119 = vunpack.c.h.b16 %v4209
        %v7120 = vunpack.c.l.b16 %v4210
        %v7121 = vunpack.c.l.b16 %v4211
        %v7122 = vunpack.c.h.b16 %v4211
        %v7123 = vunpack.c.l.b16 %v4212
        %v7124 = vunpack.c.l.b16 %v4213
        %v7125 = vunpack.c.h.b16 %v4213
        %v7126 = vunpack.c.l.b16 %v4214
        %v7127 = vunpack.c.l.b16 %v4215
        %v7128 = vunpack.c.h.b16 %v4215
        %v7129 = vunpack.c.l.b16 %v4216
        %v7130 = vunpack.c.l.b16 %v4217
        %v7131 = vunpack.c.h.b16 %v4217
        %v7132 = vunpack.c.l.b16 %v4218
        %v7133 = vunpack.c.l.b16 %v4219
        %v7134 = vunpack.c.h.b16 %v4219
        %v7135 = vunpack.c.l.b16 %v4220
        %v7136 = vunpack.c.l.b16 %v4221
        %v7137 = vunpack.c.h.b16 %v4221
        %v7138 = vunpack.c.l.b16 %v4222
        %v7139 = vunpack.c.l.b16 %v4223
        %v7140 = vunpack.c.h.b16 %v4223
        %v7141 = vunpack.c.l.b16 %v4224
        %v7142 = vunpack.c.l.b16 %v4225
        %v7143 = vunpack.c.h.b16 %v4225
        %v7144 = vunpack.c.l.b16 %v4226
        %v7145 = vunpack.c.l.b16 %v4227
        %v7146 = vunpack.c.h.b16 %v4227
        %v7147 = vunpack.c.l.b16 %v4228
        %v7148 = vunpack.c.l.b16 %v4229
        %v7149 = vunpack.c.h.b16 %v4229
        %v7150 = vunpack.c.l.b16 %v4230
        %v7151 = vunpack.c.l.b16 %v4231
        %v7152 = vunpack.c.h.b16 %v4231
        %v7153 = vunpack.c.l.b16 %v4232
        %v7154 = vunpack.c.l.b16 %v4233
        %v7155 = vunpack.c.h.b16 %v4233
        %v7156 = vunpack.c.l.b16 %v4234
        %v7157 = vunpack.c.l.b16 %v4235
        %v7158 = vunpack.c.h.b16 %v4235
        %v7159 = vunpack.c.l.b16 %v4236
        %v7160 = vunpack.c.l.b16 %v4237
        %v7161 = vunpack.c.h.b16 %v4237
        %v7162 = vunpack.c.l.b16 %v4238
        %v7163 = vunpack.c.l.b16 %v4239
        %v7164 = vunpack.c.h.b16 %v4239
        %v7165 = vunpack.c.l.b16 %v4240
        %v7166 = vunpack.c.l.b16 %v4241
        %v7167 = vunpack.c.h.b16 %v4241
        %v7168 = vunpack.c.l.b16 %v4242
        %v7169 = vunpack.c.l.b16 %v4243
        %v7170 = vunpack.c.h.b16 %v4243
        %v7171 = vunpack.c.l.b16 %v4244
        %v7172 = vunpack.c.l.b16 %v4245
        %v7173 = vunpack.c.h.b16 %v4245
        %v7174 = vunpack.c.l.b16 %v4246
        %v7175 = vunpack.c.l.b16 %v4247
        %v7176 = vunpack.c.h.b16 %v4247
        %v7177 = vunpack.c.l.b16 %v4248
        %v7178 = vunpack.c.l.b16 %v4249
        %v7179 = vunpack.c.h.b16 %v4249
        %v7180 = vunpack.c.l.b16 %v4250
        %v7181 = vunpack.c.l.b16 %v4251
        %v7182 = vunpack.c.h.b16 %v4251
        %v7183 = vunpack.c.l.b16 %v4252
        %v7184 = vunpack.c.l.b16 %v4253
        %v7185 = vunpack.c.h.b16 %v4253
        %v7186 = vunpack.c.l.b16 %v4254
        %v7187 = vunpack.c.l.b16 %v4255
        %v7188 = vunpack.c.h.b16 %v4255
        %v7189 = vunpack.c.l.b16 %v4256
        %v7190 = vunpack.c.l.b16 %v4257
        %v7191 = vunpack.c.h.b16 %v4257
        %v7192 = vunpack.c.l.b16 %v4258
        %v7193 = vunpack.c.l.b16 %v4259
        %v7194 = vunpack.c.h.b16 %v4259
        %v7195 = vunpack.c.l.b16 %v4260
        %v7196 = vunpack.c.l.b16 %v4261
        %v7197 = vunpack.c.h.b16 %v4261
        %v7198 = vunpack.c.l.b16 %v4262
        %v7199 = vunpack.c.l.b16 %v4263
        %v7200 = vunpack.c.h.b16 %v4263
        %v7201 = vunpack.c.l.b16 %v4264
        %v7202 = vunpack.c.l.b16 %v4265
        %v7203 = vunpack.c.h.b16 %v4265
        %v7204 = vunpack.c.l.b16 %v4266
        %v7205 = vunpack.c.l.b16 %v4267
        %v7206 = vunpack.c.h.b16 %v4267
        %v7207 = vunpack.c.l.b16 %v4268
        %v7208 = vunpack.c.l.b16 %v4269
        %v7209 = vunpack.c.h.b16 %v4269
        %v7210 = vunpack.c.l.b16 %v4270
        %v7211 = vunpack.c.l.b16 %v4271
        %v7212 = vunpack.c.h.b16 %v4271
        %v7213 = vunpack.c.l.b16 %v4272
        %v7214 = vunpack.c.l.b16 %v4273
        %v7215 = vunpack.c.h.b16 %v4273
        %v7216 = vunpack.c.l.b16 %v4274
        %v7217 = vunpack.c.l.b16 %v4275
        %v7218 = vunpack.c.h.b16 %v4275
        %v7219 = vunpack.c.l.b16 %v4276
        %v7220 = vunpack.c.l.b16 %v4277
        %v7221 = vunpack.c.h.b16 %v4277
        %v7222 = vunpack.c.l.b16 %v4278
        %v7223 = vunpack.c.l.b16 %v4279
        %v7224 = vunpack.c.h.b16 %v4279
        %v7225 = vunpack.c.l.b16 %v4280
        %v7226 = vunpack.c.l.b16 %v4281
        %v7227 = vunpack.c.h.b16 %v4281
        %v7228 = vunpack.c.l.b16 %v4282
        %v7229 = vunpack.c.l.b16 %v4283
        %v7230 = vunpack.c.h.b16 %v4283
        %v7231 = vunpack.c.l.b16 %v4284
        %v7232 = vunpack.c.l.b16 %v4285
        %v7233 = vunpack.c.h.b16 %v4285
        %v7234 = vunpack.c.l.b16 %v4286
        %v7235 = vunpack.c.l.b16 %v4287
        %v7236 = vunpack.c.h.b16 %v4287
        %v7237 = vunpack.c.l.b16 %v4288
        %v7238 = vunpack.c.l.b16 %v4289
        %v7239 = vunpack.c.h.b16 %v4289
        %v7240 = vunpack.c.l.b16 %v4290
        %v7241 = vunpack.c.l.b16 %v4291
        %v7242 = vunpack.c.h.b16 %v4291
        %v7243 = vunpack.c.l.b16 %v4292
        %v7244 = vunpack.c.l.b16 %v4293
        %v7245 = vunpack.c.h.b16 %v4293
        %v7246 = vunpack.c.l.b16 %v4294
        %v7247 = vunpack.c.l.b16 %v4295
        %v7248 = vunpack.c.h.b16 %v4295
        %v7249 = vunpack.c.l.b16 %v4296
        %v7250 = vunpack.c.l.b16 %v4297
        %v7251 = vunpack.c.h.b16 %v4297
        %v7252 = vunpack.c.l.b16 %v4298
        %v7253 = vunpack.c.l.b16 %v4299
        %v7254 = vunpack.c.h.b16 %v4299
        %v7255 = vunpack.c.l.b16 %v4300
        %v7256 = vunpack.c.l.b16 %v4301
        %v7257 = vunpack.c.h.b16 %v4301
        %v7258 = vunpack.c.l.b16 %v4302
        %v7259 = vunpack.c.l.b16 %v4303
        %v7260 = vunpack.c.h.b16 %v4303
        %v7261 = vunpack.c.l.b16 %v4304
        %v7262 = vunpack.c.l.b16 %v4305
        %v7263 = vunpack.c.h.b16 %v4305
        %v7264 = vunpack.c.l.b16 %v4306
        %v7265 = vunpack.c.l.b16 %v4307
        %v7266 = vunpack.c.h.b16 %v4307
        %v7267 = vunpack.c.l.b16 %v4308
        %v7268 = vunpack.c.l.b16 %v4309
        %v7269 = vunpack.c.h.b16 %v4309
        %v7270 = vunpack.c.l.b16 %v4310
        %v7271 = vunpack.c.l.b16 %v4311
        %v7272 = vunpack.c.h.b16 %v4311
        %v7273 = vunpack.c.l.b16 %v4312
        %v7274 = vunpack.c.l.b16 %v4313
        %v7275 = vunpack.c.h.b16 %v4313
        %v7276 = vunpack.c.l.b16 %v4314
        %v7277 = vunpack.c.l.b16 %v4315
        %v7278 = vunpack.c.h.b16 %v4315
        %v7279 = vunpack.c.l.b16 %v4316
        %v7280 = vunpack.c.l.b16 %v4317
        %v7281 = vunpack.c.h.b16 %v4317
        %v7282 = vunpack.c.l.b16 %v4318
        %v7283 = vunpack.c.l.b16 %v4319
        %v7284 = vunpack.c.h.b16 %v4319
        %v7285 = vunpack.c.l.b16 %v4320
        %v7286 = vunpack.c.l.b16 %v4321
        %v7287 = vunpack.c.h.b16 %v4321
        %v7288 = vunpack.c.l.b16 %v4322
        %v7289 = vunpack.c.l.b16 %v4323
        %v7290 = vunpack.c.h.b16 %v4323
        %v7291 = vunpack.c.l.b16 %v4324
        %v7292 = vunpack.c.l.b16 %v4325
        %v7293 = vunpack.c.h.b16 %v4325
        %v7294 = vunpack.c.l.b16 %v4326
        %v7295 = vunpack.c.l.b16 %v4327
        %v7296 = vunpack.c.h.b16 %v4327
        %v7297 = vunpack.c.l.b16 %v4328
        %v7298 = vunpack.c.l.b16 %v4329
        %v7299 = vunpack.c.h.b16 %v4329
        %v7300 = vunpack.c.l.b16 %v4330
        %v7301 = vunpack.c.l.b16 %v4331
        %v7302 = vunpack.c.h.b16 %v4331
        %v7303 = vunpack.c.l.b16 %v4332
        %v7304 = vunpack.c.l.b16 %v4333
        %v7305 = vunpack.c.h.b16 %v4333
        %v7306 = vunpack.c.l.b16 %v4334
        %v7307 = vunpack.c.l.b16 %v4335
        %v7308 = vunpack.c.h.b16 %v4335
        %v7309 = vunpack.c.l.b16 %v4336
        %v7310 = vunpack.c.l.b16 %v4337
        %v7311 = vunpack.c.h.b16 %v4337
        %v7312 = vunpack.c.l.b16 %v4338
        %v7313 = vunpack.c.l.b16 %v4339
        %v7314 = vunpack.c.h.b16 %v4339
        %v7315 = vunpack.c.l.b16 %v4340
        %v7316 = vunpack.c.l.b16 %v4341
        %v7317 = vunpack.c.h.b16 %v4341
        %v7318 = vunpack.c.l.b16 %v4342
        %v7319 = vunpack.c.l.b16 %v4343
        %v7320 = vunpack.c.h.b16 %v4343
        %v7321 = vunpack.c.l.b16 %v4344
        %v7322 = vunpack.c.l.b16 %v4345
        %v7323 = vunpack.c.h.b16 %v4345
        %v7324 = vunpack.c.l.b16 %v4346
        %v7325 = vunpack.c.l.b16 %v4347
        %v7326 = vunpack.c.h.b16 %v4347
        %v7327 = vunpack.c.l.b16 %v4348
        %v7328 = vunpack.c.l.b16 %v4349
        %v7329 = vunpack.c.h.b16 %v4349
        %v7330 = vunpack.c.l.b16 %v4350
        %v7331 = vunpack.c.l.b16 %v4351
        %v7332 = vunpack.c.h.b16 %v4351
        %v7333 = vunpack.c.l.b16 %v4352
        %v7334 = vunpack.c.l.b16 %v4353
        %v7335 = vunpack.c.h.b16 %v4353
        %v7336 = vunpack.c.l.b16 %v4354
        %v7337 = vunpack.c.l.b16 %v4355
        %v7338 = vunpack.c.h.b16 %v4355
        %v7339 = vunpack.c.l.b16 %v4356
        %v7340 = vunpack.c.l.b16 %v4357
        %v7341 = vunpack.c.h.b16 %v4357
        %v7342 = vunpack.c.l.b16 %v4358
        %v7343 = vunpack.c.l.b16 %v4359
        %v7344 = vunpack.c.h.b16 %v4359
        %v7345 = vunpack.c.l.b16 %v4360
        %v7346 = vunpack.c.l.b16 %v4361
        %v7347 = vunpack.c.h.b16 %v4361
        %v7348 = vunpack.c.l.b16 %v4362
        %v7349 = vunpack.c.l.b16 %v4363
        %v7350 = vunpack.c.h.b16 %v4363
        %v7351 = vunpack.c.l.b16 %v4364
        %v7352 = vunpack.c.l.b16 %v4365
        %v7353 = vunpack.c.h.b16 %v4365
        %v7354 = vunpack.c.l.b16 %v4366
        %v7355 = vunpack.c.l.b16 %v4367
        %v7356 = vunpack.c.h.b16 %v4367
        %v7357 = vunpack.c.l.b16 %v4368
        %v7358 = vunpack.c.l.b16 %v4369
        %v7359 = vunpack.c.h.b16 %v4369
        %v7360 = vunpack.c.l.b16 %v4370
        %v7361 = vunpack.c.l.b16 %v4371
        %v7362 = vunpack.c.h.b16 %v4371
        %v7363 = vunpack.c.l.b16 %v4372
        %v7364 = vunpack.c.l.b16 %v4373
        %v7365 = vunpack.c.h.b16 %v4373
        %v7366 = vunpack.c.l.b16 %v4374
        %v7367 = vunpack.c.l.b16 %v4375
        %v7368 = vunpack.c.h.b16 %v4375
        %v7369 = vunpack.c.l.b16 %v4376
        %v7370 = vunpack.c.l.b16 %v4377
        %v7371 = vunpack.c.h.b16 %v4377
        %v7372 = vunpack.c.l.b16 %v4378
        %v7373 = vunpack.c.l.b16 %v4379
        %v7374 = vunpack.c.h.b16 %v4379
        %v7375 = vunpack.c.l.b16 %v4380
        %v7376 = vunpack.c.l.b16 %v4381
        %v7377 = vunpack.c.h.b16 %v4381
        %v7378 = vunpack.c.l.b16 %v4382
        %v7379 = vunpack.c.l.b16 %v4383
        %v7380 = vunpack.c.h.b16 %v4383
        %v7381 = vunpack.c.l.b16 %v4384
        %v7382 = vunpack.c.l.b16 %v4385
        %v7383 = vunpack.c.h.b16 %v4385
        %v7384 = vunpack.c.l.b16 %v4386
        %v7385 = vunpack.c.l.b16 %v4387
        %v7386 = vunpack.c.h.b16 %v4387
        %v7387 = vunpack.c.l.b16 %v4388
        %v7388 = vunpack.c.l.b16 %v4389
        %v7389 = vunpack.c.h.b16 %v4389
        %v7390 = vunpack.c.l.b16 %v4390
        %v7391 = vpack.c.b16 %v5954, %v5951
        %v7392 = vpack.c.b16 %v5955, %v5952
        %v7393 = vpack.c.b16 %v5956, %v5953
        %v7394 = vpack.c.b16 %v5960, %v5957
        %v7395 = vpack.c.b16 %v5961, %v5958
        %v7396 = vpack.c.b16 %v5962, %v5959
        %v7397 = vpack.c.b16 %v5966, %v5963
        %v7398 = vpack.c.b16 %v5967, %v5964
        %v7399 = vpack.c.b16 %v5968, %v5965
        %v7400 = vpack.c.b16 %v5972, %v5969
        %v7401 = vpack.c.b16 %v5973, %v5970
        %v7402 = vpack.c.b16 %v5974, %v5971
        %v7403 = vpack.c.b16 %v5978, %v5975
        %v7404 = vpack.c.b16 %v5979, %v5976
        %v7405 = vpack.c.b16 %v5980, %v5977
        %v7406 = vpack.c.b16 %v5984, %v5981
        %v7407 = vpack.c.b16 %v5985, %v5982
        %v7408 = vpack.c.b16 %v5986, %v5983
        %v7409 = vpack.c.b16 %v5990, %v5987
        %v7410 = vpack.c.b16 %v5991, %v5988
        %v7411 = vpack.c.b16 %v5992, %v5989
        %v7412 = vpack.c.b16 %v5996, %v5993
        %v7413 = vpack.c.b16 %v5997, %v5994
        %v7414 = vpack.c.b16 %v5998, %v5995
        %v7415 = vpack.c.b16 %v6002, %v5999
        %v7416 = vpack.c.b16 %v6003, %v6000
        %v7417 = vpack.c.b16 %v6004, %v6001
        %v7418 = vpack.c.b16 %v6008, %v6005
        %v7419 = vpack.c.b16 %v6009, %v6006
        %v7420 = vpack.c.b16 %v6010, %v6007
        %v7421 = vpack.c.b16 %v6014, %v6011
        %v7422 = vpack.c.b16 %v6015, %v6012
        %v7423 = vpack.c.b16 %v6016, %v6013
        %v7424 = vpack.c.b16 %v6020, %v6017
        %v7425 = vpack.c.b16 %v6021, %v6018
        %v7426 = vpack.c.b16 %v6022, %v6019
        %v7427 = vpack.c.b16 %v6026, %v6023
        %v7428 = vpack.c.b16 %v6027, %v6024
        %v7429 = vpack.c.b16 %v6028, %v6025
        %v7430 = vpack.c.b16 %v6032, %v6029
        %v7431 = vpack.c.b16 %v6033, %v6030
        %v7432 = vpack.c.b16 %v6034, %v6031
        %v7433 = vpack.c.b16 %v6038, %v6035
        %v7434 = vpack.c.b16 %v6039, %v6036
        %v7435 = vpack.c.b16 %v6040, %v6037
        %v7436 = vpack.c.b16 %v6044, %v6041
        %v7437 = vpack.c.b16 %v6045, %v6042
        %v7438 = vpack.c.b16 %v6046, %v6043
        %v7439 = vpack.c.b16 %v6050, %v6047
        %v7440 = vpack.c.b16 %v6051, %v6048
        %v7441 = vpack.c.b16 %v6052, %v6049
        %v7442 = vpack.c.b16 %v6056, %v6053
        %v7443 = vpack.c.b16 %v6057, %v6054
        %v7444 = vpack.c.b16 %v6058, %v6055
        %v7445 = vpack.c.b16 %v6062, %v6059
        %v7446 = vpack.c.b16 %v6063, %v6060
        %v7447 = vpack.c.b16 %v6064, %v6061
        %v7448 = vpack.c.b16 %v6068, %v6065
        %v7449 = vpack.c.b16 %v6069, %v6066
        %v7450 = vpack.c.b16 %v6070, %v6067
        %v7451 = vpack.c.b16 %v6074, %v6071
        %v7452 = vpack.c.b16 %v6075, %v6072
        %v7453 = vpack.c.b16 %v6076, %v6073
        %v7454 = vpack.c.b16 %v6080, %v6077
        %v7455 = vpack.c.b16 %v6081, %v6078
        %v7456 = vpack.c.b16 %v6082, %v6079
        %v7457 = vpack.c.b16 %v6086, %v6083
        %v7458 = vpack.c.b16 %v6087, %v6084
        %v7459 = vpack.c.b16 %v6088, %v6085
        %v7460 = vpack.c.b16 %v6092, %v6089
        %v7461 = vpack.c.b16 %v6093, %v6090
        %v7462 = vpack.c.b16 %v6094, %v6091
        %v7463 = vpack.c.b16 %v6098, %v6095
        %v7464 = vpack.c.b16 %v6099, %v6096
        %v7465 = vpack.c.b16 %v6100, %v6097
        %v7466 = vpack.c.b16 %v6104, %v6101
        %v7467 = vpack.c.b16 %v6105, %v6102
        %v7468 = vpack.c.b16 %v6106, %v6103
        %v7469 = vpack.c.b16 %v6110, %v6107
        %v7470 = vpack.c.b16 %v6111, %v6108
        %v7471 = vpack.c.b16 %v6112, %v6109
        %v7472 = vpack.c.b16 %v6116, %v6113
        %v7473 = vpack.c.b16 %v6117, %v6114
        %v7474 = vpack.c.b16 %v6118, %v6115
        %v7475 = vpack.c.b16 %v6122, %v6119
        %v7476 = vpack.c.b16 %v6123, %v6120
        %v7477 = vpack.c.b16 %v6124, %v6121
        %v7478 = vpack.c.b16 %v6128, %v6125
        %v7479 = vpack.c.b16 %v6129, %v6126
        %v7480 = vpack.c.b16 %v6130, %v6127
        %v7481 = vpack.c.b16 %v6134, %v6131
        %v7482 = vpack.c.b16 %v6135, %v6132
        %v7483 = vpack.c.b16 %v6136, %v6133
        %v7484 = vpack.c.b16 %v6140, %v6137
        %v7485 = vpack.c.b16 %v6141, %v6138
        %v7486 = vpack.c.b16 %v6142, %v6139
        %v7487 = vpack.c.b16 %v6146, %v6143
        %v7488 = vpack.c.b16 %v6147, %v6144
        %v7489 = vpack.c.b16 %v6148, %v6145
        %v7490 = vpack.c.b16 %v6152, %v6149
        %v7491 = vpack.c.b16 %v6153, %v6150
        %v7492 = vpack.c.b16 %v6154, %v6151
        %v7493 = vpack.c.b16 %v6158, %v6155
        %v7494 = vpack.c.b16 %v6159, %v6156
        %v7495 = vpack.c.b16 %v6160, %v6157
        %v7496 = vpack.c.b16 %v6164, %v6161
        %v7497 = vpack.c.b16 %v6165, %v6162
        %v7498 = vpack.c.b16 %v6166, %v6163
        %v7499 = vpack.c.b16 %v6170, %v6167
        %v7500 = vpack.c.b16 %v6171, %v6168
        %v7501 = vpack.c.b16 %v6172, %v6169
        %v7502 = vpack.c.b16 %v6176, %v6173
        %v7503 = vpack.c.b16 %v6177, %v6174
        %v7504 = vpack.c.b16 %v6178, %v6175
        %v7505 = vpack.c.b16 %v6182, %v6179
        %v7506 = vpack.c.b16 %v6183, %v6180
        %v7507 = vpack.c.b16 %v6184, %v6181
        %v7508 = vpack.c.b16 %v6188, %v6185
        %v7509 = vpack.c.b16 %v6189, %v6186
        %v7510 = vpack.c.b16 %v6190, %v6187
        %v7511 = vpack.c.b16 %v6194, %v6191
        %v7512 = vpack.c.b16 %v6195, %v6192
        %v7513 = vpack.c.b16 %v6196, %v6193
        %v7514 = vpack.c.b16 %v6200, %v6197
        %v7515 = vpack.c.b16 %v6201, %v6198
        %v7516 = vpack.c.b16 %v6202, %v6199
        %v7517 = vpack.c.b16 %v6206, %v6203
        %v7518 = vpack.c.b16 %v6207, %v6204
        %v7519 = vpack.c.b16 %v6208, %v6205
        %v7520 = vpack.c.b16 %v6212, %v6209
        %v7521 = vpack.c.b16 %v6213, %v6210
        %v7522 = vpack.c.b16 %v6214, %v6211
        %v7523 = vpack.c.b16 %v6218, %v6215
        %v7524 = vpack.c.b16 %v6219, %v6216
        %v7525 = vpack.c.b16 %v6220, %v6217
        %v7526 = vpack.c.b16 %v6224, %v6221
        %v7527 = vpack.c.b16 %v6225, %v6222
        %v7528 = vpack.c.b16 %v6226, %v6223
        %v7529 = vpack.c.b16 %v6230, %v6227
        %v7530 = vpack.c.b16 %v6231, %v6228
        %v7531 = vpack.c.b16 %v6232, %v6229
        %v7532 = vpack.c.b16 %v6236, %v6233
        %v7533 = vpack.c.b16 %v6237, %v6234
        %v7534 = vpack.c.b16 %v6238, %v6235
        %v7535 = vpack.c.b16 %v6242, %v6239
        %v7536 = vpack.c.b16 %v6243, %v6240
        %v7537 = vpack.c.b16 %v6244, %v6241
        %v7538 = vpack.c.b16 %v6248, %v6245
        %v7539 = vpack.c.b16 %v6249, %v6246
        %v7540 = vpack.c.b16 %v6250, %v6247
        %v7541 = vpack.c.b16 %v6254, %v6251
        %v7542 = vpack.c.b16 %v6255, %v6252
        %v7543 = vpack.c.b16 %v6256, %v6253
        %v7544 = vpack.c.b16 %v6260, %v6257
        %v7545 = vpack.c.b16 %v6261, %v6258
        %v7546 = vpack.c.b16 %v6262, %v6259
        %v7547 = vpack.c.b16 %v6266, %v6263
        %v7548 = vpack.c.b16 %v6267, %v6264
        %v7549 = vpack.c.b16 %v6268, %v6265
        %v7550 = vpack.c.b16 %v6272, %v6269
        %v7551 = vpack.c.b16 %v6273, %v6270
        %v7552 = vpack.c.b16 %v6274, %v6271
        %v7553 = vpack.c.b16 %v6278, %v6275
        %v7554 = vpack.c.b16 %v6279, %v6276
        %v7555 = vpack.c.b16 %v6280, %v6277
        %v7556 = vpack.c.b16 %v6284, %v6281
        %v7557 = vpack.c.b16 %v6285, %v6282
        %v7558 = vpack.c.b16 %v6286, %v6283
        %v7559 = vpack.c.b16 %v6290, %v6287
        %v7560 = vpack.c.b16 %v6291, %v6288
        %v7561 = vpack.c.b16 %v6292, %v6289
        %v7562 = vpack.c.b16 %v6296, %v6293
        %v7563 = vpack.c.b16 %v6297, %v6294
        %v7564 = vpack.c.b16 %v6298, %v6295
        %v7565 = vpack.c.b16 %v6302, %v6299
        %v7566 = vpack.c.b16 %v6303, %v6300
        %v7567 = vpack.c.b16 %v6304, %v6301
        %v7568 = vpack.c.b16 %v6308, %v6305
        %v7569 = vpack.c.b16 %v6309, %v6306
        %v7570 = vpack.c.b16 %v6310, %v6307
        %v7571 = vpack.c.b16 %v6314, %v6311
        %v7572 = vpack.c.b16 %v6315, %v6312
        %v7573 = vpack.c.b16 %v6316, %v6313
        %v7574 = vpack.c.b16 %v6320, %v6317
        %v7575 = vpack.c.b16 %v6321, %v6318
        %v7576 = vpack.c.b16 %v6322, %v6319
        %v7577 = vpack.c.b16 %v6326, %v6323
        %v7578 = vpack.c.b16 %v6327, %v6324
        %v7579 = vpack.c.b16 %v6328, %v6325
        %v7580 = vpack.c.b16 %v6332, %v6329
        %v7581 = vpack.c.b16 %v6333, %v6330
        %v7582 = vpack.c.b16 %v6334, %v6331
        %v7583 = vpack.c.b16 %v6338, %v6335
        %v7584 = vpack.c.b16 %v6339, %v6336
        %v7585 = vpack.c.b16 %v6340, %v6337
        %v7586 = vpack.c.b16 %v6344, %v6341
        %v7587 = vpack.c.b16 %v6345, %v6342
        %v7588 = vpack.c.b16 %v6346, %v6343
        %v7589 = vpack.c.b16 %v6350, %v6347
        %v7590 = vpack.c.b16 %v6351, %v6348
        %v7591 = vpack.c.b16 %v6352, %v6349
        %v7592 = vpack.c.b16 %v6356, %v6353
        %v7593 = vpack.c.b16 %v6357, %v6354
        %v7594 = vpack.c.b16 %v6358, %v6355
        %v7595 = vpack.c.b16 %v6362, %v6359
        %v7596 = vpack.c.b16 %v6363, %v6360
        %v7597 = vpack.c.b16 %v6364, %v6361
        %v7598 = vpack.c.b16 %v6368, %v6365
        %v7599 = vpack.c.b16 %v6369, %v6366
        %v7600 = vpack.c.b16 %v6370, %v6367
        %v7601 = vpack.c.b16 %v6374, %v6371
        %v7602 = vpack.c.b16 %v6375, %v6372
        %v7603 = vpack.c.b16 %v6376, %v6373
        %v7604 = vpack.c.b16 %v6380, %v6377
        %v7605 = vpack.c.b16 %v6381, %v6378
        %v7606 = vpack.c.b16 %v6382, %v6379
        %v7607 = vpack.c.b16 %v6386, %v6383
        %v7608 = vpack.c.b16 %v6387, %v6384
        %v7609 = vpack.c.b16 %v6388, %v6385
        %v7610 = vpack.c.b16 %v6392, %v6389
        %v7611 = vpack.c.b16 %v6393, %v6390
        %v7612 = vpack.c.b16 %v6394, %v6391
        %v7613 = vpack.c.b16 %v6398, %v6395
        %v7614 = vpack.c.b16 %v6399, %v6396
        %v7615 = vpack.c.b16 %v6400, %v6397
        %v7616 = vpack.c.b16 %v6404, %v6401
        %v7617 = vpack.c.b16 %v6405, %v6402
        %v7618 = vpack.c.b16 %v6406, %v6403
        %v7619 = vpack.c.b16 %v6410, %v6407
        %v7620 = vpack.c.b16 %v6411, %v6408
        %v7621 = vpack.c.b16 %v6412, %v6409
        %v7622 = vpack.c.b16 %v6416, %v6413
        %v7623 = vpack.c.b16 %v6417, %v6414
        %v7624 = vpack.c.b16 %v6418, %v6415
        %v7625 = vpack.c.b16 %v6422, %v6419
        %v7626 = vpack.c.b16 %v6423, %v6420
        %v7627 = vpack.c.b16 %v6424, %v6421
        %v7628 = vpack.c.b16 %v6428, %v6425
        %v7629 = vpack.c.b16 %v6429, %v6426
        %v7630 = vpack.c.b16 %v6430, %v6427
        %v7631 = vpack.c.b16 %v6434, %v6431
        %v7632 = vpack.c.b16 %v6435, %v6432
        %v7633 = vpack.c.b16 %v6436, %v6433
        %v7634 = vpack.c.b16 %v6440, %v6437
        %v7635 = vpack.c.b16 %v6441, %v6438
        %v7636 = vpack.c.b16 %v6442, %v6439
        %v7637 = vpack.c.b16 %v6446, %v6443
        %v7638 = vpack.c.b16 %v6447, %v6444
        %v7639 = vpack.c.b16 %v6448, %v6445
        %v7640 = vpack.c.b16 %v6452, %v6449
        %v7641 = vpack.c.b16 %v6453, %v6450
        %v7642 = vpack.c.b16 %v6454, %v6451
        %v7643 = vpack.c.b16 %v6458, %v6455
        %v7644 = vpack.c.b16 %v6459, %v6456
        %v7645 = vpack.c.b16 %v6460, %v6457
        %v7646 = vpack.c.b16 %v6464, %v6461
        %v7647 = vpack.c.b16 %v6465, %v6462
        %v7648 = vpack.c.b16 %v6466, %v6463
        %v7649 = vpack.c.b16 %v6470, %v6467
        %v7650 = vpack.c.b16 %v6471, %v6468
        %v7651 = vpack.c.b16 %v6472, %v6469
        %v7652 = vpack.c.b16 %v6476, %v6473
        %v7653 = vpack.c.b16 %v6477, %v6474
        %v7654 = vpack.c.b16 %v6478, %v6475
        %v7655 = vpack.c.b16 %v6482, %v6479
        %v7656 = vpack.c.b16 %v6483, %v6480
        %v7657 = vpack.c.b16 %v6484, %v6481
        %v7658 = vpack.c.b16 %v6488, %v6485
        %v7659 = vpack.c.b16 %v6489, %v6486
        %v7660 = vpack.c.b16 %v6490, %v6487
        %v7661 = vpack.c.b16 %v6494, %v6491
        %v7662 = vpack.c.b16 %v6495, %v6492
        %v7663 = vpack.c.b16 %v6496, %v6493
        %v7664 = vpack.c.b16 %v6500, %v6497
        %v7665 = vpack.c.b16 %v6501, %v6498
        %v7666 = vpack.c.b16 %v6502, %v6499
        %v7667 = vpack.c.b16 %v6506, %v6503
        %v7668 = vpack.c.b16 %v6507, %v6504
        %v7669 = vpack.c.b16 %v6508, %v6505
        %v7670 = vpack.c.b16 %v6512, %v6509
        %v7671 = vpack.c.b16 %v6513, %v6510
        %v7672 = vpack.c.b16 %v6514, %v6511
        %v7673 = vpack.c.b16 %v6518, %v6515
        %v7674 = vpack.c.b16 %v6519, %v6516
        %v7675 = vpack.c.b16 %v6520, %v6517
        %v7676 = vpack.c.b16 %v6524, %v6521
        %v7677 = vpack.c.b16 %v6525, %v6522
        %v7678 = vpack.c.b16 %v6526, %v6523
        %v7679 = vpack.c.b16 %v6530, %v6527
        %v7680 = vpack.c.b16 %v6531, %v6528
        %v7681 = vpack.c.b16 %v6532, %v6529
        %v7682 = vpack.c.b16 %v6536, %v6533
        %v7683 = vpack.c.b16 %v6537, %v6534
        %v7684 = vpack.c.b16 %v6538, %v6535
        %v7685 = vpack.c.b16 %v6542, %v6539
        %v7686 = vpack.c.b16 %v6543, %v6540
        %v7687 = vpack.c.b16 %v6544, %v6541
        %v7688 = vpack.c.b16 %v6548, %v6545
        %v7689 = vpack.c.b16 %v6549, %v6546
        %v7690 = vpack.c.b16 %v6550, %v6547
        %v7691 = vpack.c.b16 %v6554, %v6551
        %v7692 = vpack.c.b16 %v6555, %v6552
        %v7693 = vpack.c.b16 %v6556, %v6553
        %v7694 = vpack.c.b16 %v6560, %v6557
        %v7695 = vpack.c.b16 %v6561, %v6558
        %v7696 = vpack.c.b16 %v6562, %v6559
        %v7697 = vpack.c.b16 %v6566, %v6563
        %v7698 = vpack.c.b16 %v6567, %v6564
        %v7699 = vpack.c.b16 %v6568, %v6565
        %v7700 = vpack.c.b16 %v6572, %v6569
        %v7701 = vpack.c.b16 %v6573, %v6570
        %v7702 = vpack.c.b16 %v6574, %v6571
        %v7703 = vpack.c.b16 %v6578, %v6575
        %v7704 = vpack.c.b16 %v6579, %v6576
        %v7705 = vpack.c.b16 %v6580, %v6577
        %v7706 = vpack.c.b16 %v6584, %v6581
        %v7707 = vpack.c.b16 %v6585, %v6582
        %v7708 = vpack.c.b16 %v6586, %v6583
        %v7709 = vpack.c.b16 %v6590, %v6587
        %v7710 = vpack.c.b16 %v6591, %v6588
        %v7711 = vpack.c.b16 %v6592, %v6589
        %v7712 = vpack.c.b16 %v6596, %v6593
        %v7713 = vpack.c.b16 %v6597, %v6594
        %v7714 = vpack.c.b16 %v6598, %v6595
        %v7715 = vpack.c.b16 %v6602, %v6599
        %v7716 = vpack.c.b16 %v6603, %v6600
        %v7717 = vpack.c.b16 %v6604, %v6601
        %v7718 = vpack.c.b16 %v6608, %v6605
        %v7719 = vpack.c.b16 %v6609, %v6606
        %v7720 = vpack.c.b16 %v6610, %v6607
        %v7721 = vpack.c.b16 %v6614, %v6611
        %v7722 = vpack.c.b16 %v6615, %v6612
        %v7723 = vpack.c.b16 %v6616, %v6613
        %v7724 = vpack.c.b16 %v6620, %v6617
        %v7725 = vpack.c.b16 %v6621, %v6618
        %v7726 = vpack.c.b16 %v6622, %v6619
        %v7727 = vpack.c.b16 %v6626, %v6623
        %v7728 = vpack.c.b16 %v6627, %v6624
        %v7729 = vpack.c.b16 %v6628, %v6625
        %v7730 = vpack.c.b16 %v6632, %v6629
        %v7731 = vpack.c.b16 %v6633, %v6630
        %v7732 = vpack.c.b16 %v6634, %v6631
        %v7733 = vpack.c.b16 %v6638, %v6635
        %v7734 = vpack.c.b16 %v6639, %v6636
        %v7735 = vpack.c.b16 %v6640, %v6637
        %v7736 = vpack.c.b16 %v6644, %v6641
        %v7737 = vpack.c.b16 %v6645, %v6642
        %v7738 = vpack.c.b16 %v6646, %v6643
        %v7739 = vpack.c.b16 %v6650, %v6647
        %v7740 = vpack.c.b16 %v6651, %v6648
        %v7741 = vpack.c.b16 %v6652, %v6649
        %v7742 = vpack.c.b16 %v6656, %v6653
        %v7743 = vpack.c.b16 %v6657, %v6654
        %v7744 = vpack.c.b16 %v6658, %v6655
        %v7745 = vpack.c.b16 %v6662, %v6659
        %v7746 = vpack.c.b16 %v6663, %v6660
        %v7747 = vpack.c.b16 %v6664, %v6661
        %v7748 = vpack.c.b16 %v6668, %v6665
        %v7749 = vpack.c.b16 %v6669, %v6666
        %v7750 = vpack.c.b16 %v6670, %v6667
        %v7751 = vpack.c.b16 %v6674, %v6671
        %v7752 = vpack.c.b16 %v6675, %v6672
        %v7753 = vpack.c.b16 %v6676, %v6673
        %v7754 = vpack.c.b16 %v6680, %v6677
        %v7755 = vpack.c.b16 %v6681, %v6678
        %v7756 = vpack.c.b16 %v6682, %v6679
        %v7757 = vpack.c.b16 %v6686, %v6683
        %v7758 = vpack.c.b16 %v6687, %v6684
        %v7759 = vpack.c.b16 %v6688, %v6685
        %v7760 = vpack.c.b16 %v6692, %v6689
        %v7761 = vpack.c.b16 %v6693, %v6690
        %v7762 = vpack.c.b16 %v6694, %v6691
        %v7763 = vpack.c.b16 %v6698, %v6695
        %v7764 = vpack.c.b16 %v6699, %v6696
        %v7765 = vpack.c.b16 %v6700, %v6697
        %v7766 = vpack.c.b16 %v6704, %v6701
        %v7767 = vpack.c.b16 %v6705, %v6702
        %v7768 = vpack.c.b16 %v6706, %v6703
        %v7769 = vpack.c.b16 %v6710, %v6707
        %v7770 = vpack.c.b16 %v6711, %v6708
        %v7771 = vpack.c.b16 %v6712, %v6709
        %v7772 = vpack.c.b16 %v6716, %v6713
        %v7773 = vpack.c.b16 %v6717, %v6714
        %v7774 = vpack.c.b16 %v6718, %v6715
        %v7775 = vpack.c.b16 %v6722, %v6719
        %v7776 = vpack.c.b16 %v6723, %v6720
        %v7777 = vpack.c.b16 %v6724, %v6721
        %v7778 = vpack.c.b16 %v6728, %v6725
        %v7779 = vpack.c.b16 %v6729, %v6726
        %v7780 = vpack.c.b16 %v6730, %v6727
        %v7781 = vpack.c.b16 %v6734, %v6731
        %v7782 = vpack.c.b16 %v6735, %v6732
        %v7783 = vpack.c.b16 %v6736, %v6733
        %v7784 = vpack.c.b16 %v6740, %v6737
        %v7785 = vpack.c.b16 %v6741, %v6738
        %v7786 = vpack.c.b16 %v6742, %v6739
        %v7787 = vpack.c.b16 %v6746, %v6743
        %v7788 = vpack.c.b16 %v6747, %v6744
        %v7789 = vpack.c.b16 %v6748, %v6745
        %v7790 = vpack.c.b16 %v6752, %v6749
        %v7791 = vpack.c.b16 %v6753, %v6750
        %v7792 = vpack.c.b16 %v6754, %v6751
        %v7793 = vpack.c.b16 %v6758, %v6755
        %v7794 = vpack.c.b16 %v6759, %v6756
        %v7795 = vpack.c.b16 %v6760, %v6757
        %v7796 = vpack.c.b16 %v6764, %v6761
        %v7797 = vpack.c.b16 %v6765, %v6762
        %v7798 = vpack.c.b16 %v6766, %v6763
        %v7799 = vpack.c.b16 %v6770, %v6767
        %v7800 = vpack.c.b16 %v6771, %v6768
        %v7801 = vpack.c.b16 %v6772, %v6769
        %v7802 = vpack.c.b16 %v6776, %v6773
        %v7803 = vpack.c.b16 %v6777, %v6774
        %v7804 = vpack.c.b16 %v6778, %v6775
        %v7805 = vpack.c.b16 %v6782, %v6779
        %v7806 = vpack.c.b16 %v6783, %v6780
        %v7807 = vpack.c.b16 %v6784, %v6781
        %v7808 = vpack.c.b16 %v6788, %v6785
        %v7809 = vpack.c.b16 %v6789, %v6786
        %v7810 = vpack.c.b16 %v6790, %v6787
        %v7811 = vpack.c.b16 %v6794, %v6791
        %v7812 = vpack.c.b16 %v6795, %v6792
        %v7813 = vpack.c.b16 %v6796, %v6793
        %v7814 = vpack.c.b16 %v6800, %v6797
        %v7815 = vpack.c.b16 %v6801, %v6798
        %v7816 = vpack.c.b16 %v6802, %v6799
        %v7817 = vpack.c.b16 %v6806, %v6803
        %v7818 = vpack.c.b16 %v6807, %v6804
        %v7819 = vpack.c.b16 %v6808, %v6805
        %v7820 = vpack.c.b16 %v6812, %v6809
        %v7821 = vpack.c.b16 %v6813, %v6810
        %v7822 = vpack.c.b16 %v6814, %v6811
        %v7823 = vpack.c.b16 %v6818, %v6815
        %v7824 = vpack.c.b16 %v6819, %v6816
        %v7825 = vpack.c.b16 %v6820, %v6817
        %v7826 = vpack.c.b16 %v6824, %v6821
        %v7827 = vpack.c.b16 %v6825, %v6822
        %v7828 = vpack.c.b16 %v6826, %v6823
        %v7829 = vpack.c.b16 %v6830, %v6827
        %v7830 = vpack.c.b16 %v6831, %v6828
        %v7831 = vpack.c.b16 %v6832, %v6829
        %v7832 = vpack.c.b16 %v6836, %v6833
        %v7833 = vpack.c.b16 %v6837, %v6834
        %v7834 = vpack.c.b16 %v6838, %v6835
        %v7835 = vpack.c.b16 %v6842, %v6839
        %v7836 = vpack.c.b16 %v6843, %v6840
        %v7837 = vpack.c.b16 %v6844, %v6841
        %v7838 = vpack.c.b16 %v6848, %v6845
        %v7839 = vpack.c.b16 %v6849, %v6846
        %v7840 = vpack.c.b16 %v6850, %v6847
        %v7841 = vpack.c.b16 %v6854, %v6851
        %v7842 = vpack.c.b16 %v6855, %v6852
        %v7843 = vpack.c.b16 %v6856, %v6853
        %v7844 = vpack.c.b16 %v6860, %v6857
        %v7845 = vpack.c.b16 %v6861, %v6858
        %v7846 = vpack.c.b16 %v6862, %v6859
        %v7847 = vpack.c.b16 %v6866, %v6863
        %v7848 = vpack.c.b16 %v6867, %v6864
        %v7849 = vpack.c.b16 %v6868, %v6865
        %v7850 = vpack.c.b16 %v6872, %v6869
        %v7851 = vpack.c.b16 %v6873, %v6870
        %v7852 = vpack.c.b16 %v6874, %v6871
        %v7853 = vpack.c.b16 %v6878, %v6875
        %v7854 = vpack.c.b16 %v6879, %v6876
        %v7855 = vpack.c.b16 %v6880, %v6877
        %v7856 = vpack.c.b16 %v6884, %v6881
        %v7857 = vpack.c.b16 %v6885, %v6882
        %v7858 = vpack.c.b16 %v6886, %v6883
        %v7859 = vpack.c.b16 %v6890, %v6887
        %v7860 = vpack.c.b16 %v6891, %v6888
        %v7861 = vpack.c.b16 %v6892, %v6889
        %v7862 = vpack.c.b16 %v6896, %v6893
        %v7863 = vpack.c.b16 %v6897, %v6894
        %v7864 = vpack.c.b16 %v6898, %v6895
        %v7865 = vpack.c.b16 %v6902, %v6899
        %v7866 = vpack.c.b16 %v6903, %v6900
        %v7867 = vpack.c.b16 %v6904, %v6901
        %v7868 = vpack.c.b16 %v6908, %v6905
        %v7869 = vpack.c.b16 %v6909, %v6906
        %v7870 = vpack.c.b16 %v6910, %v6907
        %v7871 = vpack.c.b16 %v6914, %v6911
        %v7872 = vpack.c.b16 %v6915, %v6912
        %v7873 = vpack.c.b16 %v6916, %v6913
        %v7874 = vpack.c.b16 %v6920, %v6917
        %v7875 = vpack.c.b16 %v6921, %v6918
        %v7876 = vpack.c.b16 %v6922, %v6919
        %v7877 = vpack.c.b16 %v6926, %v6923
        %v7878 = vpack.c.b16 %v6927, %v6924
        %v7879 = vpack.c.b16 %v6928, %v6925
        %v7880 = vpack.c.b16 %v6932, %v6929
        %v7881 = vpack.c.b16 %v6933, %v6930
        %v7882 = vpack.c.b16 %v6934, %v6931
        %v7883 = vpack.c.b16 %v6938, %v6935
        %v7884 = vpack.c.b16 %v6939, %v6936
        %v7885 = vpack.c.b16 %v6940, %v6937
        %v7886 = vpack.c.b16 %v6944, %v6941
        %v7887 = vpack.c.b16 %v6945, %v6942
        %v7888 = vpack.c.b16 %v6946, %v6943
        %v7889 = vpack.c.b16 %v6950, %v6947
        %v7890 = vpack.c.b16 %v6951, %v6948
        %v7891 = vpack.c.b16 %v6952, %v6949
        %v7892 = vpack.c.b16 %v6956, %v6953
        %v7893 = vpack.c.b16 %v6957, %v6954
        %v7894 = vpack.c.b16 %v6958, %v6955
        %v7895 = vpack.c.b16 %v6962, %v6959
        %v7896 = vpack.c.b16 %v6963, %v6960
        %v7897 = vpack.c.b16 %v6964, %v6961
        %v7898 = vpack.c.b16 %v6968, %v6965
        %v7899 = vpack.c.b16 %v6969, %v6966
        %v7900 = vpack.c.b16 %v6970, %v6967
        %v7901 = vpack.c.b16 %v6974, %v6971
        %v7902 = vpack.c.b16 %v6975, %v6972
        %v7903 = vpack.c.b16 %v6976, %v6973
        %v7904 = vpack.c.b16 %v6980, %v6977
        %v7905 = vpack.c.b16 %v6981, %v6978
        %v7906 = vpack.c.b16 %v6982, %v6979
        %v7907 = vpack.c.b16 %v6986, %v6983
        %v7908 = vpack.c.b16 %v6987, %v6984
        %v7909 = vpack.c.b16 %v6988, %v6985
        %v7910 = vpack.c.b16 %v6992, %v6989
        %v7911 = vpack.c.b16 %v6993, %v6990
        %v7912 = vpack.c.b16 %v6994, %v6991
        %v7913 = vpack.c.b16 %v6998, %v6995
        %v7914 = vpack.c.b16 %v6999, %v6996
        %v7915 = vpack.c.b16 %v7000, %v6997
        %v7916 = vpack.c.b16 %v7004, %v7001
        %v7917 = vpack.c.b16 %v7005, %v7002
        %v7918 = vpack.c.b16 %v7006, %v7003
        %v7919 = vpack.c.b16 %v7010, %v7007
        %v7920 = vpack.c.b16 %v7011, %v7008
        %v7921 = vpack.c.b16 %v7012, %v7009
        %v7922 = vpack.c.b16 %v7016, %v7013
        %v7923 = vpack.c.b16 %v7017, %v7014
        %v7924 = vpack.c.b16 %v7018, %v7015
        %v7925 = vpack.c.b16 %v7022, %v7019
        %v7926 = vpack.c.b16 %v7023, %v7020
        %v7927 = vpack.c.b16 %v7024, %v7021
        %v7928 = vpack.c.b16 %v7028, %v7025
        %v7929 = vpack.c.b16 %v7029, %v7026
        %v7930 = vpack.c.b16 %v7030, %v7027
        %v7931 = vpack.c.b16 %v7034, %v7031
        %v7932 = vpack.c.b16 %v7035, %v7032
        %v7933 = vpack.c.b16 %v7036, %v7033
        %v7934 = vpack.c.b16 %v7040, %v7037
        %v7935 = vpack.c.b16 %v7041, %v7038
        %v7936 = vpack.c.b16 %v7042, %v7039
        %v7937 = vpack.c.b16 %v7046, %v7043
        %v7938 = vpack.c.b16 %v7047, %v7044
        %v7939 = vpack.c.b16 %v7048, %v7045
        %v7940 = vpack.c.b16 %v7052, %v7049
        %v7941 = vpack.c.b16 %v7053, %v7050
        %v7942 = vpack.c.b16 %v7054, %v7051
        %v7943 = vpack.c.b16 %v7058, %v7055
        %v7944 = vpack.c.b16 %v7059, %v7056
        %v7945 = vpack.c.b16 %v7060, %v7057
        %v7946 = vpack.c.b16 %v7064, %v7061
        %v7947 = vpack.c.b16 %v7065, %v7062
        %v7948 = vpack.c.b16 %v7066, %v7063
        %v7949 = vpack.c.b16 %v7070, %v7067
        %v7950 = vpack.c.b16 %v7071, %v7068
        %v7951 = vpack.c.b16 %v7072, %v7069
        %v7952 = vpack.c.b16 %v7076, %v7073
        %v7953 = vpack.c.b16 %v7077, %v7074
        %v7954 = vpack.c.b16 %v7078, %v7075
        %v7955 = vpack.c.b16 %v7082, %v7079
        %v7956 = vpack.c.b16 %v7083, %v7080
        %v7957 = vpack.c.b16 %v7084, %v7081
        %v7958 = vpack.c.b16 %v7088, %v7085
        %v7959 = vpack.c.b16 %v7089, %v7086
        %v7960 = vpack.c.b16 %v7090, %v7087
        %v7961 = vpack.c.b16 %v7094, %v7091
        %v7962 = vpack.c.b16 %v7095, %v7092
        %v7963 = vpack.c.b16 %v7096, %v7093
        %v7964 = vpack.c.b16 %v7100, %v7097
        %v7965 = vpack.c.b16 %v7101, %v7098
        %v7966 = vpack.c.b16 %v7102, %v7099
        %v7967 = vpack.c.b16 %v7106, %v7103
        %v7968 = vpack.c.b16 %v7107, %v7104
        %v7969 = vpack.c.b16 %v7108, %v7105
        %v7970 = vpack.c.b16 %v7112, %v7109
        %v7971 = vpack.c.b16 %v7113, %v7110
        %v7972 = vpack.c.b16 %v7114, %v7111
        %v7973 = vpack.c.b16 %v7118, %v7115
        %v7974 = vpack.c.b16 %v7119, %v7116
        %v7975 = vpack.c.b16 %v7120, %v7117
        %v7976 = vpack.c.b16 %v7124, %v7121
        %v7977 = vpack.c.b16 %v7125, %v7122
        %v7978 = vpack.c.b16 %v7126, %v7123
        %v7979 = vpack.c.b16 %v7130, %v7127
        %v7980 = vpack.c.b16 %v7131, %v7128
        %v7981 = vpack.c.b16 %v7132, %v7129
        %v7982 = vpack.c.b16 %v7136, %v7133
        %v7983 = vpack.c.b16 %v7137, %v7134
        %v7984 = vpack.c.b16 %v7138, %v7135
        %v7985 = vpack.c.b16 %v7142, %v7139
        %v7986 = vpack.c.b16 %v7143, %v7140
        %v7987 = vpack.c.b16 %v7144, %v7141
        %v7988 = vpack.c.b16 %v7148, %v7145
        %v7989 = vpack.c.b16 %v7149, %v7146
        %v7990 = vpack.c.b16 %v7150, %v7147
        %v7991 = vpack.c.b16 %v7154, %v7151
        %v7992 = vpack.c.b16 %v7155, %v7152
        %v7993 = vpack.c.b16 %v7156, %v7153
        %v7994 = vpack.c.b16 %v7160, %v7157
        %v7995 = vpack.c.b16 %v7161, %v7158
        %v7996 = vpack.c.b16 %v7162, %v7159
        %v7997 = vpack.c.b16 %v7166, %v7163
        %v7998 = vpack.c.b16 %v7167, %v7164
        %v7999 = vpack.c.b16 %v7168, %v7165
        %v8000 = vpack.c.b16 %v7172, %v7169
        %v8001 = vpack.c.b16 %v7173, %v7170
        %v8002 = vpack.c.b16 %v7174, %v7171
        %v8003 = vpack.c.b16 %v7178, %v7175
        %v8004 = vpack.c.b16 %v7179, %v7176
        %v8005 = vpack.c.b16 %v7180, %v7177
        %v8006 = vpack.c.b16 %v7184, %v7181
        %v8007 = vpack.c.b16 %v7185, %v7182
        %v8008 = vpack.c.b16 %v7186, %v7183
        %v8009 = vpack.c.b16 %v7190, %v7187
        %v8010 = vpack.c.b16 %v7191, %v7188
        %v8011 = vpack.c.b16 %v7192, %v7189
        %v8012 = vpack.c.b16 %v7196, %v7193
        %v8013 = vpack.c.b16 %v7197, %v7194
        %v8014 = vpack.c.b16 %v7198, %v7195
        %v8015 = vpack.c.b16 %v7202, %v7199
        %v8016 = vpack.c.b16 %v7203, %v7200
        %v8017 = vpack.c.b16 %v7204, %v7201
        %v8018 = vpack.c.b16 %v7208, %v7205
        %v8019 = vpack.c.b16 %v7209, %v7206
        %v8020 = vpack.c.b16 %v7210, %v7207
        %v8021 = vpack.c.b16 %v7214, %v7211
        %v8022 = vpack.c.b16 %v7215, %v7212
        %v8023 = vpack.c.b16 %v7216, %v7213
        %v8024 = vpack.c.b16 %v7220, %v7217
        %v8025 = vpack.c.b16 %v7221, %v7218
        %v8026 = vpack.c.b16 %v7222, %v7219
        %v8027 = vpack.c.b16 %v7226, %v7223
        %v8028 = vpack.c.b16 %v7227, %v7224
        %v8029 = vpack.c.b16 %v7228, %v7225
        %v8030 = vpack.c.b16 %v7232, %v7229
        %v8031 = vpack.c.b16 %v7233, %v7230
        %v8032 = vpack.c.b16 %v7234, %v7231
        %v8033 = vpack.c.b16 %v7238, %v7235
        %v8034 = vpack.c.b16 %v7239, %v7236
        %v8035 = vpack.c.b16 %v7240, %v7237
        %v8036 = vpack.c.b16 %v7244, %v7241
        %v8037 = vpack.c.b16 %v7245, %v7242
        %v8038 = vpack.c.b16 %v7246, %v7243
        %v8039 = vpack.c.b16 %v7250, %v7247
        %v8040 = vpack.c.b16 %v7251, %v7248
        %v8041 = vpack.c.b16 %v7252, %v7249
        %v8042 = vpack.c.b16 %v7256, %v7253
        %v8043 = vpack.c.b16 %v7257, %v7254
        %v8044 = vpack.c.b16 %v7258, %v7255
        %v8045 = vpack.c.b16 %v7262, %v7259
        %v8046 = vpack.c.b16 %v7263, %v7260
        %v8047 = vpack.c.b16 %v7264, %v7261
        %v8048 = vpack.c.b16 %v7268, %v7265
        %v8049 = vpack.c.b16 %v7269, %v7266
        %v8050 = vpack.c.b16 %v7270, %v7267
        %v8051 = vpack.c.b16 %v7274, %v7271
        %v8052 = vpack.c.b16 %v7275, %v7272
        %v8053 = vpack.c.b16 %v7276, %v7273
        %v8054 = vpack.c.b16 %v7280, %v7277
        %v8055 = vpack.c.b16 %v7281, %v7278
        %v8056 = vpack.c.b16 %v7282, %v7279
        %v8057 = vpack.c.b16 %v7286, %v7283
        %v8058 = vpack.c.b16 %v7287, %v7284
        %v8059 = vpack.c.b16 %v7288, %v7285
        %v8060 = vpack.c.b16 %v7292, %v7289
        %v8061 = vpack.c.b16 %v7293, %v7290
        %v8062 = vpack.c.b16 %v7294, %v7291
        %v8063 = vpack.c.b16 %v7298, %v7295
        %v8064 = vpack.c.b16 %v7299, %v7296
        %v8065 = vpack.c.b16 %v7300, %v7297
        %v8066 = vpack.c.b16 %v7304, %v7301
        %v8067 = vpack.c.b16 %v7305, %v7302
        %v8068 = vpack.c.b16 %v7306, %v7303
        %v8069 = vpack.c.b16 %v7310, %v7307
        %v8070 = vpack.c.b16 %v7311, %v7308
        %v8071 = vpack.c.b16 %v7312, %v7309
        %v8072 = vpack.c.b16 %v7316, %v7313
        %v8073 = vpack.c.b16 %v7317, %v7314
        %v8074 = vpack.c.b16 %v7318, %v7315
        %v8075 = vpack.c.b16 %v7322, %v7319
        %v8076 = vpack.c.b16 %v7323, %v7320
        %v8077 = vpack.c.b16 %v7324, %v7321
        %v8078 = vpack.c.b16 %v7328, %v7325
        %v8079 = vpack.c.b16 %v7329, %v7326
        %v8080 = vpack.c.b16 %v7330, %v7327
        %v8081 = vpack.c.b16 %v7334, %v7331
        %v8082 = vpack.c.b16 %v7335, %v7332
        %v8083 = vpack.c.b16 %v7336, %v7333
        %v8084 = vpack.c.b16 %v7340, %v7337
        %v8085 = vpack.c.b16 %v7341, %v7338
        %v8086 = vpack.c.b16 %v7342, %v7339
        %v8087 = vpack.c.b16 %v7346, %v7343
        %v8088 = vpack.c.b16 %v7347, %v7344
        %v8089 = vpack.c.b16 %v7348, %v7345
        %v8090 = vpack.c.b16 %v7352, %v7349
        %v8091 = vpack.c.b16 %v7353, %v7350
        %v8092 = vpack.c.b16 %v7354, %v7351
        %v8093 = vpack.c.b16 %v7358, %v7355
        %v8094 = vpack.c.b16 %v7359, %v7356
        %v8095 = vpack.c.b16 %v7360, %v7357
        %v8096 = vpack.c.b16 %v7364, %v7361
        %v8097 = vpack.c.b16 %v7365, %v7362
        %v8098 = vpack.c.b16 %v7366, %v7363
        %v8099 = vpack.c.b16 %v7370, %v7367
        %v8100 = vpack.c.b16 %v7371, %v7368
        %v8101 = vpack.c.b16 %v7372, %v7369
        %v8102 = vpack.c.b16 %v7376, %v7373
        %v8103 = vpack.c.b16 %v7377, %v7374
        %v8104 = vpack.c.b16 %v7378, %v7375
        %v8105 = vpack.c.b16 %v7382, %v7379
        %v8106 = vpack.c.b16 %v7383, %v7380
        %v8107 = vpack.c.b16 %v7384, %v7381
        %v8108 = vpack.c.b16 %v7388, %v7385
        %v8109 = vpack.c.b16 %v7389, %v7386
        %v8110 = vpack.c.b16 %v7390, %v7387
        %8831 = vmatpush.bf16.msra.mxu0 %v7412
        %8832 = vmatpush.bf16.msra.mxu0 %v7409
        %8833 = vmatpush.bf16.msra.mxu0 %v7406
        %8834 = vmatpush.bf16.msra.mxu0 %v7403
        %8835 = vmatpush.bf16.msra.mxu0 %v7400
        %8836 = vmatpush.bf16.msra.mxu0 %v7397
        %8837 = vmatpush.bf16.msra.mxu0 %v7394
        %8838 = vmatpush.bf16.msra.mxu0 %v7391
        %8839 = vmatmul.bf16.gmra.mxu0 %v4751
        %v8840 = vpop.f32.mrf.mxu0
        %v8841 = vadd.f32 0.0, %v8840
        %v8842 = vpop.f32.mrf.mxu0
        %v8843 = vadd.f32 0.0, %v8842
        %8844 = vmatmul.bf16.gmra.mxu0 %v4781
        %v8845 = vpop.f32.mrf.mxu0
        %v8846 = vadd.f32 0.0, %v8845
        %v8847 = vpop.f32.mrf.mxu0
        %v8848 = vadd.f32 0.0, %v8847
        %8849 = vmatmul.bf16.gmra.mxu0 %v4811
        %v8850 = vpop.f32.mrf.mxu0
        %v8851 = vadd.f32 0.0, %v8850
        %v8852 = vpop.f32.mrf.mxu0
        %v8853 = vadd.f32 0.0, %v8852
        %8854 = vmatmul.bf16.gmra.mxu0 %v4841
        %v8855 = vpop.f32.mrf.mxu0
        %v8856 = vadd.f32 0.0, %v8855
        %v8857 = vpop.f32.mrf.mxu0
        %v8858 = vadd.f32 0.0, %v8857
        %8859 = vdwg.mxu0
        %8860 = vmatpush.bf16.msra.mxu0 %v7436
        %8861 = vmatpush.bf16.msra.mxu0 %v7433
        %8862 = vmatpush.bf16.msra.mxu0 %v7430
        %8863 = vmatpush.bf16.msra.mxu0 %v7427
        %8864 = vmatpush.bf16.msra.mxu0 %v7424
        %8865 = vmatpush.bf16.msra.mxu0 %v7421
        %8866 = vmatpush.bf16.msra.mxu0 %v7418
        %8867 = vmatpush.bf16.msra.mxu0 %v7415
        %8868 = vmatmul.bf16.gmra.mxu0 %v4752
        %v8869 = vpop.f32.mrf.mxu0
        %v8870 = vadd.f32 %v8841, %v8869
        %v8871 = vpop.f32.mrf.mxu0
        %v8872 = vadd.f32 %v8843, %v8871
        %8873 = vmatmul.bf16.gmra.mxu0 %v4782
        %v8874 = vpop.f32.mrf.mxu0
        %v8875 = vadd.f32 %v8846, %v8874
        %v8876 = vpop.f32.mrf.mxu0
        %v8877 = vadd.f32 %v8848, %v8876
        %8878 = vmatmul.bf16.gmra.mxu0 %v4812
        %v8879 = vpop.f32.mrf.mxu0
        %v8880 = vadd.f32 %v8851, %v8879
        %v8881 = vpop.f32.mrf.mxu0
        %v8882 = vadd.f32 %v8853, %v8881
        %8883 = vmatmul.bf16.gmra.mxu0 %v4842
        %v8884 = vpop.f32.mrf.mxu0
        %v8885 = vadd.f32 %v8856, %v8884
        %v8886 = vpop.f32.mrf.mxu0
        %v8887 = vadd.f32 %v8858, %v8886
        %8888 = vdwg.mxu0
        %8889 = vmatpush.bf16.msra.mxu0 %v7460
        %8890 = vmatpush.bf16.msra.mxu0 %v7457
        %8891 = vmatpush.bf16.msra.mxu0 %v7454
        %8892 = vmatpush.bf16.msra.mxu0 %v7451
        %8893 = vmatpush.bf16.msra.mxu0 %v7448
        %8894 = vmatpush.bf16.msra.mxu0 %v7445
        %8895 = vmatpush.bf16.msra.mxu0 %v7442
        %8896 = vmatpush.bf16.msra.mxu0 %v7439
        %8897 = vmatmul.bf16.gmra.mxu0 %v4753
        %v8898 = vpop.f32.mrf.mxu0
        %v8899 = vadd.f32 %v8870, %v8898
        %v8900 = vpop.f32.mrf.mxu0
        %v8901 = vadd.f32 %v8872, %v8900
        %8902 = vmatmul.bf16.gmra.mxu0 %v4783
        %v8903 = vpop.f32.mrf.mxu0
        %v8904 = vadd.f32 %v8875, %v8903
        %v8905 = vpop.f32.mrf.mxu0
        %v8906 = vadd.f32 %v8877, %v8905
        %8907 = vmatmul.bf16.gmra.mxu0 %v4813
        %v8908 = vpop.f32.mrf.mxu0
        %v8909 = vadd.f32 %v8880, %v8908
        %v8910 = vpop.f32.mrf.mxu0
        %v8911 = vadd.f32 %v8882, %v8910
        %8912 = vmatmul.bf16.gmra.mxu0 %v4843
        %v8913 = vpop.f32.mrf.mxu0
        %v8914 = vadd.f32 %v8885, %v8913
        %v8915 = vpop.f32.mrf.mxu0
        %v8916 = vadd.f32 %v8887, %v8915
        %8917 = vdwg.mxu0
        %8918 = vmatpush.bf16.msra.mxu0 %v7484
        %8919 = vmatpush.bf16.msra.mxu0 %v7481
        %8920 = vmatpush.bf16.msra.mxu0 %v7478
        %8921 = vmatpush.bf16.msra.mxu0 %v7475
        %8922 = vmatpush.bf16.msra.mxu0 %v7472
        %8923 = vmatpush.bf16.msra.mxu0 %v7469
        %8924 = vmatpush.bf16.msra.mxu0 %v7466
        %8925 = vmatpush.bf16.msra.mxu0 %v7463
        %8926 = vmatmul.bf16.gmra.mxu0 %v4754
        %v8927 = vpop.f32.mrf.mxu0
        %v8928 = vadd.f32 %v8899, %v8927
        %v8929 = vpop.f32.mrf.mxu0
        %v8930 = vadd.f32 %v8901, %v8929
        %8931 = vmatmul.bf16.gmra.mxu0 %v4784
        %v8932 = vpop.f32.mrf.mxu0
        %v8933 = vadd.f32 %v8904, %v8932
        %v8934 = vpop.f32.mrf.mxu0
        %v8935 = vadd.f32 %v8906, %v8934
        %8936 = vmatmul.bf16.gmra.mxu0 %v4814
        %v8937 = vpop.f32.mrf.mxu0
        %v8938 = vadd.f32 %v8909, %v8937
        %v8939 = vpop.f32.mrf.mxu0
        %v8940 = vadd.f32 %v8911, %v8939
        %8941 = vmatmul.bf16.gmra.mxu0 %v4844
        %v8942 = vpop.f32.mrf.mxu0
        %v8943 = vadd.f32 %v8914, %v8942
        %v8944 = vpop.f32.mrf.mxu0
        %v8945 = vadd.f32 %v8916, %v8944
        %8946 = vdwg.mxu0
        %8947 = vmatpush.bf16.msra.mxu0 %v7508
        %8948 = vmatpush.bf16.msra.mxu0 %v7505
        %8949 = vmatpush.bf16.msra.mxu0 %v7502
        %8950 = vmatpush.bf16.msra.mxu0 %v7499
        %8951 = vmatpush.bf16.msra.mxu0 %v7496
        %8952 = vmatpush.bf16.msra.mxu0 %v7493
        %8953 = vmatpush.bf16.msra.mxu0 %v7490
        %8954 = vmatpush.bf16.msra.mxu0 %v7487
        %8955 = vmatmul.bf16.gmra.mxu0 %v4755
        %v8956 = vpop.f32.mrf.mxu0
        %v8957 = vadd.f32 %v8928, %v8956
        %v8958 = vpop.f32.mrf.mxu0
        %v8959 = vadd.f32 %v8930, %v8958
        %8960 = vmatmul.bf16.gmra.mxu0 %v4785
        %v8961 = vpop.f32.mrf.mxu0
        %v8962 = vadd.f32 %v8933, %v8961
        %v8963 = vpop.f32.mrf.mxu0
        %v8964 = vadd.f32 %v8935, %v8963
        %8965 = vmatmul.bf16.gmra.mxu0 %v4815
        %v8966 = vpop.f32.mrf.mxu0
        %v8967 = vadd.f32 %v8938, %v8966
        %v8968 = vpop.f32.mrf.mxu0
        %v8969 = vadd.f32 %v8940, %v8968
        %8970 = vmatmul.bf16.gmra.mxu0 %v4845
        %v8971 = vpop.f32.mrf.mxu0
        %v8972 = vadd.f32 %v8943, %v8971
        %v8973 = vpop.f32.mrf.mxu0
        %v8974 = vadd.f32 %v8945, %v8973
        %8975 = vdwg.mxu0
        %8976 = vmatpush.bf16.msra.mxu0 %v7532
        %8977 = vmatpush.bf16.msra.mxu0 %v7529
        %8978 = vmatpush.bf16.msra.mxu0 %v7526
        %8979 = vmatpush.bf16.msra.mxu0 %v7523
        %8980 = vmatpush.bf16.msra.mxu0 %v7520
        %8981 = vmatpush.bf16.msra.mxu0 %v7517
        %8982 = vmatpush.bf16.msra.mxu0 %v7514
        %8983 = vmatpush.bf16.msra.mxu0 %v7511
        %8984 = vmatmul.bf16.gmra.mxu0 %v4756
        %v8985 = vpop.f32.mrf.mxu0
        %v8986 = vadd.f32 %v8957, %v8985
        %v8987 = vpop.f32.mrf.mxu0
        %v8988 = vadd.f32 %v8959, %v8987
        %8989 = vmatmul.bf16.gmra.mxu0 %v4786
        %v8990 = vpop.f32.mrf.mxu0
        %v8991 = vadd.f32 %v8962, %v8990
        %v8992 = vpop.f32.mrf.mxu0
        %v8993 = vadd.f32 %v8964, %v8992
        %8994 = vmatmul.bf16.gmra.mxu0 %v4816
        %v8995 = vpop.f32.mrf.mxu0
        %v8996 = vadd.f32 %v8967, %v8995
        %v8997 = vpop.f32.mrf.mxu0
        %v8998 = vadd.f32 %v8969, %v8997
        %8999 = vmatmul.bf16.gmra.mxu0 %v4846
        %v9000 = vpop.f32.mrf.mxu0
        %v9001 = vadd.f32 %v8972, %v9000
        %v9002 = vpop.f32.mrf.mxu0
        %v9003 = vadd.f32 %v8974, %v9002
        %9004 = vdwg.mxu0
        %9005 = vmatpush.bf16.msra.mxu0 %v7556
        %9006 = vmatpush.bf16.msra.mxu0 %v7553
        %9007 = vmatpush.bf16.msra.mxu0 %v7550
        %9008 = vmatpush.bf16.msra.mxu0 %v7547
        %9009 = vmatpush.bf16.msra.mxu0 %v7544
        %9010 = vmatpush.bf16.msra.mxu0 %v7541
        %9011 = vmatpush.bf16.msra.mxu0 %v7538
        %9012 = vmatpush.bf16.msra.mxu0 %v7535
        %9013 = vmatmul.bf16.gmra.mxu0 %v4757
        %v9014 = vpop.f32.mrf.mxu0
        %v9015 = vadd.f32 %v8986, %v9014
        %v9016 = vpop.f32.mrf.mxu0
        %v9017 = vadd.f32 %v8988, %v9016
        %9018 = vmatmul.bf16.gmra.mxu0 %v4787
        %v9019 = vpop.f32.mrf.mxu0
        %v9020 = vadd.f32 %v8991, %v9019
        %v9021 = vpop.f32.mrf.mxu0
        %v9022 = vadd.f32 %v8993, %v9021
        %9023 = vmatmul.bf16.gmra.mxu0 %v4817
        %v9024 = vpop.f32.mrf.mxu0
        %v9025 = vadd.f32 %v8996, %v9024
        %v9026 = vpop.f32.mrf.mxu0
        %v9027 = vadd.f32 %v8998, %v9026
        %9028 = vmatmul.bf16.gmra.mxu0 %v4847
        %v9029 = vpop.f32.mrf.mxu0
        %v9030 = vadd.f32 %v9001, %v9029
        %v9031 = vpop.f32.mrf.mxu0
        %v9032 = vadd.f32 %v9003, %v9031
        %9033 = vdwg.mxu0
        %9034 = vmatpush.bf16.msra.mxu0 %v7580
        %9035 = vmatpush.bf16.msra.mxu0 %v7577
        %9036 = vmatpush.bf16.msra.mxu0 %v7574
        %9037 = vmatpush.bf16.msra.mxu0 %v7571
        %9038 = vmatpush.bf16.msra.mxu0 %v7568
        %9039 = vmatpush.bf16.msra.mxu0 %v7565
        %9040 = vmatpush.bf16.msra.mxu0 %v7562
        %9041 = vmatpush.bf16.msra.mxu0 %v7559
        %9042 = vmatmul.bf16.gmra.mxu0 %v4758
        %v9043 = vpop.f32.mrf.mxu0
        %v9044 = vadd.f32 %v9015, %v9043
        %v9045 = vpop.f32.mrf.mxu0
        %v9046 = vadd.f32 %v9017, %v9045
        %9047 = vmatmul.bf16.gmra.mxu0 %v4788
        %v9048 = vpop.f32.mrf.mxu0
        %v9049 = vadd.f32 %v9020, %v9048
        %v9050 = vpop.f32.mrf.mxu0
        %v9051 = vadd.f32 %v9022, %v9050
        %9052 = vmatmul.bf16.gmra.mxu0 %v4818
        %v9053 = vpop.f32.mrf.mxu0
        %v9054 = vadd.f32 %v9025, %v9053
        %v9055 = vpop.f32.mrf.mxu0
        %v9056 = vadd.f32 %v9027, %v9055
        %9057 = vmatmul.bf16.gmra.mxu0 %v4848
        %v9058 = vpop.f32.mrf.mxu0
        %v9059 = vadd.f32 %v9030, %v9058
        %v9060 = vpop.f32.mrf.mxu0
        %v9061 = vadd.f32 %v9032, %v9060
        %9062 = vdwg.mxu0
        %9063 = vmatpush.bf16.msra.mxu0 %v7604
        %9064 = vmatpush.bf16.msra.mxu0 %v7601
        %9065 = vmatpush.bf16.msra.mxu0 %v7598
        %9066 = vmatpush.bf16.msra.mxu0 %v7595
        %9067 = vmatpush.bf16.msra.mxu0 %v7592
        %9068 = vmatpush.bf16.msra.mxu0 %v7589
        %9069 = vmatpush.bf16.msra.mxu0 %v7586
        %9070 = vmatpush.bf16.msra.mxu0 %v7583
        %9071 = vmatmul.bf16.gmra.mxu0 %v4759
        %v9072 = vpop.f32.mrf.mxu0
        %v9073 = vadd.f32 %v9044, %v9072
        %v9074 = vpop.f32.mrf.mxu0
        %v9075 = vadd.f32 %v9046, %v9074
        %9076 = vmatmul.bf16.gmra.mxu0 %v4789
        %v9077 = vpop.f32.mrf.mxu0
        %v9078 = vadd.f32 %v9049, %v9077
        %v9079 = vpop.f32.mrf.mxu0
        %v9080 = vadd.f32 %v9051, %v9079
        %9081 = vmatmul.bf16.gmra.mxu0 %v4819
        %v9082 = vpop.f32.mrf.mxu0
        %v9083 = vadd.f32 %v9054, %v9082
        %v9084 = vpop.f32.mrf.mxu0
        %v9085 = vadd.f32 %v9056, %v9084
        %9086 = vmatmul.bf16.gmra.mxu0 %v4849
        %v9087 = vpop.f32.mrf.mxu0
        %v9088 = vadd.f32 %v9059, %v9087
        %v9089 = vpop.f32.mrf.mxu0
        %v9090 = vadd.f32 %v9061, %v9089
        %9091 = vdwg.mxu0
        %9092 = vmatpush.bf16.msra.mxu0 %v7628
        %9093 = vmatpush.bf16.msra.mxu0 %v7625
        %9094 = vmatpush.bf16.msra.mxu0 %v7622
        %9095 = vmatpush.bf16.msra.mxu0 %v7619
        %9096 = vmatpush.bf16.msra.mxu0 %v7616
        %9097 = vmatpush.bf16.msra.mxu0 %v7613
        %9098 = vmatpush.bf16.msra.mxu0 %v7610
        %9099 = vmatpush.bf16.msra.mxu0 %v7607
        %9100 = vmatmul.bf16.gmra.mxu0 %v4760
        %v9101 = vpop.f32.mrf.mxu0
        %v9102 = vadd.f32 %v9073, %v9101
        %v9103 = vpop.f32.mrf.mxu0
        %v9104 = vadd.f32 %v9075, %v9103
        %9105 = vmatmul.bf16.gmra.mxu0 %v4790
        %v9106 = vpop.f32.mrf.mxu0
        %v9107 = vadd.f32 %v9078, %v9106
        %v9108 = vpop.f32.mrf.mxu0
        %v9109 = vadd.f32 %v9080, %v9108
        %9110 = vmatmul.bf16.gmra.mxu0 %v4820
        %v9111 = vpop.f32.mrf.mxu0
        %v9112 = vadd.f32 %v9083, %v9111
        %v9113 = vpop.f32.mrf.mxu0
        %v9114 = vadd.f32 %v9085, %v9113
        %9115 = vmatmul.bf16.gmra.mxu0 %v4850
        %v9116 = vpop.f32.mrf.mxu0
        %v9117 = vadd.f32 %v9088, %v9116
        %v9118 = vpop.f32.mrf.mxu0
        %v9119 = vadd.f32 %v9090, %v9118
        %9120 = vdwg.mxu0
        %9121 = vmatpush.bf16.msra.mxu0 %v7652
        %9122 = vmatpush.bf16.msra.mxu0 %v7649
        %9123 = vmatpush.bf16.msra.mxu0 %v7646
        %9124 = vmatpush.bf16.msra.mxu0 %v7643
        %9125 = vmatpush.bf16.msra.mxu0 %v7640
        %9126 = vmatpush.bf16.msra.mxu0 %v7637
        %9127 = vmatpush.bf16.msra.mxu0 %v7634
        %9128 = vmatpush.bf16.msra.mxu0 %v7631
        %9129 = vmatmul.bf16.gmra.mxu0 %v4761
        %v9130 = vpop.f32.mrf.mxu0
        %v9131 = vadd.f32 %v9102, %v9130
        %v9132 = vpop.f32.mrf.mxu0
        %v9133 = vadd.f32 %v9104, %v9132
        %9134 = vmatmul.bf16.gmra.mxu0 %v4791
        %v9135 = vpop.f32.mrf.mxu0
        %v9136 = vadd.f32 %v9107, %v9135
        %v9137 = vpop.f32.mrf.mxu0
        %v9138 = vadd.f32 %v9109, %v9137
        %9139 = vmatmul.bf16.gmra.mxu0 %v4821
        %v9140 = vpop.f32.mrf.mxu0
        %v9141 = vadd.f32 %v9112, %v9140
        %v9142 = vpop.f32.mrf.mxu0
        %v9143 = vadd.f32 %v9114, %v9142
        %9144 = vmatmul.bf16.gmra.mxu0 %v4851
        %v9145 = vpop.f32.mrf.mxu0
        %v9146 = vadd.f32 %v9117, %v9145
        %v9147 = vpop.f32.mrf.mxu0
        %v9148 = vadd.f32 %v9119, %v9147
        %9149 = vdwg.mxu0
        %9150 = vmatpush.bf16.msra.mxu0 %v7676
        %9151 = vmatpush.bf16.msra.mxu0 %v7673
        %9152 = vmatpush.bf16.msra.mxu0 %v7670
        %9153 = vmatpush.bf16.msra.mxu0 %v7667
        %9154 = vmatpush.bf16.msra.mxu0 %v7664
        %9155 = vmatpush.bf16.msra.mxu0 %v7661
        %9156 = vmatpush.bf16.msra.mxu0 %v7658
        %9157 = vmatpush.bf16.msra.mxu0 %v7655
        %9158 = vmatmul.bf16.gmra.mxu0 %v4762
        %v9159 = vpop.f32.mrf.mxu0
        %v9160 = vadd.f32 %v9131, %v9159
        %v9161 = vpop.f32.mrf.mxu0
        %v9162 = vadd.f32 %v9133, %v9161
        %9163 = vmatmul.bf16.gmra.mxu0 %v4792
        %v9164 = vpop.f32.mrf.mxu0
        %v9165 = vadd.f32 %v9136, %v9164
        %v9166 = vpop.f32.mrf.mxu0
        %v9167 = vadd.f32 %v9138, %v9166
        %9168 = vmatmul.bf16.gmra.mxu0 %v4822
        %v9169 = vpop.f32.mrf.mxu0
        %v9170 = vadd.f32 %v9141, %v9169
        %v9171 = vpop.f32.mrf.mxu0
        %v9172 = vadd.f32 %v9143, %v9171
        %9173 = vmatmul.bf16.gmra.mxu0 %v4852
        %v9174 = vpop.f32.mrf.mxu0
        %v9175 = vadd.f32 %v9146, %v9174
        %v9176 = vpop.f32.mrf.mxu0
        %v9177 = vadd.f32 %v9148, %v9176
        %9178 = vdwg.mxu0
        %9179 = vmatpush.bf16.msra.mxu0 %v7700
        %9180 = vmatpush.bf16.msra.mxu0 %v7697
        %9181 = vmatpush.bf16.msra.mxu0 %v7694
        %9182 = vmatpush.bf16.msra.mxu0 %v7691
        %9183 = vmatpush.bf16.msra.mxu0 %v7688
        %9184 = vmatpush.bf16.msra.mxu0 %v7685
        %9185 = vmatpush.bf16.msra.mxu0 %v7682
        %9186 = vmatpush.bf16.msra.mxu0 %v7679
        %9187 = vmatmul.bf16.gmra.mxu0 %v4763
        %v9188 = vpop.f32.mrf.mxu0
        %v9189 = vadd.f32 %v9160, %v9188
        %v9190 = vpop.f32.mrf.mxu0
        %v9191 = vadd.f32 %v9162, %v9190
        %9192 = vmatmul.bf16.gmra.mxu0 %v4793
        %v9193 = vpop.f32.mrf.mxu0
        %v9194 = vadd.f32 %v9165, %v9193
        %v9195 = vpop.f32.mrf.mxu0
        %v9196 = vadd.f32 %v9167, %v9195
        %9197 = vmatmul.bf16.gmra.mxu0 %v4823
        %v9198 = vpop.f32.mrf.mxu0
        %v9199 = vadd.f32 %v9170, %v9198
        %v9200 = vpop.f32.mrf.mxu0
        %v9201 = vadd.f32 %v9172, %v9200
        %9202 = vmatmul.bf16.gmra.mxu0 %v4853
        %v9203 = vpop.f32.mrf.mxu0
        %v9204 = vadd.f32 %v9175, %v9203
        %v9205 = vpop.f32.mrf.mxu0
        %v9206 = vadd.f32 %v9177, %v9205
        %9207 = vdwg.mxu0
        %9208 = vmatpush.bf16.msra.mxu0 %v7724
        %9209 = vmatpush.bf16.msra.mxu0 %v7721
        %9210 = vmatpush.bf16.msra.mxu0 %v7718
        %9211 = vmatpush.bf16.msra.mxu0 %v7715
        %9212 = vmatpush.bf16.msra.mxu0 %v7712
        %9213 = vmatpush.bf16.msra.mxu0 %v7709
        %9214 = vmatpush.bf16.msra.mxu0 %v7706
        %9215 = vmatpush.bf16.msra.mxu0 %v7703
        %9216 = vmatmul.bf16.gmra.mxu0 %v4764
        %v9217 = vpop.f32.mrf.mxu0
        %v9218 = vadd.f32 %v9189, %v9217
        %v9219 = vpop.f32.mrf.mxu0
        %v9220 = vadd.f32 %v9191, %v9219
        %9221 = vmatmul.bf16.gmra.mxu0 %v4794
        %v9222 = vpop.f32.mrf.mxu0
        %v9223 = vadd.f32 %v9194, %v9222
        %v9224 = vpop.f32.mrf.mxu0
        %v9225 = vadd.f32 %v9196, %v9224
        %9226 = vmatmul.bf16.gmra.mxu0 %v4824
        %v9227 = vpop.f32.mrf.mxu0
        %v9228 = vadd.f32 %v9199, %v9227
        %v9229 = vpop.f32.mrf.mxu0
        %v9230 = vadd.f32 %v9201, %v9229
        %9231 = vmatmul.bf16.gmra.mxu0 %v4854
        %v9232 = vpop.f32.mrf.mxu0
        %v9233 = vadd.f32 %v9204, %v9232
        %v9234 = vpop.f32.mrf.mxu0
        %v9235 = vadd.f32 %v9206, %v9234
        %9236 = vdwg.mxu0
        %9237 = vmatpush.bf16.msra.mxu0 %v7748
        %9238 = vmatpush.bf16.msra.mxu0 %v7745
        %9239 = vmatpush.bf16.msra.mxu0 %v7742
        %9240 = vmatpush.bf16.msra.mxu0 %v7739
        %9241 = vmatpush.bf16.msra.mxu0 %v7736
        %9242 = vmatpush.bf16.msra.mxu0 %v7733
        %9243 = vmatpush.bf16.msra.mxu0 %v7730
        %9244 = vmatpush.bf16.msra.mxu0 %v7727
        %9245 = vmatmul.bf16.gmra.mxu0 %v4765
        %v9246 = vpop.f32.mrf.mxu0
        %v9247 = vadd.f32 %v9218, %v9246
        %v9248 = vpop.f32.mrf.mxu0
        %v9249 = vadd.f32 %v9220, %v9248
        %9250 = vmatmul.bf16.gmra.mxu0 %v4795
        %v9251 = vpop.f32.mrf.mxu0
        %v9252 = vadd.f32 %v9223, %v9251
        %v9253 = vpop.f32.mrf.mxu0
        %v9254 = vadd.f32 %v9225, %v9253
        %9255 = vmatmul.bf16.gmra.mxu0 %v4825
        %v9256 = vpop.f32.mrf.mxu0
        %v9257 = vadd.f32 %v9228, %v9256
        %v9258 = vpop.f32.mrf.mxu0
        %v9259 = vadd.f32 %v9230, %v9258
        %9260 = vmatmul.bf16.gmra.mxu0 %v4855
        %v9261 = vpop.f32.mrf.mxu0
        %v9262 = vadd.f32 %v9233, %v9261
        %v9263 = vpop.f32.mrf.mxu0
        %v9264 = vadd.f32 %v9235, %v9263
        %9265 = vdwg.mxu0
        %9266 = vmatpush.bf16.msra.mxu0 %v7772
        %9267 = vmatpush.bf16.msra.mxu0 %v7769
        %9268 = vmatpush.bf16.msra.mxu0 %v7766
        %9269 = vmatpush.bf16.msra.mxu0 %v7763
        %9270 = vmatpush.bf16.msra.mxu0 %v7760
        %9271 = vmatpush.bf16.msra.mxu0 %v7757
        %9272 = vmatpush.bf16.msra.mxu0 %v7754
        %9273 = vmatpush.bf16.msra.mxu0 %v7751
        %9274 = vmatmul.bf16.gmra.mxu0 %v4766
        %v9275 = vpop.f32.mrf.mxu0
        %v9276 = vadd.f32 %v9247, %v9275
        %v9277 = vpop.f32.mrf.mxu0
        %v9278 = vadd.f32 %v9249, %v9277
        %9279 = vmatmul.bf16.gmra.mxu0 %v4796
        %v9280 = vpop.f32.mrf.mxu0
        %v9281 = vadd.f32 %v9252, %v9280
        %v9282 = vpop.f32.mrf.mxu0
        %v9283 = vadd.f32 %v9254, %v9282
        %9284 = vmatmul.bf16.gmra.mxu0 %v4826
        %v9285 = vpop.f32.mrf.mxu0
        %v9286 = vadd.f32 %v9257, %v9285
        %v9287 = vpop.f32.mrf.mxu0
        %v9288 = vadd.f32 %v9259, %v9287
        %9289 = vmatmul.bf16.gmra.mxu0 %v4856
        %v9290 = vpop.f32.mrf.mxu0
        %v9291 = vadd.f32 %v9262, %v9290
        %v9292 = vpop.f32.mrf.mxu0
        %v9293 = vadd.f32 %v9264, %v9292
        %9294 = vdwg.mxu0
        %9295 = vmatpush.bf16.msra.mxu0 %v7796
        %9296 = vmatpush.bf16.msra.mxu0 %v7793
        %9297 = vmatpush.bf16.msra.mxu0 %v7790
        %9298 = vmatpush.bf16.msra.mxu0 %v7787
        %9299 = vmatpush.bf16.msra.mxu0 %v7784
        %9300 = vmatpush.bf16.msra.mxu0 %v7781
        %9301 = vmatpush.bf16.msra.mxu0 %v7778
        %9302 = vmatpush.bf16.msra.mxu0 %v7775
        %9303 = vmatmul.bf16.gmra.mxu0 %v4767
        %v9304 = vpop.f32.mrf.mxu0
        %v9305 = vadd.f32 %v9276, %v9304
        %v9306 = vpop.f32.mrf.mxu0
        %v9307 = vadd.f32 %v9278, %v9306
        %9308 = vmatmul.bf16.gmra.mxu0 %v4797
        %v9309 = vpop.f32.mrf.mxu0
        %v9310 = vadd.f32 %v9281, %v9309
        %v9311 = vpop.f32.mrf.mxu0
        %v9312 = vadd.f32 %v9283, %v9311
        %9313 = vmatmul.bf16.gmra.mxu0 %v4827
        %v9314 = vpop.f32.mrf.mxu0
        %v9315 = vadd.f32 %v9286, %v9314
        %v9316 = vpop.f32.mrf.mxu0
        %v9317 = vadd.f32 %v9288, %v9316
        %9318 = vmatmul.bf16.gmra.mxu0 %v4857
        %v9319 = vpop.f32.mrf.mxu0
        %v9320 = vadd.f32 %v9291, %v9319
        %v9321 = vpop.f32.mrf.mxu0
        %v9322 = vadd.f32 %v9293, %v9321
        %9323 = vdwg.mxu0
        %9324 = vmatpush.bf16.msra.mxu0 %v7820
        %9325 = vmatpush.bf16.msra.mxu0 %v7817
        %9326 = vmatpush.bf16.msra.mxu0 %v7814
        %9327 = vmatpush.bf16.msra.mxu0 %v7811
        %9328 = vmatpush.bf16.msra.mxu0 %v7808
        %9329 = vmatpush.bf16.msra.mxu0 %v7805
        %9330 = vmatpush.bf16.msra.mxu0 %v7802
        %9331 = vmatpush.bf16.msra.mxu0 %v7799
        %9332 = vmatmul.bf16.gmra.mxu0 %v4768
        %v9333 = vpop.f32.mrf.mxu0
        %v9334 = vadd.f32 %v9305, %v9333
        %v9335 = vpop.f32.mrf.mxu0
        %v9336 = vadd.f32 %v9307, %v9335
        %9337 = vmatmul.bf16.gmra.mxu0 %v4798
        %v9338 = vpop.f32.mrf.mxu0
        %v9339 = vadd.f32 %v9310, %v9338
        %v9340 = vpop.f32.mrf.mxu0
        %v9341 = vadd.f32 %v9312, %v9340
        %9342 = vmatmul.bf16.gmra.mxu0 %v4828
        %v9343 = vpop.f32.mrf.mxu0
        %v9344 = vadd.f32 %v9315, %v9343
        %v9345 = vpop.f32.mrf.mxu0
        %v9346 = vadd.f32 %v9317, %v9345
        %9347 = vmatmul.bf16.gmra.mxu0 %v4858
        %v9348 = vpop.f32.mrf.mxu0
        %v9349 = vadd.f32 %v9320, %v9348
        %v9350 = vpop.f32.mrf.mxu0
        %v9351 = vadd.f32 %v9322, %v9350
        %9352 = vdwg.mxu0
        %9353 = vmatpush.bf16.msra.mxu0 %v7844
        %9354 = vmatpush.bf16.msra.mxu0 %v7841
        %9355 = vmatpush.bf16.msra.mxu0 %v7838
        %9356 = vmatpush.bf16.msra.mxu0 %v7835
        %9357 = vmatpush.bf16.msra.mxu0 %v7832
        %9358 = vmatpush.bf16.msra.mxu0 %v7829
        %9359 = vmatpush.bf16.msra.mxu0 %v7826
        %9360 = vmatpush.bf16.msra.mxu0 %v7823
        %9361 = vmatmul.bf16.gmra.mxu0 %v4769
        %v9362 = vpop.f32.mrf.mxu0
        %v9363 = vadd.f32 %v9334, %v9362
        %v9364 = vpop.f32.mrf.mxu0
        %v9365 = vadd.f32 %v9336, %v9364
        %9366 = vmatmul.bf16.gmra.mxu0 %v4799
        %v9367 = vpop.f32.mrf.mxu0
        %v9368 = vadd.f32 %v9339, %v9367
        %v9369 = vpop.f32.mrf.mxu0
        %v9370 = vadd.f32 %v9341, %v9369
        %9371 = vmatmul.bf16.gmra.mxu0 %v4829
        %v9372 = vpop.f32.mrf.mxu0
        %v9373 = vadd.f32 %v9344, %v9372
        %v9374 = vpop.f32.mrf.mxu0
        %v9375 = vadd.f32 %v9346, %v9374
        %9376 = vmatmul.bf16.gmra.mxu0 %v4859
        %v9377 = vpop.f32.mrf.mxu0
        %v9378 = vadd.f32 %v9349, %v9377
        %v9379 = vpop.f32.mrf.mxu0
        %v9380 = vadd.f32 %v9351, %v9379
        %9381 = vdwg.mxu0
        %9382 = vmatpush.bf16.msra.mxu0 %v7868
        %9383 = vmatpush.bf16.msra.mxu0 %v7865
        %9384 = vmatpush.bf16.msra.mxu0 %v7862
        %9385 = vmatpush.bf16.msra.mxu0 %v7859
        %9386 = vmatpush.bf16.msra.mxu0 %v7856
        %9387 = vmatpush.bf16.msra.mxu0 %v7853
        %9388 = vmatpush.bf16.msra.mxu0 %v7850
        %9389 = vmatpush.bf16.msra.mxu0 %v7847
        %9390 = vmatmul.bf16.gmra.mxu0 %v4770
        %v9391 = vpop.f32.mrf.mxu0
        %v9392 = vadd.f32 %v9363, %v9391
        %v9393 = vpop.f32.mrf.mxu0
        %v9394 = vadd.f32 %v9365, %v9393
        %9395 = vmatmul.bf16.gmra.mxu0 %v4800
        %v9396 = vpop.f32.mrf.mxu0
        %v9397 = vadd.f32 %v9368, %v9396
        %v9398 = vpop.f32.mrf.mxu0
        %v9399 = vadd.f32 %v9370, %v9398
        %9400 = vmatmul.bf16.gmra.mxu0 %v4830
        %v9401 = vpop.f32.mrf.mxu0
        %v9402 = vadd.f32 %v9373, %v9401
        %v9403 = vpop.f32.mrf.mxu0
        %v9404 = vadd.f32 %v9375, %v9403
        %9405 = vmatmul.bf16.gmra.mxu0 %v4860
        %v9406 = vpop.f32.mrf.mxu0
        %v9407 = vadd.f32 %v9378, %v9406
        %v9408 = vpop.f32.mrf.mxu0
        %v9409 = vadd.f32 %v9380, %v9408
        %9410 = vdwg.mxu0
        %9411 = vmatpush.bf16.msra.mxu0 %v7892
        %9412 = vmatpush.bf16.msra.mxu0 %v7889
        %9413 = vmatpush.bf16.msra.mxu0 %v7886
        %9414 = vmatpush.bf16.msra.mxu0 %v7883
        %9415 = vmatpush.bf16.msra.mxu0 %v7880
        %9416 = vmatpush.bf16.msra.mxu0 %v7877
        %9417 = vmatpush.bf16.msra.mxu0 %v7874
        %9418 = vmatpush.bf16.msra.mxu0 %v7871
        %9419 = vmatmul.bf16.gmra.mxu0 %v4771
        %v9420 = vpop.f32.mrf.mxu0
        %v9421 = vadd.f32 %v9392, %v9420
        %v9422 = vpop.f32.mrf.mxu0
        %v9423 = vadd.f32 %v9394, %v9422
        %9424 = vmatmul.bf16.gmra.mxu0 %v4801
        %v9425 = vpop.f32.mrf.mxu0
        %v9426 = vadd.f32 %v9397, %v9425
        %v9427 = vpop.f32.mrf.mxu0
        %v9428 = vadd.f32 %v9399, %v9427
        %9429 = vmatmul.bf16.gmra.mxu0 %v4831
        %v9430 = vpop.f32.mrf.mxu0
        %v9431 = vadd.f32 %v9402, %v9430
        %v9432 = vpop.f32.mrf.mxu0
        %v9433 = vadd.f32 %v9404, %v9432
        %9434 = vmatmul.bf16.gmra.mxu0 %v4861
        %v9435 = vpop.f32.mrf.mxu0
        %v9436 = vadd.f32 %v9407, %v9435
        %v9437 = vpop.f32.mrf.mxu0
        %v9438 = vadd.f32 %v9409, %v9437
        %9439 = vdwg.mxu0
        %9440 = vmatpush.bf16.msra.mxu0 %v7916
        %9441 = vmatpush.bf16.msra.mxu0 %v7913
        %9442 = vmatpush.bf16.msra.mxu0 %v7910
        %9443 = vmatpush.bf16.msra.mxu0 %v7907
        %9444 = vmatpush.bf16.msra.mxu0 %v7904
        %9445 = vmatpush.bf16.msra.mxu0 %v7901
        %9446 = vmatpush.bf16.msra.mxu0 %v7898
        %9447 = vmatpush.bf16.msra.mxu0 %v7895
        %9448 = vmatmul.bf16.gmra.mxu0 %v4772
        %v9449 = vpop.f32.mrf.mxu0
        %v9450 = vadd.f32 %v9421, %v9449
        %v9451 = vpop.f32.mrf.mxu0
        %v9452 = vadd.f32 %v9423, %v9451
        %9453 = vmatmul.bf16.gmra.mxu0 %v4802
        %v9454 = vpop.f32.mrf.mxu0
        %v9455 = vadd.f32 %v9426, %v9454
        %v9456 = vpop.f32.mrf.mxu0
        %v9457 = vadd.f32 %v9428, %v9456
        %9458 = vmatmul.bf16.gmra.mxu0 %v4832
        %v9459 = vpop.f32.mrf.mxu0
        %v9460 = vadd.f32 %v9431, %v9459
        %v9461 = vpop.f32.mrf.mxu0
        %v9462 = vadd.f32 %v9433, %v9461
        %9463 = vmatmul.bf16.gmra.mxu0 %v4862
        %v9464 = vpop.f32.mrf.mxu0
        %v9465 = vadd.f32 %v9436, %v9464
        %v9466 = vpop.f32.mrf.mxu0
        %v9467 = vadd.f32 %v9438, %v9466
        %9468 = vdwg.mxu0
        %9469 = vmatpush.bf16.msra.mxu0 %v7940
        %9470 = vmatpush.bf16.msra.mxu0 %v7937
        %9471 = vmatpush.bf16.msra.mxu0 %v7934
        %9472 = vmatpush.bf16.msra.mxu0 %v7931
        %9473 = vmatpush.bf16.msra.mxu0 %v7928
        %9474 = vmatpush.bf16.msra.mxu0 %v7925
        %9475 = vmatpush.bf16.msra.mxu0 %v7922
        %9476 = vmatpush.bf16.msra.mxu0 %v7919
        %9477 = vmatmul.bf16.gmra.mxu0 %v4773
        %v9478 = vpop.f32.mrf.mxu0
        %v9479 = vadd.f32 %v9450, %v9478
        %v9480 = vpop.f32.mrf.mxu0
        %v9481 = vadd.f32 %v9452, %v9480
        %9482 = vmatmul.bf16.gmra.mxu0 %v4803
        %v9483 = vpop.f32.mrf.mxu0
        %v9484 = vadd.f32 %v9455, %v9483
        %v9485 = vpop.f32.mrf.mxu0
        %v9486 = vadd.f32 %v9457, %v9485
        %9487 = vmatmul.bf16.gmra.mxu0 %v4833
        %v9488 = vpop.f32.mrf.mxu0
        %v9489 = vadd.f32 %v9460, %v9488
        %v9490 = vpop.f32.mrf.mxu0
        %v9491 = vadd.f32 %v9462, %v9490
        %9492 = vmatmul.bf16.gmra.mxu0 %v4863
        %v9493 = vpop.f32.mrf.mxu0
        %v9494 = vadd.f32 %v9465, %v9493
        %v9495 = vpop.f32.mrf.mxu0
        %v9496 = vadd.f32 %v9467, %v9495
        %9497 = vdwg.mxu0
        %9498 = vmatpush.bf16.msra.mxu0 %v7964
        %9499 = vmatpush.bf16.msra.mxu0 %v7961
        %9500 = vmatpush.bf16.msra.mxu0 %v7958
        %9501 = vmatpush.bf16.msra.mxu0 %v7955
        %9502 = vmatpush.bf16.msra.mxu0 %v7952
        %9503 = vmatpush.bf16.msra.mxu0 %v7949
        %9504 = vmatpush.bf16.msra.mxu0 %v7946
        %9505 = vmatpush.bf16.msra.mxu0 %v7943
        %9506 = vmatmul.bf16.gmra.mxu0 %v4774
        %v9507 = vpop.f32.mrf.mxu0
        %v9508 = vadd.f32 %v9479, %v9507
        %v9509 = vpop.f32.mrf.mxu0
        %v9510 = vadd.f32 %v9481, %v9509
        %9511 = vmatmul.bf16.gmra.mxu0 %v4804
        %v9512 = vpop.f32.mrf.mxu0
        %v9513 = vadd.f32 %v9484, %v9512
        %v9514 = vpop.f32.mrf.mxu0
        %v9515 = vadd.f32 %v9486, %v9514
        %9516 = vmatmul.bf16.gmra.mxu0 %v4834
        %v9517 = vpop.f32.mrf.mxu0
        %v9518 = vadd.f32 %v9489, %v9517
        %v9519 = vpop.f32.mrf.mxu0
        %v9520 = vadd.f32 %v9491, %v9519
        %9521 = vmatmul.bf16.gmra.mxu0 %v4864
        %v9522 = vpop.f32.mrf.mxu0
        %v9523 = vadd.f32 %v9494, %v9522
        %v9524 = vpop.f32.mrf.mxu0
        %v9525 = vadd.f32 %v9496, %v9524
        %9526 = vdwg.mxu0
        %9527 = vmatpush.bf16.msra.mxu0 %v7988
        %9528 = vmatpush.bf16.msra.mxu0 %v7985
        %9529 = vmatpush.bf16.msra.mxu0 %v7982
        %9530 = vmatpush.bf16.msra.mxu0 %v7979
        %9531 = vmatpush.bf16.msra.mxu0 %v7976
        %9532 = vmatpush.bf16.msra.mxu0 %v7973
        %9533 = vmatpush.bf16.msra.mxu0 %v7970
        %9534 = vmatpush.bf16.msra.mxu0 %v7967
        %9535 = vmatmul.bf16.gmra.mxu0 %v4775
        %v9536 = vpop.f32.mrf.mxu0
        %v9537 = vadd.f32 %v9508, %v9536
        %v9538 = vpop.f32.mrf.mxu0
        %v9539 = vadd.f32 %v9510, %v9538
        %9540 = vmatmul.bf16.gmra.mxu0 %v4805
        %v9541 = vpop.f32.mrf.mxu0
        %v9542 = vadd.f32 %v9513, %v9541
        %v9543 = vpop.f32.mrf.mxu0
        %v9544 = vadd.f32 %v9515, %v9543
        %9545 = vmatmul.bf16.gmra.mxu0 %v4835
        %v9546 = vpop.f32.mrf.mxu0
        %v9547 = vadd.f32 %v9518, %v9546
        %v9548 = vpop.f32.mrf.mxu0
        %v9549 = vadd.f32 %v9520, %v9548
        %9550 = vmatmul.bf16.gmra.mxu0 %v4865
        %v9551 = vpop.f32.mrf.mxu0
        %v9552 = vadd.f32 %v9523, %v9551
        %v9553 = vpop.f32.mrf.mxu0
        %v9554 = vadd.f32 %v9525, %v9553
        %9555 = vdwg.mxu0
        %9556 = vmatpush.bf16.msra.mxu0 %v8012
        %9557 = vmatpush.bf16.msra.mxu0 %v8009
        %9558 = vmatpush.bf16.msra.mxu0 %v8006
        %9559 = vmatpush.bf16.msra.mxu0 %v8003
        %9560 = vmatpush.bf16.msra.mxu0 %v8000
        %9561 = vmatpush.bf16.msra.mxu0 %v7997
        %9562 = vmatpush.bf16.msra.mxu0 %v7994
        %9563 = vmatpush.bf16.msra.mxu0 %v7991
        %9564 = vmatmul.bf16.gmra.mxu0 %v4776
        %v9565 = vpop.f32.mrf.mxu0
        %v9566 = vadd.f32 %v9537, %v9565
        %v9567 = vpop.f32.mrf.mxu0
        %v9568 = vadd.f32 %v9539, %v9567
        %9569 = vmatmul.bf16.gmra.mxu0 %v4806
        %v9570 = vpop.f32.mrf.mxu0
        %v9571 = vadd.f32 %v9542, %v9570
        %v9572 = vpop.f32.mrf.mxu0
        %v9573 = vadd.f32 %v9544, %v9572
        %9574 = vmatmul.bf16.gmra.mxu0 %v4836
        %v9575 = vpop.f32.mrf.mxu0
        %v9576 = vadd.f32 %v9547, %v9575
        %v9577 = vpop.f32.mrf.mxu0
        %v9578 = vadd.f32 %v9549, %v9577
        %9579 = vmatmul.bf16.gmra.mxu0 %v4866
        %v9580 = vpop.f32.mrf.mxu0
        %v9581 = vadd.f32 %v9552, %v9580
        %v9582 = vpop.f32.mrf.mxu0
        %v9583 = vadd.f32 %v9554, %v9582
        %9584 = vdwg.mxu0
        %9585 = vmatpush.bf16.msra.mxu0 %v8036
        %9586 = vmatpush.bf16.msra.mxu0 %v8033
        %9587 = vmatpush.bf16.msra.mxu0 %v8030
        %9588 = vmatpush.bf16.msra.mxu0 %v8027
        %9589 = vmatpush.bf16.msra.mxu0 %v8024
        %9590 = vmatpush.bf16.msra.mxu0 %v8021
        %9591 = vmatpush.bf16.msra.mxu0 %v8018
        %9592 = vmatpush.bf16.msra.mxu0 %v8015
        %9593 = vmatmul.bf16.gmra.mxu0 %v4777
        %v9594 = vpop.f32.mrf.mxu0
        %v9595 = vadd.f32 %v9566, %v9594
        %v9596 = vpop.f32.mrf.mxu0
        %v9597 = vadd.f32 %v9568, %v9596
        %9598 = vmatmul.bf16.gmra.mxu0 %v4807
        %v9599 = vpop.f32.mrf.mxu0
        %v9600 = vadd.f32 %v9571, %v9599
        %v9601 = vpop.f32.mrf.mxu0
        %v9602 = vadd.f32 %v9573, %v9601
        %9603 = vmatmul.bf16.gmra.mxu0 %v4837
        %v9604 = vpop.f32.mrf.mxu0
        %v9605 = vadd.f32 %v9576, %v9604
        %v9606 = vpop.f32.mrf.mxu0
        %v9607 = vadd.f32 %v9578, %v9606
        %9608 = vmatmul.bf16.gmra.mxu0 %v4867
        %v9609 = vpop.f32.mrf.mxu0
        %v9610 = vadd.f32 %v9581, %v9609
        %v9611 = vpop.f32.mrf.mxu0
        %v9612 = vadd.f32 %v9583, %v9611
        %9613 = vdwg.mxu0
        %9614 = vmatpush.bf16.msra.mxu0 %v8060
        %9615 = vmatpush.bf16.msra.mxu0 %v8057
        %9616 = vmatpush.bf16.msra.mxu0 %v8054
        %9617 = vmatpush.bf16.msra.mxu0 %v8051
        %9618 = vmatpush.bf16.msra.mxu0 %v8048
        %9619 = vmatpush.bf16.msra.mxu0 %v8045
        %9620 = vmatpush.bf16.msra.mxu0 %v8042
        %9621 = vmatpush.bf16.msra.mxu0 %v8039
        %9622 = vmatmul.bf16.gmra.mxu0 %v4778
        %v9623 = vpop.f32.mrf.mxu0
        %v9624 = vadd.f32 %v9595, %v9623
        %v9625 = vpop.f32.mrf.mxu0
        %v9626 = vadd.f32 %v9597, %v9625
        %9627 = vmatmul.bf16.gmra.mxu0 %v4808
        %v9628 = vpop.f32.mrf.mxu0
        %v9629 = vadd.f32 %v9600, %v9628
        %v9630 = vpop.f32.mrf.mxu0
        %v9631 = vadd.f32 %v9602, %v9630
        %9632 = vmatmul.bf16.gmra.mxu0 %v4838
        %v9633 = vpop.f32.mrf.mxu0
        %v9634 = vadd.f32 %v9605, %v9633
        %v9635 = vpop.f32.mrf.mxu0
        %v9636 = vadd.f32 %v9607, %v9635
        %9637 = vmatmul.bf16.gmra.mxu0 %v4868
        %v9638 = vpop.f32.mrf.mxu0
        %v9639 = vadd.f32 %v9610, %v9638
        %v9640 = vpop.f32.mrf.mxu0
        %v9641 = vadd.f32 %v9612, %v9640
        %9642 = vdwg.mxu0
        %9643 = vmatpush.bf16.msra.mxu0 %v8084
        %9644 = vmatpush.bf16.msra.mxu0 %v8081
        %9645 = vmatpush.bf16.msra.mxu0 %v8078
        %9646 = vmatpush.bf16.msra.mxu0 %v8075
        %9647 = vmatpush.bf16.msra.mxu0 %v8072
        %9648 = vmatpush.bf16.msra.mxu0 %v8069
        %9649 = vmatpush.bf16.msra.mxu0 %v8066
        %9650 = vmatpush.bf16.msra.mxu0 %v8063
        %9651 = vmatmul.bf16.gmra.mxu0 %v4779
        %v9652 = vpop.f32.mrf.mxu0
        %v9653 = vadd.f32 %v9624, %v9652
        %v9654 = vpop.f32.mrf.mxu0
        %v9655 = vadd.f32 %v9626, %v9654
        %9656 = vmatmul.bf16.gmra.mxu0 %v4809
        %v9657 = vpop.f32.mrf.mxu0
        %v9658 = vadd.f32 %v9629, %v9657
        %v9659 = vpop.f32.mrf.mxu0
        %v9660 = vadd.f32 %v9631, %v9659
        %9661 = vmatmul.bf16.gmra.mxu0 %v4839
        %v9662 = vpop.f32.mrf.mxu0
        %v9663 = vadd.f32 %v9634, %v9662
        %v9664 = vpop.f32.mrf.mxu0
        %v9665 = vadd.f32 %v9636, %v9664
        %9666 = vmatmul.bf16.gmra.mxu0 %v4869
        %v9667 = vpop.f32.mrf.mxu0
        %v9668 = vadd.f32 %v9639, %v9667
        %v9669 = vpop.f32.mrf.mxu0
        %v9670 = vadd.f32 %v9641, %v9669
        %9671 = vdwg.mxu0
        %9672 = vmatpush.bf16.msra.mxu0 %v8108
        %9673 = vmatpush.bf16.msra.mxu0 %v8105
        %9674 = vmatpush.bf16.msra.mxu0 %v8102
        %9675 = vmatpush.bf16.msra.mxu0 %v8099
        %9676 = vmatpush.bf16.msra.mxu0 %v8096
        %9677 = vmatpush.bf16.msra.mxu0 %v8093
        %9678 = vmatpush.bf16.msra.mxu0 %v8090
        %9679 = vmatpush.bf16.msra.mxu0 %v8087
        %9680 = vmatmul.bf16.gmra.mxu0 %v4780
        %v9681 = vpop.f32.mrf.mxu0
        %v9682 = vadd.f32 %v9653, %v9681
        %v9683 = vpop.f32.mrf.mxu0
        %v9684 = vadd.f32 %v9655, %v9683
        %9685 = vmatmul.bf16.gmra.mxu0 %v4810
        %v9686 = vpop.f32.mrf.mxu0
        %v9687 = vadd.f32 %v9658, %v9686
        %v9688 = vpop.f32.mrf.mxu0
        %v9689 = vadd.f32 %v9660, %v9688
        %9690 = vmatmul.bf16.gmra.mxu0 %v4840
        %v9691 = vpop.f32.mrf.mxu0
        %v9692 = vadd.f32 %v9663, %v9691
        %v9693 = vpop.f32.mrf.mxu0
        %v9694 = vadd.f32 %v9665, %v9693
        %9695 = vmatmul.bf16.gmra.mxu0 %v4870
        %v9696 = vpop.f32.mrf.mxu0
        %v9697 = vadd.f32 %v9668, %v9696
        %v9698 = vpop.f32.mrf.mxu0
        %v9699 = vadd.f32 %v9670, %v9698
        %9700 = vdwg.mxu0
        %9701 = vmatpush.bf16.msra.mxu0 %v7413
        %9702 = vmatpush.bf16.msra.mxu0 %v7410
        %9703 = vmatpush.bf16.msra.mxu0 %v7407
        %9704 = vmatpush.bf16.msra.mxu0 %v7404
        %9705 = vmatpush.bf16.msra.mxu0 %v7401
        %9706 = vmatpush.bf16.msra.mxu0 %v7398
        %9707 = vmatpush.bf16.msra.mxu0 %v7395
        %9708 = vmatpush.bf16.msra.mxu0 %v7392
        %9709 = vmatmul.bf16.gmra.mxu0 %v4751
        %v9710 = vpop.f32.mrf.mxu0
        %v9711 = vadd.f32 0.0, %v9710
        %v9712 = vpop.f32.mrf.mxu0
        %v9713 = vadd.f32 0.0, %v9712
        %9714 = vmatmul.bf16.gmra.mxu0 %v4781
        %v9715 = vpop.f32.mrf.mxu0
        %v9716 = vadd.f32 0.0, %v9715
        %v9717 = vpop.f32.mrf.mxu0
        %v9718 = vadd.f32 0.0, %v9717
        %9719 = vmatmul.bf16.gmra.mxu0 %v4811
        %v9720 = vpop.f32.mrf.mxu0
        %v9721 = vadd.f32 0.0, %v9720
        %v9722 = vpop.f32.mrf.mxu0
        %v9723 = vadd.f32 0.0, %v9722
        %9724 = vmatmul.bf16.gmra.mxu0 %v4841
        %v9725 = vpop.f32.mrf.mxu0
        %v9726 = vadd.f32 0.0, %v9725
        %v9727 = vpop.f32.mrf.mxu0
        %v9728 = vadd.f32 0.0, %v9727
        %9729 = vdwg.mxu0
        %9730 = vmatpush.bf16.msra.mxu0 %v7437
        %9731 = vmatpush.bf16.msra.mxu0 %v7434
        %9732 = vmatpush.bf16.msra.mxu0 %v7431
        %9733 = vmatpush.bf16.msra.mxu0 %v7428
        %9734 = vmatpush.bf16.msra.mxu0 %v7425
        %9735 = vmatpush.bf16.msra.mxu0 %v7422
        %9736 = vmatpush.bf16.msra.mxu0 %v7419
        %9737 = vmatpush.bf16.msra.mxu0 %v7416
        %9738 = vmatmul.bf16.gmra.mxu0 %v4752
        %v9739 = vpop.f32.mrf.mxu0
        %v9740 = vadd.f32 %v9711, %v9739
        %v9741 = vpop.f32.mrf.mxu0
        %v9742 = vadd.f32 %v9713, %v9741
        %9743 = vmatmul.bf16.gmra.mxu0 %v4782
        %v9744 = vpop.f32.mrf.mxu0
        %v9745 = vadd.f32 %v9716, %v9744
        %v9746 = vpop.f32.mrf.mxu0
        %v9747 = vadd.f32 %v9718, %v9746
        %9748 = vmatmul.bf16.gmra.mxu0 %v4812
        %v9749 = vpop.f32.mrf.mxu0
        %v9750 = vadd.f32 %v9721, %v9749
        %v9751 = vpop.f32.mrf.mxu0
        %v9752 = vadd.f32 %v9723, %v9751
        %9753 = vmatmul.bf16.gmra.mxu0 %v4842
        %v9754 = vpop.f32.mrf.mxu0
        %v9755 = vadd.f32 %v9726, %v9754
        %v9756 = vpop.f32.mrf.mxu0
        %v9757 = vadd.f32 %v9728, %v9756
        %9758 = vdwg.mxu0
        %9759 = vmatpush.bf16.msra.mxu0 %v7461
        %9760 = vmatpush.bf16.msra.mxu0 %v7458
        %9761 = vmatpush.bf16.msra.mxu0 %v7455
        %9762 = vmatpush.bf16.msra.mxu0 %v7452
        %9763 = vmatpush.bf16.msra.mxu0 %v7449
        %9764 = vmatpush.bf16.msra.mxu0 %v7446
        %9765 = vmatpush.bf16.msra.mxu0 %v7443
        %9766 = vmatpush.bf16.msra.mxu0 %v7440
        %9767 = vmatmul.bf16.gmra.mxu0 %v4753
        %v9768 = vpop.f32.mrf.mxu0
        %v9769 = vadd.f32 %v9740, %v9768
        %v9770 = vpop.f32.mrf.mxu0
        %v9771 = vadd.f32 %v9742, %v9770
        %9772 = vmatmul.bf16.gmra.mxu0 %v4783
        %v9773 = vpop.f32.mrf.mxu0
        %v9774 = vadd.f32 %v9745, %v9773
        %v9775 = vpop.f32.mrf.mxu0
        %v9776 = vadd.f32 %v9747, %v9775
        %9777 = vmatmul.bf16.gmra.mxu0 %v4813
        %v9778 = vpop.f32.mrf.mxu0
        %v9779 = vadd.f32 %v9750, %v9778
        %v9780 = vpop.f32.mrf.mxu0
        %v9781 = vadd.f32 %v9752, %v9780
        %9782 = vmatmul.bf16.gmra.mxu0 %v4843
        %v9783 = vpop.f32.mrf.mxu0
        %v9784 = vadd.f32 %v9755, %v9783
        %v9785 = vpop.f32.mrf.mxu0
        %v9786 = vadd.f32 %v9757, %v9785
        %9787 = vdwg.mxu0
        %9788 = vmatpush.bf16.msra.mxu0 %v7485
        %9789 = vmatpush.bf16.msra.mxu0 %v7482
        %9790 = vmatpush.bf16.msra.mxu0 %v7479
        %9791 = vmatpush.bf16.msra.mxu0 %v7476
        %9792 = vmatpush.bf16.msra.mxu0 %v7473
        %9793 = vmatpush.bf16.msra.mxu0 %v7470
        %9794 = vmatpush.bf16.msra.mxu0 %v7467
        %9795 = vmatpush.bf16.msra.mxu0 %v7464
        %9796 = vmatmul.bf16.gmra.mxu0 %v4754
        %v9797 = vpop.f32.mrf.mxu0
        %v9798 = vadd.f32 %v9769, %v9797
        %v9799 = vpop.f32.mrf.mxu0
        %v9800 = vadd.f32 %v9771, %v9799
        %9801 = vmatmul.bf16.gmra.mxu0 %v4784
        %v9802 = vpop.f32.mrf.mxu0
        %v9803 = vadd.f32 %v9774, %v9802
        %v9804 = vpop.f32.mrf.mxu0
        %v9805 = vadd.f32 %v9776, %v9804
        %9806 = vmatmul.bf16.gmra.mxu0 %v4814
        %v9807 = vpop.f32.mrf.mxu0
        %v9808 = vadd.f32 %v9779, %v9807
        %v9809 = vpop.f32.mrf.mxu0
        %v9810 = vadd.f32 %v9781, %v9809
        %9811 = vmatmul.bf16.gmra.mxu0 %v4844
        %v9812 = vpop.f32.mrf.mxu0
        %v9813 = vadd.f32 %v9784, %v9812
        %v9814 = vpop.f32.mrf.mxu0
        %v9815 = vadd.f32 %v9786, %v9814
        %9816 = vdwg.mxu0
        %9817 = vmatpush.bf16.msra.mxu0 %v7509
        %9818 = vmatpush.bf16.msra.mxu0 %v7506
        %9819 = vmatpush.bf16.msra.mxu0 %v7503
        %9820 = vmatpush.bf16.msra.mxu0 %v7500
        %9821 = vmatpush.bf16.msra.mxu0 %v7497
        %9822 = vmatpush.bf16.msra.mxu0 %v7494
        %9823 = vmatpush.bf16.msra.mxu0 %v7491
        %9824 = vmatpush.bf16.msra.mxu0 %v7488
        %9825 = vmatmul.bf16.gmra.mxu0 %v4755
        %v9826 = vpop.f32.mrf.mxu0
        %v9827 = vadd.f32 %v9798, %v9826
        %v9828 = vpop.f32.mrf.mxu0
        %v9829 = vadd.f32 %v9800, %v9828
        %9830 = vmatmul.bf16.gmra.mxu0 %v4785
        %v9831 = vpop.f32.mrf.mxu0
        %v9832 = vadd.f32 %v9803, %v9831
        %v9833 = vpop.f32.mrf.mxu0
        %v9834 = vadd.f32 %v9805, %v9833
        %9835 = vmatmul.bf16.gmra.mxu0 %v4815
        %v9836 = vpop.f32.mrf.mxu0
        %v9837 = vadd.f32 %v9808, %v9836
        %v9838 = vpop.f32.mrf.mxu0
        %v9839 = vadd.f32 %v9810, %v9838
        %9840 = vmatmul.bf16.gmra.mxu0 %v4845
        %v9841 = vpop.f32.mrf.mxu0
        %v9842 = vadd.f32 %v9813, %v9841
        %v9843 = vpop.f32.mrf.mxu0
        %v9844 = vadd.f32 %v9815, %v9843
        %9845 = vdwg.mxu0
        %9846 = vmatpush.bf16.msra.mxu0 %v7533
        %9847 = vmatpush.bf16.msra.mxu0 %v7530
        %9848 = vmatpush.bf16.msra.mxu0 %v7527
        %9849 = vmatpush.bf16.msra.mxu0 %v7524
        %9850 = vmatpush.bf16.msra.mxu0 %v7521
        %9851 = vmatpush.bf16.msra.mxu0 %v7518
        %9852 = vmatpush.bf16.msra.mxu0 %v7515
        %9853 = vmatpush.bf16.msra.mxu0 %v7512
        %9854 = vmatmul.bf16.gmra.mxu0 %v4756
        %v9855 = vpop.f32.mrf.mxu0
        %v9856 = vadd.f32 %v9827, %v9855
        %v9857 = vpop.f32.mrf.mxu0
        %v9858 = vadd.f32 %v9829, %v9857
        %9859 = vmatmul.bf16.gmra.mxu0 %v4786
        %v9860 = vpop.f32.mrf.mxu0
        %v9861 = vadd.f32 %v9832, %v9860
        %v9862 = vpop.f32.mrf.mxu0
        %v9863 = vadd.f32 %v9834, %v9862
        %9864 = vmatmul.bf16.gmra.mxu0 %v4816
        %v9865 = vpop.f32.mrf.mxu0
        %v9866 = vadd.f32 %v9837, %v9865
        %v9867 = vpop.f32.mrf.mxu0
        %v9868 = vadd.f32 %v9839, %v9867
        %9869 = vmatmul.bf16.gmra.mxu0 %v4846
        %v9870 = vpop.f32.mrf.mxu0
        %v9871 = vadd.f32 %v9842, %v9870
        %v9872 = vpop.f32.mrf.mxu0
        %v9873 = vadd.f32 %v9844, %v9872
        %9874 = vdwg.mxu0
        %9875 = vmatpush.bf16.msra.mxu0 %v7557
        %9876 = vmatpush.bf16.msra.mxu0 %v7554
        %9877 = vmatpush.bf16.msra.mxu0 %v7551
        %9878 = vmatpush.bf16.msra.mxu0 %v7548
        %9879 = vmatpush.bf16.msra.mxu0 %v7545
        %9880 = vmatpush.bf16.msra.mxu0 %v7542
        %9881 = vmatpush.bf16.msra.mxu0 %v7539
        %9882 = vmatpush.bf16.msra.mxu0 %v7536
        %9883 = vmatmul.bf16.gmra.mxu0 %v4757
        %v9884 = vpop.f32.mrf.mxu0
        %v9885 = vadd.f32 %v9856, %v9884
        %v9886 = vpop.f32.mrf.mxu0
        %v9887 = vadd.f32 %v9858, %v9886
        %9888 = vmatmul.bf16.gmra.mxu0 %v4787
        %v9889 = vpop.f32.mrf.mxu0
        %v9890 = vadd.f32 %v9861, %v9889
        %v9891 = vpop.f32.mrf.mxu0
        %v9892 = vadd.f32 %v9863, %v9891
        %9893 = vmatmul.bf16.gmra.mxu0 %v4817
        %v9894 = vpop.f32.mrf.mxu0
        %v9895 = vadd.f32 %v9866, %v9894
        %v9896 = vpop.f32.mrf.mxu0
        %v9897 = vadd.f32 %v9868, %v9896
        %9898 = vmatmul.bf16.gmra.mxu0 %v4847
        %v9899 = vpop.f32.mrf.mxu0
        %v9900 = vadd.f32 %v9871, %v9899
        %v9901 = vpop.f32.mrf.mxu0
        %v9902 = vadd.f32 %v9873, %v9901
        %9903 = vdwg.mxu0
        %9904 = vmatpush.bf16.msra.mxu0 %v7581
        %9905 = vmatpush.bf16.msra.mxu0 %v7578
        %9906 = vmatpush.bf16.msra.mxu0 %v7575
        %9907 = vmatpush.bf16.msra.mxu0 %v7572
        %9908 = vmatpush.bf16.msra.mxu0 %v7569
        %9909 = vmatpush.bf16.msra.mxu0 %v7566
        %9910 = vmatpush.bf16.msra.mxu0 %v7563
        %9911 = vmatpush.bf16.msra.mxu0 %v7560
        %9912 = vmatmul.bf16.gmra.mxu0 %v4758
        %v9913 = vpop.f32.mrf.mxu0
        %v9914 = vadd.f32 %v9885, %v9913
        %v9915 = vpop.f32.mrf.mxu0
        %v9916 = vadd.f32 %v9887, %v9915
        %9917 = vmatmul.bf16.gmra.mxu0 %v4788
        %v9918 = vpop.f32.mrf.mxu0
        %v9919 = vadd.f32 %v9890, %v9918
        %v9920 = vpop.f32.mrf.mxu0
        %v9921 = vadd.f32 %v9892, %v9920
        %9922 = vmatmul.bf16.gmra.mxu0 %v4818
        %v9923 = vpop.f32.mrf.mxu0
        %v9924 = vadd.f32 %v9895, %v9923
        %v9925 = vpop.f32.mrf.mxu0
        %v9926 = vadd.f32 %v9897, %v9925
        %9927 = vmatmul.bf16.gmra.mxu0 %v4848
        %v9928 = vpop.f32.mrf.mxu0
        %v9929 = vadd.f32 %v9900, %v9928
        %v9930 = vpop.f32.mrf.mxu0
        %v9931 = vadd.f32 %v9902, %v9930
        %9932 = vdwg.mxu0
        %9933 = vmatpush.bf16.msra.mxu0 %v7605
        %9934 = vmatpush.bf16.msra.mxu0 %v7602
        %9935 = vmatpush.bf16.msra.mxu0 %v7599
        %9936 = vmatpush.bf16.msra.mxu0 %v7596
        %9937 = vmatpush.bf16.msra.mxu0 %v7593
        %9938 = vmatpush.bf16.msra.mxu0 %v7590
        %9939 = vmatpush.bf16.msra.mxu0 %v7587
        %9940 = vmatpush.bf16.msra.mxu0 %v7584
        %9941 = vmatmul.bf16.gmra.mxu0 %v4759
        %v9942 = vpop.f32.mrf.mxu0
        %v9943 = vadd.f32 %v9914, %v9942
        %v9944 = vpop.f32.mrf.mxu0
        %v9945 = vadd.f32 %v9916, %v9944
        %9946 = vmatmul.bf16.gmra.mxu0 %v4789
        %v9947 = vpop.f32.mrf.mxu0
        %v9948 = vadd.f32 %v9919, %v9947
        %v9949 = vpop.f32.mrf.mxu0
        %v9950 = vadd.f32 %v9921, %v9949
        %9951 = vmatmul.bf16.gmra.mxu0 %v4819
        %v9952 = vpop.f32.mrf.mxu0
        %v9953 = vadd.f32 %v9924, %v9952
        %v9954 = vpop.f32.mrf.mxu0
        %v9955 = vadd.f32 %v9926, %v9954
        %9956 = vmatmul.bf16.gmra.mxu0 %v4849
        %v9957 = vpop.f32.mrf.mxu0
        %v9958 = vadd.f32 %v9929, %v9957
        %v9959 = vpop.f32.mrf.mxu0
        %v9960 = vadd.f32 %v9931, %v9959
        %9961 = vdwg.mxu0
        %9962 = vmatpush.bf16.msra.mxu0 %v7629
        %9963 = vmatpush.bf16.msra.mxu0 %v7626
        %9964 = vmatpush.bf16.msra.mxu0 %v7623
        %9965 = vmatpush.bf16.msra.mxu0 %v7620
        %9966 = vmatpush.bf16.msra.mxu0 %v7617
        %9967 = vmatpush.bf16.msra.mxu0 %v7614
        %9968 = vmatpush.bf16.msra.mxu0 %v7611
        %9969 = vmatpush.bf16.msra.mxu0 %v7608
        %9970 = vmatmul.bf16.gmra.mxu0 %v4760
        %v9971 = vpop.f32.mrf.mxu0
        %v9972 = vadd.f32 %v9943, %v9971
        %v9973 = vpop.f32.mrf.mxu0
        %v9974 = vadd.f32 %v9945, %v9973
        %9975 = vmatmul.bf16.gmra.mxu0 %v4790
        %v9976 = vpop.f32.mrf.mxu0
        %v9977 = vadd.f32 %v9948, %v9976
        %v9978 = vpop.f32.mrf.mxu0
        %v9979 = vadd.f32 %v9950, %v9978
        %9980 = vmatmul.bf16.gmra.mxu0 %v4820
        %v9981 = vpop.f32.mrf.mxu0
        %v9982 = vadd.f32 %v9953, %v9981
        %v9983 = vpop.f32.mrf.mxu0
        %v9984 = vadd.f32 %v9955, %v9983
        %9985 = vmatmul.bf16.gmra.mxu0 %v4850
        %v9986 = vpop.f32.mrf.mxu0
        %v9987 = vadd.f32 %v9958, %v9986
        %v9988 = vpop.f32.mrf.mxu0
        %v9989 = vadd.f32 %v9960, %v9988
        %9990 = vdwg.mxu0
        %9991 = vmatpush.bf16.msra.mxu0 %v7653
        %9992 = vmatpush.bf16.msra.mxu0 %v7650
        %9993 = vmatpush.bf16.msra.mxu0 %v7647
        %9994 = vmatpush.bf16.msra.mxu0 %v7644
        %9995 = vmatpush.bf16.msra.mxu0 %v7641
        %9996 = vmatpush.bf16.msra.mxu0 %v7638
        %9997 = vmatpush.bf16.msra.mxu0 %v7635
        %9998 = vmatpush.bf16.msra.mxu0 %v7632
        %9999 = vmatmul.bf16.gmra.mxu0 %v4761
        %v10000 = vpop.f32.mrf.mxu0
        %v10001 = vadd.f32 %v9972, %v10000
        %v10002 = vpop.f32.mrf.mxu0
        %v10003 = vadd.f32 %v9974, %v10002
        %10004 = vmatmul.bf16.gmra.mxu0 %v4791
        %v10005 = vpop.f32.mrf.mxu0
        %v10006 = vadd.f32 %v9977, %v10005
        %v10007 = vpop.f32.mrf.mxu0
        %v10008 = vadd.f32 %v9979, %v10007
        %10009 = vmatmul.bf16.gmra.mxu0 %v4821
        %v10010 = vpop.f32.mrf.mxu0
        %v10011 = vadd.f32 %v9982, %v10010
        %v10012 = vpop.f32.mrf.mxu0
        %v10013 = vadd.f32 %v9984, %v10012
        %10014 = vmatmul.bf16.gmra.mxu0 %v4851
        %v10015 = vpop.f32.mrf.mxu0
        %v10016 = vadd.f32 %v9987, %v10015
        %v10017 = vpop.f32.mrf.mxu0
        %v10018 = vadd.f32 %v9989, %v10017
        %10019 = vdwg.mxu0
        %10020 = vmatpush.bf16.msra.mxu0 %v7677
        %10021 = vmatpush.bf16.msra.mxu0 %v7674
        %10022 = vmatpush.bf16.msra.mxu0 %v7671
        %10023 = vmatpush.bf16.msra.mxu0 %v7668
        %10024 = vmatpush.bf16.msra.mxu0 %v7665
        %10025 = vmatpush.bf16.msra.mxu0 %v7662
        %10026 = vmatpush.bf16.msra.mxu0 %v7659
        %10027 = vmatpush.bf16.msra.mxu0 %v7656
        %10028 = vmatmul.bf16.gmra.mxu0 %v4762
        %v10029 = vpop.f32.mrf.mxu0
        %v10030 = vadd.f32 %v10001, %v10029
        %v10031 = vpop.f32.mrf.mxu0
        %v10032 = vadd.f32 %v10003, %v10031
        %10033 = vmatmul.bf16.gmra.mxu0 %v4792
        %v10034 = vpop.f32.mrf.mxu0
        %v10035 = vadd.f32 %v10006, %v10034
        %v10036 = vpop.f32.mrf.mxu0
        %v10037 = vadd.f32 %v10008, %v10036
        %10038 = vmatmul.bf16.gmra.mxu0 %v4822
        %v10039 = vpop.f32.mrf.mxu0
        %v10040 = vadd.f32 %v10011, %v10039
        %v10041 = vpop.f32.mrf.mxu0
        %v10042 = vadd.f32 %v10013, %v10041
        %10043 = vmatmul.bf16.gmra.mxu0 %v4852
        %v10044 = vpop.f32.mrf.mxu0
        %v10045 = vadd.f32 %v10016, %v10044
        %v10046 = vpop.f32.mrf.mxu0
        %v10047 = vadd.f32 %v10018, %v10046
        %10048 = vdwg.mxu0
        %10049 = vmatpush.bf16.msra.mxu0 %v7701
        %10050 = vmatpush.bf16.msra.mxu0 %v7698
        %10051 = vmatpush.bf16.msra.mxu0 %v7695
        %10052 = vmatpush.bf16.msra.mxu0 %v7692
        %10053 = vmatpush.bf16.msra.mxu0 %v7689
        %10054 = vmatpush.bf16.msra.mxu0 %v7686
        %10055 = vmatpush.bf16.msra.mxu0 %v7683
        %10056 = vmatpush.bf16.msra.mxu0 %v7680
        %10057 = vmatmul.bf16.gmra.mxu0 %v4763
        %v10058 = vpop.f32.mrf.mxu0
        %v10059 = vadd.f32 %v10030, %v10058
        %v10060 = vpop.f32.mrf.mxu0
        %v10061 = vadd.f32 %v10032, %v10060
        %10062 = vmatmul.bf16.gmra.mxu0 %v4793
        %v10063 = vpop.f32.mrf.mxu0
        %v10064 = vadd.f32 %v10035, %v10063
        %v10065 = vpop.f32.mrf.mxu0
        %v10066 = vadd.f32 %v10037, %v10065
        %10067 = vmatmul.bf16.gmra.mxu0 %v4823
        %v10068 = vpop.f32.mrf.mxu0
        %v10069 = vadd.f32 %v10040, %v10068
        %v10070 = vpop.f32.mrf.mxu0
        %v10071 = vadd.f32 %v10042, %v10070
        %10072 = vmatmul.bf16.gmra.mxu0 %v4853
        %v10073 = vpop.f32.mrf.mxu0
        %v10074 = vadd.f32 %v10045, %v10073
        %v10075 = vpop.f32.mrf.mxu0
        %v10076 = vadd.f32 %v10047, %v10075
        %10077 = vdwg.mxu0
        %10078 = vmatpush.bf16.msra.mxu0 %v7725
        %10079 = vmatpush.bf16.msra.mxu0 %v7722
        %10080 = vmatpush.bf16.msra.mxu0 %v7719
        %10081 = vmatpush.bf16.msra.mxu0 %v7716
        %10082 = vmatpush.bf16.msra.mxu0 %v7713
        %10083 = vmatpush.bf16.msra.mxu0 %v7710
        %10084 = vmatpush.bf16.msra.mxu0 %v7707
        %10085 = vmatpush.bf16.msra.mxu0 %v7704
        %10086 = vmatmul.bf16.gmra.mxu0 %v4764
        %v10087 = vpop.f32.mrf.mxu0
        %v10088 = vadd.f32 %v10059, %v10087
        %v10089 = vpop.f32.mrf.mxu0
        %v10090 = vadd.f32 %v10061, %v10089
        %10091 = vmatmul.bf16.gmra.mxu0 %v4794
        %v10092 = vpop.f32.mrf.mxu0
        %v10093 = vadd.f32 %v10064, %v10092
        %v10094 = vpop.f32.mrf.mxu0
        %v10095 = vadd.f32 %v10066, %v10094
        %10096 = vmatmul.bf16.gmra.mxu0 %v4824
        %v10097 = vpop.f32.mrf.mxu0
        %v10098 = vadd.f32 %v10069, %v10097
        %v10099 = vpop.f32.mrf.mxu0
        %v10100 = vadd.f32 %v10071, %v10099
        %10101 = vmatmul.bf16.gmra.mxu0 %v4854
        %v10102 = vpop.f32.mrf.mxu0
        %v10103 = vadd.f32 %v10074, %v10102
        %v10104 = vpop.f32.mrf.mxu0
        %v10105 = vadd.f32 %v10076, %v10104
        %10106 = vdwg.mxu0
        %10107 = vmatpush.bf16.msra.mxu0 %v7749
        %10108 = vmatpush.bf16.msra.mxu0 %v7746
        %10109 = vmatpush.bf16.msra.mxu0 %v7743
        %10110 = vmatpush.bf16.msra.mxu0 %v7740
        %10111 = vmatpush.bf16.msra.mxu0 %v7737
        %10112 = vmatpush.bf16.msra.mxu0 %v7734
        %10113 = vmatpush.bf16.msra.mxu0 %v7731
        %10114 = vmatpush.bf16.msra.mxu0 %v7728
        %10115 = vmatmul.bf16.gmra.mxu0 %v4765
        %v10116 = vpop.f32.mrf.mxu0
        %v10117 = vadd.f32 %v10088, %v10116
        %v10118 = vpop.f32.mrf.mxu0
        %v10119 = vadd.f32 %v10090, %v10118
        %10120 = vmatmul.bf16.gmra.mxu0 %v4795
        %v10121 = vpop.f32.mrf.mxu0
        %v10122 = vadd.f32 %v10093, %v10121
        %v10123 = vpop.f32.mrf.mxu0
        %v10124 = vadd.f32 %v10095, %v10123
        %10125 = vmatmul.bf16.gmra.mxu0 %v4825
        %v10126 = vpop.f32.mrf.mxu0
        %v10127 = vadd.f32 %v10098, %v10126
        %v10128 = vpop.f32.mrf.mxu0
        %v10129 = vadd.f32 %v10100, %v10128
        %10130 = vmatmul.bf16.gmra.mxu0 %v4855
        %v10131 = vpop.f32.mrf.mxu0
        %v10132 = vadd.f32 %v10103, %v10131
        %v10133 = vpop.f32.mrf.mxu0
        %v10134 = vadd.f32 %v10105, %v10133
        %10135 = vdwg.mxu0
        %10136 = vmatpush.bf16.msra.mxu0 %v7773
        %10137 = vmatpush.bf16.msra.mxu0 %v7770
        %10138 = vmatpush.bf16.msra.mxu0 %v7767
        %10139 = vmatpush.bf16.msra.mxu0 %v7764
        %10140 = vmatpush.bf16.msra.mxu0 %v7761
        %10141 = vmatpush.bf16.msra.mxu0 %v7758
        %10142 = vmatpush.bf16.msra.mxu0 %v7755
        %10143 = vmatpush.bf16.msra.mxu0 %v7752
        %10144 = vmatmul.bf16.gmra.mxu0 %v4766
        %v10145 = vpop.f32.mrf.mxu0
        %v10146 = vadd.f32 %v10117, %v10145
        %v10147 = vpop.f32.mrf.mxu0
        %v10148 = vadd.f32 %v10119, %v10147
        %10149 = vmatmul.bf16.gmra.mxu0 %v4796
        %v10150 = vpop.f32.mrf.mxu0
        %v10151 = vadd.f32 %v10122, %v10150
        %v10152 = vpop.f32.mrf.mxu0
        %v10153 = vadd.f32 %v10124, %v10152
        %10154 = vmatmul.bf16.gmra.mxu0 %v4826
        %v10155 = vpop.f32.mrf.mxu0
        %v10156 = vadd.f32 %v10127, %v10155
        %v10157 = vpop.f32.mrf.mxu0
        %v10158 = vadd.f32 %v10129, %v10157
        %10159 = vmatmul.bf16.gmra.mxu0 %v4856
        %v10160 = vpop.f32.mrf.mxu0
        %v10161 = vadd.f32 %v10132, %v10160
        %v10162 = vpop.f32.mrf.mxu0
        %v10163 = vadd.f32 %v10134, %v10162
        %10164 = vdwg.mxu0
        %10165 = vmatpush.bf16.msra.mxu0 %v7797
        %10166 = vmatpush.bf16.msra.mxu0 %v7794
        %10167 = vmatpush.bf16.msra.mxu0 %v7791
        %10168 = vmatpush.bf16.msra.mxu0 %v7788
        %10169 = vmatpush.bf16.msra.mxu0 %v7785
        %10170 = vmatpush.bf16.msra.mxu0 %v7782
        %10171 = vmatpush.bf16.msra.mxu0 %v7779
        %10172 = vmatpush.bf16.msra.mxu0 %v7776
        %10173 = vmatmul.bf16.gmra.mxu0 %v4767
        %v10174 = vpop.f32.mrf.mxu0
        %v10175 = vadd.f32 %v10146, %v10174
        %v10176 = vpop.f32.mrf.mxu0
        %v10177 = vadd.f32 %v10148, %v10176
        %10178 = vmatmul.bf16.gmra.mxu0 %v4797
        %v10179 = vpop.f32.mrf.mxu0
        %v10180 = vadd.f32 %v10151, %v10179
        %v10181 = vpop.f32.mrf.mxu0
        %v10182 = vadd.f32 %v10153, %v10181
        %10183 = vmatmul.bf16.gmra.mxu0 %v4827
        %v10184 = vpop.f32.mrf.mxu0
        %v10185 = vadd.f32 %v10156, %v10184
        %v10186 = vpop.f32.mrf.mxu0
        %v10187 = vadd.f32 %v10158, %v10186
        %10188 = vmatmul.bf16.gmra.mxu0 %v4857
        %v10189 = vpop.f32.mrf.mxu0
        %v10190 = vadd.f32 %v10161, %v10189
        %v10191 = vpop.f32.mrf.mxu0
        %v10192 = vadd.f32 %v10163, %v10191
        %10193 = vdwg.mxu0
        %10194 = vmatpush.bf16.msra.mxu0 %v7821
        %10195 = vmatpush.bf16.msra.mxu0 %v7818
        %10196 = vmatpush.bf16.msra.mxu0 %v7815
        %10197 = vmatpush.bf16.msra.mxu0 %v7812
        %10198 = vmatpush.bf16.msra.mxu0 %v7809
        %10199 = vmatpush.bf16.msra.mxu0 %v7806
        %10200 = vmatpush.bf16.msra.mxu0 %v7803
        %10201 = vmatpush.bf16.msra.mxu0 %v7800
        %10202 = vmatmul.bf16.gmra.mxu0 %v4768
        %v10203 = vpop.f32.mrf.mxu0
        %v10204 = vadd.f32 %v10175, %v10203
        %v10205 = vpop.f32.mrf.mxu0
        %v10206 = vadd.f32 %v10177, %v10205
        %10207 = vmatmul.bf16.gmra.mxu0 %v4798
        %v10208 = vpop.f32.mrf.mxu0
        %v10209 = vadd.f32 %v10180, %v10208
        %v10210 = vpop.f32.mrf.mxu0
        %v10211 = vadd.f32 %v10182, %v10210
        %10212 = vmatmul.bf16.gmra.mxu0 %v4828
        %v10213 = vpop.f32.mrf.mxu0
        %v10214 = vadd.f32 %v10185, %v10213
        %v10215 = vpop.f32.mrf.mxu0
        %v10216 = vadd.f32 %v10187, %v10215
        %10217 = vmatmul.bf16.gmra.mxu0 %v4858
        %v10218 = vpop.f32.mrf.mxu0
        %v10219 = vadd.f32 %v10190, %v10218
        %v10220 = vpop.f32.mrf.mxu0
        %v10221 = vadd.f32 %v10192, %v10220
        %10222 = vdwg.mxu0
        %10223 = vmatpush.bf16.msra.mxu0 %v7845
        %10224 = vmatpush.bf16.msra.mxu0 %v7842
        %10225 = vmatpush.bf16.msra.mxu0 %v7839
        %10226 = vmatpush.bf16.msra.mxu0 %v7836
        %10227 = vmatpush.bf16.msra.mxu0 %v7833
        %10228 = vmatpush.bf16.msra.mxu0 %v7830
        %10229 = vmatpush.bf16.msra.mxu0 %v7827
        %10230 = vmatpush.bf16.msra.mxu0 %v7824
        %10231 = vmatmul.bf16.gmra.mxu0 %v4769
        %v10232 = vpop.f32.mrf.mxu0
        %v10233 = vadd.f32 %v10204, %v10232
        %v10234 = vpop.f32.mrf.mxu0
        %v10235 = vadd.f32 %v10206, %v10234
        %10236 = vmatmul.bf16.gmra.mxu0 %v4799
        %v10237 = vpop.f32.mrf.mxu0
        %v10238 = vadd.f32 %v10209, %v10237
        %v10239 = vpop.f32.mrf.mxu0
        %v10240 = vadd.f32 %v10211, %v10239
        %10241 = vmatmul.bf16.gmra.mxu0 %v4829
        %v10242 = vpop.f32.mrf.mxu0
        %v10243 = vadd.f32 %v10214, %v10242
        %v10244 = vpop.f32.mrf.mxu0
        %v10245 = vadd.f32 %v10216, %v10244
        %10246 = vmatmul.bf16.gmra.mxu0 %v4859
        %v10247 = vpop.f32.mrf.mxu0
        %v10248 = vadd.f32 %v10219, %v10247
        %v10249 = vpop.f32.mrf.mxu0
        %v10250 = vadd.f32 %v10221, %v10249
        %10251 = vdwg.mxu0
        %10252 = vmatpush.bf16.msra.mxu0 %v7869
        %10253 = vmatpush.bf16.msra.mxu0 %v7866
        %10254 = vmatpush.bf16.msra.mxu0 %v7863
        %10255 = vmatpush.bf16.msra.mxu0 %v7860
        %10256 = vmatpush.bf16.msra.mxu0 %v7857
        %10257 = vmatpush.bf16.msra.mxu0 %v7854
        %10258 = vmatpush.bf16.msra.mxu0 %v7851
        %10259 = vmatpush.bf16.msra.mxu0 %v7848
        %10260 = vmatmul.bf16.gmra.mxu0 %v4770
        %v10261 = vpop.f32.mrf.mxu0
        %v10262 = vadd.f32 %v10233, %v10261
        %v10263 = vpop.f32.mrf.mxu0
        %v10264 = vadd.f32 %v10235, %v10263
        %10265 = vmatmul.bf16.gmra.mxu0 %v4800
        %v10266 = vpop.f32.mrf.mxu0
        %v10267 = vadd.f32 %v10238, %v10266
        %v10268 = vpop.f32.mrf.mxu0
        %v10269 = vadd.f32 %v10240, %v10268
        %10270 = vmatmul.bf16.gmra.mxu0 %v4830
        %v10271 = vpop.f32.mrf.mxu0
        %v10272 = vadd.f32 %v10243, %v10271
        %v10273 = vpop.f32.mrf.mxu0
        %v10274 = vadd.f32 %v10245, %v10273
        %10275 = vmatmul.bf16.gmra.mxu0 %v4860
        %v10276 = vpop.f32.mrf.mxu0
        %v10277 = vadd.f32 %v10248, %v10276
        %v10278 = vpop.f32.mrf.mxu0
        %v10279 = vadd.f32 %v10250, %v10278
        %10280 = vdwg.mxu0
        %10281 = vmatpush.bf16.msra.mxu0 %v7893
        %10282 = vmatpush.bf16.msra.mxu0 %v7890
        %10283 = vmatpush.bf16.msra.mxu0 %v7887
        %10284 = vmatpush.bf16.msra.mxu0 %v7884
        %10285 = vmatpush.bf16.msra.mxu0 %v7881
        %10286 = vmatpush.bf16.msra.mxu0 %v7878
        %10287 = vmatpush.bf16.msra.mxu0 %v7875
        %10288 = vmatpush.bf16.msra.mxu0 %v7872
        %10289 = vmatmul.bf16.gmra.mxu0 %v4771
        %v10290 = vpop.f32.mrf.mxu0
        %v10291 = vadd.f32 %v10262, %v10290
        %v10292 = vpop.f32.mrf.mxu0
        %v10293 = vadd.f32 %v10264, %v10292
        %10294 = vmatmul.bf16.gmra.mxu0 %v4801
        %v10295 = vpop.f32.mrf.mxu0
        %v10296 = vadd.f32 %v10267, %v10295
        %v10297 = vpop.f32.mrf.mxu0
        %v10298 = vadd.f32 %v10269, %v10297
        %10299 = vmatmul.bf16.gmra.mxu0 %v4831
        %v10300 = vpop.f32.mrf.mxu0
        %v10301 = vadd.f32 %v10272, %v10300
        %v10302 = vpop.f32.mrf.mxu0
        %v10303 = vadd.f32 %v10274, %v10302
        %10304 = vmatmul.bf16.gmra.mxu0 %v4861
        %v10305 = vpop.f32.mrf.mxu0
        %v10306 = vadd.f32 %v10277, %v10305
        %v10307 = vpop.f32.mrf.mxu0
        %v10308 = vadd.f32 %v10279, %v10307
        %10309 = vdwg.mxu0
        %10310 = vmatpush.bf16.msra.mxu0 %v7917
        %10311 = vmatpush.bf16.msra.mxu0 %v7914
        %10312 = vmatpush.bf16.msra.mxu0 %v7911
        %10313 = vmatpush.bf16.msra.mxu0 %v7908
        %10314 = vmatpush.bf16.msra.mxu0 %v7905
        %10315 = vmatpush.bf16.msra.mxu0 %v7902
        %10316 = vmatpush.bf16.msra.mxu0 %v7899
        %10317 = vmatpush.bf16.msra.mxu0 %v7896
        %10318 = vmatmul.bf16.gmra.mxu0 %v4772
        %v10319 = vpop.f32.mrf.mxu0
        %v10320 = vadd.f32 %v10291, %v10319
        %v10321 = vpop.f32.mrf.mxu0
        %v10322 = vadd.f32 %v10293, %v10321
        %10323 = vmatmul.bf16.gmra.mxu0 %v4802
        %v10324 = vpop.f32.mrf.mxu0
        %v10325 = vadd.f32 %v10296, %v10324
        %v10326 = vpop.f32.mrf.mxu0
        %v10327 = vadd.f32 %v10298, %v10326
        %10328 = vmatmul.bf16.gmra.mxu0 %v4832
        %v10329 = vpop.f32.mrf.mxu0
        %v10330 = vadd.f32 %v10301, %v10329
        %v10331 = vpop.f32.mrf.mxu0
        %v10332 = vadd.f32 %v10303, %v10331
        %10333 = vmatmul.bf16.gmra.mxu0 %v4862
        %v10334 = vpop.f32.mrf.mxu0
        %v10335 = vadd.f32 %v10306, %v10334
        %v10336 = vpop.f32.mrf.mxu0
        %v10337 = vadd.f32 %v10308, %v10336
        %10338 = vdwg.mxu0
        %10339 = vmatpush.bf16.msra.mxu0 %v7941
        %10340 = vmatpush.bf16.msra.mxu0 %v7938
        %10341 = vmatpush.bf16.msra.mxu0 %v7935
        %10342 = vmatpush.bf16.msra.mxu0 %v7932
        %10343 = vmatpush.bf16.msra.mxu0 %v7929
        %10344 = vmatpush.bf16.msra.mxu0 %v7926
        %10345 = vmatpush.bf16.msra.mxu0 %v7923
        %10346 = vmatpush.bf16.msra.mxu0 %v7920
        %10347 = vmatmul.bf16.gmra.mxu0 %v4773
        %v10348 = vpop.f32.mrf.mxu0
        %v10349 = vadd.f32 %v10320, %v10348
        %v10350 = vpop.f32.mrf.mxu0
        %v10351 = vadd.f32 %v10322, %v10350
        %10352 = vmatmul.bf16.gmra.mxu0 %v4803
        %v10353 = vpop.f32.mrf.mxu0
        %v10354 = vadd.f32 %v10325, %v10353
        %v10355 = vpop.f32.mrf.mxu0
        %v10356 = vadd.f32 %v10327, %v10355
        %10357 = vmatmul.bf16.gmra.mxu0 %v4833
        %v10358 = vpop.f32.mrf.mxu0
        %v10359 = vadd.f32 %v10330, %v10358
        %v10360 = vpop.f32.mrf.mxu0
        %v10361 = vadd.f32 %v10332, %v10360
        %10362 = vmatmul.bf16.gmra.mxu0 %v4863
        %v10363 = vpop.f32.mrf.mxu0
        %v10364 = vadd.f32 %v10335, %v10363
        %v10365 = vpop.f32.mrf.mxu0
        %v10366 = vadd.f32 %v10337, %v10365
        %10367 = vdwg.mxu0
        %10368 = vmatpush.bf16.msra.mxu0 %v7965
        %10369 = vmatpush.bf16.msra.mxu0 %v7962
        %10370 = vmatpush.bf16.msra.mxu0 %v7959
        %10371 = vmatpush.bf16.msra.mxu0 %v7956
        %10372 = vmatpush.bf16.msra.mxu0 %v7953
        %10373 = vmatpush.bf16.msra.mxu0 %v7950
        %10374 = vmatpush.bf16.msra.mxu0 %v7947
        %10375 = vmatpush.bf16.msra.mxu0 %v7944
        %10376 = vmatmul.bf16.gmra.mxu0 %v4774
        %v10377 = vpop.f32.mrf.mxu0
        %v10378 = vadd.f32 %v10349, %v10377
        %v10379 = vpop.f32.mrf.mxu0
        %v10380 = vadd.f32 %v10351, %v10379
        %10381 = vmatmul.bf16.gmra.mxu0 %v4804
        %v10382 = vpop.f32.mrf.mxu0
        %v10383 = vadd.f32 %v10354, %v10382
        %v10384 = vpop.f32.mrf.mxu0
        %v10385 = vadd.f32 %v10356, %v10384
        %10386 = vmatmul.bf16.gmra.mxu0 %v4834
        %v10387 = vpop.f32.mrf.mxu0
        %v10388 = vadd.f32 %v10359, %v10387
        %v10389 = vpop.f32.mrf.mxu0
        %v10390 = vadd.f32 %v10361, %v10389
        %10391 = vmatmul.bf16.gmra.mxu0 %v4864
        %v10392 = vpop.f32.mrf.mxu0
        %v10393 = vadd.f32 %v10364, %v10392
        %v10394 = vpop.f32.mrf.mxu0
        %v10395 = vadd.f32 %v10366, %v10394
        %10396 = vdwg.mxu0
        %10397 = vmatpush.bf16.msra.mxu0 %v7989
        %10398 = vmatpush.bf16.msra.mxu0 %v7986
        %10399 = vmatpush.bf16.msra.mxu0 %v7983
        %10400 = vmatpush.bf16.msra.mxu0 %v7980
        %10401 = vmatpush.bf16.msra.mxu0 %v7977
        %10402 = vmatpush.bf16.msra.mxu0 %v7974
        %10403 = vmatpush.bf16.msra.mxu0 %v7971
        %10404 = vmatpush.bf16.msra.mxu0 %v7968
        %10405 = vmatmul.bf16.gmra.mxu0 %v4775
        %v10406 = vpop.f32.mrf.mxu0
        %v10407 = vadd.f32 %v10378, %v10406
        %v10408 = vpop.f32.mrf.mxu0
        %v10409 = vadd.f32 %v10380, %v10408
        %10410 = vmatmul.bf16.gmra.mxu0 %v4805
        %v10411 = vpop.f32.mrf.mxu0
        %v10412 = vadd.f32 %v10383, %v10411
        %v10413 = vpop.f32.mrf.mxu0
        %v10414 = vadd.f32 %v10385, %v10413
        %10415 = vmatmul.bf16.gmra.mxu0 %v4835
        %v10416 = vpop.f32.mrf.mxu0
        %v10417 = vadd.f32 %v10388, %v10416
        %v10418 = vpop.f32.mrf.mxu0
        %v10419 = vadd.f32 %v10390, %v10418
        %10420 = vmatmul.bf16.gmra.mxu0 %v4865
        %v10421 = vpop.f32.mrf.mxu0
        %v10422 = vadd.f32 %v10393, %v10421
        %v10423 = vpop.f32.mrf.mxu0
        %v10424 = vadd.f32 %v10395, %v10423
        %10425 = vdwg.mxu0
        %10426 = vmatpush.bf16.msra.mxu0 %v8013
        %10427 = vmatpush.bf16.msra.mxu0 %v8010
        %10428 = vmatpush.bf16.msra.mxu0 %v8007
        %10429 = vmatpush.bf16.msra.mxu0 %v8004
        %10430 = vmatpush.bf16.msra.mxu0 %v8001
        %10431 = vmatpush.bf16.msra.mxu0 %v7998
        %10432 = vmatpush.bf16.msra.mxu0 %v7995
        %10433 = vmatpush.bf16.msra.mxu0 %v7992
        %10434 = vmatmul.bf16.gmra.mxu0 %v4776
        %v10435 = vpop.f32.mrf.mxu0
        %v10436 = vadd.f32 %v10407, %v10435
        %v10437 = vpop.f32.mrf.mxu0
        %v10438 = vadd.f32 %v10409, %v10437
        %10439 = vmatmul.bf16.gmra.mxu0 %v4806
        %v10440 = vpop.f32.mrf.mxu0
        %v10441 = vadd.f32 %v10412, %v10440
        %v10442 = vpop.f32.mrf.mxu0
        %v10443 = vadd.f32 %v10414, %v10442
        %10444 = vmatmul.bf16.gmra.mxu0 %v4836
        %v10445 = vpop.f32.mrf.mxu0
        %v10446 = vadd.f32 %v10417, %v10445
        %v10447 = vpop.f32.mrf.mxu0
        %v10448 = vadd.f32 %v10419, %v10447
        %10449 = vmatmul.bf16.gmra.mxu0 %v4866
        %v10450 = vpop.f32.mrf.mxu0
        %v10451 = vadd.f32 %v10422, %v10450
        %v10452 = vpop.f32.mrf.mxu0
        %v10453 = vadd.f32 %v10424, %v10452
        %10454 = vdwg.mxu0
        %10455 = vmatpush.bf16.msra.mxu0 %v8037
        %10456 = vmatpush.bf16.msra.mxu0 %v8034
        %10457 = vmatpush.bf16.msra.mxu0 %v8031
        %10458 = vmatpush.bf16.msra.mxu0 %v8028
        %10459 = vmatpush.bf16.msra.mxu0 %v8025
        %10460 = vmatpush.bf16.msra.mxu0 %v8022
        %10461 = vmatpush.bf16.msra.mxu0 %v8019
        %10462 = vmatpush.bf16.msra.mxu0 %v8016
        %10463 = vmatmul.bf16.gmra.mxu0 %v4777
        %v10464 = vpop.f32.mrf.mxu0
        %v10465 = vadd.f32 %v10436, %v10464
        %v10466 = vpop.f32.mrf.mxu0
        %v10467 = vadd.f32 %v10438, %v10466
        %10468 = vmatmul.bf16.gmra.mxu0 %v4807
        %v10469 = vpop.f32.mrf.mxu0
        %v10470 = vadd.f32 %v10441, %v10469
        %v10471 = vpop.f32.mrf.mxu0
        %v10472 = vadd.f32 %v10443, %v10471
        %10473 = vmatmul.bf16.gmra.mxu0 %v4837
        %v10474 = vpop.f32.mrf.mxu0
        %v10475 = vadd.f32 %v10446, %v10474
        %v10476 = vpop.f32.mrf.mxu0
        %v10477 = vadd.f32 %v10448, %v10476
        %10478 = vmatmul.bf16.gmra.mxu0 %v4867
        %v10479 = vpop.f32.mrf.mxu0
        %v10480 = vadd.f32 %v10451, %v10479
        %v10481 = vpop.f32.mrf.mxu0
        %v10482 = vadd.f32 %v10453, %v10481
        %10483 = vdwg.mxu0
        %10484 = vmatpush.bf16.msra.mxu0 %v8061
        %10485 = vmatpush.bf16.msra.mxu0 %v8058
        %10486 = vmatpush.bf16.msra.mxu0 %v8055
        %10487 = vmatpush.bf16.msra.mxu0 %v8052
        %10488 = vmatpush.bf16.msra.mxu0 %v8049
        %10489 = vmatpush.bf16.msra.mxu0 %v8046
        %10490 = vmatpush.bf16.msra.mxu0 %v8043
        %10491 = vmatpush.bf16.msra.mxu0 %v8040
        %10492 = vmatmul.bf16.gmra.mxu0 %v4778
        %v10493 = vpop.f32.mrf.mxu0
        %v10494 = vadd.f32 %v10465, %v10493
        %v10495 = vpop.f32.mrf.mxu0
        %v10496 = vadd.f32 %v10467, %v10495
        %10497 = vmatmul.bf16.gmra.mxu0 %v4808
        %v10498 = vpop.f32.mrf.mxu0
        %v10499 = vadd.f32 %v10470, %v10498
        %v10500 = vpop.f32.mrf.mxu0
        %v10501 = vadd.f32 %v10472, %v10500
        %10502 = vmatmul.bf16.gmra.mxu0 %v4838
        %v10503 = vpop.f32.mrf.mxu0
        %v10504 = vadd.f32 %v10475, %v10503
        %v10505 = vpop.f32.mrf.mxu0
        %v10506 = vadd.f32 %v10477, %v10505
        %10507 = vmatmul.bf16.gmra.mxu0 %v4868
        %v10508 = vpop.f32.mrf.mxu0
        %v10509 = vadd.f32 %v10480, %v10508
        %v10510 = vpop.f32.mrf.mxu0
        %v10511 = vadd.f32 %v10482, %v10510
        %10512 = vdwg.mxu0
        %10513 = vmatpush.bf16.msra.mxu0 %v8085
        %10514 = vmatpush.bf16.msra.mxu0 %v8082
        %10515 = vmatpush.bf16.msra.mxu0 %v8079
        %10516 = vmatpush.bf16.msra.mxu0 %v8076
        %10517 = vmatpush.bf16.msra.mxu0 %v8073
        %10518 = vmatpush.bf16.msra.mxu0 %v8070
        %10519 = vmatpush.bf16.msra.mxu0 %v8067
        %10520 = vmatpush.bf16.msra.mxu0 %v8064
        %10521 = vmatmul.bf16.gmra.mxu0 %v4779
        %v10522 = vpop.f32.mrf.mxu0
        %v10523 = vadd.f32 %v10494, %v10522
        %v10524 = vpop.f32.mrf.mxu0
        %v10525 = vadd.f32 %v10496, %v10524
        %10526 = vmatmul.bf16.gmra.mxu0 %v4809
        %v10527 = vpop.f32.mrf.mxu0
        %v10528 = vadd.f32 %v10499, %v10527
        %v10529 = vpop.f32.mrf.mxu0
        %v10530 = vadd.f32 %v10501, %v10529
        %10531 = vmatmul.bf16.gmra.mxu0 %v4839
        %v10532 = vpop.f32.mrf.mxu0
        %v10533 = vadd.f32 %v10504, %v10532
        %v10534 = vpop.f32.mrf.mxu0
        %v10535 = vadd.f32 %v10506, %v10534
        %10536 = vmatmul.bf16.gmra.mxu0 %v4869
        %v10537 = vpop.f32.mrf.mxu0
        %v10538 = vadd.f32 %v10509, %v10537
        %v10539 = vpop.f32.mrf.mxu0
        %v10540 = vadd.f32 %v10511, %v10539
        %10541 = vdwg.mxu0
        %10542 = vmatpush.bf16.msra.mxu0 %v8109
        %10543 = vmatpush.bf16.msra.mxu0 %v8106
        %10544 = vmatpush.bf16.msra.mxu0 %v8103
        %10545 = vmatpush.bf16.msra.mxu0 %v8100
        %10546 = vmatpush.bf16.msra.mxu0 %v8097
        %10547 = vmatpush.bf16.msra.mxu0 %v8094
        %10548 = vmatpush.bf16.msra.mxu0 %v8091
        %10549 = vmatpush.bf16.msra.mxu0 %v8088
        %10550 = vmatmul.bf16.gmra.mxu0 %v4780
        %v10551 = vpop.f32.mrf.mxu0
        %v10552 = vadd.f32 %v10523, %v10551
        %v10553 = vpop.f32.mrf.mxu0
        %v10554 = vadd.f32 %v10525, %v10553
        %10555 = vmatmul.bf16.gmra.mxu0 %v4810
        %v10556 = vpop.f32.mrf.mxu0
        %v10557 = vadd.f32 %v10528, %v10556
        %v10558 = vpop.f32.mrf.mxu0
        %v10559 = vadd.f32 %v10530, %v10558
        %10560 = vmatmul.bf16.gmra.mxu0 %v4840
        %v10561 = vpop.f32.mrf.mxu0
        %v10562 = vadd.f32 %v10533, %v10561
        %v10563 = vpop.f32.mrf.mxu0
        %v10564 = vadd.f32 %v10535, %v10563
        %10565 = vmatmul.bf16.gmra.mxu0 %v4870
        %v10566 = vpop.f32.mrf.mxu0
        %v10567 = vadd.f32 %v10538, %v10566
        %v10568 = vpop.f32.mrf.mxu0
        %v10569 = vadd.f32 %v10540, %v10568
        %10570 = vdwg.mxu0
        %10571 = vmatpush.bf16.msra.mxu0 %v7414
        %10572 = vmatpush.bf16.msra.mxu0 %v7411
        %10573 = vmatpush.bf16.msra.mxu0 %v7408
        %10574 = vmatpush.bf16.msra.mxu0 %v7405
        %10575 = vmatpush.bf16.msra.mxu0 %v7402
        %10576 = vmatpush.bf16.msra.mxu0 %v7399
        %10577 = vmatpush.bf16.msra.mxu0 %v7396
        %10578 = vmatpush.bf16.msra.mxu0 %v7393
        %10579 = vmatmul.bf16.gmra.mxu0 %v4751
        %v10580 = vpop.f32.mrf.mxu0
        %v10581 = vadd.f32 0.0, %v10580
        %v10582 = vpop.f32.mrf.mxu0
        %v10583 = vadd.f32 0.0, %v10582
        %10584 = vmatmul.bf16.gmra.mxu0 %v4781
        %v10585 = vpop.f32.mrf.mxu0
        %v10586 = vadd.f32 0.0, %v10585
        %v10587 = vpop.f32.mrf.mxu0
        %v10588 = vadd.f32 0.0, %v10587
        %10589 = vmatmul.bf16.gmra.mxu0 %v4811
        %v10590 = vpop.f32.mrf.mxu0
        %v10591 = vadd.f32 0.0, %v10590
        %v10592 = vpop.f32.mrf.mxu0
        %v10593 = vadd.f32 0.0, %v10592
        %10594 = vmatmul.bf16.gmra.mxu0 %v4841
        %v10595 = vpop.f32.mrf.mxu0
        %v10596 = vadd.f32 0.0, %v10595
        %v10597 = vpop.f32.mrf.mxu0
        %v10598 = vadd.f32 0.0, %v10597
        %10599 = vdwg.mxu0
        %10600 = vmatpush.bf16.msra.mxu0 %v7438
        %10601 = vmatpush.bf16.msra.mxu0 %v7435
        %10602 = vmatpush.bf16.msra.mxu0 %v7432
        %10603 = vmatpush.bf16.msra.mxu0 %v7429
        %10604 = vmatpush.bf16.msra.mxu0 %v7426
        %10605 = vmatpush.bf16.msra.mxu0 %v7423
        %10606 = vmatpush.bf16.msra.mxu0 %v7420
        %10607 = vmatpush.bf16.msra.mxu0 %v7417
        %10608 = vmatmul.bf16.gmra.mxu0 %v4752
        %v10609 = vpop.f32.mrf.mxu0
        %v10610 = vadd.f32 %v10581, %v10609
        %v10611 = vpop.f32.mrf.mxu0
        %v10612 = vadd.f32 %v10583, %v10611
        %10613 = vmatmul.bf16.gmra.mxu0 %v4782
        %v10614 = vpop.f32.mrf.mxu0
        %v10615 = vadd.f32 %v10586, %v10614
        %v10616 = vpop.f32.mrf.mxu0
        %v10617 = vadd.f32 %v10588, %v10616
        %10618 = vmatmul.bf16.gmra.mxu0 %v4812
        %v10619 = vpop.f32.mrf.mxu0
        %v10620 = vadd.f32 %v10591, %v10619
        %v10621 = vpop.f32.mrf.mxu0
        %v10622 = vadd.f32 %v10593, %v10621
        %10623 = vmatmul.bf16.gmra.mxu0 %v4842
        %v10624 = vpop.f32.mrf.mxu0
        %v10625 = vadd.f32 %v10596, %v10624
        %v10626 = vpop.f32.mrf.mxu0
        %v10627 = vadd.f32 %v10598, %v10626
        %10628 = vdwg.mxu0
        %10629 = vmatpush.bf16.msra.mxu0 %v7462
        %10630 = vmatpush.bf16.msra.mxu0 %v7459
        %10631 = vmatpush.bf16.msra.mxu0 %v7456
        %10632 = vmatpush.bf16.msra.mxu0 %v7453
        %10633 = vmatpush.bf16.msra.mxu0 %v7450
        %10634 = vmatpush.bf16.msra.mxu0 %v7447
        %10635 = vmatpush.bf16.msra.mxu0 %v7444
        %10636 = vmatpush.bf16.msra.mxu0 %v7441
        %10637 = vmatmul.bf16.gmra.mxu0 %v4753
        %v10638 = vpop.f32.mrf.mxu0
        %v10639 = vadd.f32 %v10610, %v10638
        %v10640 = vpop.f32.mrf.mxu0
        %v10641 = vadd.f32 %v10612, %v10640
        %10642 = vmatmul.bf16.gmra.mxu0 %v4783
        %v10643 = vpop.f32.mrf.mxu0
        %v10644 = vadd.f32 %v10615, %v10643
        %v10645 = vpop.f32.mrf.mxu0
        %v10646 = vadd.f32 %v10617, %v10645
        %10647 = vmatmul.bf16.gmra.mxu0 %v4813
        %v10648 = vpop.f32.mrf.mxu0
        %v10649 = vadd.f32 %v10620, %v10648
        %v10650 = vpop.f32.mrf.mxu0
        %v10651 = vadd.f32 %v10622, %v10650
        %10652 = vmatmul.bf16.gmra.mxu0 %v4843
        %v10653 = vpop.f32.mrf.mxu0
        %v10654 = vadd.f32 %v10625, %v10653
        %v10655 = vpop.f32.mrf.mxu0
        %v10656 = vadd.f32 %v10627, %v10655
        %10657 = vdwg.mxu0
        %10658 = vmatpush.bf16.msra.mxu0 %v7486
        %10659 = vmatpush.bf16.msra.mxu0 %v7483
        %10660 = vmatpush.bf16.msra.mxu0 %v7480
        %10661 = vmatpush.bf16.msra.mxu0 %v7477
        %10662 = vmatpush.bf16.msra.mxu0 %v7474
        %10663 = vmatpush.bf16.msra.mxu0 %v7471
        %10664 = vmatpush.bf16.msra.mxu0 %v7468
        %10665 = vmatpush.bf16.msra.mxu0 %v7465
        %10666 = vmatmul.bf16.gmra.mxu0 %v4754
        %v10667 = vpop.f32.mrf.mxu0
        %v10668 = vadd.f32 %v10639, %v10667
        %v10669 = vpop.f32.mrf.mxu0
        %v10670 = vadd.f32 %v10641, %v10669
        %10671 = vmatmul.bf16.gmra.mxu0 %v4784
        %v10672 = vpop.f32.mrf.mxu0
        %v10673 = vadd.f32 %v10644, %v10672
        %v10674 = vpop.f32.mrf.mxu0
        %v10675 = vadd.f32 %v10646, %v10674
        %10676 = vmatmul.bf16.gmra.mxu0 %v4814
        %v10677 = vpop.f32.mrf.mxu0
        %v10678 = vadd.f32 %v10649, %v10677
        %v10679 = vpop.f32.mrf.mxu0
        %v10680 = vadd.f32 %v10651, %v10679
        %10681 = vmatmul.bf16.gmra.mxu0 %v4844
        %v10682 = vpop.f32.mrf.mxu0
        %v10683 = vadd.f32 %v10654, %v10682
        %v10684 = vpop.f32.mrf.mxu0
        %v10685 = vadd.f32 %v10656, %v10684
        %10686 = vdwg.mxu0
        %10687 = vmatpush.bf16.msra.mxu0 %v7510
        %10688 = vmatpush.bf16.msra.mxu0 %v7507
        %10689 = vmatpush.bf16.msra.mxu0 %v7504
        %10690 = vmatpush.bf16.msra.mxu0 %v7501
        %10691 = vmatpush.bf16.msra.mxu0 %v7498
        %10692 = vmatpush.bf16.msra.mxu0 %v7495
        %10693 = vmatpush.bf16.msra.mxu0 %v7492
        %10694 = vmatpush.bf16.msra.mxu0 %v7489
        %10695 = vmatmul.bf16.gmra.mxu0 %v4755
        %v10696 = vpop.f32.mrf.mxu0
        %v10697 = vadd.f32 %v10668, %v10696
        %v10698 = vpop.f32.mrf.mxu0
        %v10699 = vadd.f32 %v10670, %v10698
        %10700 = vmatmul.bf16.gmra.mxu0 %v4785
        %v10701 = vpop.f32.mrf.mxu0
        %v10702 = vadd.f32 %v10673, %v10701
        %v10703 = vpop.f32.mrf.mxu0
        %v10704 = vadd.f32 %v10675, %v10703
        %10705 = vmatmul.bf16.gmra.mxu0 %v4815
        %v10706 = vpop.f32.mrf.mxu0
        %v10707 = vadd.f32 %v10678, %v10706
        %v10708 = vpop.f32.mrf.mxu0
        %v10709 = vadd.f32 %v10680, %v10708
        %10710 = vmatmul.bf16.gmra.mxu0 %v4845
        %v10711 = vpop.f32.mrf.mxu0
        %v10712 = vadd.f32 %v10683, %v10711
        %v10713 = vpop.f32.mrf.mxu0
        %v10714 = vadd.f32 %v10685, %v10713
        %10715 = vdwg.mxu0
        %10716 = vmatpush.bf16.msra.mxu0 %v7534
        %10717 = vmatpush.bf16.msra.mxu0 %v7531
        %10718 = vmatpush.bf16.msra.mxu0 %v7528
        %10719 = vmatpush.bf16.msra.mxu0 %v7525
        %10720 = vmatpush.bf16.msra.mxu0 %v7522
        %10721 = vmatpush.bf16.msra.mxu0 %v7519
        %10722 = vmatpush.bf16.msra.mxu0 %v7516
        %10723 = vmatpush.bf16.msra.mxu0 %v7513
        %10724 = vmatmul.bf16.gmra.mxu0 %v4756
        %v10725 = vpop.f32.mrf.mxu0
        %v10726 = vadd.f32 %v10697, %v10725
        %v10727 = vpop.f32.mrf.mxu0
        %v10728 = vadd.f32 %v10699, %v10727
        %10729 = vmatmul.bf16.gmra.mxu0 %v4786
        %v10730 = vpop.f32.mrf.mxu0
        %v10731 = vadd.f32 %v10702, %v10730
        %v10732 = vpop.f32.mrf.mxu0
        %v10733 = vadd.f32 %v10704, %v10732
        %10734 = vmatmul.bf16.gmra.mxu0 %v4816
        %v10735 = vpop.f32.mrf.mxu0
        %v10736 = vadd.f32 %v10707, %v10735
        %v10737 = vpop.f32.mrf.mxu0
        %v10738 = vadd.f32 %v10709, %v10737
        %10739 = vmatmul.bf16.gmra.mxu0 %v4846
        %v10740 = vpop.f32.mrf.mxu0
        %v10741 = vadd.f32 %v10712, %v10740
        %v10742 = vpop.f32.mrf.mxu0
        %v10743 = vadd.f32 %v10714, %v10742
        %10744 = vdwg.mxu0
        %10745 = vmatpush.bf16.msra.mxu0 %v7558
        %10746 = vmatpush.bf16.msra.mxu0 %v7555
        %10747 = vmatpush.bf16.msra.mxu0 %v7552
        %10748 = vmatpush.bf16.msra.mxu0 %v7549
        %10749 = vmatpush.bf16.msra.mxu0 %v7546
        %10750 = vmatpush.bf16.msra.mxu0 %v7543
        %10751 = vmatpush.bf16.msra.mxu0 %v7540
        %10752 = vmatpush.bf16.msra.mxu0 %v7537
        %10753 = vmatmul.bf16.gmra.mxu0 %v4757
        %v10754 = vpop.f32.mrf.mxu0
        %v10755 = vadd.f32 %v10726, %v10754
        %v10756 = vpop.f32.mrf.mxu0
        %v10757 = vadd.f32 %v10728, %v10756
        %10758 = vmatmul.bf16.gmra.mxu0 %v4787
        %v10759 = vpop.f32.mrf.mxu0
        %v10760 = vadd.f32 %v10731, %v10759
        %v10761 = vpop.f32.mrf.mxu0
        %v10762 = vadd.f32 %v10733, %v10761
        %10763 = vmatmul.bf16.gmra.mxu0 %v4817
        %v10764 = vpop.f32.mrf.mxu0
        %v10765 = vadd.f32 %v10736, %v10764
        %v10766 = vpop.f32.mrf.mxu0
        %v10767 = vadd.f32 %v10738, %v10766
        %10768 = vmatmul.bf16.gmra.mxu0 %v4847
        %v10769 = vpop.f32.mrf.mxu0
        %v10770 = vadd.f32 %v10741, %v10769
        %v10771 = vpop.f32.mrf.mxu0
        %v10772 = vadd.f32 %v10743, %v10771
        %10773 = vdwg.mxu0
        %10774 = vmatpush.bf16.msra.mxu0 %v7582
        %10775 = vmatpush.bf16.msra.mxu0 %v7579
        %10776 = vmatpush.bf16.msra.mxu0 %v7576
        %10777 = vmatpush.bf16.msra.mxu0 %v7573
        %10778 = vmatpush.bf16.msra.mxu0 %v7570
        %10779 = vmatpush.bf16.msra.mxu0 %v7567
        %10780 = vmatpush.bf16.msra.mxu0 %v7564
        %10781 = vmatpush.bf16.msra.mxu0 %v7561
        %10782 = vmatmul.bf16.gmra.mxu0 %v4758
        %v10783 = vpop.f32.mrf.mxu0
        %v10784 = vadd.f32 %v10755, %v10783
        %v10785 = vpop.f32.mrf.mxu0
        %v10786 = vadd.f32 %v10757, %v10785
        %10787 = vmatmul.bf16.gmra.mxu0 %v4788
        %v10788 = vpop.f32.mrf.mxu0
        %v10789 = vadd.f32 %v10760, %v10788
        %v10790 = vpop.f32.mrf.mxu0
        %v10791 = vadd.f32 %v10762, %v10790
        %10792 = vmatmul.bf16.gmra.mxu0 %v4818
        %v10793 = vpop.f32.mrf.mxu0
        %v10794 = vadd.f32 %v10765, %v10793
        %v10795 = vpop.f32.mrf.mxu0
        %v10796 = vadd.f32 %v10767, %v10795
        %10797 = vmatmul.bf16.gmra.mxu0 %v4848
        %v10798 = vpop.f32.mrf.mxu0
        %v10799 = vadd.f32 %v10770, %v10798
        %v10800 = vpop.f32.mrf.mxu0
        %v10801 = vadd.f32 %v10772, %v10800
        %10802 = vdwg.mxu0
        %10803 = vmatpush.bf16.msra.mxu0 %v7606
        %10804 = vmatpush.bf16.msra.mxu0 %v7603
        %10805 = vmatpush.bf16.msra.mxu0 %v7600
        %10806 = vmatpush.bf16.msra.mxu0 %v7597
        %10807 = vmatpush.bf16.msra.mxu0 %v7594
        %10808 = vmatpush.bf16.msra.mxu0 %v7591
        %10809 = vmatpush.bf16.msra.mxu0 %v7588
        %10810 = vmatpush.bf16.msra.mxu0 %v7585
        %10811 = vmatmul.bf16.gmra.mxu0 %v4759
        %v10812 = vpop.f32.mrf.mxu0
        %v10813 = vadd.f32 %v10784, %v10812
        %v10814 = vpop.f32.mrf.mxu0
        %v10815 = vadd.f32 %v10786, %v10814
        %10816 = vmatmul.bf16.gmra.mxu0 %v4789
        %v10817 = vpop.f32.mrf.mxu0
        %v10818 = vadd.f32 %v10789, %v10817
        %v10819 = vpop.f32.mrf.mxu0
        %v10820 = vadd.f32 %v10791, %v10819
        %10821 = vmatmul.bf16.gmra.mxu0 %v4819
        %v10822 = vpop.f32.mrf.mxu0
        %v10823 = vadd.f32 %v10794, %v10822
        %v10824 = vpop.f32.mrf.mxu0
        %v10825 = vadd.f32 %v10796, %v10824
        %10826 = vmatmul.bf16.gmra.mxu0 %v4849
        %v10827 = vpop.f32.mrf.mxu0
        %v10828 = vadd.f32 %v10799, %v10827
        %v10829 = vpop.f32.mrf.mxu0
        %v10830 = vadd.f32 %v10801, %v10829
        %10831 = vdwg.mxu0
        %10832 = vmatpush.bf16.msra.mxu0 %v7630
        %10833 = vmatpush.bf16.msra.mxu0 %v7627
        %10834 = vmatpush.bf16.msra.mxu0 %v7624
        %10835 = vmatpush.bf16.msra.mxu0 %v7621
        %10836 = vmatpush.bf16.msra.mxu0 %v7618
        %10837 = vmatpush.bf16.msra.mxu0 %v7615
        %10838 = vmatpush.bf16.msra.mxu0 %v7612
        %10839 = vmatpush.bf16.msra.mxu0 %v7609
        %10840 = vmatmul.bf16.gmra.mxu0 %v4760
        %v10841 = vpop.f32.mrf.mxu0
        %v10842 = vadd.f32 %v10813, %v10841
        %v10843 = vpop.f32.mrf.mxu0
        %v10844 = vadd.f32 %v10815, %v10843
        %10845 = vmatmul.bf16.gmra.mxu0 %v4790
        %v10846 = vpop.f32.mrf.mxu0
        %v10847 = vadd.f32 %v10818, %v10846
        %v10848 = vpop.f32.mrf.mxu0
        %v10849 = vadd.f32 %v10820, %v10848
        %10850 = vmatmul.bf16.gmra.mxu0 %v4820
        %v10851 = vpop.f32.mrf.mxu0
        %v10852 = vadd.f32 %v10823, %v10851
        %v10853 = vpop.f32.mrf.mxu0
        %v10854 = vadd.f32 %v10825, %v10853
        %10855 = vmatmul.bf16.gmra.mxu0 %v4850
        %v10856 = vpop.f32.mrf.mxu0
        %v10857 = vadd.f32 %v10828, %v10856
        %v10858 = vpop.f32.mrf.mxu0
        %v10859 = vadd.f32 %v10830, %v10858
        %10860 = vdwg.mxu0
        %10861 = vmatpush.bf16.msra.mxu0 %v7654
        %10862 = vmatpush.bf16.msra.mxu0 %v7651
        %10863 = vmatpush.bf16.msra.mxu0 %v7648
        %10864 = vmatpush.bf16.msra.mxu0 %v7645
        %10865 = vmatpush.bf16.msra.mxu0 %v7642
        %10866 = vmatpush.bf16.msra.mxu0 %v7639
        %10867 = vmatpush.bf16.msra.mxu0 %v7636
        %10868 = vmatpush.bf16.msra.mxu0 %v7633
        %10869 = vmatmul.bf16.gmra.mxu0 %v4761
        %v10870 = vpop.f32.mrf.mxu0
        %v10871 = vadd.f32 %v10842, %v10870
        %v10872 = vpop.f32.mrf.mxu0
        %v10873 = vadd.f32 %v10844, %v10872
        %10874 = vmatmul.bf16.gmra.mxu0 %v4791
        %v10875 = vpop.f32.mrf.mxu0
        %v10876 = vadd.f32 %v10847, %v10875
        %v10877 = vpop.f32.mrf.mxu0
        %v10878 = vadd.f32 %v10849, %v10877
        %10879 = vmatmul.bf16.gmra.mxu0 %v4821
        %v10880 = vpop.f32.mrf.mxu0
        %v10881 = vadd.f32 %v10852, %v10880
        %v10882 = vpop.f32.mrf.mxu0
        %v10883 = vadd.f32 %v10854, %v10882
        %10884 = vmatmul.bf16.gmra.mxu0 %v4851
        %v10885 = vpop.f32.mrf.mxu0
        %v10886 = vadd.f32 %v10857, %v10885
        %v10887 = vpop.f32.mrf.mxu0
        %v10888 = vadd.f32 %v10859, %v10887
        %10889 = vdwg.mxu0
        %10890 = vmatpush.bf16.msra.mxu0 %v7678
        %10891 = vmatpush.bf16.msra.mxu0 %v7675
        %10892 = vmatpush.bf16.msra.mxu0 %v7672
        %10893 = vmatpush.bf16.msra.mxu0 %v7669
        %10894 = vmatpush.bf16.msra.mxu0 %v7666
        %10895 = vmatpush.bf16.msra.mxu0 %v7663
        %10896 = vmatpush.bf16.msra.mxu0 %v7660
        %10897 = vmatpush.bf16.msra.mxu0 %v7657
        %10898 = vmatmul.bf16.gmra.mxu0 %v4762
        %v10899 = vpop.f32.mrf.mxu0
        %v10900 = vadd.f32 %v10871, %v10899
        %v10901 = vpop.f32.mrf.mxu0
        %v10902 = vadd.f32 %v10873, %v10901
        %10903 = vmatmul.bf16.gmra.mxu0 %v4792
        %v10904 = vpop.f32.mrf.mxu0
        %v10905 = vadd.f32 %v10876, %v10904
        %v10906 = vpop.f32.mrf.mxu0
        %v10907 = vadd.f32 %v10878, %v10906
        %10908 = vmatmul.bf16.gmra.mxu0 %v4822
        %v10909 = vpop.f32.mrf.mxu0
        %v10910 = vadd.f32 %v10881, %v10909
        %v10911 = vpop.f32.mrf.mxu0
        %v10912 = vadd.f32 %v10883, %v10911
        %10913 = vmatmul.bf16.gmra.mxu0 %v4852
        %v10914 = vpop.f32.mrf.mxu0
        %v10915 = vadd.f32 %v10886, %v10914
        %v10916 = vpop.f32.mrf.mxu0
        %v10917 = vadd.f32 %v10888, %v10916
        %10918 = vdwg.mxu0
        %10919 = vmatpush.bf16.msra.mxu0 %v7702
        %10920 = vmatpush.bf16.msra.mxu0 %v7699
        %10921 = vmatpush.bf16.msra.mxu0 %v7696
        %10922 = vmatpush.bf16.msra.mxu0 %v7693
        %10923 = vmatpush.bf16.msra.mxu0 %v7690
        %10924 = vmatpush.bf16.msra.mxu0 %v7687
        %10925 = vmatpush.bf16.msra.mxu0 %v7684
        %10926 = vmatpush.bf16.msra.mxu0 %v7681
        %10927 = vmatmul.bf16.gmra.mxu0 %v4763
        %v10928 = vpop.f32.mrf.mxu0
        %v10929 = vadd.f32 %v10900, %v10928
        %v10930 = vpop.f32.mrf.mxu0
        %v10931 = vadd.f32 %v10902, %v10930
        %10932 = vmatmul.bf16.gmra.mxu0 %v4793
        %v10933 = vpop.f32.mrf.mxu0
        %v10934 = vadd.f32 %v10905, %v10933
        %v10935 = vpop.f32.mrf.mxu0
        %v10936 = vadd.f32 %v10907, %v10935
        %10937 = vmatmul.bf16.gmra.mxu0 %v4823
        %v10938 = vpop.f32.mrf.mxu0
        %v10939 = vadd.f32 %v10910, %v10938
        %v10940 = vpop.f32.mrf.mxu0
        %v10941 = vadd.f32 %v10912, %v10940
        %10942 = vmatmul.bf16.gmra.mxu0 %v4853
        %v10943 = vpop.f32.mrf.mxu0
        %v10944 = vadd.f32 %v10915, %v10943
        %v10945 = vpop.f32.mrf.mxu0
        %v10946 = vadd.f32 %v10917, %v10945
        %10947 = vdwg.mxu0
        %10948 = vmatpush.bf16.msra.mxu0 %v7726
        %10949 = vmatpush.bf16.msra.mxu0 %v7723
        %10950 = vmatpush.bf16.msra.mxu0 %v7720
        %10951 = vmatpush.bf16.msra.mxu0 %v7717
        %10952 = vmatpush.bf16.msra.mxu0 %v7714
        %10953 = vmatpush.bf16.msra.mxu0 %v7711
        %10954 = vmatpush.bf16.msra.mxu0 %v7708
        %10955 = vmatpush.bf16.msra.mxu0 %v7705
        %10956 = vmatmul.bf16.gmra.mxu0 %v4764
        %v10957 = vpop.f32.mrf.mxu0
        %v10958 = vadd.f32 %v10929, %v10957
        %v10959 = vpop.f32.mrf.mxu0
        %v10960 = vadd.f32 %v10931, %v10959
        %10961 = vmatmul.bf16.gmra.mxu0 %v4794
        %v10962 = vpop.f32.mrf.mxu0
        %v10963 = vadd.f32 %v10934, %v10962
        %v10964 = vpop.f32.mrf.mxu0
        %v10965 = vadd.f32 %v10936, %v10964
        %10966 = vmatmul.bf16.gmra.mxu0 %v4824
        %v10967 = vpop.f32.mrf.mxu0
        %v10968 = vadd.f32 %v10939, %v10967
        %v10969 = vpop.f32.mrf.mxu0
        %v10970 = vadd.f32 %v10941, %v10969
        %10971 = vmatmul.bf16.gmra.mxu0 %v4854
        %v10972 = vpop.f32.mrf.mxu0
        %v10973 = vadd.f32 %v10944, %v10972
        %v10974 = vpop.f32.mrf.mxu0
        %v10975 = vadd.f32 %v10946, %v10974
        %10976 = vdwg.mxu0
        %10977 = vmatpush.bf16.msra.mxu0 %v7750
        %10978 = vmatpush.bf16.msra.mxu0 %v7747
        %10979 = vmatpush.bf16.msra.mxu0 %v7744
        %10980 = vmatpush.bf16.msra.mxu0 %v7741
        %10981 = vmatpush.bf16.msra.mxu0 %v7738
        %10982 = vmatpush.bf16.msra.mxu0 %v7735
        %10983 = vmatpush.bf16.msra.mxu0 %v7732
        %10984 = vmatpush.bf16.msra.mxu0 %v7729
        %10985 = vmatmul.bf16.gmra.mxu0 %v4765
        %v10986 = vpop.f32.mrf.mxu0
        %v10987 = vadd.f32 %v10958, %v10986
        %v10988 = vpop.f32.mrf.mxu0
        %v10989 = vadd.f32 %v10960, %v10988
        %10990 = vmatmul.bf16.gmra.mxu0 %v4795
        %v10991 = vpop.f32.mrf.mxu0
        %v10992 = vadd.f32 %v10963, %v10991
        %v10993 = vpop.f32.mrf.mxu0
        %v10994 = vadd.f32 %v10965, %v10993
        %10995 = vmatmul.bf16.gmra.mxu0 %v4825
        %v10996 = vpop.f32.mrf.mxu0
        %v10997 = vadd.f32 %v10968, %v10996
        %v10998 = vpop.f32.mrf.mxu0
        %v10999 = vadd.f32 %v10970, %v10998
        %11000 = vmatmul.bf16.gmra.mxu0 %v4855
        %v11001 = vpop.f32.mrf.mxu0
        %v11002 = vadd.f32 %v10973, %v11001
        %v11003 = vpop.f32.mrf.mxu0
        %v11004 = vadd.f32 %v10975, %v11003
        %11005 = vdwg.mxu0
        %11006 = vmatpush.bf16.msra.mxu0 %v7774
        %11007 = vmatpush.bf16.msra.mxu0 %v7771
        %11008 = vmatpush.bf16.msra.mxu0 %v7768
        %11009 = vmatpush.bf16.msra.mxu0 %v7765
        %11010 = vmatpush.bf16.msra.mxu0 %v7762
        %11011 = vmatpush.bf16.msra.mxu0 %v7759
        %11012 = vmatpush.bf16.msra.mxu0 %v7756
        %11013 = vmatpush.bf16.msra.mxu0 %v7753
        %11014 = vmatmul.bf16.gmra.mxu0 %v4766
        %v11015 = vpop.f32.mrf.mxu0
        %v11016 = vadd.f32 %v10987, %v11015
        %v11017 = vpop.f32.mrf.mxu0
        %v11018 = vadd.f32 %v10989, %v11017
        %11019 = vmatmul.bf16.gmra.mxu0 %v4796
        %v11020 = vpop.f32.mrf.mxu0
        %v11021 = vadd.f32 %v10992, %v11020
        %v11022 = vpop.f32.mrf.mxu0
        %v11023 = vadd.f32 %v10994, %v11022
        %11024 = vmatmul.bf16.gmra.mxu0 %v4826
        %v11025 = vpop.f32.mrf.mxu0
        %v11026 = vadd.f32 %v10997, %v11025
        %v11027 = vpop.f32.mrf.mxu0
        %v11028 = vadd.f32 %v10999, %v11027
        %11029 = vmatmul.bf16.gmra.mxu0 %v4856
        %v11030 = vpop.f32.mrf.mxu0
        %v11031 = vadd.f32 %v11002, %v11030
        %v11032 = vpop.f32.mrf.mxu0
        %v11033 = vadd.f32 %v11004, %v11032
        %11034 = vdwg.mxu0
        %11035 = vmatpush.bf16.msra.mxu0 %v7798
        %11036 = vmatpush.bf16.msra.mxu0 %v7795
        %11037 = vmatpush.bf16.msra.mxu0 %v7792
        %11038 = vmatpush.bf16.msra.mxu0 %v7789
        %11039 = vmatpush.bf16.msra.mxu0 %v7786
        %11040 = vmatpush.bf16.msra.mxu0 %v7783
        %11041 = vmatpush.bf16.msra.mxu0 %v7780
        %11042 = vmatpush.bf16.msra.mxu0 %v7777
        %11043 = vmatmul.bf16.gmra.mxu0 %v4767
        %v11044 = vpop.f32.mrf.mxu0
        %v11045 = vadd.f32 %v11016, %v11044
        %v11046 = vpop.f32.mrf.mxu0
        %v11047 = vadd.f32 %v11018, %v11046
        %11048 = vmatmul.bf16.gmra.mxu0 %v4797
        %v11049 = vpop.f32.mrf.mxu0
        %v11050 = vadd.f32 %v11021, %v11049
        %v11051 = vpop.f32.mrf.mxu0
        %v11052 = vadd.f32 %v11023, %v11051
        %11053 = vmatmul.bf16.gmra.mxu0 %v4827
        %v11054 = vpop.f32.mrf.mxu0
        %v11055 = vadd.f32 %v11026, %v11054
        %v11056 = vpop.f32.mrf.mxu0
        %v11057 = vadd.f32 %v11028, %v11056
        %11058 = vmatmul.bf16.gmra.mxu0 %v4857
        %v11059 = vpop.f32.mrf.mxu0
        %v11060 = vadd.f32 %v11031, %v11059
        %v11061 = vpop.f32.mrf.mxu0
        %v11062 = vadd.f32 %v11033, %v11061
        %11063 = vdwg.mxu0
        %11064 = vmatpush.bf16.msra.mxu0 %v7822
        %11065 = vmatpush.bf16.msra.mxu0 %v7819
        %11066 = vmatpush.bf16.msra.mxu0 %v7816
        %11067 = vmatpush.bf16.msra.mxu0 %v7813
        %11068 = vmatpush.bf16.msra.mxu0 %v7810
        %11069 = vmatpush.bf16.msra.mxu0 %v7807
        %11070 = vmatpush.bf16.msra.mxu0 %v7804
        %11071 = vmatpush.bf16.msra.mxu0 %v7801
        %11072 = vmatmul.bf16.gmra.mxu0 %v4768
        %v11073 = vpop.f32.mrf.mxu0
        %v11074 = vadd.f32 %v11045, %v11073
        %v11075 = vpop.f32.mrf.mxu0
        %v11076 = vadd.f32 %v11047, %v11075
        %11077 = vmatmul.bf16.gmra.mxu0 %v4798
        %v11078 = vpop.f32.mrf.mxu0
        %v11079 = vadd.f32 %v11050, %v11078
        %v11080 = vpop.f32.mrf.mxu0
        %v11081 = vadd.f32 %v11052, %v11080
        %11082 = vmatmul.bf16.gmra.mxu0 %v4828
        %v11083 = vpop.f32.mrf.mxu0
        %v11084 = vadd.f32 %v11055, %v11083
        %v11085 = vpop.f32.mrf.mxu0
        %v11086 = vadd.f32 %v11057, %v11085
        %11087 = vmatmul.bf16.gmra.mxu0 %v4858
        %v11088 = vpop.f32.mrf.mxu0
        %v11089 = vadd.f32 %v11060, %v11088
        %v11090 = vpop.f32.mrf.mxu0
        %v11091 = vadd.f32 %v11062, %v11090
        %11092 = vdwg.mxu0
        %11093 = vmatpush.bf16.msra.mxu0 %v7846
        %11094 = vmatpush.bf16.msra.mxu0 %v7843
        %11095 = vmatpush.bf16.msra.mxu0 %v7840
        %11096 = vmatpush.bf16.msra.mxu0 %v7837
        %11097 = vmatpush.bf16.msra.mxu0 %v7834
        %11098 = vmatpush.bf16.msra.mxu0 %v7831
        %11099 = vmatpush.bf16.msra.mxu0 %v7828
        %11100 = vmatpush.bf16.msra.mxu0 %v7825
        %11101 = vmatmul.bf16.gmra.mxu0 %v4769
        %v11102 = vpop.f32.mrf.mxu0
        %v11103 = vadd.f32 %v11074, %v11102
        %v11104 = vpop.f32.mrf.mxu0
        %v11105 = vadd.f32 %v11076, %v11104
        %11106 = vmatmul.bf16.gmra.mxu0 %v4799
        %v11107 = vpop.f32.mrf.mxu0
        %v11108 = vadd.f32 %v11079, %v11107
        %v11109 = vpop.f32.mrf.mxu0
        %v11110 = vadd.f32 %v11081, %v11109
        %11111 = vmatmul.bf16.gmra.mxu0 %v4829
        %v11112 = vpop.f32.mrf.mxu0
        %v11113 = vadd.f32 %v11084, %v11112
        %v11114 = vpop.f32.mrf.mxu0
        %v11115 = vadd.f32 %v11086, %v11114
        %11116 = vmatmul.bf16.gmra.mxu0 %v4859
        %v11117 = vpop.f32.mrf.mxu0
        %v11118 = vadd.f32 %v11089, %v11117
        %v11119 = vpop.f32.mrf.mxu0
        %v11120 = vadd.f32 %v11091, %v11119
        %11121 = vdwg.mxu0
        %11122 = vmatpush.bf16.msra.mxu0 %v7870
        %11123 = vmatpush.bf16.msra.mxu0 %v7867
        %11124 = vmatpush.bf16.msra.mxu0 %v7864
        %11125 = vmatpush.bf16.msra.mxu0 %v7861
        %11126 = vmatpush.bf16.msra.mxu0 %v7858
        %11127 = vmatpush.bf16.msra.mxu0 %v7855
        %11128 = vmatpush.bf16.msra.mxu0 %v7852
        %11129 = vmatpush.bf16.msra.mxu0 %v7849
        %11130 = vmatmul.bf16.gmra.mxu0 %v4770
        %v11131 = vpop.f32.mrf.mxu0
        %v11132 = vadd.f32 %v11103, %v11131
        %v11133 = vpop.f32.mrf.mxu0
        %v11134 = vadd.f32 %v11105, %v11133
        %11135 = vmatmul.bf16.gmra.mxu0 %v4800
        %v11136 = vpop.f32.mrf.mxu0
        %v11137 = vadd.f32 %v11108, %v11136
        %v11138 = vpop.f32.mrf.mxu0
        %v11139 = vadd.f32 %v11110, %v11138
        %11140 = vmatmul.bf16.gmra.mxu0 %v4830
        %v11141 = vpop.f32.mrf.mxu0
        %v11142 = vadd.f32 %v11113, %v11141
        %v11143 = vpop.f32.mrf.mxu0
        %v11144 = vadd.f32 %v11115, %v11143
        %11145 = vmatmul.bf16.gmra.mxu0 %v4860
        %v11146 = vpop.f32.mrf.mxu0
        %v11147 = vadd.f32 %v11118, %v11146
        %v11148 = vpop.f32.mrf.mxu0
        %v11149 = vadd.f32 %v11120, %v11148
        %11150 = vdwg.mxu0
        %11151 = vmatpush.bf16.msra.mxu0 %v7894
        %11152 = vmatpush.bf16.msra.mxu0 %v7891
        %11153 = vmatpush.bf16.msra.mxu0 %v7888
        %11154 = vmatpush.bf16.msra.mxu0 %v7885
        %11155 = vmatpush.bf16.msra.mxu0 %v7882
        %11156 = vmatpush.bf16.msra.mxu0 %v7879
        %11157 = vmatpush.bf16.msra.mxu0 %v7876
        %11158 = vmatpush.bf16.msra.mxu0 %v7873
        %11159 = vmatmul.bf16.gmra.mxu0 %v4771
        %v11160 = vpop.f32.mrf.mxu0
        %v11161 = vadd.f32 %v11132, %v11160
        %v11162 = vpop.f32.mrf.mxu0
        %v11163 = vadd.f32 %v11134, %v11162
        %11164 = vmatmul.bf16.gmra.mxu0 %v4801
        %v11165 = vpop.f32.mrf.mxu0
        %v11166 = vadd.f32 %v11137, %v11165
        %v11167 = vpop.f32.mrf.mxu0
        %v11168 = vadd.f32 %v11139, %v11167
        %11169 = vmatmul.bf16.gmra.mxu0 %v4831
        %v11170 = vpop.f32.mrf.mxu0
        %v11171 = vadd.f32 %v11142, %v11170
        %v11172 = vpop.f32.mrf.mxu0
        %v11173 = vadd.f32 %v11144, %v11172
        %11174 = vmatmul.bf16.gmra.mxu0 %v4861
        %v11175 = vpop.f32.mrf.mxu0
        %v11176 = vadd.f32 %v11147, %v11175
        %v11177 = vpop.f32.mrf.mxu0
        %v11178 = vadd.f32 %v11149, %v11177
        %11179 = vdwg.mxu0
        %11180 = vmatpush.bf16.msra.mxu0 %v7918
        %11181 = vmatpush.bf16.msra.mxu0 %v7915
        %11182 = vmatpush.bf16.msra.mxu0 %v7912
        %11183 = vmatpush.bf16.msra.mxu0 %v7909
        %11184 = vmatpush.bf16.msra.mxu0 %v7906
        %11185 = vmatpush.bf16.msra.mxu0 %v7903
        %11186 = vmatpush.bf16.msra.mxu0 %v7900
        %11187 = vmatpush.bf16.msra.mxu0 %v7897
        %11188 = vmatmul.bf16.gmra.mxu0 %v4772
        %v11189 = vpop.f32.mrf.mxu0
        %v11190 = vadd.f32 %v11161, %v11189
        %v11191 = vpop.f32.mrf.mxu0
        %v11192 = vadd.f32 %v11163, %v11191
        %11193 = vmatmul.bf16.gmra.mxu0 %v4802
        %v11194 = vpop.f32.mrf.mxu0
        %v11195 = vadd.f32 %v11166, %v11194
        %v11196 = vpop.f32.mrf.mxu0
        %v11197 = vadd.f32 %v11168, %v11196
        %11198 = vmatmul.bf16.gmra.mxu0 %v4832
        %v11199 = vpop.f32.mrf.mxu0
        %v11200 = vadd.f32 %v11171, %v11199
        %v11201 = vpop.f32.mrf.mxu0
        %v11202 = vadd.f32 %v11173, %v11201
        %11203 = vmatmul.bf16.gmra.mxu0 %v4862
        %v11204 = vpop.f32.mrf.mxu0
        %v11205 = vadd.f32 %v11176, %v11204
        %v11206 = vpop.f32.mrf.mxu0
        %v11207 = vadd.f32 %v11178, %v11206
        %11208 = vdwg.mxu0
        %11209 = vmatpush.bf16.msra.mxu0 %v7942
        %11210 = vmatpush.bf16.msra.mxu0 %v7939
        %11211 = vmatpush.bf16.msra.mxu0 %v7936
        %11212 = vmatpush.bf16.msra.mxu0 %v7933
        %11213 = vmatpush.bf16.msra.mxu0 %v7930
        %11214 = vmatpush.bf16.msra.mxu0 %v7927
        %11215 = vmatpush.bf16.msra.mxu0 %v7924
        %11216 = vmatpush.bf16.msra.mxu0 %v7921
        %11217 = vmatmul.bf16.gmra.mxu0 %v4773
        %v11218 = vpop.f32.mrf.mxu0
        %v11219 = vadd.f32 %v11190, %v11218
        %v11220 = vpop.f32.mrf.mxu0
        %v11221 = vadd.f32 %v11192, %v11220
        %11222 = vmatmul.bf16.gmra.mxu0 %v4803
        %v11223 = vpop.f32.mrf.mxu0
        %v11224 = vadd.f32 %v11195, %v11223
        %v11225 = vpop.f32.mrf.mxu0
        %v11226 = vadd.f32 %v11197, %v11225
        %11227 = vmatmul.bf16.gmra.mxu0 %v4833
        %v11228 = vpop.f32.mrf.mxu0
        %v11229 = vadd.f32 %v11200, %v11228
        %v11230 = vpop.f32.mrf.mxu0
        %v11231 = vadd.f32 %v11202, %v11230
        %11232 = vmatmul.bf16.gmra.mxu0 %v4863
        %v11233 = vpop.f32.mrf.mxu0
        %v11234 = vadd.f32 %v11205, %v11233
        %v11235 = vpop.f32.mrf.mxu0
        %v11236 = vadd.f32 %v11207, %v11235
        %11237 = vdwg.mxu0
        %11238 = vmatpush.bf16.msra.mxu0 %v7966
        %11239 = vmatpush.bf16.msra.mxu0 %v7963
        %11240 = vmatpush.bf16.msra.mxu0 %v7960
        %11241 = vmatpush.bf16.msra.mxu0 %v7957
        %11242 = vmatpush.bf16.msra.mxu0 %v7954
        %11243 = vmatpush.bf16.msra.mxu0 %v7951
        %11244 = vmatpush.bf16.msra.mxu0 %v7948
        %11245 = vmatpush.bf16.msra.mxu0 %v7945
        %11246 = vmatmul.bf16.gmra.mxu0 %v4774
        %v11247 = vpop.f32.mrf.mxu0
        %v11248 = vadd.f32 %v11219, %v11247
        %v11249 = vpop.f32.mrf.mxu0
        %v11250 = vadd.f32 %v11221, %v11249
        %11251 = vmatmul.bf16.gmra.mxu0 %v4804
        %v11252 = vpop.f32.mrf.mxu0
        %v11253 = vadd.f32 %v11224, %v11252
        %v11254 = vpop.f32.mrf.mxu0
        %v11255 = vadd.f32 %v11226, %v11254
        %11256 = vmatmul.bf16.gmra.mxu0 %v4834
        %v11257 = vpop.f32.mrf.mxu0
        %v11258 = vadd.f32 %v11229, %v11257
        %v11259 = vpop.f32.mrf.mxu0
        %v11260 = vadd.f32 %v11231, %v11259
        %11261 = vmatmul.bf16.gmra.mxu0 %v4864
        %v11262 = vpop.f32.mrf.mxu0
        %v11263 = vadd.f32 %v11234, %v11262
        %v11264 = vpop.f32.mrf.mxu0
        %v11265 = vadd.f32 %v11236, %v11264
        %11266 = vdwg.mxu0
        %11267 = vmatpush.bf16.msra.mxu0 %v7990
        %11268 = vmatpush.bf16.msra.mxu0 %v7987
        %11269 = vmatpush.bf16.msra.mxu0 %v7984
        %11270 = vmatpush.bf16.msra.mxu0 %v7981
        %11271 = vmatpush.bf16.msra.mxu0 %v7978
        %11272 = vmatpush.bf16.msra.mxu0 %v7975
        %11273 = vmatpush.bf16.msra.mxu0 %v7972
        %11274 = vmatpush.bf16.msra.mxu0 %v7969
        %11275 = vmatmul.bf16.gmra.mxu0 %v4775
        %v11276 = vpop.f32.mrf.mxu0
        %v11277 = vadd.f32 %v11248, %v11276
        %v11278 = vpop.f32.mrf.mxu0
        %v11279 = vadd.f32 %v11250, %v11278
        %11280 = vmatmul.bf16.gmra.mxu0 %v4805
        %v11281 = vpop.f32.mrf.mxu0
        %v11282 = vadd.f32 %v11253, %v11281
        %v11283 = vpop.f32.mrf.mxu0
        %v11284 = vadd.f32 %v11255, %v11283
        %11285 = vmatmul.bf16.gmra.mxu0 %v4835
        %v11286 = vpop.f32.mrf.mxu0
        %v11287 = vadd.f32 %v11258, %v11286
        %v11288 = vpop.f32.mrf.mxu0
        %v11289 = vadd.f32 %v11260, %v11288
        %11290 = vmatmul.bf16.gmra.mxu0 %v4865
        %v11291 = vpop.f32.mrf.mxu0
        %v11292 = vadd.f32 %v11263, %v11291
        %v11293 = vpop.f32.mrf.mxu0
        %v11294 = vadd.f32 %v11265, %v11293
        %11295 = vdwg.mxu0
        %11296 = vmatpush.bf16.msra.mxu0 %v8014
        %11297 = vmatpush.bf16.msra.mxu0 %v8011
        %11298 = vmatpush.bf16.msra.mxu0 %v8008
        %11299 = vmatpush.bf16.msra.mxu0 %v8005
        %11300 = vmatpush.bf16.msra.mxu0 %v8002
        %11301 = vmatpush.bf16.msra.mxu0 %v7999
        %11302 = vmatpush.bf16.msra.mxu0 %v7996
        %11303 = vmatpush.bf16.msra.mxu0 %v7993
        %11304 = vmatmul.bf16.gmra.mxu0 %v4776
        %v11305 = vpop.f32.mrf.mxu0
        %v11306 = vadd.f32 %v11277, %v11305
        %v11307 = vpop.f32.mrf.mxu0
        %v11308 = vadd.f32 %v11279, %v11307
        %11309 = vmatmul.bf16.gmra.mxu0 %v4806
        %v11310 = vpop.f32.mrf.mxu0
        %v11311 = vadd.f32 %v11282, %v11310
        %v11312 = vpop.f32.mrf.mxu0
        %v11313 = vadd.f32 %v11284, %v11312
        %11314 = vmatmul.bf16.gmra.mxu0 %v4836
        %v11315 = vpop.f32.mrf.mxu0
        %v11316 = vadd.f32 %v11287, %v11315
        %v11317 = vpop.f32.mrf.mxu0
        %v11318 = vadd.f32 %v11289, %v11317
        %11319 = vmatmul.bf16.gmra.mxu0 %v4866
        %v11320 = vpop.f32.mrf.mxu0
        %v11321 = vadd.f32 %v11292, %v11320
        %v11322 = vpop.f32.mrf.mxu0
        %v11323 = vadd.f32 %v11294, %v11322
        %11324 = vdwg.mxu0
        %11325 = vmatpush.bf16.msra.mxu0 %v8038
        %11326 = vmatpush.bf16.msra.mxu0 %v8035
        %11327 = vmatpush.bf16.msra.mxu0 %v8032
        %11328 = vmatpush.bf16.msra.mxu0 %v8029
        %11329 = vmatpush.bf16.msra.mxu0 %v8026
        %11330 = vmatpush.bf16.msra.mxu0 %v8023
        %11331 = vmatpush.bf16.msra.mxu0 %v8020
        %11332 = vmatpush.bf16.msra.mxu0 %v8017
        %11333 = vmatmul.bf16.gmra.mxu0 %v4777
        %v11334 = vpop.f32.mrf.mxu0
        %v11335 = vadd.f32 %v11306, %v11334
        %v11336 = vpop.f32.mrf.mxu0
        %v11337 = vadd.f32 %v11308, %v11336
        %11338 = vmatmul.bf16.gmra.mxu0 %v4807
        %v11339 = vpop.f32.mrf.mxu0
        %v11340 = vadd.f32 %v11311, %v11339
        %v11341 = vpop.f32.mrf.mxu0
        %v11342 = vadd.f32 %v11313, %v11341
        %11343 = vmatmul.bf16.gmra.mxu0 %v4837
        %v11344 = vpop.f32.mrf.mxu0
        %v11345 = vadd.f32 %v11316, %v11344
        %v11346 = vpop.f32.mrf.mxu0
        %v11347 = vadd.f32 %v11318, %v11346
        %11348 = vmatmul.bf16.gmra.mxu0 %v4867
        %v11349 = vpop.f32.mrf.mxu0
        %v11350 = vadd.f32 %v11321, %v11349
        %v11351 = vpop.f32.mrf.mxu0
        %v11352 = vadd.f32 %v11323, %v11351
        %11353 = vdwg.mxu0
        %11354 = vmatpush.bf16.msra.mxu0 %v8062
        %11355 = vmatpush.bf16.msra.mxu0 %v8059
        %11356 = vmatpush.bf16.msra.mxu0 %v8056
        %11357 = vmatpush.bf16.msra.mxu0 %v8053
        %11358 = vmatpush.bf16.msra.mxu0 %v8050
        %11359 = vmatpush.bf16.msra.mxu0 %v8047
        %11360 = vmatpush.bf16.msra.mxu0 %v8044
        %11361 = vmatpush.bf16.msra.mxu0 %v8041
        %11362 = vmatmul.bf16.gmra.mxu0 %v4778
        %v11363 = vpop.f32.mrf.mxu0
        %v11364 = vadd.f32 %v11335, %v11363
        %v11365 = vpop.f32.mrf.mxu0
        %v11366 = vadd.f32 %v11337, %v11365
        %11367 = vmatmul.bf16.gmra.mxu0 %v4808
        %v11368 = vpop.f32.mrf.mxu0
        %v11369 = vadd.f32 %v11340, %v11368
        %v11370 = vpop.f32.mrf.mxu0
        %v11371 = vadd.f32 %v11342, %v11370
        %11372 = vmatmul.bf16.gmra.mxu0 %v4838
        %v11373 = vpop.f32.mrf.mxu0
        %v11374 = vadd.f32 %v11345, %v11373
        %v11375 = vpop.f32.mrf.mxu0
        %v11376 = vadd.f32 %v11347, %v11375
        %11377 = vmatmul.bf16.gmra.mxu0 %v4868
        %v11378 = vpop.f32.mrf.mxu0
        %v11379 = vadd.f32 %v11350, %v11378
        %v11380 = vpop.f32.mrf.mxu0
        %v11381 = vadd.f32 %v11352, %v11380
        %11382 = vdwg.mxu0
        %11383 = vmatpush.bf16.msra.mxu0 %v8086
        %11384 = vmatpush.bf16.msra.mxu0 %v8083
        %11385 = vmatpush.bf16.msra.mxu0 %v8080
        %11386 = vmatpush.bf16.msra.mxu0 %v8077
        %11387 = vmatpush.bf16.msra.mxu0 %v8074
        %11388 = vmatpush.bf16.msra.mxu0 %v8071
        %11389 = vmatpush.bf16.msra.mxu0 %v8068
        %11390 = vmatpush.bf16.msra.mxu0 %v8065
        %11391 = vmatmul.bf16.gmra.mxu0 %v4779
        %v11392 = vpop.f32.mrf.mxu0
        %v11393 = vadd.f32 %v11364, %v11392
        %v11394 = vpop.f32.mrf.mxu0
        %v11395 = vadd.f32 %v11366, %v11394
        %11396 = vmatmul.bf16.gmra.mxu0 %v4809
        %v11397 = vpop.f32.mrf.mxu0
        %v11398 = vadd.f32 %v11369, %v11397
        %v11399 = vpop.f32.mrf.mxu0
        %v11400 = vadd.f32 %v11371, %v11399
        %11401 = vmatmul.bf16.gmra.mxu0 %v4839
        %v11402 = vpop.f32.mrf.mxu0
        %v11403 = vadd.f32 %v11374, %v11402
        %v11404 = vpop.f32.mrf.mxu0
        %v11405 = vadd.f32 %v11376, %v11404
        %11406 = vmatmul.bf16.gmra.mxu0 %v4869
        %v11407 = vpop.f32.mrf.mxu0
        %v11408 = vadd.f32 %v11379, %v11407
        %v11409 = vpop.f32.mrf.mxu0
        %v11410 = vadd.f32 %v11381, %v11409
        %11411 = vdwg.mxu0
        %11412 = vmatpush.bf16.msra.mxu0 %v8110
        %11413 = vmatpush.bf16.msra.mxu0 %v8107
        %11414 = vmatpush.bf16.msra.mxu0 %v8104
        %11415 = vmatpush.bf16.msra.mxu0 %v8101
        %11416 = vmatpush.bf16.msra.mxu0 %v8098
        %11417 = vmatpush.bf16.msra.mxu0 %v8095
        %11418 = vmatpush.bf16.msra.mxu0 %v8092
        %11419 = vmatpush.bf16.msra.mxu0 %v8089
        %11420 = vmatmul.bf16.gmra.mxu0 %v4780
        %v11421 = vpop.f32.mrf.mxu0
        %v11422 = vadd.f32 %v11393, %v11421
        %v11423 = vpop.f32.mrf.mxu0
        %v11424 = vadd.f32 %v11395, %v11423
        %11425 = vmatmul.bf16.gmra.mxu0 %v4810
        %v11426 = vpop.f32.mrf.mxu0
        %v11427 = vadd.f32 %v11398, %v11426
        %v11428 = vpop.f32.mrf.mxu0
        %v11429 = vadd.f32 %v11400, %v11428
        %11430 = vmatmul.bf16.gmra.mxu0 %v4840
        %v11431 = vpop.f32.mrf.mxu0
        %v11432 = vadd.f32 %v11403, %v11431
        %v11433 = vpop.f32.mrf.mxu0
        %v11434 = vadd.f32 %v11405, %v11433
        %11435 = vmatmul.bf16.gmra.mxu0 %v4870
        %v11436 = vpop.f32.mrf.mxu0
        %v11437 = vadd.f32 %v11408, %v11436
        %v11438 = vpop.f32.mrf.mxu0
        %v11439 = vadd.f32 %v11410, %v11438
        %11440 = vdwg.mxu0
        %v11441 = vld [vmem:[#allocation8] sm:$0x1]
        %v11443 = vperm.slane %v11441, 0
        %v11445 = vadd.f32 %v11443, %v9682
        %v11446 = vadd.f32 %v11443, %v9684
        %v11447 = vadd.f32 %v11443, %v9687
        %v11448 = vadd.f32 %v11443, %v9689
        %v11449 = vadd.f32 %v11443, %v9692
        %v11450 = vadd.f32 %v11443, %v9694
        %v11451 = vadd.f32 %v11443, %v9697
        %v11452 = vadd.f32 %v11443, %v9699
        %11453 = vst [vmem:[%s289] sm:$0xff] %v11445
        %11454 = vst [vmem:[%s289 + $0x8] sm:$0xff] %v11446
        %11455 = vst [vmem:[%s289 + $0x10] sm:$0xff] %v11447
        %11456 = vst [vmem:[%s289 + $0x18] sm:$0xff] %v11448
        %11457 = vst [vmem:[%s289 + $0x20] sm:$0xff] %v11449
        %11458 = vst [vmem:[%s289 + $0x28] sm:$0xff] %v11450
        %11459 = vst [vmem:[%s289 + $0x30] sm:$0xff] %v11451
        %11460 = vst [vmem:[%s289 + $0x38] sm:$0xff] %v11452
        %v11461 = vld [vmem:[%s289 + $0x1] sm:$0xff]
        %v11462 = vld [vmem:[%s289 + $0x9] sm:$0xff]
        %v11463 = vld [vmem:[%s289 + $0x11] sm:$0xff]
        %v11464 = vld [vmem:[%s289 + $0x19] sm:$0xff]
        %v11465 = vld [vmem:[%s289 + $0x21] sm:$0xff]
        %v11466 = vld [vmem:[%s289 + $0x29] sm:$0xff]
        %v11467 = vld [vmem:[%s289 + $0x31] sm:$0xff]
        %v11468 = vld [vmem:[%s289 + $0x39] sm:$0x7f]
        %v11469 = vadd.f32 %v11461, %v10552
        %v11470 = vadd.f32 %v11462, %v10554
        %v11471 = vadd.f32 %v11463, %v10557
        %v11472 = vadd.f32 %v11464, %v10559
        %v11473 = vadd.f32 %v11465, %v10562
        %v11474 = vadd.f32 %v11466, %v10564
        %v11475 = vadd.f32 %v11467, %v10567
        %v11476 = vadd.f32 %v11468, %v10569
        %11477 = vst [vmem:[%s289 + $0x1] sm:$0xff] %v11469
        %11478 = vst [vmem:[%s289 + $0x9] sm:$0xff] %v11470
        %11479 = vst [vmem:[%s289 + $0x11] sm:$0xff] %v11471
        %11480 = vst [vmem:[%s289 + $0x19] sm:$0xff] %v11472
        %11481 = vst [vmem:[%s289 + $0x21] sm:$0xff] %v11473
        %11482 = vst [vmem:[%s289 + $0x29] sm:$0xff] %v11474
        %11483 = vst [vmem:[%s289 + $0x31] sm:$0xff] %v11475
        %11484 = vst [vmem:[%s289 + $0x39] sm:$0x7f] %v11476
        %v11485 = vld [vmem:[%s289 + $0x2] sm:$0xff]
        %v11486 = vld [vmem:[%s289 + $0xa] sm:$0xff]
        %v11487 = vld [vmem:[%s289 + $0x12] sm:$0xff]
        %v11488 = vld [vmem:[%s289 + $0x1a] sm:$0xff]
        %v11489 = vld [vmem:[%s289 + $0x22] sm:$0xff]
        %v11490 = vld [vmem:[%s289 + $0x2a] sm:$0xff]
        %v11491 = vld [vmem:[%s289 + $0x32] sm:$0xff]
        %v11492 = vld [vmem:[%s289 + $0x3a] sm:$0x3f]
        %v11493 = vadd.f32 %v11485, %v11422
        %v11494 = vadd.f32 %v11486, %v11424
        %v11495 = vadd.f32 %v11487, %v11427
        %v11496 = vadd.f32 %v11488, %v11429
        %v11497 = vadd.f32 %v11489, %v11432
        %v11498 = vadd.f32 %v11490, %v11434
        %v11499 = vadd.f32 %v11491, %v11437
        %v11500 = vadd.f32 %v11492, %v11439
        %11501 = vst [vmem:[%s289 + $0x2] sm:$0xff] %v11493
        %11502 = vst [vmem:[%s289 + $0xa] sm:$0xff] %v11494
        %11503 = vst [vmem:[%s289 + $0x12] sm:$0xff] %v11495
        %11504 = vst [vmem:[%s289 + $0x1a] sm:$0xff] %v11496
        %11505 = vst [vmem:[%s289 + $0x22] sm:$0xff] %v11497
        %11506 = vst [vmem:[%s289 + $0x2a] sm:$0xff] %v11498
        %11507 = vst [vmem:[%s289 + $0x32] sm:$0xff] %v11499
        %11508 = vst [vmem:[%s289 + $0x3a] sm:$0x3f] %v11500
        %s11509 = smul.u32 8, %s19
        %p11510 = scmp.lt.s32.totalorder %s11509, 15
        %s11511 = scalar_select %p11510, %s11509, 15
        %s11512 = smul.addr %s11511, 8
        %s11513 = scalar_lea.vmem %s5, %s11512
        // Predicated region
        $region57: #{model_forward.1} parent=39 // pred_check
          %p11514 = pneg %p147
        $region58: #{model_forward.1} parent=39 // pred_check_branch
          %11516 = sbr.rel (%p11514) target = $region60
        $region59: #{model_forward.1} parent=39 // pred_region
          %s11517 = smul.u32 8, %s19
        $region60: #{model_forward.1} parent=39 // pred_fallthru
          _
      $region40: #{model_forward.1} parent=5 // pred_fallthru
        _
      %p11518 = scmp.le.s32.totalorder 2, %s14
      // Predicated region
      $region61: #{model_forward.1} parent=5 // pred_check
        %p11519 = pneg %p11518
      $region62: #{model_forward.1} parent=5 // pred_check_branch
        %11521 = sbr.rel (%p11519) target = $region64
      $region63: #{model_forward.1} parent=5 // pred_region
        %s11522 = ssub.s32 %s14, 2
        // Predicated region
        $region65: #{model_forward.1} parent=63 // pred_check
          %p11523 = pneg %p153
        $region66: #{model_forward.1} parent=63 // pred_check_branch
          %11525 = sbr.rel (%p11523) target = $region68
        $region67: #{model_forward.1} parent=63 // pred_region
          %s11526 = smul.u32 8, %s20
          %p11527 = scmp.lt.s32.totalorder %s11526, 15
          %s11528 = scalar_select %p11527, %s11526, 15
          %s11529 = smul.addr %s11528, 8
          %s11530 = scalar_lea.vmem %s5, %s11529
        $region68: #{model_forward.1} parent=63 // pred_fallthru
          _
      $region64: #{model_forward.1} parent=5 // pred_fallthru
        _
    $region6: #{model_forward.1} parent=1 // loop_footer
      %s18 = sadd.s32 1, %s14
    $region7: #{model_forward.1} parent=1 // loop_footer_branch
      %13 = sbr.rel target = $region3
    $region8: #{model_forward.1} parent=1 // loop_exit
      _
    %11531 = vsyncpa [#allocation4], 1
    %s11532 = scalar_lea.sflag [#allocation4], 1
    %11533 = vsyncpa %s11532, 1
    %11534 = vsyncpa [#allocation6], 1
    %11535 = vsyncpa [#allocation9], 1

</llo_original>
